<compile_context>
chip_gen: v7x
topology: tpu7x:2x2x1
jax: 0.10.0
libtpu: 0.0.40
codegen_flags: <defaults>
</compile_context>

<pallas_src>
import functools

import jax
import jax.numpy as jnp
from jax import lax
from jax.experimental import pallas as pl
from jax.experimental.pallas import tpu as pltpu

_LN_EPS = 1e-5
_C_PAD = 128  # lane-dense logits; real classes occupy [:, :num_classes]


# ----------------------------------------------------------------------------
# Shared LayerNorm + Linear math (used by the fused epilogue and the
# standalone use_lstm=False kernel).
# ----------------------------------------------------------------------------
def _layernorm_dense(h, gamma, beta, wd, bd):
    mean = jnp.mean(h, axis=-1, keepdims=True)
    var = jnp.mean((h - mean) * (h - mean), axis=-1, keepdims=True)
    y = (h - mean) * lax.rsqrt(var + _LN_EPS)
    y = y * gamma + beta
    return jnp.dot(y.astype(jnp.bfloat16), wd,
                   preferred_element_type=jnp.float32) + bd


# ----------------------------------------------------------------------------
# Fused 4-layer bidirectional LSTM + LayerNorm + Linear kernel.
# One grid step == one bidirectional layer; the last step runs the epilogue.
# ----------------------------------------------------------------------------
def _bilstm_fused_kernel(x0_ref, wih_ref, whh_ref, b_ref, gamma_ref, beta_ref,
                         wd_ref, bd_ref, o_ref,
                         act_scr, gxf_scr, gxb_scr,
                         hf_scr, cf_scr, hb_scr, cb_scr):
    layer = pl.program_id(0)
    num_layers = pl.num_programs(0)

    n_rows, _ = act_scr.shape            # n_rows = S * Bp (time-major rows)
    bp, hdim = hf_scr.shape              # padded batch, per-direction hidden
    seq_len = n_rows // bp

    @pl.when(layer == 0)
    def _():
        act_scr[...] = x0_ref[...]

    # ---- Hoisted input projection: one big matmul per direction, bias folded.
    x_bf = act_scr[...].astype(jnp.bfloat16)
    gxf_scr[...] = (jnp.dot(x_bf, wih_ref[0, 0],
                            preferred_element_type=jnp.float32) + b_ref[0, 0])
    gxb_scr[...] = (jnp.dot(x_bf, wih_ref[0, 1],
                            preferred_element_type=jnp.float32) + b_ref[0, 1])

    hf_scr[...] = jnp.zeros_like(hf_scr)
    cf_scr[...] = jnp.zeros_like(cf_scr)
    hb_scr[...] = jnp.zeros_like(hb_scr)
    cb_scr[...] = jnp.zeros_like(cb_scr)

    def cell(gates, c_prev):
        i_g = jax.nn.sigmoid(gates[:, 0 * hdim:1 * hdim])
        f_g = jax.nn.sigmoid(gates[:, 1 * hdim:2 * hdim])
        g_g = jnp.tanh(gates[:, 2 * hdim:3 * hdim])
        o_g = jax.nn.sigmoid(gates[:, 3 * hdim:4 * hdim])
        c_new = f_g * c_prev + i_g * g_g
        return o_g * jnp.tanh(c_new), c_new

    # ---- Sequential recurrence: only h @ W_hh^T remains on the critical path.
    # fwd walks t = 0..S-1 while bwd walks S-1..0 in the same iteration.
    # act_scr (fully consumed into gxf/gxb above) is reused as the layer
    # output buffer: [:, :H] <- fwd, [:, H:] <- bwd, already in forward time
    # order, so no flips or extra HBM passes are needed between layers.
    for t in range(seq_len):
        rf = t * bp
        gates_f = gxf_scr[rf:rf + bp, :] + jnp.dot(
            hf_scr[...].astype(jnp.bfloat16), whh_ref[0, 0],
            preferred_element_type=jnp.float32)
        h_f, c_f = cell(gates_f, cf_scr[...])
        hf_scr[...] = h_f
        cf_scr[...] = c_f
        act_scr[rf:rf + bp, 0:hdim] = h_f

        rb = (seq_len - 1 - t) * bp
        gates_b = gxb_scr[rb:rb + bp, :] + jnp.dot(
            hb_scr[...].astype(jnp.bfloat16), whh_ref[0, 1],
            preferred_element_type=jnp.float32)
        h_b, c_b = cell(gates_b, cb_scr[...])
        hb_scr[...] = h_b
        cb_scr[...] = c_b
        act_scr[rb:rb + bp, hdim:2 * hdim] = h_b

    # ---- Fused epilogue on the final layer: LayerNorm + Linear, one dense
    # lane-aligned (n_rows, 128) store.
    @pl.when(layer == num_layers - 1)
    def _():
        o_ref[...] = _layernorm_dense(
            act_scr[...], gamma_ref[...], beta_ref[...],
            wd_ref[...], bd_ref[...]).astype(o_ref.dtype)


def fused_bilstm_ln_dense(x0, wih_all, whh_all, b_all, gamma, beta, wd, bd, *,
                          batch_padded):
    """x0: (S*Bp, Hfull) f32, time-major (row = s*Bp + b, batch zero-padded).
    wih_all/whh_all: (L, 2, Hin, 4H)/(L, 2, H, 4H) bf16 (pre-transposed),
    b_all: (L, 2, 1, 4H) f32 (b_ih + b_hh).  Returns (S*Bp, C_PAD) f32."""
    num_layers = wih_all.shape[0]
    n_rows, h_full = x0.shape
    h_dir = whh_all.shape[2]
    c_pad = wd.shape[1]

    def const2d(shape):
        return pl.BlockSpec(shape, lambda l: (0, 0))

    grid_spec = pltpu.PrefetchScalarGridSpec(
        num_scalar_prefetch=0,
        grid=(num_layers,),
        in_specs=[
            const2d((n_rows, h_full)),                                   # x0
            pl.BlockSpec((1, 2, h_full, 4 * h_dir), lambda l: (l, 0, 0, 0)),
            pl.BlockSpec((1, 2, h_dir, 4 * h_dir), lambda l: (l, 0, 0, 0)),
            pl.BlockSpec((1, 2, 1, 4 * h_dir), lambda l: (l, 0, 0, 0)),
            const2d((1, h_full)),                                        # gamma
            const2d((1, h_full)),                                        # beta
            const2d((h_full, c_pad)),                                    # dense W
            const2d((1, c_pad)),                                         # dense b
        ],
        out_specs=pl.BlockSpec((n_rows, c_pad), lambda l: (0, 0)),
        scratch_shapes=[
            pltpu.VMEM((n_rows, h_full), jnp.float32),       # activations
            pltpu.VMEM((n_rows, 4 * h_dir), jnp.float32),    # fwd input gates
            pltpu.VMEM((n_rows, 4 * h_dir), jnp.float32),    # bwd input gates
            pltpu.VMEM((batch_padded, h_dir), jnp.float32),  # h fwd
            pltpu.VMEM((batch_padded, h_dir), jnp.float32),  # c fwd
            pltpu.VMEM((batch_padded, h_dir), jnp.float32),  # h bwd
            pltpu.VMEM((batch_padded, h_dir), jnp.float32),  # c bwd
        ],
    )
    return pl.pallas_call(
        _bilstm_fused_kernel,
        out_shape=jax.ShapeDtypeStruct((n_rows, c_pad), jnp.float32),
        grid_spec=grid_spec,
        compiler_params=pltpu.CompilerParams(
            dimension_semantics=("arbitrary",),   # layers are sequential
            vmem_limit_bytes=32 * 1024 * 1024,
        ),
    )(x0, wih_all, whh_all, b_all, gamma, beta, wd, bd)


# ----------------------------------------------------------------------------
# Standalone LayerNorm + Linear (only used for the use_lstm=False branch).
# ----------------------------------------------------------------------------
def _ln_dense_kernel(x_ref, gamma_ref, beta_ref, wd_ref, bd_ref, o_ref):
    o_ref[...] = _layernorm_dense(
        x_ref[...], gamma_ref[...], beta_ref[...],
        wd_ref[...], bd_ref[...]).astype(o_ref.dtype)


def layernorm_dense(x2d, gamma, beta, wd, bd):
    n_rows, h_full = x2d.shape
    c_pad = wd.shape[1]
    return pl.pallas_call(
        _ln_dense_kernel,
        out_shape=jax.ShapeDtypeStruct((n_rows, c_pad), jnp.float32),
        grid_spec=pltpu.PrefetchScalarGridSpec(
            num_scalar_prefetch=0,
            grid=(1,),
            in_specs=[
                pl.BlockSpec((n_rows, h_full), lambda i: (0, 0)),
                pl.BlockSpec((1, h_full), lambda i: (0, 0)),
                pl.BlockSpec((1, h_full), lambda i: (0, 0)),
                pl.BlockSpec((h_full, c_pad), lambda i: (0, 0)),
                pl.BlockSpec((1, c_pad), lambda i: (0, 0)),
            ],
            out_specs=pl.BlockSpec((n_rows, c_pad), lambda i: (0, 0)),
        ),
    )(x2d, gamma, beta, wd, bd)


# ----------------------------------------------------------------------------
# Parameter construction (deterministic, synthetic)
# ----------------------------------------------------------------------------
def init_params(key, vocab_size, h_full, h_dir, num_layers, num_classes):
    keys = iter(jax.random.split(key, 4 + num_layers * 16))

    def u(shape, scale):
        return jax.random.uniform(next(keys), shape, jnp.float32, -scale, scale)

    params = {}
    params["embed"] = jax.random.normal(
        next(keys), (vocab_size, h_full), jnp.float32) * 0.02

    k = 1.0 / jnp.sqrt(jnp.float32(h_dir))
    layers = []
    for _ in range(num_layers):
        hin = h_full  # layer 0 input = h_full; later layers input = 2*h_dir = h_full
        layer_p = {}
        for dname in ("fwd", "bwd"):
            w_ih = u((4 * h_dir, hin), k)
            w_hh = u((4 * h_dir, h_dir), k)
            b_ih = u((4 * h_dir,), k)
            b_hh = u((4 * h_dir,), k)
            layer_p[dname] = (w_ih, w_hh, b_ih, b_hh)
        layers.append(layer_p)
    params["bilstm"] = layers

    params["ln_gamma"] = jnp.ones((h_full,), jnp.float32)
    params["ln_beta"] = jnp.zeros((h_full,), jnp.float32)
    kd = 1.0 / jnp.sqrt(jnp.float32(h_full))
    params["dense_w"] = u((num_classes, h_full), kd)
    params["dense_b"] = u((num_classes,), kd)
    return params


# ----------------------------------------------------------------------------
# Forward pass (mirrors No_encoder_model.forward, use_lstm=True, use_label=None)
# ----------------------------------------------------------------------------
@functools.partial(jax.jit, static_argnames=("use_lstm",))
def no_encoder_model_forward(params, context, mask, use_lstm=True):
    del mask  # TODO(synk): attention_mask only influences the (stand-in) BERT.
    batch, seq_len = context.shape
    hidden = jnp.take(params["embed"], context, axis=0).astype(jnp.float32)
    h_full = hidden.shape[-1]
    num_classes = params["dense_b"].shape[0]

    gamma = params["ln_gamma"].reshape(1, h_full).astype(jnp.float32)
    beta = params["ln_beta"].reshape(1, h_full).astype(jnp.float32)
    wd = jnp.zeros((h_full, _C_PAD), jnp.bfloat16).at[:, :num_classes].set(
        jnp.transpose(params["dense_w"]).astype(jnp.bfloat16))
    bd = jnp.zeros((1, _C_PAD), jnp.float32).at[0, :num_classes].set(
        params["dense_b"].astype(jnp.float32))

    if use_lstm:
        layers = params["bilstm"]
        h_dir = layers[0]["fwd"][1].shape[1]
        # Stack all 8 weight sets: (L, 2, ...) with W pre-transposed, biases folded.
        wih_all = jnp.stack(
            [jnp.stack([jnp.transpose(lp[d][0]) for d in ("fwd", "bwd")])
             for lp in layers]).astype(jnp.bfloat16)            # (L,2,Hin,4H)
        whh_all = jnp.stack(
            [jnp.stack([jnp.transpose(lp[d][1]) for d in ("fwd", "bwd")])
             for lp in layers]).astype(jnp.bfloat16)            # (L,2,H,4H)
        b_all = jnp.stack(
            [jnp.stack([(lp[d][2] + lp[d][3]).reshape(1, 4 * h_dir)
                        for d in ("fwd", "bwd")])
             for lp in layers]).astype(jnp.float32)             # (L,2,1,4H)

        batch_padded = ((batch + 7) // 8) * 8     # fill all 8 sublanes per vreg
        hidden_p = jnp.pad(hidden, ((0, batch_padded - batch), (0, 0), (0, 0)))
        x0 = jnp.transpose(hidden_p, (1, 0, 2)).reshape(
            seq_len * batch_padded, h_full)       # time-major rows: r = s*Bp + b

        out = fused_bilstm_ln_dense(x0, wih_all, whh_all, b_all,
                                    gamma, beta, wd, bd,
                                    batch_padded=batch_padded)
        logits_seq = jnp.transpose(
            out.reshape(seq_len, batch_padded, _C_PAD),
            (1, 0, 2))[:batch, :, :num_classes]
    else:
        n_rows = batch * seq_len
        n_pad = ((n_rows + 7) // 8) * 8
        x2d = jnp.pad(hidden.reshape(n_rows, h_full),
                      ((0, n_pad - n_rows), (0, 0)))
        out = layernorm_dense(x2d, gamma, beta, wd, bd)
        logits_seq = out[:n_rows, :num_classes].reshape(
            batch, seq_len, num_classes)

    outputs_loss = (logits_seq,)
    # TODO(synk): CRF loss branch (use_label is not None) is not implemented.
    return logits_seq, outputs_loss


# ----------------------------------------------------------------------------
if __name__ == "__main__":
    B, S = 2, 8
    H_FULL, H_DIR = 256, 128      # scaled-down analog of 768 / 384
    VOCAB, NUM_CLASSES, NUM_LAYERS = 32, 5, 4

    root = jax.random.PRNGKey(0)
    k_param, k_ctx = jax.random.split(root)

    params = init_params(k_param, VOCAB, H_FULL, H_DIR, NUM_LAYERS, NUM_CLASSES)
    context = jax.random.randint(k_ctx, (B, S), 0, VOCAB, dtype=jnp.int32)
    mask = jnp.ones((B, S), jnp.int32)

    logits_seq, outputs_loss = no_encoder_model_forward(params, context, mask)
    jax.block_until_ready(logits_seq)
    assert logits_seq.shape == (B, S, NUM_CLASSES)
    assert outputs_loss[0].shape == (B, S, NUM_CLASSES)
    assert bool(jnp.isfinite(logits_seq).all())
    print("KERNEL_OK")
</pallas_src>

<mosaic_0001>
module attributes {stable_mosaic.version = 11 : i64} {
  func.func @_bilstm_fused_kernel(%arg0: i32, %arg1: memref<64x256xf32, #tpu.memory_space<vmem>>, %arg2: memref<1x2x256x512xbf16, #tpu.memory_space<vmem>>, %arg3: memref<1x2x128x512xbf16, #tpu.memory_space<vmem>>, %arg4: memref<1x2x1x512xf32, #tpu.memory_space<vmem>>, %arg5: memref<1x256xf32, #tpu.memory_space<vmem>>, %arg6: memref<1x256xf32, #tpu.memory_space<vmem>>, %arg7: memref<256x128xbf16, #tpu.memory_space<vmem>>, %arg8: memref<1x128xf32, #tpu.memory_space<vmem>>, %arg9: memref<64x128xf32, #tpu.memory_space<vmem>>, %arg10: memref<64x256xf32, #tpu.memory_space<vmem>>, %arg11: memref<64x512xf32, #tpu.memory_space<vmem>>, %arg12: memref<64x512xf32, #tpu.memory_space<vmem>>, %arg13: memref<8x128xf32, #tpu.memory_space<vmem>>, %arg14: memref<8x128xf32, #tpu.memory_space<vmem>>, %arg15: memref<8x128xf32, #tpu.memory_space<vmem>>, %arg16: memref<8x128xf32, #tpu.memory_space<vmem>>) attributes {dimension_semantics = [#tpu.dimension_semantics<arbitrary>], iteration_bounds = array<i64: 4>, scalar_prefetch = 0 : i64, scratch_operands = 7 : i64, tpu.core_type = #tpu.core_type<tc>, window_params = [{pipeline_mode = #tpu.pipeline_mode<synchronous>, transform_indices = @transform_0, window_bounds = array<i64: 64, 256>}, {transform_indices = @transform_1, window_bounds = array<i64: 1, 2, 256, 512>}, {transform_indices = @transform_2, window_bounds = array<i64: 1, 2, 128, 512>}, {transform_indices = @transform_3, window_bounds = array<i64: 1, 2, 1, 512>}, {pipeline_mode = #tpu.pipeline_mode<synchronous>, transform_indices = @transform_4, window_bounds = array<i64: 1, 256>}, {pipeline_mode = #tpu.pipeline_mode<synchronous>, transform_indices = @transform_5, window_bounds = array<i64: 1, 256>}, {pipeline_mode = #tpu.pipeline_mode<synchronous>, transform_indices = @transform_6, window_bounds = array<i64: 256, 128>}, {pipeline_mode = #tpu.pipeline_mode<synchronous>, transform_indices = @transform_7, window_bounds = array<i64: 1, 128>}, {pipeline_mode = #tpu.pipeline_mode<synchronous>, transform_indices = @transform_8, window_bounds = array<i64: 64, 128>}]} {
    %c0_i32 = arith.constant 0 : i32
    %0 = arith.cmpi eq, %arg0, %c0_i32 : i32
    %1 = arith.extui %0 : i1 to i32
    %c0_i32_0 = arith.constant 0 : i32
    %2 = arith.cmpi ne, %1, %c0_i32_0 : i32
    scf.if %2 {
      %c0_347 = arith.constant 0 : index
      %c0_348 = arith.constant 0 : index
      %608 = vector.load %arg1[%c0_347, %c0_348] : memref<64x256xf32, #tpu.memory_space<vmem>>, vector<64x256xf32>
      %c0_349 = arith.constant 0 : index
      %c0_350 = arith.constant 0 : index
      %609 = vector.load %arg10[%c0_349, %c0_350] : memref<64x256xf32, #tpu.memory_space<vmem>>, vector<64x256xf32>
      tpu.vector_store %arg10[%c0_349, %c0_350], %608 {strides = array<i32>} : memref<64x256xf32, #tpu.memory_space<vmem>>, vector<64x256xf32>,
    } else {
    }
    %c0 = arith.constant 0 : index
    %c0_1 = arith.constant 0 : index
    %3 = vector.load %arg10[%c0, %c0_1] : memref<64x256xf32, #tpu.memory_space<vmem>>, vector<64x256xf32>
    %4 = arith.truncf %3 : vector<64x256xf32> to vector<64x256xbf16>
    %c0_2 = arith.constant 0 : index
    %c0_3 = arith.constant 0 : index
    %c0_4 = arith.constant 0 : index
    %c0_5 = arith.constant 0 : index
    %5 = vector.load %arg2[%c0_2, %c0_3, %c0_4, %c0_5] : memref<1x2x256x512xbf16, #tpu.memory_space<vmem>>, vector<1x1x256x512xbf16>
    %6 = vector.shape_cast %5 : vector<1x1x256x512xbf16> to vector<256x512xbf16>
    %cst = arith.constant dense<0.000000e+00> : vector<64x512xf32>
    %7 = tpu.matmul %4, %6, %cst {dimension_numbers = #tpu.dot_dimension_numbers<[1], [0], [0], [1], [0, 0, 1, 1], [], []>} : vector<64x256xbf16>, vector<256x512xbf16>, vector<64x512xf32> -> vector<64x512xf32>
    %c0_6 = arith.constant 0 : index
    %c0_7 = arith.constant 0 : index
    %c0_8 = arith.constant 0 : index
    %c0_9 = arith.constant 0 : index
    %8 = vector.load %arg4[%c0_6, %c0_7, %c0_8, %c0_9] : memref<1x2x1x512xf32, #tpu.memory_space<vmem>>, vector<1x1x1x512xf32>
    %9 = vector.shape_cast %8 : vector<1x1x1x512xf32> to vector<1x512xf32>
    %10 = vector.broadcast %9 : vector<1x512xf32> to vector<64x512xf32>
    %11 = arith.addf %7, %10 : vector<64x512xf32>
    %c0_10 = arith.constant 0 : index
    %c0_11 = arith.constant 0 : index
    %12 = vector.load %arg11[%c0_10, %c0_11] : memref<64x512xf32, #tpu.memory_space<vmem>>, vector<64x512xf32>
    tpu.vector_store %arg11[%c0_10, %c0_11], %11 {strides = array<i32>} : memref<64x512xf32, #tpu.memory_space<vmem>>, vector<64x512xf32>,
    %c0_12 = arith.constant 0 : index
    %c1 = arith.constant 1 : index
    %c0_13 = arith.constant 0 : index
    %c0_14 = arith.constant 0 : index
    %13 = vector.load %arg2[%c0_12, %c1, %c0_13, %c0_14] : memref<1x2x256x512xbf16, #tpu.memory_space<vmem>>, vector<1x1x256x512xbf16>
    %14 = vector.shape_cast %13 : vector<1x1x256x512xbf16> to vector<256x512xbf16>
    %cst_15 = arith.constant dense<0.000000e+00> : vector<64x512xf32>
    %15 = tpu.matmul %4, %14, %cst_15 {dimension_numbers = #tpu.dot_dimension_numbers<[1], [0], [0], [1], [0, 0, 1, 1], [], []>} : vector<64x256xbf16>, vector<256x512xbf16>, vector<64x512xf32> -> vector<64x512xf32>
    %c0_16 = arith.constant 0 : index
    %c1_17 = arith.constant 1 : index
    %c0_18 = arith.constant 0 : index
    %c0_19 = arith.constant 0 : index
    %16 = vector.load %arg4[%c0_16, %c1_17, %c0_18, %c0_19] : memref<1x2x1x512xf32, #tpu.memory_space<vmem>>, vector<1x1x1x512xf32>
    %17 = vector.shape_cast %16 : vector<1x1x1x512xf32> to vector<1x512xf32>
    %18 = vector.broadcast %17 : vector<1x512xf32> to vector<64x512xf32>
    %19 = arith.addf %15, %18 : vector<64x512xf32>
    %c0_20 = arith.constant 0 : index
    %c0_21 = arith.constant 0 : index
    %20 = vector.load %arg12[%c0_20, %c0_21] : memref<64x512xf32, #tpu.memory_space<vmem>>, vector<64x512xf32>
    tpu.vector_store %arg12[%c0_20, %c0_21], %19 {strides = array<i32>} : memref<64x512xf32, #tpu.memory_space<vmem>>, vector<64x512xf32>,
    %cst_22 = arith.constant 0.000000e+00 : f32
    %21 = vector.broadcast %cst_22 : f32 to vector<8x128xf32>
    %c0_23 = arith.constant 0 : index
    %c0_24 = arith.constant 0 : index
    %22 = vector.load %arg13[%c0_23, %c0_24] : memref<8x128xf32, #tpu.memory_space<vmem>>, vector<8x128xf32>
    tpu.vector_store %arg13[%c0_23, %c0_24], %21 {strides = array<i32>} : memref<8x128xf32, #tpu.memory_space<vmem>>, vector<8x128xf32>,
    %cst_25 = arith.constant 0.000000e+00 : f32
    %23 = vector.broadcast %cst_25 : f32 to vector<8x128xf32>
    %c0_26 = arith.constant 0 : index
    %c0_27 = arith.constant 0 : index
    %24 = vector.load %arg14[%c0_26, %c0_27] : memref<8x128xf32, #tpu.memory_space<vmem>>, vector<8x128xf32>
    tpu.vector_store %arg14[%c0_26, %c0_27], %23 {strides = array<i32>} : memref<8x128xf32, #tpu.memory_space<vmem>>, vector<8x128xf32>,
    %cst_28 = arith.constant 0.000000e+00 : f32
    %25 = vector.broadcast %cst_28 : f32 to vector<8x128xf32>
    %c0_29 = arith.constant 0 : index
    %c0_30 = arith.constant 0 : index
    %26 = vector.load %arg15[%c0_29, %c0_30] : memref<8x128xf32, #tpu.memory_space<vmem>>, vector<8x128xf32>
    tpu.vector_store %arg15[%c0_29, %c0_30], %25 {strides = array<i32>} : memref<8x128xf32, #tpu.memory_space<vmem>>, vector<8x128xf32>,
    %cst_31 = arith.constant 0.000000e+00 : f32
    %27 = vector.broadcast %cst_31 : f32 to vector<8x128xf32>
    %c0_32 = arith.constant 0 : index
    %c0_33 = arith.constant 0 : index
    %28 = vector.load %arg16[%c0_32, %c0_33] : memref<8x128xf32, #tpu.memory_space<vmem>>, vector<8x128xf32>
    tpu.vector_store %arg16[%c0_32, %c0_33], %27 {strides = array<i32>} : memref<8x128xf32, #tpu.memory_space<vmem>>, vector<8x128xf32>,
    %c0_34 = arith.constant 0 : index
    %c0_35 = arith.constant 0 : index
    %29 = vector.load %arg11[%c0_34, %c0_35] : memref<64x512xf32, #tpu.memory_space<vmem>>, vector<8x512xf32>
    %c0_36 = arith.constant 0 : index
    %c0_37 = arith.constant 0 : index
    %30 = vector.load %arg13[%c0_36, %c0_37] : memref<8x128xf32, #tpu.memory_space<vmem>>, vector<8x128xf32>
    %31 = arith.truncf %30 : vector<8x128xf32> to vector<8x128xbf16>
    %c0_38 = arith.constant 0 : index
    %c0_39 = arith.constant 0 : index
    %c0_40 = arith.constant 0 : index
    %c0_41 = arith.constant 0 : index
    %32 = vector.load %arg3[%c0_38, %c0_39, %c0_40, %c0_41] : memref<1x2x128x512xbf16, #tpu.memory_space<vmem>>, vector<1x1x128x512xbf16>
    %33 = vector.shape_cast %32 : vector<1x1x128x512xbf16> to vector<128x512xbf16>
    %cst_42 = arith.constant dense<0.000000e+00> : vector<8x512xf32>
    %34 = tpu.matmul %31, %33, %cst_42 {dimension_numbers = #tpu.dot_dimension_numbers<[1], [0], [0], [1], [0, 0, 1, 1], [], []>} : vector<8x128xbf16>, vector<128x512xbf16>, vector<8x512xf32> -> vector<8x512xf32>
    %35 = arith.addf %29, %34 : vector<8x512xf32>
    %c0_43 = arith.constant 0 : index
    %c0_44 = arith.constant 0 : index
    %36 = vector.load %arg14[%c0_43, %c0_44] : memref<8x128xf32, #tpu.memory_space<vmem>>, vector<8x128xf32>
    %37 = vector.extract_strided_slice %35 {offsets = [0, 0], sizes = [8, 128], strides = [1, 1]} : vector<8x512xf32> to vector<8x128xf32>
    %38 = arith.negf %37 : vector<8x128xf32>
    %39 = math.exp %38 : vector<8x128xf32>
    %cst_45 = arith.constant 1.000000e+00 : f32
    %40 = vector.broadcast %cst_45 : f32 to vector<8x128xf32>
    %41 = arith.addf %40, %39 : vector<8x128xf32>
    %42 = arith.divf %40, %41 : vector<8x128xf32>
    %43 = vector.extract_strided_slice %35 {offsets = [0, 128], sizes = [8, 128], strides = [1, 1]} : vector<8x512xf32> to vector<8x128xf32>
    %44 = arith.negf %43 : vector<8x128xf32>
    %45 = math.exp %44 : vector<8x128xf32>
    %cst_46 = arith.constant 1.000000e+00 : f32
    %46 = vector.broadcast %cst_46 : f32 to vector<8x128xf32>
    %47 = arith.addf %46, %45 : vector<8x128xf32>
    %48 = arith.divf %46, %47 : vector<8x128xf32>
    %49 = vector.extract_strided_slice %35 {offsets = [0, 256], sizes = [8, 128], strides = [1, 1]} : vector<8x512xf32> to vector<8x128xf32>
    %50 = math.tanh %49 : vector<8x128xf32>
    %51 = vector.extract_strided_slice %35 {offsets = [0, 384], sizes = [8, 128], strides = [1, 1]} : vector<8x512xf32> to vector<8x128xf32>
    %52 = arith.negf %51 : vector<8x128xf32>
    %53 = math.exp %52 : vector<8x128xf32>
    %cst_47 = arith.constant 1.000000e+00 : f32
    %54 = vector.broadcast %cst_47 : f32 to vector<8x128xf32>
    %55 = arith.addf %54, %53 : vector<8x128xf32>
    %56 = arith.divf %54, %55 : vector<8x128xf32>
    %57 = arith.mulf %48, %36 : vector<8x128xf32>
    %58 = arith.mulf %42, %50 : vector<8x128xf32>
    %59 = arith.addf %57, %58 : vector<8x128xf32>
    %60 = math.tanh %59 : vector<8x128xf32>
    %61 = arith.mulf %56, %60 : vector<8x128xf32>
    %c0_48 = arith.constant 0 : index
    %c0_49 = arith.constant 0 : index
    %62 = vector.load %arg13[%c0_48, %c0_49] : memref<8x128xf32, #tpu.memory_space<vmem>>, vector<8x128xf32>
    tpu.vector_store %arg13[%c0_48, %c0_49], %61 {strides = array<i32>} : memref<8x128xf32, #tpu.memory_space<vmem>>, vector<8x128xf32>,
    %c0_50 = arith.constant 0 : index
    %c0_51 = arith.constant 0 : index
    %63 = vector.load %arg14[%c0_50, %c0_51] : memref<8x128xf32, #tpu.memory_space<vmem>>, vector<8x128xf32>
    tpu.vector_store %arg14[%c0_50, %c0_51], %59 {strides = array<i32>} : memref<8x128xf32, #tpu.memory_space<vmem>>, vector<8x128xf32>,
    %c0_52 = arith.constant 0 : index
    %c0_53 = arith.constant 0 : index
    %64 = vector.load %arg10[%c0_52, %c0_53] : memref<64x256xf32, #tpu.memory_space<vmem>>, vector<8x128xf32>
    tpu.vector_store %arg10[%c0_52, %c0_53], %61 {strides = array<i32>} : memref<64x256xf32, #tpu.memory_space<vmem>>, vector<8x128xf32>,
    %c56 = arith.constant 56 : index
    %c0_54 = arith.constant 0 : index
    %65 = vector.load %arg12[%c56, %c0_54] : memref<64x512xf32, #tpu.memory_space<vmem>>, vector<8x512xf32>
    %c0_55 = arith.constant 0 : index
    %c0_56 = arith.constant 0 : index
    %66 = vector.load %arg15[%c0_55, %c0_56] : memref<8x128xf32, #tpu.memory_space<vmem>>, vector<8x128xf32>
    %67 = arith.truncf %66 : vector<8x128xf32> to vector<8x128xbf16>
    %c0_57 = arith.constant 0 : index
    %c1_58 = arith.constant 1 : index
    %c0_59 = arith.constant 0 : index
    %c0_60 = arith.constant 0 : index
    %68 = vector.load %arg3[%c0_57, %c1_58, %c0_59, %c0_60] : memref<1x2x128x512xbf16, #tpu.memory_space<vmem>>, vector<1x1x128x512xbf16>
    %69 = vector.shape_cast %68 : vector<1x1x128x512xbf16> to vector<128x512xbf16>
    %cst_61 = arith.constant dense<0.000000e+00> : vector<8x512xf32>
    %70 = tpu.matmul %67, %69, %cst_61 {dimension_numbers = #tpu.dot_dimension_numbers<[1], [0], [0], [1], [0, 0, 1, 1], [], []>} : vector<8x128xbf16>, vector<128x512xbf16>, vector<8x512xf32> -> vector<8x512xf32>
    %71 = arith.addf %65, %70 : vector<8x512xf32>
    %c0_62 = arith.constant 0 : index
    %c0_63 = arith.constant 0 : index
    %72 = vector.load %arg16[%c0_62, %c0_63] : memref<8x128xf32, #tpu.memory_space<vmem>>, vector<8x128xf32>
    %73 = vector.extract_strided_slice %71 {offsets = [0, 0], sizes = [8, 128], strides = [1, 1]} : vector<8x512xf32> to vector<8x128xf32>
    %74 = arith.negf %73 : vector<8x128xf32>
    %75 = math.exp %74 : vector<8x128xf32>
    %cst_64 = arith.constant 1.000000e+00 : f32
    %76 = vector.broadcast %cst_64 : f32 to vector<8x128xf32>
    %77 = arith.addf %76, %75 : vector<8x128xf32>
    %78 = arith.divf %76, %77 : vector<8x128xf32>
    %79 = vector.extract_strided_slice %71 {offsets = [0, 128], sizes = [8, 128], strides = [1, 1]} : vector<8x512xf32> to vector<8x128xf32>
    %80 = arith.negf %79 : vector<8x128xf32>
    %81 = math.exp %80 : vector<8x128xf32>
    %cst_65 = arith.constant 1.000000e+00 : f32
    %82 = vector.broadcast %cst_65 : f32 to vector<8x128xf32>
    %83 = arith.addf %82, %81 : vector<8x128xf32>
    %84 = arith.divf %82, %83 : vector<8x128xf32>
    %85 = vector.extract_strided_slice %71 {offsets = [0, 256], sizes = [8, 128], strides = [1, 1]} : vector<8x512xf32> to vector<8x128xf32>
    %86 = math.tanh %85 : vector<8x128xf32>
    %87 = vector.extract_strided_slice %71 {offsets = [0, 384], sizes = [8, 128], strides = [1, 1]} : vector<8x512xf32> to vector<8x128xf32>
    %88 = arith.negf %87 : vector<8x128xf32>
    %89 = math.exp %88 : vector<8x128xf32>
    %cst_66 = arith.constant 1.000000e+00 : f32
    %90 = vector.broadcast %cst_66 : f32 to vector<8x128xf32>
    %91 = arith.addf %90, %89 : vector<8x128xf32>
    %92 = arith.divf %90, %91 : vector<8x128xf32>
    %93 = arith.mulf %84, %72 : vector<8x128xf32>
    %94 = arith.mulf %78, %86 : vector<8x128xf32>
    %95 = arith.addf %93, %94 : vector<8x128xf32>
    %96 = math.tanh %95 : vector<8x128xf32>
    %97 = arith.mulf %92, %96 : vector<8x128xf32>
    %c0_67 = arith.constant 0 : index
    %c0_68 = arith.constant 0 : index
    %98 = vector.load %arg15[%c0_67, %c0_68] : memref<8x128xf32, #tpu.memory_space<vmem>>, vector<8x128xf32>
    tpu.vector_store %arg15[%c0_67, %c0_68], %97 {strides = array<i32>} : memref<8x128xf32, #tpu.memory_space<vmem>>, vector<8x128xf32>,
    %c0_69 = arith.constant 0 : index
    %c0_70 = arith.constant 0 : index
    %99 = vector.load %arg16[%c0_69, %c0_70] : memref<8x128xf32, #tpu.memory_space<vmem>>, vector<8x128xf32>
    tpu.vector_store %arg16[%c0_69, %c0_70], %95 {strides = array<i32>} : memref<8x128xf32, #tpu.memory_space<vmem>>, vector<8x128xf32>,
    %c56_71 = arith.constant 56 : index
    %c128 = arith.constant 128 : index
    %100 = vector.load %arg10[%c56_71, %c128] : memref<64x256xf32, #tpu.memory_space<vmem>>, vector<8x128xf32>
    tpu.vector_store %arg10[%c56_71, %c128], %97 {strides = array<i32>} : memref<64x256xf32, #tpu.memory_space<vmem>>, vector<8x128xf32>,
    %c8 = arith.constant 8 : index
    %c0_72 = arith.constant 0 : index
    %101 = vector.load %arg11[%c8, %c0_72] : memref<64x512xf32, #tpu.memory_space<vmem>>, vector<8x512xf32>
    %c0_73 = arith.constant 0 : index
    %c0_74 = arith.constant 0 : index
    %102 = vector.load %arg13[%c0_73, %c0_74] : memref<8x128xf32, #tpu.memory_space<vmem>>, vector<8x128xf32>
    %103 = arith.truncf %102 : vector<8x128xf32> to vector<8x128xbf16>
    %c0_75 = arith.constant 0 : index
    %c0_76 = arith.constant 0 : index
    %c0_77 = arith.constant 0 : index
    %c0_78 = arith.constant 0 : index
    %104 = vector.load %arg3[%c0_75, %c0_76, %c0_77, %c0_78] : memref<1x2x128x512xbf16, #tpu.memory_space<vmem>>, vector<1x1x128x512xbf16>
    %105 = vector.shape_cast %104 : vector<1x1x128x512xbf16> to vector<128x512xbf16>
    %cst_79 = arith.constant dense<0.000000e+00> : vector<8x512xf32>
    %106 = tpu.matmul %103, %105, %cst_79 {dimension_numbers = #tpu.dot_dimension_numbers<[1], [0], [0], [1], [0, 0, 1, 1], [], []>} : vector<8x128xbf16>, vector<128x512xbf16>, vector<8x512xf32> -> vector<8x512xf32>
    %107 = arith.addf %101, %106 : vector<8x512xf32>
    %c0_80 = arith.constant 0 : index
    %c0_81 = arith.constant 0 : index
    %108 = vector.load %arg14[%c0_80, %c0_81] : memref<8x128xf32, #tpu.memory_space<vmem>>, vector<8x128xf32>
    %109 = vector.extract_strided_slice %107 {offsets = [0, 0], sizes = [8, 128], strides = [1, 1]} : vector<8x512xf32> to vector<8x128xf32>
    %110 = arith.negf %109 : vector<8x128xf32>
    %111 = math.exp %110 : vector<8x128xf32>
    %cst_82 = arith.constant 1.000000e+00 : f32
    %112 = vector.broadcast %cst_82 : f32 to vector<8x128xf32>
    %113 = arith.addf %112, %111 : vector<8x128xf32>
    %114 = arith.divf %112, %113 : vector<8x128xf32>
    %115 = vector.extract_strided_slice %107 {offsets = [0, 128], sizes = [8, 128], strides = [1, 1]} : vector<8x512xf32> to vector<8x128xf32>
    %116 = arith.negf %115 : vector<8x128xf32>
    %117 = math.exp %116 : vector<8x128xf32>
    %cst_83 = arith.constant 1.000000e+00 : f32
    %118 = vector.broadcast %cst_83 : f32 to vector<8x128xf32>
    %119 = arith.addf %118, %117 : vector<8x128xf32>
    %120 = arith.divf %118, %119 : vector<8x128xf32>
    %121 = vector.extract_strided_slice %107 {offsets = [0, 256], sizes = [8, 128], strides = [1, 1]} : vector<8x512xf32> to vector<8x128xf32>
    %122 = math.tanh %121 : vector<8x128xf32>
    %123 = vector.extract_strided_slice %107 {offsets = [0, 384], sizes = [8, 128], strides = [1, 1]} : vector<8x512xf32> to vector<8x128xf32>
    %124 = arith.negf %123 : vector<8x128xf32>
    %125 = math.exp %124 : vector<8x128xf32>
    %cst_84 = arith.constant 1.000000e+00 : f32
    %126 = vector.broadcast %cst_84 : f32 to vector<8x128xf32>
    %127 = arith.addf %126, %125 : vector<8x128xf32>
    %128 = arith.divf %126, %127 : vector<8x128xf32>
    %129 = arith.mulf %120, %108 : vector<8x128xf32>
    %130 = arith.mulf %114, %122 : vector<8x128xf32>
    %131 = arith.addf %129, %130 : vector<8x128xf32>
    %132 = math.tanh %131 : vector<8x128xf32>
    %133 = arith.mulf %128, %132 : vector<8x128xf32>
    %c0_85 = arith.constant 0 : index
    %c0_86 = arith.constant 0 : index
    %134 = vector.load %arg13[%c0_85, %c0_86] : memref<8x128xf32, #tpu.memory_space<vmem>>, vector<8x128xf32>
    tpu.vector_store %arg13[%c0_85, %c0_86], %133 {strides = array<i32>} : memref<8x128xf32, #tpu.memory_space<vmem>>, vector<8x128xf32>,
    %c0_87 = arith.constant 0 : index
    %c0_88 = arith.constant 0 : index
    %135 = vector.load %arg14[%c0_87, %c0_88] : memref<8x128xf32, #tpu.memory_space<vmem>>, vector<8x128xf32>
    tpu.vector_store %arg14[%c0_87, %c0_88], %131 {strides = array<i32>} : memref<8x128xf32, #tpu.memory_space<vmem>>, vector<8x128xf32>,
    %c8_89 = arith.constant 8 : index
    %c0_90 = arith.constant 0 : index
    %136 = vector.load %arg10[%c8_89, %c0_90] : memref<64x256xf32, #tpu.memory_space<vmem>>, vector<8x128xf32>
    tpu.vector_store %arg10[%c8_89, %c0_90], %133 {strides = array<i32>} : memref<64x256xf32, #tpu.memory_space<vmem>>, vector<8x128xf32>,
    %c48 = arith.constant 48 : index
    %c0_91 = arith.constant 0 : index
    %137 = vector.load %arg12[%c48, %c0_91] : memref<64x512xf32, #tpu.memory_space<vmem>>, vector<8x512xf32>
    %c0_92 = arith.constant 0 : index
    %c0_93 = arith.constant 0 : index
    %138 = vector.load %arg15[%c0_92, %c0_93] : memref<8x128xf32, #tpu.memory_space<vmem>>, vector<8x128xf32>
    %139 = arith.truncf %138 : vector<8x128xf32> to vector<8x128xbf16>
    %c0_94 = arith.constant 0 : index
    %c1_95 = arith.constant 1 : index
    %c0_96 = arith.constant 0 : index
    %c0_97 = arith.constant 0 : index
    %140 = vector.load %arg3[%c0_94, %c1_95, %c0_96, %c0_97] : memref<1x2x128x512xbf16, #tpu.memory_space<vmem>>, vector<1x1x128x512xbf16>
    %141 = vector.shape_cast %140 : vector<1x1x128x512xbf16> to vector<128x512xbf16>
    %cst_98 = arith.constant dense<0.000000e+00> : vector<8x512xf32>
    %142 = tpu.matmul %139, %141, %cst_98 {dimension_numbers = #tpu.dot_dimension_numbers<[1], [0], [0], [1], [0, 0, 1, 1], [], []>} : vector<8x128xbf16>, vector<128x512xbf16>, vector<8x512xf32> -> vector<8x512xf32>
    %143 = arith.addf %137, %142 : vector<8x512xf32>
    %c0_99 = arith.constant 0 : index
    %c0_100 = arith.constant 0 : index
    %144 = vector.load %arg16[%c0_99, %c0_100] : memref<8x128xf32, #tpu.memory_space<vmem>>, vector<8x128xf32>
    %145 = vector.extract_strided_slice %143 {offsets = [0, 0], sizes = [8, 128], strides = [1, 1]} : vector<8x512xf32> to vector<8x128xf32>
    %146 = arith.negf %145 : vector<8x128xf32>
    %147 = math.exp %146 : vector<8x128xf32>
    %cst_101 = arith.constant 1.000000e+00 : f32
    %148 = vector.broadcast %cst_101 : f32 to vector<8x128xf32>
    %149 = arith.addf %148, %147 : vector<8x128xf32>
    %150 = arith.divf %148, %149 : vector<8x128xf32>
    %151 = vector.extract_strided_slice %143 {offsets = [0, 128], sizes = [8, 128], strides = [1, 1]} : vector<8x512xf32> to vector<8x128xf32>
    %152 = arith.negf %151 : vector<8x128xf32>
    %153 = math.exp %152 : vector<8x128xf32>
    %cst_102 = arith.constant 1.000000e+00 : f32
    %154 = vector.broadcast %cst_102 : f32 to vector<8x128xf32>
    %155 = arith.addf %154, %153 : vector<8x128xf32>
    %156 = arith.divf %154, %155 : vector<8x128xf32>
    %157 = vector.extract_strided_slice %143 {offsets = [0, 256], sizes = [8, 128], strides = [1, 1]} : vector<8x512xf32> to vector<8x128xf32>
    %158 = math.tanh %157 : vector<8x128xf32>
    %159 = vector.extract_strided_slice %143 {offsets = [0, 384], sizes = [8, 128], strides = [1, 1]} : vector<8x512xf32> to vector<8x128xf32>
    %160 = arith.negf %159 : vector<8x128xf32>
    %161 = math.exp %160 : vector<8x128xf32>
    %cst_103 = arith.constant 1.000000e+00 : f32
    %162 = vector.broadcast %cst_103 : f32 to vector<8x128xf32>
    %163 = arith.addf %162, %161 : vector<8x128xf32>
    %164 = arith.divf %162, %163 : vector<8x128xf32>
    %165 = arith.mulf %156, %144 : vector<8x128xf32>
    %166 = arith.mulf %150, %158 : vector<8x128xf32>
    %167 = arith.addf %165, %166 : vector<8x128xf32>
    %168 = math.tanh %167 : vector<8x128xf32>
    %169 = arith.mulf %164, %168 : vector<8x128xf32>
    %c0_104 = arith.constant 0 : index
    %c0_105 = arith.constant 0 : index
    %170 = vector.load %arg15[%c0_104, %c0_105] : memref<8x128xf32, #tpu.memory_space<vmem>>, vector<8x128xf32>
    tpu.vector_store %arg15[%c0_104, %c0_105], %169 {strides = array<i32>} : memref<8x128xf32, #tpu.memory_space<vmem>>, vector<8x128xf32>,
    %c0_106 = arith.constant 0 : index
    %c0_107 = arith.constant 0 : index
    %171 = vector.load %arg16[%c0_106, %c0_107] : memref<8x128xf32, #tpu.memory_space<vmem>>, vector<8x128xf32>
    tpu.vector_store %arg16[%c0_106, %c0_107], %167 {strides = array<i32>} : memref<8x128xf32, #tpu.memory_space<vmem>>, vector<8x128xf32>,
    %c48_108 = arith.constant 48 : index
    %c128_109 = arith.constant 128 : index
    %172 = vector.load %arg10[%c48_108, %c128_109] : memref<64x256xf32, #tpu.memory_space<vmem>>, vector<8x128xf32>
    tpu.vector_store %arg10[%c48_108, %c128_109], %169 {strides = array<i32>} : memref<64x256xf32, #tpu.memory_space<vmem>>, vector<8x128xf32>,
    %c16 = arith.constant 16 : index
    %c0_110 = arith.constant 0 : index
    %173 = vector.load %arg11[%c16, %c0_110] : memref<64x512xf32, #tpu.memory_space<vmem>>, vector<8x512xf32>
    %c0_111 = arith.constant 0 : index
    %c0_112 = arith.constant 0 : index
    %174 = vector.load %arg13[%c0_111, %c0_112] : memref<8x128xf32, #tpu.memory_space<vmem>>, vector<8x128xf32>
    %175 = arith.truncf %174 : vector<8x128xf32> to vector<8x128xbf16>
    %c0_113 = arith.constant 0 : index
    %c0_114 = arith.constant 0 : index
    %c0_115 = arith.constant 0 : index
    %c0_116 = arith.constant 0 : index
    %176 = vector.load %arg3[%c0_113, %c0_114, %c0_115, %c0_116] : memref<1x2x128x512xbf16, #tpu.memory_space<vmem>>, vector<1x1x128x512xbf16>
    %177 = vector.shape_cast %176 : vector<1x1x128x512xbf16> to vector<128x512xbf16>
    %cst_117 = arith.constant dense<0.000000e+00> : vector<8x512xf32>
    %178 = tpu.matmul %175, %177, %cst_117 {dimension_numbers = #tpu.dot_dimension_numbers<[1], [0], [0], [1], [0, 0, 1, 1], [], []>} : vector<8x128xbf16>, vector<128x512xbf16>, vector<8x512xf32> -> vector<8x512xf32>
    %179 = arith.addf %173, %178 : vector<8x512xf32>
    %c0_118 = arith.constant 0 : index
    %c0_119 = arith.constant 0 : index
    %180 = vector.load %arg14[%c0_118, %c0_119] : memref<8x128xf32, #tpu.memory_space<vmem>>, vector<8x128xf32>
    %181 = vector.extract_strided_slice %179 {offsets = [0, 0], sizes = [8, 128], strides = [1, 1]} : vector<8x512xf32> to vector<8x128xf32>
    %182 = arith.negf %181 : vector<8x128xf32>
    %183 = math.exp %182 : vector<8x128xf32>
    %cst_120 = arith.constant 1.000000e+00 : f32
    %184 = vector.broadcast %cst_120 : f32 to vector<8x128xf32>
    %185 = arith.addf %184, %183 : vector<8x128xf32>
    %186 = arith.divf %184, %185 : vector<8x128xf32>
    %187 = vector.extract_strided_slice %179 {offsets = [0, 128], sizes = [8, 128], strides = [1, 1]} : vector<8x512xf32> to vector<8x128xf32>
    %188 = arith.negf %187 : vector<8x128xf32>
    %189 = math.exp %188 : vector<8x128xf32>
    %cst_121 = arith.constant 1.000000e+00 : f32
    %190 = vector.broadcast %cst_121 : f32 to vector<8x128xf32>
    %191 = arith.addf %190, %189 : vector<8x128xf32>
    %192 = arith.divf %190, %191 : vector<8x128xf32>
    %193 = vector.extract_strided_slice %179 {offsets = [0, 256], sizes = [8, 128], strides = [1, 1]} : vector<8x512xf32> to vector<8x128xf32>
    %194 = math.tanh %193 : vector<8x128xf32>
    %195 = vector.extract_strided_slice %179 {offsets = [0, 384], sizes = [8, 128], strides = [1, 1]} : vector<8x512xf32> to vector<8x128xf32>
    %196 = arith.negf %195 : vector<8x128xf32>
    %197 = math.exp %196 : vector<8x128xf32>
    %cst_122 = arith.constant 1.000000e+00 : f32
    %198 = vector.broadcast %cst_122 : f32 to vector<8x128xf32>
    %199 = arith.addf %198, %197 : vector<8x128xf32>
    %200 = arith.divf %198, %199 : vector<8x128xf32>
    %201 = arith.mulf %192, %180 : vector<8x128xf32>
    %202 = arith.mulf %186, %194 : vector<8x128xf32>
    %203 = arith.addf %201, %202 : vector<8x128xf32>
    %204 = math.tanh %203 : vector<8x128xf32>
    %205 = arith.mulf %200, %204 : vector<8x128xf32>
    %c0_123 = arith.constant 0 : index
    %c0_124 = arith.constant 0 : index
    %206 = vector.load %arg13[%c0_123, %c0_124] : memref<8x128xf32, #tpu.memory_space<vmem>>, vector<8x128xf32>
    tpu.vector_store %arg13[%c0_123, %c0_124], %205 {strides = array<i32>} : memref<8x128xf32, #tpu.memory_space<vmem>>, vector<8x128xf32>,
    %c0_125 = arith.constant 0 : index
    %c0_126 = arith.constant 0 : index
    %207 = vector.load %arg14[%c0_125, %c0_126] : memref<8x128xf32, #tpu.memory_space<vmem>>, vector<8x128xf32>
    tpu.vector_store %arg14[%c0_125, %c0_126], %203 {strides = array<i32>} : memref<8x128xf32, #tpu.memory_space<vmem>>, vector<8x128xf32>,
    %c16_127 = arith.constant 16 : index
    %c0_128 = arith.constant 0 : index
    %208 = vector.load %arg10[%c16_127, %c0_128] : memref<64x256xf32, #tpu.memory_space<vmem>>, vector<8x128xf32>
    tpu.vector_store %arg10[%c16_127, %c0_128], %205 {strides = array<i32>} : memref<64x256xf32, #tpu.memory_space<vmem>>, vector<8x128xf32>,
    %c40 = arith.constant 40 : index
    %c0_129 = arith.constant 0 : index
    %209 = vector.load %arg12[%c40, %c0_129] : memref<64x512xf32, #tpu.memory_space<vmem>>, vector<8x512xf32>
    %c0_130 = arith.constant 0 : index
    %c0_131 = arith.constant 0 : index
    %210 = vector.load %arg15[%c0_130, %c0_131] : memref<8x128xf32, #tpu.memory_space<vmem>>, vector<8x128xf32>
    %211 = arith.truncf %210 : vector<8x128xf32> to vector<8x128xbf16>
    %c0_132 = arith.constant 0 : index
    %c1_133 = arith.constant 1 : index
    %c0_134 = arith.constant 0 : index
    %c0_135 = arith.constant 0 : index
    %212 = vector.load %arg3[%c0_132, %c1_133, %c0_134, %c0_135] : memref<1x2x128x512xbf16, #tpu.memory_space<vmem>>, vector<1x1x128x512xbf16>
    %213 = vector.shape_cast %212 : vector<1x1x128x512xbf16> to vector<128x512xbf16>
    %cst_136 = arith.constant dense<0.000000e+00> : vector<8x512xf32>
    %214 = tpu.matmul %211, %213, %cst_136 {dimension_numbers = #tpu.dot_dimension_numbers<[1], [0], [0], [1], [0, 0, 1, 1], [], []>} : vector<8x128xbf16>, vector<128x512xbf16>, vector<8x512xf32> -> vector<8x512xf32>
    %215 = arith.addf %209, %214 : vector<8x512xf32>
    %c0_137 = arith.constant 0 : index
    %c0_138 = arith.constant 0 : index
    %216 = vector.load %arg16[%c0_137, %c0_138] : memref<8x128xf32, #tpu.memory_space<vmem>>, vector<8x128xf32>
    %217 = vector.extract_strided_slice %215 {offsets = [0, 0], sizes = [8, 128], strides = [1, 1]} : vector<8x512xf32> to vector<8x128xf32>
    %218 = arith.negf %217 : vector<8x128xf32>
    %219 = math.exp %218 : vector<8x128xf32>
    %cst_139 = arith.constant 1.000000e+00 : f32
    %220 = vector.broadcast %cst_139 : f32 to vector<8x128xf32>
    %221 = arith.addf %220, %219 : vector<8x128xf32>
    %222 = arith.divf %220, %221 : vector<8x128xf32>
    %223 = vector.extract_strided_slice %215 {offsets = [0, 128], sizes = [8, 128], strides = [1, 1]} : vector<8x512xf32> to vector<8x128xf32>
    %224 = arith.negf %223 : vector<8x128xf32>
    %225 = math.exp %224 : vector<8x128xf32>
    %cst_140 = arith.constant 1.000000e+00 : f32
    %226 = vector.broadcast %cst_140 : f32 to vector<8x128xf32>
    %227 = arith.addf %226, %225 : vector<8x128xf32>
    %228 = arith.divf %226, %227 : vector<8x128xf32>
    %229 = vector.extract_strided_slice %215 {offsets = [0, 256], sizes = [8, 128], strides = [1, 1]} : vector<8x512xf32> to vector<8x128xf32>
    %230 = math.tanh %229 : vector<8x128xf32>
    %231 = vector.extract_strided_slice %215 {offsets = [0, 384], sizes = [8, 128], strides = [1, 1]} : vector<8x512xf32> to vector<8x128xf32>
    %232 = arith.negf %231 : vector<8x128xf32>
    %233 = math.exp %232 : vector<8x128xf32>
    %cst_141 = arith.constant 1.000000e+00 : f32
    %234 = vector.broadcast %cst_141 : f32 to vector<8x128xf32>
    %235 = arith.addf %234, %233 : vector<8x128xf32>
    %236 = arith.divf %234, %235 : vector<8x128xf32>
    %237 = arith.mulf %228, %216 : vector<8x128xf32>
    %238 = arith.mulf %222, %230 : vector<8x128xf32>
    %239 = arith.addf %237, %238 : vector<8x128xf32>
    %240 = math.tanh %239 : vector<8x128xf32>
    %241 = arith.mulf %236, %240 : vector<8x128xf32>
    %c0_142 = arith.constant 0 : index
    %c0_143 = arith.constant 0 : index
    %242 = vector.load %arg15[%c0_142, %c0_143] : memref<8x128xf32, #tpu.memory_space<vmem>>, vector<8x128xf32>
    tpu.vector_store %arg15[%c0_142, %c0_143], %241 {strides = array<i32>} : memref<8x128xf32, #tpu.memory_space<vmem>>, vector<8x128xf32>,
    %c0_144 = arith.constant 0 : index
    %c0_145 = arith.constant 0 : index
    %243 = vector.load %arg16[%c0_144, %c0_145] : memref<8x128xf32, #tpu.memory_space<vmem>>, vector<8x128xf32>
    tpu.vector_store %arg16[%c0_144, %c0_145], %239 {strides = array<i32>} : memref<8x128xf32, #tpu.memory_space<vmem>>, vector<8x128xf32>,
    %c40_146 = arith.constant 40 : index
    %c128_147 = arith.constant 128 : index
    %244 = vector.load %arg10[%c40_146, %c128_147] : memref<64x256xf32, #tpu.memory_space<vmem>>, vector<8x128xf32>
    tpu.vector_store %arg10[%c40_146, %c128_147], %241 {strides = array<i32>} : memref<64x256xf32, #tpu.memory_space<vmem>>, vector<8x128xf32>,
    %c24 = arith.constant 24 : index
    %c0_148 = arith.constant 0 : index
    %245 = vector.load %arg11[%c24, %c0_148] : memref<64x512xf32, #tpu.memory_space<vmem>>, vector<8x512xf32>
    %c0_149 = arith.constant 0 : index
    %c0_150 = arith.constant 0 : index
    %246 = vector.load %arg13[%c0_149, %c0_150] : memref<8x128xf32, #tpu.memory_space<vmem>>, vector<8x128xf32>
    %247 = arith.truncf %246 : vector<8x128xf32> to vector<8x128xbf16>
    %c0_151 = arith.constant 0 : index
    %c0_152 = arith.constant 0 : index
    %c0_153 = arith.constant 0 : index
    %c0_154 = arith.constant 0 : index
    %248 = vector.load %arg3[%c0_151, %c0_152, %c0_153, %c0_154] : memref<1x2x128x512xbf16, #tpu.memory_space<vmem>>, vector<1x1x128x512xbf16>
    %249 = vector.shape_cast %248 : vector<1x1x128x512xbf16> to vector<128x512xbf16>
    %cst_155 = arith.constant dense<0.000000e+00> : vector<8x512xf32>
    %250 = tpu.matmul %247, %249, %cst_155 {dimension_numbers = #tpu.dot_dimension_numbers<[1], [0], [0], [1], [0, 0, 1, 1], [], []>} : vector<8x128xbf16>, vector<128x512xbf16>, vector<8x512xf32> -> vector<8x512xf32>
    %251 = arith.addf %245, %250 : vector<8x512xf32>
    %c0_156 = arith.constant 0 : index
    %c0_157 = arith.constant 0 : index
    %252 = vector.load %arg14[%c0_156, %c0_157] : memref<8x128xf32, #tpu.memory_space<vmem>>, vector<8x128xf32>
    %253 = vector.extract_strided_slice %251 {offsets = [0, 0], sizes = [8, 128], strides = [1, 1]} : vector<8x512xf32> to vector<8x128xf32>
    %254 = arith.negf %253 : vector<8x128xf32>
    %255 = math.exp %254 : vector<8x128xf32>
    %cst_158 = arith.constant 1.000000e+00 : f32
    %256 = vector.broadcast %cst_158 : f32 to vector<8x128xf32>
    %257 = arith.addf %256, %255 : vector<8x128xf32>
    %258 = arith.divf %256, %257 : vector<8x128xf32>
    %259 = vector.extract_strided_slice %251 {offsets = [0, 128], sizes = [8, 128], strides = [1, 1]} : vector<8x512xf32> to vector<8x128xf32>
    %260 = arith.negf %259 : vector<8x128xf32>
    %261 = math.exp %260 : vector<8x128xf32>
    %cst_159 = arith.constant 1.000000e+00 : f32
    %262 = vector.broadcast %cst_159 : f32 to vector<8x128xf32>
    %263 = arith.addf %262, %261 : vector<8x128xf32>
    %264 = arith.divf %262, %263 : vector<8x128xf32>
    %265 = vector.extract_strided_slice %251 {offsets = [0, 256], sizes = [8, 128], strides = [1, 1]} : vector<8x512xf32> to vector<8x128xf32>
    %266 = math.tanh %265 : vector<8x128xf32>
    %267 = vector.extract_strided_slice %251 {offsets = [0, 384], sizes = [8, 128], strides = [1, 1]} : vector<8x512xf32> to vector<8x128xf32>
    %268 = arith.negf %267 : vector<8x128xf32>
    %269 = math.exp %268 : vector<8x128xf32>
    %cst_160 = arith.constant 1.000000e+00 : f32
    %270 = vector.broadcast %cst_160 : f32 to vector<8x128xf32>
    %271 = arith.addf %270, %269 : vector<8x128xf32>
    %272 = arith.divf %270, %271 : vector<8x128xf32>
    %273 = arith.mulf %264, %252 : vector<8x128xf32>
    %274 = arith.mulf %258, %266 : vector<8x128xf32>
    %275 = arith.addf %273, %274 : vector<8x128xf32>
    %276 = math.tanh %275 : vector<8x128xf32>
    %277 = arith.mulf %272, %276 : vector<8x128xf32>
    %c0_161 = arith.constant 0 : index
    %c0_162 = arith.constant 0 : index
    %278 = vector.load %arg13[%c0_161, %c0_162] : memref<8x128xf32, #tpu.memory_space<vmem>>, vector<8x128xf32>
    tpu.vector_store %arg13[%c0_161, %c0_162], %277 {strides = array<i32>} : memref<8x128xf32, #tpu.memory_space<vmem>>, vector<8x128xf32>,
    %c0_163 = arith.constant 0 : index
    %c0_164 = arith.constant 0 : index
    %279 = vector.load %arg14[%c0_163, %c0_164] : memref<8x128xf32, #tpu.memory_space<vmem>>, vector<8x128xf32>
    tpu.vector_store %arg14[%c0_163, %c0_164], %275 {strides = array<i32>} : memref<8x128xf32, #tpu.memory_space<vmem>>, vector<8x128xf32>,
    %c24_165 = arith.constant 24 : index
    %c0_166 = arith.constant 0 : index
    %280 = vector.load %arg10[%c24_165, %c0_166] : memref<64x256xf32, #tpu.memory_space<vmem>>, vector<8x128xf32>
    tpu.vector_store %arg10[%c24_165, %c0_166], %277 {strides = array<i32>} : memref<64x256xf32, #tpu.memory_space<vmem>>, vector<8x128xf32>,
    %c32 = arith.constant 32 : index
    %c0_167 = arith.constant 0 : index
    %281 = vector.load %arg12[%c32, %c0_167] : memref<64x512xf32, #tpu.memory_space<vmem>>, vector<8x512xf32>
    %c0_168 = arith.constant 0 : index
    %c0_169 = arith.constant 0 : index
    %282 = vector.load %arg15[%c0_168, %c0_169] : memref<8x128xf32, #tpu.memory_space<vmem>>, vector<8x128xf32>
    %283 = arith.truncf %282 : vector<8x128xf32> to vector<8x128xbf16>
    %c0_170 = arith.constant 0 : index
    %c1_171 = arith.constant 1 : index
    %c0_172 = arith.constant 0 : index
    %c0_173 = arith.constant 0 : index
    %284 = vector.load %arg3[%c0_170, %c1_171, %c0_172, %c0_173] : memref<1x2x128x512xbf16, #tpu.memory_space<vmem>>, vector<1x1x128x512xbf16>
    %285 = vector.shape_cast %284 : vector<1x1x128x512xbf16> to vector<128x512xbf16>
    %cst_174 = arith.constant dense<0.000000e+00> : vector<8x512xf32>
    %286 = tpu.matmul %283, %285, %cst_174 {dimension_numbers = #tpu.dot_dimension_numbers<[1], [0], [0], [1], [0, 0, 1, 1], [], []>} : vector<8x128xbf16>, vector<128x512xbf16>, vector<8x512xf32> -> vector<8x512xf32>
    %287 = arith.addf %281, %286 : vector<8x512xf32>
    %c0_175 = arith.constant 0 : index
    %c0_176 = arith.constant 0 : index
    %288 = vector.load %arg16[%c0_175, %c0_176] : memref<8x128xf32, #tpu.memory_space<vmem>>, vector<8x128xf32>
    %289 = vector.extract_strided_slice %287 {offsets = [0, 0], sizes = [8, 128], strides = [1, 1]} : vector<8x512xf32> to vector<8x128xf32>
    %290 = arith.negf %289 : vector<8x128xf32>
    %291 = math.exp %290 : vector<8x128xf32>
    %cst_177 = arith.constant 1.000000e+00 : f32
    %292 = vector.broadcast %cst_177 : f32 to vector<8x128xf32>
    %293 = arith.addf %292, %291 : vector<8x128xf32>
    %294 = arith.divf %292, %293 : vector<8x128xf32>
    %295 = vector.extract_strided_slice %287 {offsets = [0, 128], sizes = [8, 128], strides = [1, 1]} : vector<8x512xf32> to vector<8x128xf32>
    %296 = arith.negf %295 : vector<8x128xf32>
    %297 = math.exp %296 : vector<8x128xf32>
    %cst_178 = arith.constant 1.000000e+00 : f32
    %298 = vector.broadcast %cst_178 : f32 to vector<8x128xf32>
    %299 = arith.addf %298, %297 : vector<8x128xf32>
    %300 = arith.divf %298, %299 : vector<8x128xf32>
    %301 = vector.extract_strided_slice %287 {offsets = [0, 256], sizes = [8, 128], strides = [1, 1]} : vector<8x512xf32> to vector<8x128xf32>
    %302 = math.tanh %301 : vector<8x128xf32>
    %303 = vector.extract_strided_slice %287 {offsets = [0, 384], sizes = [8, 128], strides = [1, 1]} : vector<8x512xf32> to vector<8x128xf32>
    %304 = arith.negf %303 : vector<8x128xf32>
    %305 = math.exp %304 : vector<8x128xf32>
    %cst_179 = arith.constant 1.000000e+00 : f32
    %306 = vector.broadcast %cst_179 : f32 to vector<8x128xf32>
    %307 = arith.addf %306, %305 : vector<8x128xf32>
    %308 = arith.divf %306, %307 : vector<8x128xf32>
    %309 = arith.mulf %300, %288 : vector<8x128xf32>
    %310 = arith.mulf %294, %302 : vector<8x128xf32>
    %311 = arith.addf %309, %310 : vector<8x128xf32>
    %312 = math.tanh %311 : vector<8x128xf32>
    %313 = arith.mulf %308, %312 : vector<8x128xf32>
    %c0_180 = arith.constant 0 : index
    %c0_181 = arith.constant 0 : index
    %314 = vector.load %arg15[%c0_180, %c0_181] : memref<8x128xf32, #tpu.memory_space<vmem>>, vector<8x128xf32>
    tpu.vector_store %arg15[%c0_180, %c0_181], %313 {strides = array<i32>} : memref<8x128xf32, #tpu.memory_space<vmem>>, vector<8x128xf32>,
    %c0_182 = arith.constant 0 : index
    %c0_183 = arith.constant 0 : index
    %315 = vector.load %arg16[%c0_182, %c0_183] : memref<8x128xf32, #tpu.memory_space<vmem>>, vector<8x128xf32>
    tpu.vector_store %arg16[%c0_182, %c0_183], %311 {strides = array<i32>} : memref<8x128xf32, #tpu.memory_space<vmem>>, vector<8x128xf32>,
    %c32_184 = arith.constant 32 : index
    %c128_185 = arith.constant 128 : index
    %316 = vector.load %arg10[%c32_184, %c128_185] : memref<64x256xf32, #tpu.memory_space<vmem>>, vector<8x128xf32>
    tpu.vector_store %arg10[%c32_184, %c128_185], %313 {strides = array<i32>} : memref<64x256xf32, #tpu.memory_space<vmem>>, vector<8x128xf32>,
    %c32_186 = arith.constant 32 : index
    %c0_187 = arith.constant 0 : index
    %317 = vector.load %arg11[%c32_186, %c0_187] : memref<64x512xf32, #tpu.memory_space<vmem>>, vector<8x512xf32>
    %c0_188 = arith.constant 0 : index
    %c0_189 = arith.constant 0 : index
    %318 = vector.load %arg13[%c0_188, %c0_189] : memref<8x128xf32, #tpu.memory_space<vmem>>, vector<8x128xf32>
    %319 = arith.truncf %318 : vector<8x128xf32> to vector<8x128xbf16>
    %c0_190 = arith.constant 0 : index
    %c0_191 = arith.constant 0 : index
    %c0_192 = arith.constant 0 : index
    %c0_193 = arith.constant 0 : index
    %320 = vector.load %arg3[%c0_190, %c0_191, %c0_192, %c0_193] : memref<1x2x128x512xbf16, #tpu.memory_space<vmem>>, vector<1x1x128x512xbf16>
    %321 = vector.shape_cast %320 : vector<1x1x128x512xbf16> to vector<128x512xbf16>
    %cst_194 = arith.constant dense<0.000000e+00> : vector<8x512xf32>
    %322 = tpu.matmul %319, %321, %cst_194 {dimension_numbers = #tpu.dot_dimension_numbers<[1], [0], [0], [1], [0, 0, 1, 1], [], []>} : vector<8x128xbf16>, vector<128x512xbf16>, vector<8x512xf32> -> vector<8x512xf32>
    %323 = arith.addf %317, %322 : vector<8x512xf32>
    %c0_195 = arith.constant 0 : index
    %c0_196 = arith.constant 0 : index
    %324 = vector.load %arg14[%c0_195, %c0_196] : memref<8x128xf32, #tpu.memory_space<vmem>>, vector<8x128xf32>
    %325 = vector.extract_strided_slice %323 {offsets = [0, 0], sizes = [8, 128], strides = [1, 1]} : vector<8x512xf32> to vector<8x128xf32>
    %326 = arith.negf %325 : vector<8x128xf32>
    %327 = math.exp %326 : vector<8x128xf32>
    %cst_197 = arith.constant 1.000000e+00 : f32
    %328 = vector.broadcast %cst_197 : f32 to vector<8x128xf32>
    %329 = arith.addf %328, %327 : vector<8x128xf32>
    %330 = arith.divf %328, %329 : vector<8x128xf32>
    %331 = vector.extract_strided_slice %323 {offsets = [0, 128], sizes = [8, 128], strides = [1, 1]} : vector<8x512xf32> to vector<8x128xf32>
    %332 = arith.negf %331 : vector<8x128xf32>
    %333 = math.exp %332 : vector<8x128xf32>
    %cst_198 = arith.constant 1.000000e+00 : f32
    %334 = vector.broadcast %cst_198 : f32 to vector<8x128xf32>
    %335 = arith.addf %334, %333 : vector<8x128xf32>
    %336 = arith.divf %334, %335 : vector<8x128xf32>
    %337 = vector.extract_strided_slice %323 {offsets = [0, 256], sizes = [8, 128], strides = [1, 1]} : vector<8x512xf32> to vector<8x128xf32>
    %338 = math.tanh %337 : vector<8x128xf32>
    %339 = vector.extract_strided_slice %323 {offsets = [0, 384], sizes = [8, 128], strides = [1, 1]} : vector<8x512xf32> to vector<8x128xf32>
    %340 = arith.negf %339 : vector<8x128xf32>
    %341 = math.exp %340 : vector<8x128xf32>
    %cst_199 = arith.constant 1.000000e+00 : f32
    %342 = vector.broadcast %cst_199 : f32 to vector<8x128xf32>
    %343 = arith.addf %342, %341 : vector<8x128xf32>
    %344 = arith.divf %342, %343 : vector<8x128xf32>
    %345 = arith.mulf %336, %324 : vector<8x128xf32>
    %346 = arith.mulf %330, %338 : vector<8x128xf32>
    %347 = arith.addf %345, %346 : vector<8x128xf32>
    %348 = math.tanh %347 : vector<8x128xf32>
    %349 = arith.mulf %344, %348 : vector<8x128xf32>
    %c0_200 = arith.constant 0 : index
    %c0_201 = arith.constant 0 : index
    %350 = vector.load %arg13[%c0_200, %c0_201] : memref<8x128xf32, #tpu.memory_space<vmem>>, vector<8x128xf32>
    tpu.vector_store %arg13[%c0_200, %c0_201], %349 {strides = array<i32>} : memref<8x128xf32, #tpu.memory_space<vmem>>, vector<8x128xf32>,
    %c0_202 = arith.constant 0 : index
    %c0_203 = arith.constant 0 : index
    %351 = vector.load %arg14[%c0_202, %c0_203] : memref<8x128xf32, #tpu.memory_space<vmem>>, vector<8x128xf32>
    tpu.vector_store %arg14[%c0_202, %c0_203], %347 {strides = array<i32>} : memref<8x128xf32, #tpu.memory_space<vmem>>, vector<8x128xf32>,
    %c32_204 = arith.constant 32 : index
    %c0_205 = arith.constant 0 : index
    %352 = vector.load %arg10[%c32_204, %c0_205] : memref<64x256xf32, #tpu.memory_space<vmem>>, vector<8x128xf32>
    tpu.vector_store %arg10[%c32_204, %c0_205], %349 {strides = array<i32>} : memref<64x256xf32, #tpu.memory_space<vmem>>, vector<8x128xf32>,
    %c24_206 = arith.constant 24 : index
    %c0_207 = arith.constant 0 : index
    %353 = vector.load %arg12[%c24_206, %c0_207] : memref<64x512xf32, #tpu.memory_space<vmem>>, vector<8x512xf32>
    %c0_208 = arith.constant 0 : index
    %c0_209 = arith.constant 0 : index
    %354 = vector.load %arg15[%c0_208, %c0_209] : memref<8x128xf32, #tpu.memory_space<vmem>>, vector<8x128xf32>
    %355 = arith.truncf %354 : vector<8x128xf32> to vector<8x128xbf16>
    %c0_210 = arith.constant 0 : index
    %c1_211 = arith.constant 1 : index
    %c0_212 = arith.constant 0 : index
    %c0_213 = arith.constant 0 : index
    %356 = vector.load %arg3[%c0_210, %c1_211, %c0_212, %c0_213] : memref<1x2x128x512xbf16, #tpu.memory_space<vmem>>, vector<1x1x128x512xbf16>
    %357 = vector.shape_cast %356 : vector<1x1x128x512xbf16> to vector<128x512xbf16>
    %cst_214 = arith.constant dense<0.000000e+00> : vector<8x512xf32>
    %358 = tpu.matmul %355, %357, %cst_214 {dimension_numbers = #tpu.dot_dimension_numbers<[1], [0], [0], [1], [0, 0, 1, 1], [], []>} : vector<8x128xbf16>, vector<128x512xbf16>, vector<8x512xf32> -> vector<8x512xf32>
    %359 = arith.addf %353, %358 : vector<8x512xf32>
    %c0_215 = arith.constant 0 : index
    %c0_216 = arith.constant 0 : index
    %360 = vector.load %arg16[%c0_215, %c0_216] : memref<8x128xf32, #tpu.memory_space<vmem>>, vector<8x128xf32>
    %361 = vector.extract_strided_slice %359 {offsets = [0, 0], sizes = [8, 128], strides = [1, 1]} : vector<8x512xf32> to vector<8x128xf32>
    %362 = arith.negf %361 : vector<8x128xf32>
    %363 = math.exp %362 : vector<8x128xf32>
    %cst_217 = arith.constant 1.000000e+00 : f32
    %364 = vector.broadcast %cst_217 : f32 to vector<8x128xf32>
    %365 = arith.addf %364, %363 : vector<8x128xf32>
    %366 = arith.divf %364, %365 : vector<8x128xf32>
    %367 = vector.extract_strided_slice %359 {offsets = [0, 128], sizes = [8, 128], strides = [1, 1]} : vector<8x512xf32> to vector<8x128xf32>
    %368 = arith.negf %367 : vector<8x128xf32>
    %369 = math.exp %368 : vector<8x128xf32>
    %cst_218 = arith.constant 1.000000e+00 : f32
    %370 = vector.broadcast %cst_218 : f32 to vector<8x128xf32>
    %371 = arith.addf %370, %369 : vector<8x128xf32>
    %372 = arith.divf %370, %371 : vector<8x128xf32>
    %373 = vector.extract_strided_slice %359 {offsets = [0, 256], sizes = [8, 128], strides = [1, 1]} : vector<8x512xf32> to vector<8x128xf32>
    %374 = math.tanh %373 : vector<8x128xf32>
    %375 = vector.extract_strided_slice %359 {offsets = [0, 384], sizes = [8, 128], strides = [1, 1]} : vector<8x512xf32> to vector<8x128xf32>
    %376 = arith.negf %375 : vector<8x128xf32>
    %377 = math.exp %376 : vector<8x128xf32>
    %cst_219 = arith.constant 1.000000e+00 : f32
    %378 = vector.broadcast %cst_219 : f32 to vector<8x128xf32>
    %379 = arith.addf %378, %377 : vector<8x128xf32>
    %380 = arith.divf %378, %379 : vector<8x128xf32>
    %381 = arith.mulf %372, %360 : vector<8x128xf32>
    %382 = arith.mulf %366, %374 : vector<8x128xf32>
    %383 = arith.addf %381, %382 : vector<8x128xf32>
    %384 = math.tanh %383 : vector<8x128xf32>
    %385 = arith.mulf %380, %384 : vector<8x128xf32>
    %c0_220 = arith.constant 0 : index
    %c0_221 = arith.constant 0 : index
    %386 = vector.load %arg15[%c0_220, %c0_221] : memref<8x128xf32, #tpu.memory_space<vmem>>, vector<8x128xf32>
    tpu.vector_store %arg15[%c0_220, %c0_221], %385 {strides = array<i32>} : memref<8x128xf32, #tpu.memory_space<vmem>>, vector<8x128xf32>,
    %c0_222 = arith.constant 0 : index
    %c0_223 = arith.constant 0 : index
    %387 = vector.load %arg16[%c0_222, %c0_223] : memref<8x128xf32, #tpu.memory_space<vmem>>, vector<8x128xf32>
    tpu.vector_store %arg16[%c0_222, %c0_223], %383 {strides = array<i32>} : memref<8x128xf32, #tpu.memory_space<vmem>>, vector<8x128xf32>,
    %c24_224 = arith.constant 24 : index
    %c128_225 = arith.constant 128 : index
    %388 = vector.load %arg10[%c24_224, %c128_225] : memref<64x256xf32, #tpu.memory_space<vmem>>, vector<8x128xf32>
    tpu.vector_store %arg10[%c24_224, %c128_225], %385 {strides = array<i32>} : memref<64x256xf32, #tpu.memory_space<vmem>>, vector<8x128xf32>,
    %c40_226 = arith.constant 40 : index
    %c0_227 = arith.constant 0 : index
    %389 = vector.load %arg11[%c40_226, %c0_227] : memref<64x512xf32, #tpu.memory_space<vmem>>, vector<8x512xf32>
    %c0_228 = arith.constant 0 : index
    %c0_229 = arith.constant 0 : index
    %390 = vector.load %arg13[%c0_228, %c0_229] : memref<8x128xf32, #tpu.memory_space<vmem>>, vector<8x128xf32>
    %391 = arith.truncf %390 : vector<8x128xf32> to vector<8x128xbf16>
    %c0_230 = arith.constant 0 : index
    %c0_231 = arith.constant 0 : index
    %c0_232 = arith.constant 0 : index
    %c0_233 = arith.constant 0 : index
    %392 = vector.load %arg3[%c0_230, %c0_231, %c0_232, %c0_233] : memref<1x2x128x512xbf16, #tpu.memory_space<vmem>>, vector<1x1x128x512xbf16>
    %393 = vector.shape_cast %392 : vector<1x1x128x512xbf16> to vector<128x512xbf16>
    %cst_234 = arith.constant dense<0.000000e+00> : vector<8x512xf32>
    %394 = tpu.matmul %391, %393, %cst_234 {dimension_numbers = #tpu.dot_dimension_numbers<[1], [0], [0], [1], [0, 0, 1, 1], [], []>} : vector<8x128xbf16>, vector<128x512xbf16>, vector<8x512xf32> -> vector<8x512xf32>
    %395 = arith.addf %389, %394 : vector<8x512xf32>
    %c0_235 = arith.constant 0 : index
    %c0_236 = arith.constant 0 : index
    %396 = vector.load %arg14[%c0_235, %c0_236] : memref<8x128xf32, #tpu.memory_space<vmem>>, vector<8x128xf32>
    %397 = vector.extract_strided_slice %395 {offsets = [0, 0], sizes = [8, 128], strides = [1, 1]} : vector<8x512xf32> to vector<8x128xf32>
    %398 = arith.negf %397 : vector<8x128xf32>
    %399 = math.exp %398 : vector<8x128xf32>
    %cst_237 = arith.constant 1.000000e+00 : f32
    %400 = vector.broadcast %cst_237 : f32 to vector<8x128xf32>
    %401 = arith.addf %400, %399 : vector<8x128xf32>
    %402 = arith.divf %400, %401 : vector<8x128xf32>
    %403 = vector.extract_strided_slice %395 {offsets = [0, 128], sizes = [8, 128], strides = [1, 1]} : vector<8x512xf32> to vector<8x128xf32>
    %404 = arith.negf %403 : vector<8x128xf32>
    %405 = math.exp %404 : vector<8x128xf32>
    %cst_238 = arith.constant 1.000000e+00 : f32
    %406 = vector.broadcast %cst_238 : f32 to vector<8x128xf32>
    %407 = arith.addf %406, %405 : vector<8x128xf32>
    %408 = arith.divf %406, %407 : vector<8x128xf32>
    %409 = vector.extract_strided_slice %395 {offsets = [0, 256], sizes = [8, 128], strides = [1, 1]} : vector<8x512xf32> to vector<8x128xf32>
    %410 = math.tanh %409 : vector<8x128xf32>
    %411 = vector.extract_strided_slice %395 {offsets = [0, 384], sizes = [8, 128], strides = [1, 1]} : vector<8x512xf32> to vector<8x128xf32>
    %412 = arith.negf %411 : vector<8x128xf32>
    %413 = math.exp %412 : vector<8x128xf32>
    %cst_239 = arith.constant 1.000000e+00 : f32
    %414 = vector.broadcast %cst_239 : f32 to vector<8x128xf32>
    %415 = arith.addf %414, %413 : vector<8x128xf32>
    %416 = arith.divf %414, %415 : vector<8x128xf32>
    %417 = arith.mulf %408, %396 : vector<8x128xf32>
    %418 = arith.mulf %402, %410 : vector<8x128xf32>
    %419 = arith.addf %417, %418 : vector<8x128xf32>
    %420 = math.tanh %419 : vector<8x128xf32>
    %421 = arith.mulf %416, %420 : vector<8x128xf32>
    %c0_240 = arith.constant 0 : index
    %c0_241 = arith.constant 0 : index
    %422 = vector.load %arg13[%c0_240, %c0_241] : memref<8x128xf32, #tpu.memory_space<vmem>>, vector<8x128xf32>
    tpu.vector_store %arg13[%c0_240, %c0_241], %421 {strides = array<i32>} : memref<8x128xf32, #tpu.memory_space<vmem>>, vector<8x128xf32>,
    %c0_242 = arith.constant 0 : index
    %c0_243 = arith.constant 0 : index
    %423 = vector.load %arg14[%c0_242, %c0_243] : memref<8x128xf32, #tpu.memory_space<vmem>>, vector<8x128xf32>
    tpu.vector_store %arg14[%c0_242, %c0_243], %419 {strides = array<i32>} : memref<8x128xf32, #tpu.memory_space<vmem>>, vector<8x128xf32>,
    %c40_244 = arith.constant 40 : index
    %c0_245 = arith.constant 0 : index
    %424 = vector.load %arg10[%c40_244, %c0_245] : memref<64x256xf32, #tpu.memory_space<vmem>>, vector<8x128xf32>
    tpu.vector_store %arg10[%c40_244, %c0_245], %421 {strides = array<i32>} : memref<64x256xf32, #tpu.memory_space<vmem>>, vector<8x128xf32>,
    %c16_246 = arith.constant 16 : index
    %c0_247 = arith.constant 0 : index
    %425 = vector.load %arg12[%c16_246, %c0_247] : memref<64x512xf32, #tpu.memory_space<vmem>>, vector<8x512xf32>
    %c0_248 = arith.constant 0 : index
    %c0_249 = arith.constant 0 : index
    %426 = vector.load %arg15[%c0_248, %c0_249] : memref<8x128xf32, #tpu.memory_space<vmem>>, vector<8x128xf32>
    %427 = arith.truncf %426 : vector<8x128xf32> to vector<8x128xbf16>
    %c0_250 = arith.constant 0 : index
    %c1_251 = arith.constant 1 : index
    %c0_252 = arith.constant 0 : index
    %c0_253 = arith.constant 0 : index
    %428 = vector.load %arg3[%c0_250, %c1_251, %c0_252, %c0_253] : memref<1x2x128x512xbf16, #tpu.memory_space<vmem>>, vector<1x1x128x512xbf16>
    %429 = vector.shape_cast %428 : vector<1x1x128x512xbf16> to vector<128x512xbf16>
    %cst_254 = arith.constant dense<0.000000e+00> : vector<8x512xf32>
    %430 = tpu.matmul %427, %429, %cst_254 {dimension_numbers = #tpu.dot_dimension_numbers<[1], [0], [0], [1], [0, 0, 1, 1], [], []>} : vector<8x128xbf16>, vector<128x512xbf16>, vector<8x512xf32> -> vector<8x512xf32>
    %431 = arith.addf %425, %430 : vector<8x512xf32>
    %c0_255 = arith.constant 0 : index
    %c0_256 = arith.constant 0 : index
    %432 = vector.load %arg16[%c0_255, %c0_256] : memref<8x128xf32, #tpu.memory_space<vmem>>, vector<8x128xf32>
    %433 = vector.extract_strided_slice %431 {offsets = [0, 0], sizes = [8, 128], strides = [1, 1]} : vector<8x512xf32> to vector<8x128xf32>
    %434 = arith.negf %433 : vector<8x128xf32>
    %435 = math.exp %434 : vector<8x128xf32>
    %cst_257 = arith.constant 1.000000e+00 : f32
    %436 = vector.broadcast %cst_257 : f32 to vector<8x128xf32>
    %437 = arith.addf %436, %435 : vector<8x128xf32>
    %438 = arith.divf %436, %437 : vector<8x128xf32>
    %439 = vector.extract_strided_slice %431 {offsets = [0, 128], sizes = [8, 128], strides = [1, 1]} : vector<8x512xf32> to vector<8x128xf32>
    %440 = arith.negf %439 : vector<8x128xf32>
    %441 = math.exp %440 : vector<8x128xf32>
    %cst_258 = arith.constant 1.000000e+00 : f32
    %442 = vector.broadcast %cst_258 : f32 to vector<8x128xf32>
    %443 = arith.addf %442, %441 : vector<8x128xf32>
    %444 = arith.divf %442, %443 : vector<8x128xf32>
    %445 = vector.extract_strided_slice %431 {offsets = [0, 256], sizes = [8, 128], strides = [1, 1]} : vector<8x512xf32> to vector<8x128xf32>
    %446 = math.tanh %445 : vector<8x128xf32>
    %447 = vector.extract_strided_slice %431 {offsets = [0, 384], sizes = [8, 128], strides = [1, 1]} : vector<8x512xf32> to vector<8x128xf32>
    %448 = arith.negf %447 : vector<8x128xf32>
    %449 = math.exp %448 : vector<8x128xf32>
    %cst_259 = arith.constant 1.000000e+00 : f32
    %450 = vector.broadcast %cst_259 : f32 to vector<8x128xf32>
    %451 = arith.addf %450, %449 : vector<8x128xf32>
    %452 = arith.divf %450, %451 : vector<8x128xf32>
    %453 = arith.mulf %444, %432 : vector<8x128xf32>
    %454 = arith.mulf %438, %446 : vector<8x128xf32>
    %455 = arith.addf %453, %454 : vector<8x128xf32>
    %456 = math.tanh %455 : vector<8x128xf32>
    %457 = arith.mulf %452, %456 : vector<8x128xf32>
    %c0_260 = arith.constant 0 : index
    %c0_261 = arith.constant 0 : index
    %458 = vector.load %arg15[%c0_260, %c0_261] : memref<8x128xf32, #tpu.memory_space<vmem>>, vector<8x128xf32>
    tpu.vector_store %arg15[%c0_260, %c0_261], %457 {strides = array<i32>} : memref<8x128xf32, #tpu.memory_space<vmem>>, vector<8x128xf32>,
    %c0_262 = arith.constant 0 : index
    %c0_263 = arith.constant 0 : index
    %459 = vector.load %arg16[%c0_262, %c0_263] : memref<8x128xf32, #tpu.memory_space<vmem>>, vector<8x128xf32>
    tpu.vector_store %arg16[%c0_262, %c0_263], %455 {strides = array<i32>} : memref<8x128xf32, #tpu.memory_space<vmem>>, vector<8x128xf32>,
    %c16_264 = arith.constant 16 : index
    %c128_265 = arith.constant 128 : index
    %460 = vector.load %arg10[%c16_264, %c128_265] : memref<64x256xf32, #tpu.memory_space<vmem>>, vector<8x128xf32>
    tpu.vector_store %arg10[%c16_264, %c128_265], %457 {strides = array<i32>} : memref<64x256xf32, #tpu.memory_space<vmem>>, vector<8x128xf32>,
    %c48_266 = arith.constant 48 : index
    %c0_267 = arith.constant 0 : index
    %461 = vector.load %arg11[%c48_266, %c0_267] : memref<64x512xf32, #tpu.memory_space<vmem>>, vector<8x512xf32>
    %c0_268 = arith.constant 0 : index
    %c0_269 = arith.constant 0 : index
    %462 = vector.load %arg13[%c0_268, %c0_269] : memref<8x128xf32, #tpu.memory_space<vmem>>, vector<8x128xf32>
    %463 = arith.truncf %462 : vector<8x128xf32> to vector<8x128xbf16>
    %c0_270 = arith.constant 0 : index
    %c0_271 = arith.constant 0 : index
    %c0_272 = arith.constant 0 : index
    %c0_273 = arith.constant 0 : index
    %464 = vector.load %arg3[%c0_270, %c0_271, %c0_272, %c0_273] : memref<1x2x128x512xbf16, #tpu.memory_space<vmem>>, vector<1x1x128x512xbf16>
    %465 = vector.shape_cast %464 : vector<1x1x128x512xbf16> to vector<128x512xbf16>
    %cst_274 = arith.constant dense<0.000000e+00> : vector<8x512xf32>
    %466 = tpu.matmul %463, %465, %cst_274 {dimension_numbers = #tpu.dot_dimension_numbers<[1], [0], [0], [1], [0, 0, 1, 1], [], []>} : vector<8x128xbf16>, vector<128x512xbf16>, vector<8x512xf32> -> vector<8x512xf32>
    %467 = arith.addf %461, %466 : vector<8x512xf32>
    %c0_275 = arith.constant 0 : index
    %c0_276 = arith.constant 0 : index
    %468 = vector.load %arg14[%c0_275, %c0_276] : memref<8x128xf32, #tpu.memory_space<vmem>>, vector<8x128xf32>
    %469 = vector.extract_strided_slice %467 {offsets = [0, 0], sizes = [8, 128], strides = [1, 1]} : vector<8x512xf32> to vector<8x128xf32>
    %470 = arith.negf %469 : vector<8x128xf32>
    %471 = math.exp %470 : vector<8x128xf32>
    %cst_277 = arith.constant 1.000000e+00 : f32
    %472 = vector.broadcast %cst_277 : f32 to vector<8x128xf32>
    %473 = arith.addf %472, %471 : vector<8x128xf32>
    %474 = arith.divf %472, %473 : vector<8x128xf32>
    %475 = vector.extract_strided_slice %467 {offsets = [0, 128], sizes = [8, 128], strides = [1, 1]} : vector<8x512xf32> to vector<8x128xf32>
    %476 = arith.negf %475 : vector<8x128xf32>
    %477 = math.exp %476 : vector<8x128xf32>
    %cst_278 = arith.constant 1.000000e+00 : f32
    %478 = vector.broadcast %cst_278 : f32 to vector<8x128xf32>
    %479 = arith.addf %478, %477 : vector<8x128xf32>
    %480 = arith.divf %478, %479 : vector<8x128xf32>
    %481 = vector.extract_strided_slice %467 {offsets = [0, 256], sizes = [8, 128], strides = [1, 1]} : vector<8x512xf32> to vector<8x128xf32>
    %482 = math.tanh %481 : vector<8x128xf32>
    %483 = vector.extract_strided_slice %467 {offsets = [0, 384], sizes = [8, 128], strides = [1, 1]} : vector<8x512xf32> to vector<8x128xf32>
    %484 = arith.negf %483 : vector<8x128xf32>
    %485 = math.exp %484 : vector<8x128xf32>
    %cst_279 = arith.constant 1.000000e+00 : f32
    %486 = vector.broadcast %cst_279 : f32 to vector<8x128xf32>
    %487 = arith.addf %486, %485 : vector<8x128xf32>
    %488 = arith.divf %486, %487 : vector<8x128xf32>
    %489 = arith.mulf %480, %468 : vector<8x128xf32>
    %490 = arith.mulf %474, %482 : vector<8x128xf32>
    %491 = arith.addf %489, %490 : vector<8x128xf32>
    %492 = math.tanh %491 : vector<8x128xf32>
    %493 = arith.mulf %488, %492 : vector<8x128xf32>
    %c0_280 = arith.constant 0 : index
    %c0_281 = arith.constant 0 : index
    %494 = vector.load %arg13[%c0_280, %c0_281] : memref<8x128xf32, #tpu.memory_space<vmem>>, vector<8x128xf32>
    tpu.vector_store %arg13[%c0_280, %c0_281], %493 {strides = array<i32>} : memref<8x128xf32, #tpu.memory_space<vmem>>, vector<8x128xf32>,
    %c0_282 = arith.constant 0 : index
    %c0_283 = arith.constant 0 : index
    %495 = vector.load %arg14[%c0_282, %c0_283] : memref<8x128xf32, #tpu.memory_space<vmem>>, vector<8x128xf32>
    tpu.vector_store %arg14[%c0_282, %c0_283], %491 {strides = array<i32>} : memref<8x128xf32, #tpu.memory_space<vmem>>, vector<8x128xf32>,
    %c48_284 = arith.constant 48 : index
    %c0_285 = arith.constant 0 : index
    %496 = vector.load %arg10[%c48_284, %c0_285] : memref<64x256xf32, #tpu.memory_space<vmem>>, vector<8x128xf32>
    tpu.vector_store %arg10[%c48_284, %c0_285], %493 {strides = array<i32>} : memref<64x256xf32, #tpu.memory_space<vmem>>, vector<8x128xf32>,
    %c8_286 = arith.constant 8 : index
    %c0_287 = arith.constant 0 : index
    %497 = vector.load %arg12[%c8_286, %c0_287] : memref<64x512xf32, #tpu.memory_space<vmem>>, vector<8x512xf32>
    %c0_288 = arith.constant 0 : index
    %c0_289 = arith.constant 0 : index
    %498 = vector.load %arg15[%c0_288, %c0_289] : memref<8x128xf32, #tpu.memory_space<vmem>>, vector<8x128xf32>
    %499 = arith.truncf %498 : vector<8x128xf32> to vector<8x128xbf16>
    %c0_290 = arith.constant 0 : index
    %c1_291 = arith.constant 1 : index
    %c0_292 = arith.constant 0 : index
    %c0_293 = arith.constant 0 : index
    %500 = vector.load %arg3[%c0_290, %c1_291, %c0_292, %c0_293] : memref<1x2x128x512xbf16, #tpu.memory_space<vmem>>, vector<1x1x128x512xbf16>
    %501 = vector.shape_cast %500 : vector<1x1x128x512xbf16> to vector<128x512xbf16>
    %cst_294 = arith.constant dense<0.000000e+00> : vector<8x512xf32>
    %502 = tpu.matmul %499, %501, %cst_294 {dimension_numbers = #tpu.dot_dimension_numbers<[1], [0], [0], [1], [0, 0, 1, 1], [], []>} : vector<8x128xbf16>, vector<128x512xbf16>, vector<8x512xf32> -> vector<8x512xf32>
    %503 = arith.addf %497, %502 : vector<8x512xf32>
    %c0_295 = arith.constant 0 : index
    %c0_296 = arith.constant 0 : index
    %504 = vector.load %arg16[%c0_295, %c0_296] : memref<8x128xf32, #tpu.memory_space<vmem>>, vector<8x128xf32>
    %505 = vector.extract_strided_slice %503 {offsets = [0, 0], sizes = [8, 128], strides = [1, 1]} : vector<8x512xf32> to vector<8x128xf32>
    %506 = arith.negf %505 : vector<8x128xf32>
    %507 = math.exp %506 : vector<8x128xf32>
    %cst_297 = arith.constant 1.000000e+00 : f32
    %508 = vector.broadcast %cst_297 : f32 to vector<8x128xf32>
    %509 = arith.addf %508, %507 : vector<8x128xf32>
    %510 = arith.divf %508, %509 : vector<8x128xf32>
    %511 = vector.extract_strided_slice %503 {offsets = [0, 128], sizes = [8, 128], strides = [1, 1]} : vector<8x512xf32> to vector<8x128xf32>
    %512 = arith.negf %511 : vector<8x128xf32>
    %513 = math.exp %512 : vector<8x128xf32>
    %cst_298 = arith.constant 1.000000e+00 : f32
    %514 = vector.broadcast %cst_298 : f32 to vector<8x128xf32>
    %515 = arith.addf %514, %513 : vector<8x128xf32>
    %516 = arith.divf %514, %515 : vector<8x128xf32>
    %517 = vector.extract_strided_slice %503 {offsets = [0, 256], sizes = [8, 128], strides = [1, 1]} : vector<8x512xf32> to vector<8x128xf32>
    %518 = math.tanh %517 : vector<8x128xf32>
    %519 = vector.extract_strided_slice %503 {offsets = [0, 384], sizes = [8, 128], strides = [1, 1]} : vector<8x512xf32> to vector<8x128xf32>
    %520 = arith.negf %519 : vector<8x128xf32>
    %521 = math.exp %520 : vector<8x128xf32>
    %cst_299 = arith.constant 1.000000e+00 : f32
    %522 = vector.broadcast %cst_299 : f32 to vector<8x128xf32>
    %523 = arith.addf %522, %521 : vector<8x128xf32>
    %524 = arith.divf %522, %523 : vector<8x128xf32>
    %525 = arith.mulf %516, %504 : vector<8x128xf32>
    %526 = arith.mulf %510, %518 : vector<8x128xf32>
    %527 = arith.addf %525, %526 : vector<8x128xf32>
    %528 = math.tanh %527 : vector<8x128xf32>
    %529 = arith.mulf %524, %528 : vector<8x128xf32>
    %c0_300 = arith.constant 0 : index
    %c0_301 = arith.constant 0 : index
    %530 = vector.load %arg15[%c0_300, %c0_301] : memref<8x128xf32, #tpu.memory_space<vmem>>, vector<8x128xf32>
    tpu.vector_store %arg15[%c0_300, %c0_301], %529 {strides = array<i32>} : memref<8x128xf32, #tpu.memory_space<vmem>>, vector<8x128xf32>,
    %c0_302 = arith.constant 0 : index
    %c0_303 = arith.constant 0 : index
    %531 = vector.load %arg16[%c0_302, %c0_303] : memref<8x128xf32, #tpu.memory_space<vmem>>, vector<8x128xf32>
    tpu.vector_store %arg16[%c0_302, %c0_303], %527 {strides = array<i32>} : memref<8x128xf32, #tpu.memory_space<vmem>>, vector<8x128xf32>,
    %c8_304 = arith.constant 8 : index
    %c128_305 = arith.constant 128 : index
    %532 = vector.load %arg10[%c8_304, %c128_305] : memref<64x256xf32, #tpu.memory_space<vmem>>, vector<8x128xf32>
    tpu.vector_store %arg10[%c8_304, %c128_305], %529 {strides = array<i32>} : memref<64x256xf32, #tpu.memory_space<vmem>>, vector<8x128xf32>,
    %c56_306 = arith.constant 56 : index
    %c0_307 = arith.constant 0 : index
    %533 = vector.load %arg11[%c56_306, %c0_307] : memref<64x512xf32, #tpu.memory_space<vmem>>, vector<8x512xf32>
    %c0_308 = arith.constant 0 : index
    %c0_309 = arith.constant 0 : index
    %534 = vector.load %arg13[%c0_308, %c0_309] : memref<8x128xf32, #tpu.memory_space<vmem>>, vector<8x128xf32>
    %535 = arith.truncf %534 : vector<8x128xf32> to vector<8x128xbf16>
    %c0_310 = arith.constant 0 : index
    %c0_311 = arith.constant 0 : index
    %c0_312 = arith.constant 0 : index
    %c0_313 = arith.constant 0 : index
    %536 = vector.load %arg3[%c0_310, %c0_311, %c0_312, %c0_313] : memref<1x2x128x512xbf16, #tpu.memory_space<vmem>>, vector<1x1x128x512xbf16>
    %537 = vector.shape_cast %536 : vector<1x1x128x512xbf16> to vector<128x512xbf16>
    %cst_314 = arith.constant dense<0.000000e+00> : vector<8x512xf32>
    %538 = tpu.matmul %535, %537, %cst_314 {dimension_numbers = #tpu.dot_dimension_numbers<[1], [0], [0], [1], [0, 0, 1, 1], [], []>} : vector<8x128xbf16>, vector<128x512xbf16>, vector<8x512xf32> -> vector<8x512xf32>
    %539 = arith.addf %533, %538 : vector<8x512xf32>
    %c0_315 = arith.constant 0 : index
    %c0_316 = arith.constant 0 : index
    %540 = vector.load %arg14[%c0_315, %c0_316] : memref<8x128xf32, #tpu.memory_space<vmem>>, vector<8x128xf32>
    %541 = vector.extract_strided_slice %539 {offsets = [0, 0], sizes = [8, 128], strides = [1, 1]} : vector<8x512xf32> to vector<8x128xf32>
    %542 = arith.negf %541 : vector<8x128xf32>
    %543 = math.exp %542 : vector<8x128xf32>
    %cst_317 = arith.constant 1.000000e+00 : f32
    %544 = vector.broadcast %cst_317 : f32 to vector<8x128xf32>
    %545 = arith.addf %544, %543 : vector<8x128xf32>
    %546 = arith.divf %544, %545 : vector<8x128xf32>
    %547 = vector.extract_strided_slice %539 {offsets = [0, 128], sizes = [8, 128], strides = [1, 1]} : vector<8x512xf32> to vector<8x128xf32>
    %548 = arith.negf %547 : vector<8x128xf32>
    %549 = math.exp %548 : vector<8x128xf32>
    %cst_318 = arith.constant 1.000000e+00 : f32
    %550 = vector.broadcast %cst_318 : f32 to vector<8x128xf32>
    %551 = arith.addf %550, %549 : vector<8x128xf32>
    %552 = arith.divf %550, %551 : vector<8x128xf32>
    %553 = vector.extract_strided_slice %539 {offsets = [0, 256], sizes = [8, 128], strides = [1, 1]} : vector<8x512xf32> to vector<8x128xf32>
    %554 = math.tanh %553 : vector<8x128xf32>
    %555 = vector.extract_strided_slice %539 {offsets = [0, 384], sizes = [8, 128], strides = [1, 1]} : vector<8x512xf32> to vector<8x128xf32>
    %556 = arith.negf %555 : vector<8x128xf32>
    %557 = math.exp %556 : vector<8x128xf32>
    %cst_319 = arith.constant 1.000000e+00 : f32
    %558 = vector.broadcast %cst_319 : f32 to vector<8x128xf32>
    %559 = arith.addf %558, %557 : vector<8x128xf32>
    %560 = arith.divf %558, %559 : vector<8x128xf32>
    %561 = arith.mulf %552, %540 : vector<8x128xf32>
    %562 = arith.mulf %546, %554 : vector<8x128xf32>
    %563 = arith.addf %561, %562 : vector<8x128xf32>
    %564 = math.tanh %563 : vector<8x128xf32>
    %565 = arith.mulf %560, %564 : vector<8x128xf32>
    %c0_320 = arith.constant 0 : index
    %c0_321 = arith.constant 0 : index
    %566 = vector.load %arg13[%c0_320, %c0_321] : memref<8x128xf32, #tpu.memory_space<vmem>>, vector<8x128xf32>
    tpu.vector_store %arg13[%c0_320, %c0_321], %565 {strides = array<i32>} : memref<8x128xf32, #tpu.memory_space<vmem>>, vector<8x128xf32>,
    %c0_322 = arith.constant 0 : index
    %c0_323 = arith.constant 0 : index
    %567 = vector.load %arg14[%c0_322, %c0_323] : memref<8x128xf32, #tpu.memory_space<vmem>>, vector<8x128xf32>
    tpu.vector_store %arg14[%c0_322, %c0_323], %563 {strides = array<i32>} : memref<8x128xf32, #tpu.memory_space<vmem>>, vector<8x128xf32>,
    %c56_324 = arith.constant 56 : index
    %c0_325 = arith.constant 0 : index
    %568 = vector.load %arg10[%c56_324, %c0_325] : memref<64x256xf32, #tpu.memory_space<vmem>>, vector<8x128xf32>
    tpu.vector_store %arg10[%c56_324, %c0_325], %565 {strides = array<i32>} : memref<64x256xf32, #tpu.memory_space<vmem>>, vector<8x128xf32>,
    %c0_326 = arith.constant 0 : index
    %c0_327 = arith.constant 0 : index
    %569 = vector.load %arg12[%c0_326, %c0_327] : memref<64x512xf32, #tpu.memory_space<vmem>>, vector<8x512xf32>
    %c0_328 = arith.constant 0 : index
    %c0_329 = arith.constant 0 : index
    %570 = vector.load %arg15[%c0_328, %c0_329] : memref<8x128xf32, #tpu.memory_space<vmem>>, vector<8x128xf32>
    %571 = arith.truncf %570 : vector<8x128xf32> to vector<8x128xbf16>
    %c0_330 = arith.constant 0 : index
    %c1_331 = arith.constant 1 : index
    %c0_332 = arith.constant 0 : index
    %c0_333 = arith.constant 0 : index
    %572 = vector.load %arg3[%c0_330, %c1_331, %c0_332, %c0_333] : memref<1x2x128x512xbf16, #tpu.memory_space<vmem>>, vector<1x1x128x512xbf16>
    %573 = vector.shape_cast %572 : vector<1x1x128x512xbf16> to vector<128x512xbf16>
    %cst_334 = arith.constant dense<0.000000e+00> : vector<8x512xf32>
    %574 = tpu.matmul %571, %573, %cst_334 {dimension_numbers = #tpu.dot_dimension_numbers<[1], [0], [0], [1], [0, 0, 1, 1], [], []>} : vector<8x128xbf16>, vector<128x512xbf16>, vector<8x512xf32> -> vector<8x512xf32>
    %575 = arith.addf %569, %574 : vector<8x512xf32>
    %c0_335 = arith.constant 0 : index
    %c0_336 = arith.constant 0 : index
    %576 = vector.load %arg16[%c0_335, %c0_336] : memref<8x128xf32, #tpu.memory_space<vmem>>, vector<8x128xf32>
    %577 = vector.extract_strided_slice %575 {offsets = [0, 0], sizes = [8, 128], strides = [1, 1]} : vector<8x512xf32> to vector<8x128xf32>
    %578 = arith.negf %577 : vector<8x128xf32>
    %579 = math.exp %578 : vector<8x128xf32>
    %cst_337 = arith.constant 1.000000e+00 : f32
    %580 = vector.broadcast %cst_337 : f32 to vector<8x128xf32>
    %581 = arith.addf %580, %579 : vector<8x128xf32>
    %582 = arith.divf %580, %581 : vector<8x128xf32>
    %583 = vector.extract_strided_slice %575 {offsets = [0, 128], sizes = [8, 128], strides = [1, 1]} : vector<8x512xf32> to vector<8x128xf32>
    %584 = arith.negf %583 : vector<8x128xf32>
    %585 = math.exp %584 : vector<8x128xf32>
    %cst_338 = arith.constant 1.000000e+00 : f32
    %586 = vector.broadcast %cst_338 : f32 to vector<8x128xf32>
    %587 = arith.addf %586, %585 : vector<8x128xf32>
    %588 = arith.divf %586, %587 : vector<8x128xf32>
    %589 = vector.extract_strided_slice %575 {offsets = [0, 256], sizes = [8, 128], strides = [1, 1]} : vector<8x512xf32> to vector<8x128xf32>
    %590 = math.tanh %589 : vector<8x128xf32>
    %591 = vector.extract_strided_slice %575 {offsets = [0, 384], sizes = [8, 128], strides = [1, 1]} : vector<8x512xf32> to vector<8x128xf32>
    %592 = arith.negf %591 : vector<8x128xf32>
    %593 = math.exp %592 : vector<8x128xf32>
    %cst_339 = arith.constant 1.000000e+00 : f32
    %594 = vector.broadcast %cst_339 : f32 to vector<8x128xf32>
    %595 = arith.addf %594, %593 : vector<8x128xf32>
    %596 = arith.divf %594, %595 : vector<8x128xf32>
    %597 = arith.mulf %588, %576 : vector<8x128xf32>
    %598 = arith.mulf %582, %590 : vector<8x128xf32>
    %599 = arith.addf %597, %598 : vector<8x128xf32>
    %600 = math.tanh %599 : vector<8x128xf32>
    %601 = arith.mulf %596, %600 : vector<8x128xf32>
    %c0_340 = arith.constant 0 : index
    %c0_341 = arith.constant 0 : index
    %602 = vector.load %arg15[%c0_340, %c0_341] : memref<8x128xf32, #tpu.memory_space<vmem>>, vector<8x128xf32>
    tpu.vector_store %arg15[%c0_340, %c0_341], %601 {strides = array<i32>} : memref<8x128xf32, #tpu.memory_space<vmem>>, vector<8x128xf32>,
    %c0_342 = arith.constant 0 : index
    %c0_343 = arith.constant 0 : index
    %603 = vector.load %arg16[%c0_342, %c0_343] : memref<8x128xf32, #tpu.memory_space<vmem>>, vector<8x128xf32>
    tpu.vector_store %arg16[%c0_342, %c0_343], %599 {strides = array<i32>} : memref<8x128xf32, #tpu.memory_space<vmem>>, vector<8x128xf32>,
    %c0_344 = arith.constant 0 : index
    %c128_345 = arith.constant 128 : index
    %604 = vector.load %arg10[%c0_344, %c128_345] : memref<64x256xf32, #tpu.memory_space<vmem>>, vector<8x128xf32>
    tpu.vector_store %arg10[%c0_344, %c128_345], %601 {strides = array<i32>} : memref<64x256xf32, #tpu.memory_space<vmem>>, vector<8x128xf32>,
    %c3_i32 = arith.constant 3 : i32
    %605 = arith.cmpi eq, %arg0, %c3_i32 : i32
    %606 = arith.extui %605 : i1 to i32
    %c0_i32_346 = arith.constant 0 : i32
    %607 = arith.cmpi ne, %606, %c0_i32_346 : i32
    scf.if %607 {
      %c0_347 = arith.constant 0 : index
      %c0_348 = arith.constant 0 : index
      %608 = vector.load %arg10[%c0_347, %c0_348] : memref<64x256xf32, #tpu.memory_space<vmem>>, vector<64x256xf32>
      %c0_349 = arith.constant 0 : index
      %c0_350 = arith.constant 0 : index
      %609 = vector.load %arg5[%c0_349, %c0_350] : memref<1x256xf32, #tpu.memory_space<vmem>>, vector<1x256xf32>
      %c0_351 = arith.constant 0 : index
      %c0_352 = arith.constant 0 : index
      %610 = vector.load %arg6[%c0_351, %c0_352] : memref<1x256xf32, #tpu.memory_space<vmem>>, vector<1x256xf32>
      %c0_353 = arith.constant 0 : index
      %c0_354 = arith.constant 0 : index
      %611 = vector.load %arg7[%c0_353, %c0_354] : memref<256x128xbf16, #tpu.memory_space<vmem>>, vector<256x128xbf16>
      %c0_355 = arith.constant 0 : index
      %c0_356 = arith.constant 0 : index
      %612 = vector.load %arg8[%c0_355, %c0_356] : memref<1x128xf32, #tpu.memory_space<vmem>>, vector<1x128xf32>
      %cst_357 = arith.constant dense<0.000000e+00> : vector<64xf32>
      %613 = vector.multi_reduction <add>, %608, %cst_357 [1] : vector<64x256xf32> to vector<64xf32>
      %614 = vector.shape_cast %613 : vector<64xf32> to vector<64x1xf32>
      %cst_358 = arith.constant 2.560000e+02 : f32
      %615 = vector.broadcast %cst_358 : f32 to vector<64x1xf32>
      %616 = arith.divf %614, %615 : vector<64x1xf32>
      %617 = vector.broadcast %616 : vector<64x1xf32> to vector<64x256xf32>
      %618 = arith.subf %608, %617 : vector<64x256xf32>
      %619 = vector.broadcast %616 : vector<64x1xf32> to vector<64x256xf32>
      %620 = arith.subf %608, %619 : vector<64x256xf32>
      %621 = arith.mulf %618, %620 : vector<64x256xf32>
      %cst_359 = arith.constant dense<0.000000e+00> : vector<64xf32>
      %622 = vector.multi_reduction <add>, %621, %cst_359 [1] : vector<64x256xf32> to vector<64xf32>
      %623 = vector.shape_cast %622 : vector<64xf32> to vector<64x1xf32>
      %cst_360 = arith.constant 2.560000e+02 : f32
      %624 = vector.broadcast %cst_360 : f32 to vector<64x1xf32>
      %625 = arith.divf %623, %624 : vector<64x1xf32>
      %626 = vector.broadcast %616 : vector<64x1xf32> to vector<64x256xf32>
      %627 = arith.subf %608, %626 : vector<64x256xf32>
      %cst_361 = arith.constant 9.99999974E-6 : f32
      %628 = vector.broadcast %cst_361 : f32 to vector<64x1xf32>
      %629 = arith.addf %625, %628 : vector<64x1xf32>
      %630 = math.rsqrt %629 : vector<64x1xf32>
      %631 = vector.broadcast %630 : vector<64x1xf32> to vector<64x256xf32>
      %632 = arith.mulf %627, %631 : vector<64x256xf32>
      %633 = vector.broadcast %609 : vector<1x256xf32> to vector<64x256xf32>
      %634 = arith.mulf %632, %633 : vector<64x256xf32>
      %635 = vector.broadcast %610 : vector<1x256xf32> to vector<64x256xf32>
      %636 = arith.addf %634, %635 : vector<64x256xf32>
      %637 = arith.truncf %636 : vector<64x256xf32> to vector<64x256xbf16>
      %cst_362 = arith.constant dense<0.000000e+00> : vector<64x128xf32>
      %638 = tpu.matmul %637, %611, %cst_362 {dimension_numbers = #tpu.dot_dimension_numbers<[1], [0], [0], [1], [0, 0, 1, 1], [], []>} : vector<64x256xbf16>, vector<256x128xbf16>, vector<64x128xf32> -> vector<64x128xf32>
      %639 = vector.broadcast %612 : vector<1x128xf32> to vector<64x128xf32>
      %640 = arith.addf %638, %639 : vector<64x128xf32>
      %c0_363 = arith.constant 0 : index
      %c0_364 = arith.constant 0 : index
      %641 = vector.load %arg9[%c0_363, %c0_364] : memref<64x128xf32, #tpu.memory_space<vmem>>, vector<64x128xf32>
      tpu.vector_store %arg9[%c0_363, %c0_364], %640 {strides = array<i32>} : memref<64x128xf32, #tpu.memory_space<vmem>>, vector<64x128xf32>,
    } else {
    }
    return
  }
  func.func @transform_0(%arg0: i32) -> (i32, i32) {
    %c0_i32 = arith.constant 0 : i32
    %c0_i32_0 = arith.constant 0 : i32
    %c0_i32_1 = arith.constant 0 : i32
    return %c0_i32, %c0_i32_0 : i32, i32
  }
  func.func @transform_1(%arg0: i32) -> (i32, i32, i32, i32) {
    %c0_i32 = arith.constant 0 : i32
    %c0_i32_0 = arith.constant 0 : i32
    %c0_i32_1 = arith.constant 0 : i32
    %c0_i32_2 = arith.constant 0 : i32
    return %arg0, %c0_i32, %c0_i32_0, %c0_i32_1 : i32, i32, i32, i32
  }
  func.func @transform_2(%arg0: i32) -> (i32, i32, i32, i32) {
    %c0_i32 = arith.constant 0 : i32
    %c0_i32_0 = arith.constant 0 : i32
    %c0_i32_1 = arith.constant 0 : i32
    %c0_i32_2 = arith.constant 0 : i32
    return %arg0, %c0_i32, %c0_i32_0, %c0_i32_1 : i32, i32, i32, i32
  }
  func.func @transform_3(%arg0: i32) -> (i32, i32, i32, i32) {
    %c0_i32 = arith.constant 0 : i32
    %c0_i32_0 = arith.constant 0 : i32
    %c0_i32_1 = arith.constant 0 : i32
    %c0_i32_2 = arith.constant 0 : i32
    return %arg0, %c0_i32, %c0_i32_0, %c0_i32_1 : i32, i32, i32, i32
  }
  func.func @transform_4(%arg0: i32) -> (i32, i32) {
    %c0_i32 = arith.constant 0 : i32
    %c0_i32_0 = arith.constant 0 : i32
    %c0_i32_1 = arith.constant 0 : i32
    return %c0_i32, %c0_i32_0 : i32, i32
  }
  func.func @transform_5(%arg0: i32) -> (i32, i32) {
    %c0_i32 = arith.constant 0 : i32
    %c0_i32_0 = arith.constant 0 : i32
    %c0_i32_1 = arith.constant 0 : i32
    return %c0_i32, %c0_i32_0 : i32, i32
  }
  func.func @transform_6(%arg0: i32) -> (i32, i32) {
    %c0_i32 = arith.constant 0 : i32
    %c0_i32_0 = arith.constant 0 : i32
    %c0_i32_1 = arith.constant 0 : i32
    return %c0_i32, %c0_i32_0 : i32, i32
  }
  func.func @transform_7(%arg0: i32) -> (i32, i32) {
    %c0_i32 = arith.constant 0 : i32
    %c0_i32_0 = arith.constant 0 : i32
    %c0_i32_1 = arith.constant 0 : i32
    return %c0_i32, %c0_i32_0 : i32, i32
  }
  func.func @transform_8(%arg0: i32) -> (i32, i32) {
    %c0_i32 = arith.constant 0 : i32
    %c0_i32_0 = arith.constant 0 : i32
    %c0_i32_1 = arith.constant 0 : i32
    return %c0_i32, %c0_i32_0 : i32, i32
  }
}

</mosaic_0001>

<llo_original>
// kernel: no_encoder_model_forward.1
$region0: #{no_encoder_model_forward.1}
  #allocation0 [shape = 'u32[]', space=smem, size = 0x4, offset = 0x4, fixed_abs, tag = 'smem constant byte address 0x4 - core index']
  #allocation1 [shape = 'u32[144,128]{1,0:T(1,128)}', space=vmem, size = 0x12000, scoped, tag = 'internal scratch']
  #allocation2 [shape = 'f32[64,256]{1,0:T(8,128)}', space=vmem, size = 0x10000, scoped, tag = 'scratch operand']
  #allocation3 [shape = 'f32[64,512]{1,0:T(8,128)}', space=vmem, size = 0x20000, scoped, tag = 'scratch operand']
  #allocation4 [shape = 'f32[64,512]{1,0:T(8,128)}', space=vmem, size = 0x20000, scoped, tag = 'scratch operand']
  #allocation5 [shape = 'f32[8,128]{1,0:T(8,128)}', space=vmem, size = 0x1000, scoped, tag = 'scratch operand']
  #allocation6 [shape = 'f32[8,128]{1,0:T(8,128)}', space=vmem, size = 0x1000, scoped, tag = 'scratch operand']
  #allocation7 [shape = 'f32[8,128]{1,0:T(8,128)}', space=vmem, size = 0x1000, scoped, tag = 'scratch operand']
  #allocation8 [shape = 'f32[8,128]{1,0:T(8,128)}', space=vmem, size = 0x1000, scoped, tag = 'scratch operand']
  %s0 = inlined_call_operand.vmem [shape: f32[64,256], index: 0, kind: input, shape index: {}]
  %s1 = inlined_call_operand.vmem [shape: bf16[4,2,256,512], index: 1, kind: input, shape index: {}]
  %s2 = inlined_call_operand.vmem [shape: bf16[4,2,128,512], index: 2, kind: input, shape index: {}]
  %s3 = inlined_call_operand.vmem [shape: f32[4,2,1,512], index: 3, kind: input, shape index: {}]
  %s4 = inlined_call_operand.vmem [shape: f32[1,256], index: 4, kind: input, shape index: {}]
  %s5 = inlined_call_operand.vmem [shape: f32[1,256], index: 5, kind: input, shape index: {}]
  %s6 = inlined_call_operand.vmem [shape: bf16[256,128], index: 6, kind: input, shape index: {}]
  %s7 = inlined_call_operand.vmem [shape: f32[1,128], index: 7, kind: input, shape index: {}]
  %s8 = inlined_call_operand.vmem [shape: f32[64,128], index: 8, kind: output, shape index: {}]
  %s9 = sld [smem:[#allocation0]]
  $region73: #{no_encoder_model_forward.1} parent=0
    _
  %s11 = ssub.s32 1, %s9
  %s12 = scalar_select 0, %s11, %s9
  loop: start=0, step=1, limit=6
  $region2: #{no_encoder_model_forward.1} parent=0 // loop_pre_header
    _
  $region3: #{no_encoder_model_forward.1} parent=0 // loop_header
    %s14 = sphi 0, %s18
    %p15 = scmp.ge.s32.totalorder %s14, 6
    %s22 = sphi 0, %s22
    %s24 = sphi 0, %s22
    %s25 = sphi 0, %s24
    %s39 = sphi 0, %s25
    %s45 = sphi 0, %s47
    %s48 = sphi 0, %s45
    %s49 = sphi 0, %s48
    %s65 = sphi 0, %s49
    %s71 = sphi 0, %s73
    %s74 = sphi 0, %s71
    %s75 = sphi 0, %s74
    %s91 = sphi 0, %s75
    %s97 = sphi 0, %s99
    %s100 = sphi 0, %s97
    %s101 = sphi 0, %s100
    %s117 = sphi 0, %s101
    %s121 = sphi 0, %s121
    %s123 = sphi 0, %s121
    %s124 = sphi 0, %s123
    %s138 = sphi 0, %s124
    %s142 = sphi 0, %s142
    %s144 = sphi 0, %s142
    %s145 = sphi 0, %s144
    %s159 = sphi 0, %s145
    %s163 = sphi 0, %s163
    %s165 = sphi 0, %s163
    %s166 = sphi 0, %s165
    %s180 = sphi 0, %s166
    %s184 = sphi 0, %s184
    %s186 = sphi 0, %s184
    %s187 = sphi 0, %s186
    %s201 = sphi 0, %s187
    %s205 = sphi 0, %s205
    %s207 = sphi 0, %s205
    %s208 = sphi 0, %s207
    %s222 = sphi 0, %s208
  $region4: #{no_encoder_model_forward.1} parent=0 // loop_header_branch
    %17 = sbr.rel (%p15) target = $region8
  $region5: #{no_encoder_model_forward.1} parent=0 // loop_body
    %s19 = ssub.s32 %s14, 1
    %s20 = ssub.s32 %s14, 2
    %s21 = sadd.s32 %s14, 1
    %s23 = sadd.s32 %s22, 1
    %p26 = scmp.eq.s32.totalorder %s14, 3
    %p27 = scmp.ne.s32.totalorder %s22, %s24
    %p28 = scmp.eq.s32.totalorder %s14, 0
    %p29 = por %p27, %p28
    %p30 = scmp.ne.s32.totalorder %s22, %s24
    %p31 = scmp.eq.s32.totalorder %s19, 3
    %p32 = por %p30, %p31
    %p33 = scmp.ne.s32.totalorder %s24, %s25
    %p34 = scmp.eq.s32.totalorder %s19, 0
    %p35 = por %p33, %p34
    %p36 = scmp.ne.s32.totalorder %s24, %s25
    %p37 = scmp.eq.s32.totalorder %s20, 3
    %p38 = por %p36, %p37
    %p40 = scmp.ne.s32.totalorder %s25, %s39
    %p41 = scmp.eq.s32.totalorder %s20, 0
    %p42 = por %p40, %p41
    %s43 = ssub.s32 %s14, %s21
    %p44 = scmp.eq.s32.totalorder %s43, 0
    %s46 = sadd.s32 %s45, 1
    %s47 = scalar_select %p44, %s45, %s46
    %p50 = pneg %p44
    %p51 = scmp.eq.s32.totalorder %s14, 3
    %p52 = por %p50, %p51
    %p53 = scmp.ne.s32.totalorder %s45, %s48
    %p54 = scmp.eq.s32.totalorder %s14, 0
    %p55 = por %p53, %p54
    %p56 = scmp.ne.s32.totalorder %s45, %s48
    %p57 = scmp.eq.s32.totalorder %s19, 3
    %p58 = por %p56, %p57
    %p59 = scmp.ne.s32.totalorder %s48, %s49
    %p60 = scmp.eq.s32.totalorder %s19, 0
    %p61 = por %p59, %p60
    %p62 = scmp.ne.s32.totalorder %s48, %s49
    %p63 = scmp.eq.s32.totalorder %s20, 3
    %p64 = por %p62, %p63
    %p66 = scmp.ne.s32.totalorder %s49, %s65
    %p67 = scmp.eq.s32.totalorder %s20, 0
    %p68 = por %p66, %p67
    %s69 = ssub.s32 %s14, %s21
    %p70 = scmp.eq.s32.totalorder %s69, 0
    %s72 = sadd.s32 %s71, 1
    %s73 = scalar_select %p70, %s71, %s72
    %p76 = pneg %p70
    %p77 = scmp.eq.s32.totalorder %s14, 3
    %p78 = por %p76, %p77
    %p79 = scmp.ne.s32.totalorder %s71, %s74
    %p80 = scmp.eq.s32.totalorder %s14, 0
    %p81 = por %p79, %p80
    %p82 = scmp.ne.s32.totalorder %s71, %s74
    %p83 = scmp.eq.s32.totalorder %s19, 3
    %p84 = por %p82, %p83
    %p85 = scmp.ne.s32.totalorder %s74, %s75
    %p86 = scmp.eq.s32.totalorder %s19, 0
    %p87 = por %p85, %p86
    %p88 = scmp.ne.s32.totalorder %s74, %s75
    %p89 = scmp.eq.s32.totalorder %s20, 3
    %p90 = por %p88, %p89
    %p92 = scmp.ne.s32.totalorder %s75, %s91
    %p93 = scmp.eq.s32.totalorder %s20, 0
    %p94 = por %p92, %p93
    %s95 = ssub.s32 %s14, %s21
    %p96 = scmp.eq.s32.totalorder %s95, 0
    %s98 = sadd.s32 %s97, 1
    %s99 = scalar_select %p96, %s97, %s98
    %p102 = pneg %p96
    %p103 = scmp.eq.s32.totalorder %s14, 3
    %p104 = por %p102, %p103
    %p105 = scmp.ne.s32.totalorder %s97, %s100
    %p106 = scmp.eq.s32.totalorder %s14, 0
    %p107 = por %p105, %p106
    %p108 = scmp.ne.s32.totalorder %s97, %s100
    %p109 = scmp.eq.s32.totalorder %s19, 3
    %p110 = por %p108, %p109
    %p111 = scmp.ne.s32.totalorder %s100, %s101
    %p112 = scmp.eq.s32.totalorder %s19, 0
    %p113 = por %p111, %p112
    %p114 = scmp.ne.s32.totalorder %s100, %s101
    %p115 = scmp.eq.s32.totalorder %s20, 3
    %p116 = por %p114, %p115
    %p118 = scmp.ne.s32.totalorder %s101, %s117
    %p119 = scmp.eq.s32.totalorder %s20, 0
    %p120 = por %p118, %p119
    %s122 = sadd.s32 %s121, 1
    %p125 = scmp.eq.s32.totalorder %s14, 3
    %p126 = scmp.ne.s32.totalorder %s121, %s123
    %p127 = scmp.eq.s32.totalorder %s14, 0
    %p128 = por %p126, %p127
    %p129 = scmp.ne.s32.totalorder %s121, %s123
    %p130 = scmp.eq.s32.totalorder %s19, 3
    %p131 = por %p129, %p130
    %p132 = scmp.ne.s32.totalorder %s123, %s124
    %p133 = scmp.eq.s32.totalorder %s19, 0
    %p134 = por %p132, %p133
    %p135 = scmp.ne.s32.totalorder %s123, %s124
    %p136 = scmp.eq.s32.totalorder %s20, 3
    %p137 = por %p135, %p136
    %p139 = scmp.ne.s32.totalorder %s124, %s138
    %p140 = scmp.eq.s32.totalorder %s20, 0
    %p141 = por %p139, %p140
    %s143 = sadd.s32 %s142, 1
    %p146 = scmp.eq.s32.totalorder %s14, 3
    %p147 = scmp.ne.s32.totalorder %s142, %s144
    %p148 = scmp.eq.s32.totalorder %s14, 0
    %p149 = por %p147, %p148
    %p150 = scmp.ne.s32.totalorder %s142, %s144
    %p151 = scmp.eq.s32.totalorder %s19, 3
    %p152 = por %p150, %p151
    %p153 = scmp.ne.s32.totalorder %s144, %s145
    %p154 = scmp.eq.s32.totalorder %s19, 0
    %p155 = por %p153, %p154
    %p156 = scmp.ne.s32.totalorder %s144, %s145
    %p157 = scmp.eq.s32.totalorder %s20, 3
    %p158 = por %p156, %p157
    %p160 = scmp.ne.s32.totalorder %s145, %s159
    %p161 = scmp.eq.s32.totalorder %s20, 0
    %p162 = por %p160, %p161
    %s164 = sadd.s32 %s163, 1
    %p167 = scmp.eq.s32.totalorder %s14, 3
    %p168 = scmp.ne.s32.totalorder %s163, %s165
    %p169 = scmp.eq.s32.totalorder %s14, 0
    %p170 = por %p168, %p169
    %p171 = scmp.ne.s32.totalorder %s163, %s165
    %p172 = scmp.eq.s32.totalorder %s19, 3
    %p173 = por %p171, %p172
    %p174 = scmp.ne.s32.totalorder %s165, %s166
    %p175 = scmp.eq.s32.totalorder %s19, 0
    %p176 = por %p174, %p175
    %p177 = scmp.ne.s32.totalorder %s165, %s166
    %p178 = scmp.eq.s32.totalorder %s20, 3
    %p179 = por %p177, %p178
    %p181 = scmp.ne.s32.totalorder %s166, %s180
    %p182 = scmp.eq.s32.totalorder %s20, 0
    %p183 = por %p181, %p182
    %s185 = sadd.s32 %s184, 1
    %p188 = scmp.eq.s32.totalorder %s14, 3
    %p189 = scmp.ne.s32.totalorder %s184, %s186
    %p190 = scmp.eq.s32.totalorder %s14, 0
    %p191 = por %p189, %p190
    %p192 = scmp.ne.s32.totalorder %s184, %s186
    %p193 = scmp.eq.s32.totalorder %s19, 3
    %p194 = por %p192, %p193
    %p195 = scmp.ne.s32.totalorder %s186, %s187
    %p196 = scmp.eq.s32.totalorder %s19, 0
    %p197 = por %p195, %p196
    %p198 = scmp.ne.s32.totalorder %s186, %s187
    %p199 = scmp.eq.s32.totalorder %s20, 3
    %p200 = por %p198, %p199
    %p202 = scmp.ne.s32.totalorder %s187, %s201
    %p203 = scmp.eq.s32.totalorder %s20, 0
    %p204 = por %p202, %p203
    %s206 = sadd.s32 %s205, 1
    %p209 = scmp.eq.s32.totalorder %s14, 3
    %p210 = scmp.ne.s32.totalorder %s205, %s207
    %p211 = scmp.eq.s32.totalorder %s14, 0
    %p212 = por %p210, %p211
    %p213 = scmp.ne.s32.totalorder %s205, %s207
    %p214 = scmp.eq.s32.totalorder %s19, 3
    %p215 = por %p213, %p214
    %p216 = scmp.ne.s32.totalorder %s207, %s208
    %p217 = scmp.eq.s32.totalorder %s19, 0
    %p218 = por %p216, %p217
    %p219 = scmp.ne.s32.totalorder %s207, %s208
    %p220 = scmp.eq.s32.totalorder %s20, 3
    %p221 = por %p219, %p220
    %p223 = scmp.ne.s32.totalorder %s208, %s222
    %p224 = scmp.eq.s32.totalorder %s20, 0
    %p225 = por %p223, %p224
    %p226 = scmp.le.s32.totalorder 1, %s14
    %p227 = scmp.lt.s32.totalorder %s14, 5
    %p228 = pnand %p226, %p227
    %p229 = pneg %p228
    // Predicated region
    $region9: #{no_encoder_model_forward.1} parent=5 // pred_check
      _
    $region10: #{no_encoder_model_forward.1} parent=5 // pred_check_branch
      %231 = sbr.rel (%p228) target = $region12
    $region11: #{no_encoder_model_forward.1} parent=5 // pred_region
      %s232 = ssub.s32 %s14, 1
      // Predicated region
      $region13: #{no_encoder_model_forward.1} parent=11 // pred_check
        %p233 = pneg %p35
      $region14: #{no_encoder_model_forward.1} parent=11 // pred_check_branch
        %235 = sbr.rel (%p233) target = $region16
      $region15: #{no_encoder_model_forward.1} parent=11 // pred_region
        _
      $region16: #{no_encoder_model_forward.1} parent=11 // pred_fallthru
        _
      // Predicated region
      $region17: #{no_encoder_model_forward.1} parent=11 // pred_check
        %p236 = pneg %p134
      $region18: #{no_encoder_model_forward.1} parent=11 // pred_check_branch
        %238 = sbr.rel (%p236) target = $region20
      $region19: #{no_encoder_model_forward.1} parent=11 // pred_region
        _
      $region20: #{no_encoder_model_forward.1} parent=11 // pred_fallthru
        _
      // Predicated region
      $region21: #{no_encoder_model_forward.1} parent=11 // pred_check
        %p239 = pneg %p155
      $region22: #{no_encoder_model_forward.1} parent=11 // pred_check_branch
        %241 = sbr.rel (%p239) target = $region24
      $region23: #{no_encoder_model_forward.1} parent=11 // pred_region
        _
      $region24: #{no_encoder_model_forward.1} parent=11 // pred_fallthru
        _
      // Predicated region
      $region25: #{no_encoder_model_forward.1} parent=11 // pred_check
        %p242 = pneg %p176
      $region26: #{no_encoder_model_forward.1} parent=11 // pred_check_branch
        %244 = sbr.rel (%p242) target = $region28
      $region27: #{no_encoder_model_forward.1} parent=11 // pred_region
        _
      $region28: #{no_encoder_model_forward.1} parent=11 // pred_fallthru
        _
      // Predicated region
      $region29: #{no_encoder_model_forward.1} parent=11 // pred_check
        %p245 = pneg %p197
      $region30: #{no_encoder_model_forward.1} parent=11 // pred_check_branch
        %247 = sbr.rel (%p245) target = $region32
      $region31: #{no_encoder_model_forward.1} parent=11 // pred_region
        _
      $region32: #{no_encoder_model_forward.1} parent=11 // pred_fallthru
        _
    $region12: #{no_encoder_model_forward.1} parent=5 // pred_fallthru
      _
    %p248 = scmp.lt.s32.totalorder %s14, 4
    // Predicated region
    $region33: #{no_encoder_model_forward.1} parent=5 // pred_check
      %p249 = pneg %p248
    $region34: #{no_encoder_model_forward.1} parent=5 // pred_check_branch
      %251 = sbr.rel (%p249) target = $region36
    $region35: #{no_encoder_model_forward.1} parent=5 // pred_region
      // Predicated region
      $region37: #{no_encoder_model_forward.1} parent=35 // pred_check
        %p252 = pneg %p55
      $region38: #{no_encoder_model_forward.1} parent=35 // pred_check_branch
        %254 = sbr.rel (%p252) target = $region40
      $region39: #{no_encoder_model_forward.1} parent=35 // pred_region
        %p255 = scmp.lt.s32.totalorder %s14, 3
        %s256 = scalar_select %p255, %s14, 3
        %s257 = smul.addr %s256, 256
        %s258 = smul.addr %s257, 4
        %s259 = scalar_lea.vmem %s1, %s258
      $region40: #{no_encoder_model_forward.1} parent=35 // pred_fallthru
        _
      // Predicated region
      $region41: #{no_encoder_model_forward.1} parent=35 // pred_check
        %p260 = pneg %p81
      $region42: #{no_encoder_model_forward.1} parent=35 // pred_check_branch
        %262 = sbr.rel (%p260) target = $region44
      $region43: #{no_encoder_model_forward.1} parent=35 // pred_region
        %p263 = scmp.lt.s32.totalorder %s14, 3
        %s264 = scalar_select %p263, %s14, 3
        %s265 = smul.addr %s264, 128
        %s266 = smul.addr %s265, 4
        %s267 = scalar_lea.vmem %s2, %s266
      $region44: #{no_encoder_model_forward.1} parent=35 // pred_fallthru
        _
      // Predicated region
      $region45: #{no_encoder_model_forward.1} parent=35 // pred_check
        %p268 = pneg %p107
      $region46: #{no_encoder_model_forward.1} parent=35 // pred_check_branch
        %270 = sbr.rel (%p268) target = $region48
      $region47: #{no_encoder_model_forward.1} parent=35 // pred_region
        %p271 = scmp.lt.s32.totalorder %s14, 3
        %s272 = scalar_select %p271, %s14, 3
        %s273 = smul.addr %s272, 8
        %s274 = scalar_lea.vmem %s3, %s273
      $region48: #{no_encoder_model_forward.1} parent=35 // pred_fallthru
        _
    $region36: #{no_encoder_model_forward.1} parent=5 // pred_fallthru
      _
    %p275 = scmp.le.s32.totalorder 1, %s14
    %p276 = scmp.lt.s32.totalorder %s14, 5
    %p277 = pnand %p275, %p276
    %p278 = pneg %p277
    // Predicated region
    $region49: #{no_encoder_model_forward.1} parent=5 // pred_check
      _
    $region50: #{no_encoder_model_forward.1} parent=5 // pred_check_branch
      %280 = sbr.rel (%p277) target = $region52
    $region51: #{no_encoder_model_forward.1} parent=5 // pred_region
      %s281 = ssub.s32 %s14, 1
      %p282 = pneg %p35
      %p283 = pneg %p32
      %p284 = scmp.lt.s32.totalorder %s19, 3
      %s285 = scalar_select %p284, %s19, 3
      %s286 = smul.addr %s285, 256
      %s287 = smul.addr %s286, 4
      %s288 = scalar_lea.vmem %s1, %s287
      %p289 = pneg %p61
      %p290 = pneg %p58
      %p291 = scmp.lt.s32.totalorder %s19, 3
      %s292 = scalar_select %p291, %s19, 3
      %s293 = smul.addr %s292, 128
      %s294 = smul.addr %s293, 4
      %s295 = scalar_lea.vmem %s2, %s294
      %p296 = pneg %p87
      %p297 = pneg %p84
      %p298 = scmp.lt.s32.totalorder %s19, 3
      %s299 = scalar_select %p298, %s19, 3
      %s300 = smul.addr %s299, 8
      %s301 = scalar_lea.vmem %s3, %s300
      %p302 = pneg %p113
      %p303 = pneg %p110
      %p304 = pneg %p134
      %p305 = pneg %p131
      %p306 = pneg %p155
      %p307 = pneg %p152
      %p308 = pneg %p176
      %p309 = pneg %p173
      %p310 = pneg %p197
      %p311 = pneg %p194
      %p312 = pneg %p218
      %p313 = pneg %p215
      %p314 = scmp.lt.s32.totalorder %s19, 3
      %s315 = scalar_select %p314, %s19, 3
      %s316 = smul.addr %s315, 256
      %s317 = smul.addr %s316, 4
      %s318 = scalar_lea.vmem %s1, %s317
      %p319 = scmp.lt.s32.totalorder %s19, 3
      %s320 = scalar_select %p319, %s19, 3
      %s321 = smul.addr %s320, 128
      %s322 = smul.addr %s321, 4
      %s323 = scalar_lea.vmem %s2, %s322
      %p324 = scmp.lt.s32.totalorder %s19, 3
      %s325 = scalar_select %p324, %s19, 3
      %s326 = smul.addr %s325, 8
      %s327 = scalar_lea.vmem %s3, %s326
      %p329 = scmp.eq.s32.totalorder %s19, 0
      // Predicated region
      $region53: #{no_encoder_model_forward.1} parent=51 // pred_check
        %p330 = pneg %p329
      $region54: #{no_encoder_model_forward.1} parent=51 // pred_check_branch
        %332 = sbr.rel (%p330) target = $region56
      $region55: #{no_encoder_model_forward.1} parent=51 // pred_region
        %v333 = vld [vmem:[%s0] sm:$0xff]
        %v334 = vld [vmem:[%s0 + $0x8] sm:$0xff]
        %v335 = vld [vmem:[%s0 + $0x10] sm:$0xff]
        %v336 = vld [vmem:[%s0 + $0x18] sm:$0xff]
        %v337 = vld [vmem:[%s0 + $0x20] sm:$0xff]
        %v338 = vld [vmem:[%s0 + $0x28] sm:$0xff]
        %v339 = vld [vmem:[%s0 + $0x30] sm:$0xff]
        %v340 = vld [vmem:[%s0 + $0x38] sm:$0xff]
        %v341 = vld [vmem:[%s0 + $0x40] sm:$0xff]
        %v342 = vld [vmem:[%s0 + $0x48] sm:$0xff]
        %v343 = vld [vmem:[%s0 + $0x50] sm:$0xff]
        %v344 = vld [vmem:[%s0 + $0x58] sm:$0xff]
        %v345 = vld [vmem:[%s0 + $0x60] sm:$0xff]
        %v346 = vld [vmem:[%s0 + $0x68] sm:$0xff]
        %v347 = vld [vmem:[%s0 + $0x70] sm:$0xff]
        %v348 = vld [vmem:[%s0 + $0x78] sm:$0xff]
        %349 = vst [vmem:[#allocation2] sm:$0xff] %v333
        %350 = vst [vmem:[#allocation2 + $0x8] sm:$0xff] %v334
        %351 = vst [vmem:[#allocation2 + $0x10] sm:$0xff] %v335
        %352 = vst [vmem:[#allocation2 + $0x18] sm:$0xff] %v336
        %353 = vst [vmem:[#allocation2 + $0x20] sm:$0xff] %v337
        %354 = vst [vmem:[#allocation2 + $0x28] sm:$0xff] %v338
        %355 = vst [vmem:[#allocation2 + $0x30] sm:$0xff] %v339
        %356 = vst [vmem:[#allocation2 + $0x38] sm:$0xff] %v340
        %357 = vst [vmem:[#allocation2 + $0x40] sm:$0xff] %v341
        %358 = vst [vmem:[#allocation2 + $0x48] sm:$0xff] %v342
        %359 = vst [vmem:[#allocation2 + $0x50] sm:$0xff] %v343
        %360 = vst [vmem:[#allocation2 + $0x58] sm:$0xff] %v344
        %361 = vst [vmem:[#allocation2 + $0x60] sm:$0xff] %v345
        %362 = vst [vmem:[#allocation2 + $0x68] sm:$0xff] %v346
        %363 = vst [vmem:[#allocation2 + $0x70] sm:$0xff] %v347
        %364 = vst [vmem:[#allocation2 + $0x78] sm:$0xff] %v348
      $region56: #{no_encoder_model_forward.1} parent=51 // pred_fallthru
        _
      %v365 = vld [vmem:[#allocation2] sm:$0xff]
      %v366 = vld [vmem:[#allocation2 + $0x8] sm:$0xff]
      %v367 = vld [vmem:[#allocation2 + $0x10] sm:$0xff]
      %v368 = vld [vmem:[#allocation2 + $0x18] sm:$0xff]
      %v369 = vld [vmem:[#allocation2 + $0x20] sm:$0xff]
      %v370 = vld [vmem:[#allocation2 + $0x28] sm:$0xff]
      %v371 = vld [vmem:[#allocation2 + $0x30] sm:$0xff]
      %v372 = vld [vmem:[#allocation2 + $0x38] sm:$0xff]
      %v373 = vld [vmem:[#allocation2 + $0x40] sm:$0xff]
      %v374 = vld [vmem:[#allocation2 + $0x48] sm:$0xff]
      %v375 = vld [vmem:[#allocation2 + $0x50] sm:$0xff]
      %v376 = vld [vmem:[#allocation2 + $0x58] sm:$0xff]
      %v377 = vld [vmem:[#allocation2 + $0x60] sm:$0xff]
      %v378 = vld [vmem:[#allocation2 + $0x68] sm:$0xff]
      %v379 = vld [vmem:[#allocation2 + $0x70] sm:$0xff]
      %v380 = vld [vmem:[#allocation2 + $0x78] sm:$0xff]
      %v381 = vpack.c.bf16 %v367, %v365
      %v382 = vpack.c.bf16 %v368, %v366
      %v383 = vpack.c.bf16 %v371, %v369
      %v384 = vpack.c.bf16 %v372, %v370
      %v385 = vpack.c.bf16 %v375, %v373
      %v386 = vpack.c.bf16 %v376, %v374
      %v387 = vpack.c.bf16 %v379, %v377
      %v388 = vpack.c.bf16 %v380, %v378
      %v389 = vld [vmem:[%s318] sm:$0xff]
      %v390 = vld [vmem:[%s318 + $0x8] sm:$0xff]
      %v391 = vld [vmem:[%s318 + $0x10] sm:$0xff]
      %v392 = vld [vmem:[%s318 + $0x18] sm:$0xff]
      %v393 = vld [vmem:[%s318 + $0x20] sm:$0xff]
      %v394 = vld [vmem:[%s318 + $0x28] sm:$0xff]
      %v395 = vld [vmem:[%s318 + $0x30] sm:$0xff]
      %v396 = vld [vmem:[%s318 + $0x38] sm:$0xff]
      %v397 = vld [vmem:[%s318 + $0x40] sm:$0xff]
      %v398 = vld [vmem:[%s318 + $0x48] sm:$0xff]
      %v399 = vld [vmem:[%s318 + $0x50] sm:$0xff]
      %v400 = vld [vmem:[%s318 + $0x58] sm:$0xff]
      %v401 = vld [vmem:[%s318 + $0x60] sm:$0xff]
      %v402 = vld [vmem:[%s318 + $0x68] sm:$0xff]
      %v403 = vld [vmem:[%s318 + $0x70] sm:$0xff]
      %v404 = vld [vmem:[%s318 + $0x78] sm:$0xff]
      %v405 = vld [vmem:[%s318 + $0x80] sm:$0xff]
      %v406 = vld [vmem:[%s318 + $0x88] sm:$0xff]
      %v407 = vld [vmem:[%s318 + $0x90] sm:$0xff]
      %v408 = vld [vmem:[%s318 + $0x98] sm:$0xff]
      %v409 = vld [vmem:[%s318 + $0xa0] sm:$0xff]
      %v410 = vld [vmem:[%s318 + $0xa8] sm:$0xff]
      %v411 = vld [vmem:[%s318 + $0xb0] sm:$0xff]
      %v412 = vld [vmem:[%s318 + $0xb8] sm:$0xff]
      %v413 = vld [vmem:[%s318 + $0xc0] sm:$0xff]
      %v414 = vld [vmem:[%s318 + $0xc8] sm:$0xff]
      %v415 = vld [vmem:[%s318 + $0xd0] sm:$0xff]
      %v416 = vld [vmem:[%s318 + $0xd8] sm:$0xff]
      %v417 = vld [vmem:[%s318 + $0xe0] sm:$0xff]
      %v418 = vld [vmem:[%s318 + $0xe8] sm:$0xff]
      %v419 = vld [vmem:[%s318 + $0xf0] sm:$0xff]
      %v420 = vld [vmem:[%s318 + $0xf8] sm:$0xff]
      %v421 = vld [vmem:[%s318 + $0x100] sm:$0xff]
      %v422 = vld [vmem:[%s318 + $0x108] sm:$0xff]
      %v423 = vld [vmem:[%s318 + $0x110] sm:$0xff]
      %v424 = vld [vmem:[%s318 + $0x118] sm:$0xff]
      %v425 = vld [vmem:[%s318 + $0x120] sm:$0xff]
      %v426 = vld [vmem:[%s318 + $0x128] sm:$0xff]
      %v427 = vld [vmem:[%s318 + $0x130] sm:$0xff]
      %v428 = vld [vmem:[%s318 + $0x138] sm:$0xff]
      %v429 = vld [vmem:[%s318 + $0x140] sm:$0xff]
      %v430 = vld [vmem:[%s318 + $0x148] sm:$0xff]
      %v431 = vld [vmem:[%s318 + $0x150] sm:$0xff]
      %v432 = vld [vmem:[%s318 + $0x158] sm:$0xff]
      %v433 = vld [vmem:[%s318 + $0x160] sm:$0xff]
      %v434 = vld [vmem:[%s318 + $0x168] sm:$0xff]
      %v435 = vld [vmem:[%s318 + $0x170] sm:$0xff]
      %v436 = vld [vmem:[%s318 + $0x178] sm:$0xff]
      %v437 = vld [vmem:[%s318 + $0x180] sm:$0xff]
      %v438 = vld [vmem:[%s318 + $0x188] sm:$0xff]
      %v439 = vld [vmem:[%s318 + $0x190] sm:$0xff]
      %v440 = vld [vmem:[%s318 + $0x198] sm:$0xff]
      %v441 = vld [vmem:[%s318 + $0x1a0] sm:$0xff]
      %v442 = vld [vmem:[%s318 + $0x1a8] sm:$0xff]
      %v443 = vld [vmem:[%s318 + $0x1b0] sm:$0xff]
      %v444 = vld [vmem:[%s318 + $0x1b8] sm:$0xff]
      %v445 = vld [vmem:[%s318 + $0x1c0] sm:$0xff]
      %v446 = vld [vmem:[%s318 + $0x1c8] sm:$0xff]
      %v447 = vld [vmem:[%s318 + $0x1d0] sm:$0xff]
      %v448 = vld [vmem:[%s318 + $0x1d8] sm:$0xff]
      %v449 = vld [vmem:[%s318 + $0x1e0] sm:$0xff]
      %v450 = vld [vmem:[%s318 + $0x1e8] sm:$0xff]
      %v451 = vld [vmem:[%s318 + $0x1f0] sm:$0xff]
      %v452 = vld [vmem:[%s318 + $0x1f8] sm:$0xff]
      %v453 = vld [vmem:[%s327] sm:$0xf]
      %v455 = vlaneseq
      %v456 = vshrl.u32 %v455, 7
      %v457 = vsub.s32 0, %v456
      %v458 = vrot.slane %v453, %v457
      %v459 = vlaneseq
      %v460 = vshrl.u32 %v459, 7
      %v461 = vsub.s32 1, %v460
      %v462 = vrot.slane %v453, %v461
      %v463 = vlaneseq
      %v464 = vshrl.u32 %v463, 7
      %v465 = vsub.s32 2, %v464
      %v466 = vrot.slane %v453, %v465
      %v467 = vlaneseq
      %v468 = vshrl.u32 %v467, 7
      %v469 = vsub.s32 3, %v468
      %v470 = vrot.slane %v453, %v469
      %v539 = vunpack.c.l.b16 %v389
      %v540 = vunpack.c.h.b16 %v389
      %v541 = vunpack.c.l.b16 %v390
      %v542 = vunpack.c.h.b16 %v390
      %v543 = vunpack.c.l.b16 %v391
      %v544 = vunpack.c.h.b16 %v391
      %v545 = vunpack.c.l.b16 %v392
      %v546 = vunpack.c.h.b16 %v392
      %v547 = vunpack.c.l.b16 %v393
      %v548 = vunpack.c.h.b16 %v393
      %v549 = vunpack.c.l.b16 %v394
      %v550 = vunpack.c.h.b16 %v394
      %v551 = vunpack.c.l.b16 %v395
      %v552 = vunpack.c.h.b16 %v395
      %v553 = vunpack.c.l.b16 %v396
      %v554 = vunpack.c.h.b16 %v396
      %v555 = vunpack.c.l.b16 %v397
      %v556 = vunpack.c.h.b16 %v397
      %v557 = vunpack.c.l.b16 %v398
      %v558 = vunpack.c.h.b16 %v398
      %v559 = vunpack.c.l.b16 %v399
      %v560 = vunpack.c.h.b16 %v399
      %v561 = vunpack.c.l.b16 %v400
      %v562 = vunpack.c.h.b16 %v400
      %v563 = vunpack.c.l.b16 %v401
      %v564 = vunpack.c.h.b16 %v401
      %v565 = vunpack.c.l.b16 %v402
      %v566 = vunpack.c.h.b16 %v402
      %v567 = vunpack.c.l.b16 %v403
      %v568 = vunpack.c.h.b16 %v403
      %v569 = vunpack.c.l.b16 %v404
      %v570 = vunpack.c.h.b16 %v404
      %v571 = vunpack.c.l.b16 %v405
      %v572 = vunpack.c.h.b16 %v405
      %v573 = vunpack.c.l.b16 %v406
      %v574 = vunpack.c.h.b16 %v406
      %v575 = vunpack.c.l.b16 %v407
      %v576 = vunpack.c.h.b16 %v407
      %v577 = vunpack.c.l.b16 %v408
      %v578 = vunpack.c.h.b16 %v408
      %v579 = vunpack.c.l.b16 %v409
      %v580 = vunpack.c.h.b16 %v409
      %v581 = vunpack.c.l.b16 %v410
      %v582 = vunpack.c.h.b16 %v410
      %v583 = vunpack.c.l.b16 %v411
      %v584 = vunpack.c.h.b16 %v411
      %v585 = vunpack.c.l.b16 %v412
      %v586 = vunpack.c.h.b16 %v412
      %v587 = vunpack.c.l.b16 %v413
      %v588 = vunpack.c.h.b16 %v413
      %v589 = vunpack.c.l.b16 %v414
      %v590 = vunpack.c.h.b16 %v414
      %v591 = vunpack.c.l.b16 %v415
      %v592 = vunpack.c.h.b16 %v415
      %v593 = vunpack.c.l.b16 %v416
      %v594 = vunpack.c.h.b16 %v416
      %v595 = vunpack.c.l.b16 %v417
      %v596 = vunpack.c.h.b16 %v417
      %v597 = vunpack.c.l.b16 %v418
      %v598 = vunpack.c.h.b16 %v418
      %v599 = vunpack.c.l.b16 %v419
      %v600 = vunpack.c.h.b16 %v419
      %v601 = vunpack.c.l.b16 %v420
      %v602 = vunpack.c.h.b16 %v420
      %v603 = vunpack.c.l.b16 %v421
      %v604 = vunpack.c.h.b16 %v421
      %v605 = vunpack.c.l.b16 %v422
      %v606 = vunpack.c.h.b16 %v422
      %v607 = vunpack.c.l.b16 %v423
      %v608 = vunpack.c.h.b16 %v423
      %v609 = vunpack.c.l.b16 %v424
      %v610 = vunpack.c.h.b16 %v424
      %v611 = vunpack.c.l.b16 %v425
      %v612 = vunpack.c.h.b16 %v425
      %v613 = vunpack.c.l.b16 %v426
      %v614 = vunpack.c.h.b16 %v426
      %v615 = vunpack.c.l.b16 %v427
      %v616 = vunpack.c.h.b16 %v427
      %v617 = vunpack.c.l.b16 %v428
      %v618 = vunpack.c.h.b16 %v428
      %v619 = vunpack.c.l.b16 %v429
      %v620 = vunpack.c.h.b16 %v429
      %v621 = vunpack.c.l.b16 %v430
      %v622 = vunpack.c.h.b16 %v430
      %v623 = vunpack.c.l.b16 %v431
      %v624 = vunpack.c.h.b16 %v431
      %v625 = vunpack.c.l.b16 %v432
      %v626 = vunpack.c.h.b16 %v432
      %v627 = vunpack.c.l.b16 %v433
      %v628 = vunpack.c.h.b16 %v433
      %v629 = vunpack.c.l.b16 %v434
      %v630 = vunpack.c.h.b16 %v434
      %v631 = vunpack.c.l.b16 %v435
      %v632 = vunpack.c.h.b16 %v435
      %v633 = vunpack.c.l.b16 %v436
      %v634 = vunpack.c.h.b16 %v436
      %v635 = vunpack.c.l.b16 %v437
      %v636 = vunpack.c.h.b16 %v437
      %v637 = vunpack.c.l.b16 %v438
      %v638 = vunpack.c.h.b16 %v438
      %v639 = vunpack.c.l.b16 %v439
      %v640 = vunpack.c.h.b16 %v439
      %v641 = vunpack.c.l.b16 %v440
      %v642 = vunpack.c.h.b16 %v440
      %v643 = vunpack.c.l.b16 %v441
      %v644 = vunpack.c.h.b16 %v441
      %v645 = vunpack.c.l.b16 %v442
      %v646 = vunpack.c.h.b16 %v442
      %v647 = vunpack.c.l.b16 %v443
      %v648 = vunpack.c.h.b16 %v443
      %v649 = vunpack.c.l.b16 %v444
      %v650 = vunpack.c.h.b16 %v444
      %v651 = vunpack.c.l.b16 %v445
      %v652 = vunpack.c.h.b16 %v445
      %v653 = vunpack.c.l.b16 %v446
      %v654 = vunpack.c.h.b16 %v446
      %v655 = vunpack.c.l.b16 %v447
      %v656 = vunpack.c.h.b16 %v447
      %v657 = vunpack.c.l.b16 %v448
      %v658 = vunpack.c.h.b16 %v448
      %v659 = vunpack.c.l.b16 %v449
      %v660 = vunpack.c.h.b16 %v449
      %v661 = vunpack.c.l.b16 %v450
      %v662 = vunpack.c.h.b16 %v450
      %v663 = vunpack.c.l.b16 %v451
      %v664 = vunpack.c.h.b16 %v451
      %v665 = vunpack.c.l.b16 %v452
      %v666 = vunpack.c.h.b16 %v452
      %v667 = vpack.c.b16 %v543, %v539
      %v668 = vpack.c.b16 %v544, %v540
      %v669 = vpack.c.b16 %v545, %v541
      %v670 = vpack.c.b16 %v546, %v542
      %v671 = vpack.c.b16 %v551, %v547
      %v672 = vpack.c.b16 %v552, %v548
      %v673 = vpack.c.b16 %v553, %v549
      %v674 = vpack.c.b16 %v554, %v550
      %v675 = vpack.c.b16 %v559, %v555
      %v676 = vpack.c.b16 %v560, %v556
      %v677 = vpack.c.b16 %v561, %v557
      %v678 = vpack.c.b16 %v562, %v558
      %v679 = vpack.c.b16 %v567, %v563
      %v680 = vpack.c.b16 %v568, %v564
      %v681 = vpack.c.b16 %v569, %v565
      %v682 = vpack.c.b16 %v570, %v566
      %v683 = vpack.c.b16 %v575, %v571
      %v684 = vpack.c.b16 %v576, %v572
      %v685 = vpack.c.b16 %v577, %v573
      %v686 = vpack.c.b16 %v578, %v574
      %v687 = vpack.c.b16 %v583, %v579
      %v688 = vpack.c.b16 %v584, %v580
      %v689 = vpack.c.b16 %v585, %v581
      %v690 = vpack.c.b16 %v586, %v582
      %v691 = vpack.c.b16 %v591, %v587
      %v692 = vpack.c.b16 %v592, %v588
      %v693 = vpack.c.b16 %v593, %v589
      %v694 = vpack.c.b16 %v594, %v590
      %v695 = vpack.c.b16 %v599, %v595
      %v696 = vpack.c.b16 %v600, %v596
      %v697 = vpack.c.b16 %v601, %v597
      %v698 = vpack.c.b16 %v602, %v598
      %v699 = vpack.c.b16 %v607, %v603
      %v700 = vpack.c.b16 %v608, %v604
      %v701 = vpack.c.b16 %v609, %v605
      %v702 = vpack.c.b16 %v610, %v606
      %v703 = vpack.c.b16 %v615, %v611
      %v704 = vpack.c.b16 %v616, %v612
      %v705 = vpack.c.b16 %v617, %v613
      %v706 = vpack.c.b16 %v618, %v614
      %v707 = vpack.c.b16 %v623, %v619
      %v708 = vpack.c.b16 %v624, %v620
      %v709 = vpack.c.b16 %v625, %v621
      %v710 = vpack.c.b16 %v626, %v622
      %v711 = vpack.c.b16 %v631, %v627
      %v712 = vpack.c.b16 %v632, %v628
      %v713 = vpack.c.b16 %v633, %v629
      %v714 = vpack.c.b16 %v634, %v630
      %v715 = vpack.c.b16 %v639, %v635
      %v716 = vpack.c.b16 %v640, %v636
      %v717 = vpack.c.b16 %v641, %v637
      %v718 = vpack.c.b16 %v642, %v638
      %v719 = vpack.c.b16 %v647, %v643
      %v720 = vpack.c.b16 %v648, %v644
      %v721 = vpack.c.b16 %v649, %v645
      %v722 = vpack.c.b16 %v650, %v646
      %v723 = vpack.c.b16 %v655, %v651
      %v724 = vpack.c.b16 %v656, %v652
      %v725 = vpack.c.b16 %v657, %v653
      %v726 = vpack.c.b16 %v658, %v654
      %v727 = vpack.c.b16 %v663, %v659
      %v728 = vpack.c.b16 %v664, %v660
      %v729 = vpack.c.b16 %v665, %v661
      %v730 = vpack.c.b16 %v666, %v662
      %795 = vmatprep.subr.bf16.mxu0 %v668
      %796 = vmatpush1.bf16.msra.mxu0 %v667
      %797 = vmatprep.subr.bf16.mxu0 %v672
      %798 = vmatpush1.bf16.msra.mxu0 %v671
      %799 = vmatprep.subr.bf16.mxu0 %v676
      %800 = vmatpush1.bf16.msra.mxu0 %v675
      %801 = vmatprep.subr.bf16.mxu0 %v680
      %802 = vmatpush1.bf16.msra.mxu0 %v679
      %803 = vmatprep.subr.bf16.mxu0 %v684
      %804 = vmatpush1.bf16.msra.mxu0 %v683
      %805 = vmatprep.subr.bf16.mxu0 %v688
      %806 = vmatpush1.bf16.msra.mxu0 %v687
      %807 = vmatprep.subr.bf16.mxu0 %v692
      %808 = vmatpush1.bf16.msra.mxu0 %v691
      %809 = vmatprep.subr.bf16.mxu0 %v696
      %810 = vmatpush1.bf16.msra.mxu0 %v695
      %811 = vmatprep.subr.bf16.mxu0 %v700
      %812 = vmatpush1.bf16.msra.mxu0 %v699
      %813 = vmatprep.subr.bf16.mxu0 %v704
      %814 = vmatpush1.bf16.msra.mxu0 %v703
      %815 = vmatprep.subr.bf16.mxu0 %v708
      %816 = vmatpush1.bf16.msra.mxu0 %v707
      %817 = vmatprep.subr.bf16.mxu0 %v712
      %818 = vmatpush1.bf16.msra.mxu0 %v711
      %819 = vmatprep.subr.bf16.mxu0 %v716
      %820 = vmatpush1.bf16.msra.mxu0 %v715
      %821 = vmatprep.subr.bf16.mxu0 %v720
      %822 = vmatpush1.bf16.msra.mxu0 %v719
      %823 = vmatprep.subr.bf16.mxu0 %v724
      %824 = vmatpush1.bf16.msra.mxu0 %v723
      %825 = vmatprep.subr.bf16.mxu0 %v728
      %826 = vmatpush1.bf16.msra.mxu0 %v727
      %827 = vmatprep.mubr.bf16.mxu0 %v382
      %828 = vmatmul.mubr.bf16.gmra.mrb[0].mxu0 %v381
      %v829 = vpop.f32.mrb[0].mxu0
      %v830 = vadd.f32 %v458, %v829
      %v831 = vpop.f32.mrb[0].mxu0
      %v832 = vadd.f32 %v462, %v831
      %v833 = vpop.f32.mrb[0].mxu0
      %v834 = vadd.f32 %v458, %v833
      %v835 = vpop.f32.mrb[0].mxu0
      %v836 = vadd.f32 %v462, %v835
      %837 = vmatprep.mubr.bf16.mxu0 %v384
      %838 = vmatmul.mubr.bf16.gmra.mrb[0].mxu0 %v383
      %v839 = vpop.f32.mrb[0].mxu0
      %v840 = vadd.f32 %v458, %v839
      %v841 = vpop.f32.mrb[0].mxu0
      %v842 = vadd.f32 %v462, %v841
      %v843 = vpop.f32.mrb[0].mxu0
      %v844 = vadd.f32 %v458, %v843
      %v845 = vpop.f32.mrb[0].mxu0
      %v846 = vadd.f32 %v462, %v845
      %847 = vmatprep.mubr.bf16.mxu0 %v386
      %848 = vmatmul.mubr.bf16.gmra.mrb[0].mxu0 %v385
      %v849 = vpop.f32.mrb[0].mxu0
      %v850 = vadd.f32 %v458, %v849
      %v851 = vpop.f32.mrb[0].mxu0
      %v852 = vadd.f32 %v462, %v851
      %v853 = vpop.f32.mrb[0].mxu0
      %v854 = vadd.f32 %v458, %v853
      %v855 = vpop.f32.mrb[0].mxu0
      %v856 = vadd.f32 %v462, %v855
      %857 = vmatprep.mubr.bf16.mxu0 %v388
      %858 = vmatmul.mubr.bf16.gmra.mrb[0].mxu0 %v387
      %v859 = vpop.f32.mrb[0].mxu0
      %v860 = vadd.f32 %v458, %v859
      %v861 = vpop.f32.mrb[0].mxu0
      %v862 = vadd.f32 %v462, %v861
      %v863 = vpop.f32.mrb[0].mxu0
      %v864 = vadd.f32 %v458, %v863
      %v865 = vpop.f32.mrb[0].mxu0
      %v866 = vadd.f32 %v462, %v865
      %867 = vdwg.mxu0
      %868 = vmatprep.subr.bf16.mxu0 %v670
      %869 = vmatpush1.bf16.msra.mxu0 %v669
      %870 = vmatprep.subr.bf16.mxu0 %v674
      %871 = vmatpush1.bf16.msra.mxu0 %v673
      %872 = vmatprep.subr.bf16.mxu0 %v678
      %873 = vmatpush1.bf16.msra.mxu0 %v677
      %874 = vmatprep.subr.bf16.mxu0 %v682
      %875 = vmatpush1.bf16.msra.mxu0 %v681
      %876 = vmatprep.subr.bf16.mxu0 %v686
      %877 = vmatpush1.bf16.msra.mxu0 %v685
      %878 = vmatprep.subr.bf16.mxu0 %v690
      %879 = vmatpush1.bf16.msra.mxu0 %v689
      %880 = vmatprep.subr.bf16.mxu0 %v694
      %881 = vmatpush1.bf16.msra.mxu0 %v693
      %882 = vmatprep.subr.bf16.mxu0 %v698
      %883 = vmatpush1.bf16.msra.mxu0 %v697
      %884 = vmatprep.subr.bf16.mxu0 %v702
      %885 = vmatpush1.bf16.msra.mxu0 %v701
      %886 = vmatprep.subr.bf16.mxu0 %v706
      %887 = vmatpush1.bf16.msra.mxu0 %v705
      %888 = vmatprep.subr.bf16.mxu0 %v710
      %889 = vmatpush1.bf16.msra.mxu0 %v709
      %890 = vmatprep.subr.bf16.mxu0 %v714
      %891 = vmatpush1.bf16.msra.mxu0 %v713
      %892 = vmatprep.subr.bf16.mxu0 %v718
      %893 = vmatpush1.bf16.msra.mxu0 %v717
      %894 = vmatprep.subr.bf16.mxu0 %v722
      %895 = vmatpush1.bf16.msra.mxu0 %v721
      %896 = vmatprep.subr.bf16.mxu0 %v726
      %897 = vmatpush1.bf16.msra.mxu0 %v725
      %898 = vmatprep.subr.bf16.mxu0 %v730
      %899 = vmatpush1.bf16.msra.mxu0 %v729
      %900 = vmatprep.mubr.bf16.mxu0 %v382
      %901 = vmatmul.mubr.bf16.gmra.mrb[0].mxu0 %v381
      %v902 = vpop.f32.mrb[0].mxu0
      %v903 = vadd.f32 %v466, %v902
      %v904 = vpop.f32.mrb[0].mxu0
      %v905 = vadd.f32 %v470, %v904
      %v906 = vpop.f32.mrb[0].mxu0
      %v907 = vadd.f32 %v466, %v906
      %v908 = vpop.f32.mrb[0].mxu0
      %v909 = vadd.f32 %v470, %v908
      %910 = vmatprep.mubr.bf16.mxu0 %v384
      %911 = vmatmul.mubr.bf16.gmra.mrb[0].mxu0 %v383
      %v912 = vpop.f32.mrb[0].mxu0
      %v913 = vadd.f32 %v466, %v912
      %v914 = vpop.f32.mrb[0].mxu0
      %v915 = vadd.f32 %v470, %v914
      %v916 = vpop.f32.mrb[0].mxu0
      %v917 = vadd.f32 %v466, %v916
      %v918 = vpop.f32.mrb[0].mxu0
      %v919 = vadd.f32 %v470, %v918
      %920 = vmatprep.mubr.bf16.mxu0 %v386
      %921 = vmatmul.mubr.bf16.gmra.mrb[0].mxu0 %v385
      %v922 = vpop.f32.mrb[0].mxu0
      %v923 = vadd.f32 %v466, %v922
      %v924 = vpop.f32.mrb[0].mxu0
      %v925 = vadd.f32 %v470, %v924
      %v926 = vpop.f32.mrb[0].mxu0
      %v927 = vadd.f32 %v466, %v926
      %v928 = vpop.f32.mrb[0].mxu0
      %v929 = vadd.f32 %v470, %v928
      %930 = vmatprep.mubr.bf16.mxu0 %v388
      %931 = vmatmul.mubr.bf16.gmra.mrb[0].mxu0 %v387
      %v932 = vpop.f32.mrb[0].mxu0
      %v933 = vadd.f32 %v466, %v932
      %v934 = vpop.f32.mrb[0].mxu0
      %v935 = vadd.f32 %v470, %v934
      %v936 = vpop.f32.mrb[0].mxu0
      %v937 = vadd.f32 %v466, %v936
      %v938 = vpop.f32.mrb[0].mxu0
      %v939 = vadd.f32 %v470, %v938
      %940 = vdwg.mxu0
      %941 = vst [vmem:[#allocation3] sm:$0xff] %v830
      %942 = vst [vmem:[#allocation3 + $0x8] sm:$0xff] %v832
      %943 = vst [vmem:[#allocation3 + $0x10] sm:$0xff] %v903
      %944 = vst [vmem:[#allocation3 + $0x18] sm:$0xff] %v905
      %945 = vst [vmem:[#allocation3 + $0x20] sm:$0xff] %v834
      %946 = vst [vmem:[#allocation3 + $0x28] sm:$0xff] %v836
      %947 = vst [vmem:[#allocation3 + $0x30] sm:$0xff] %v907
      %948 = vst [vmem:[#allocation3 + $0x38] sm:$0xff] %v909
      %949 = vst [vmem:[#allocation3 + $0x40] sm:$0xff] %v840
      %950 = vst [vmem:[#allocation3 + $0x48] sm:$0xff] %v842
      %951 = vst [vmem:[#allocation3 + $0x50] sm:$0xff] %v913
      %952 = vst [vmem:[#allocation3 + $0x58] sm:$0xff] %v915
      %953 = vst [vmem:[#allocation3 + $0x60] sm:$0xff] %v844
      %954 = vst [vmem:[#allocation3 + $0x68] sm:$0xff] %v846
      %955 = vst [vmem:[#allocation3 + $0x70] sm:$0xff] %v917
      %956 = vst [vmem:[#allocation3 + $0x78] sm:$0xff] %v919
      %957 = vst [vmem:[#allocation3 + $0x80] sm:$0xff] %v850
      %958 = vst [vmem:[#allocation3 + $0x88] sm:$0xff] %v852
      %959 = vst [vmem:[#allocation3 + $0x90] sm:$0xff] %v923
      %960 = vst [vmem:[#allocation3 + $0x98] sm:$0xff] %v925
      %961 = vst [vmem:[#allocation3 + $0xa0] sm:$0xff] %v854
      %962 = vst [vmem:[#allocation3 + $0xa8] sm:$0xff] %v856
      %963 = vst [vmem:[#allocation3 + $0xb0] sm:$0xff] %v927
      %964 = vst [vmem:[#allocation3 + $0xb8] sm:$0xff] %v929
      %965 = vst [vmem:[#allocation3 + $0xc0] sm:$0xff] %v860
      %966 = vst [vmem:[#allocation3 + $0xc8] sm:$0xff] %v862
      %967 = vst [vmem:[#allocation3 + $0xd0] sm:$0xff] %v933
      %968 = vst [vmem:[#allocation3 + $0xd8] sm:$0xff] %v935
      %969 = vst [vmem:[#allocation3 + $0xe0] sm:$0xff] %v864
      %970 = vst [vmem:[#allocation3 + $0xe8] sm:$0xff] %v866
      %971 = vst [vmem:[#allocation3 + $0xf0] sm:$0xff] %v937
      %972 = vst [vmem:[#allocation3 + $0xf8] sm:$0xff] %v939
      %s973 = scalar_lea.vmem %s318, 512
      %v974 = vld [vmem:[%s973] sm:$0xff]
      %v975 = vld [vmem:[%s973 + $0x8] sm:$0xff]
      %v976 = vld [vmem:[%s973 + $0x10] sm:$0xff]
      %v977 = vld [vmem:[%s973 + $0x18] sm:$0xff]
      %v978 = vld [vmem:[%s973 + $0x20] sm:$0xff]
      %v979 = vld [vmem:[%s973 + $0x28] sm:$0xff]
      %v980 = vld [vmem:[%s973 + $0x30] sm:$0xff]
      %v981 = vld [vmem:[%s973 + $0x38] sm:$0xff]
      %v982 = vld [vmem:[%s973 + $0x40] sm:$0xff]
      %v983 = vld [vmem:[%s973 + $0x48] sm:$0xff]
      %v984 = vld [vmem:[%s973 + $0x50] sm:$0xff]
      %v985 = vld [vmem:[%s973 + $0x58] sm:$0xff]
      %v986 = vld [vmem:[%s973 + $0x60] sm:$0xff]
      %v987 = vld [vmem:[%s973 + $0x68] sm:$0xff]
      %v988 = vld [vmem:[%s973 + $0x70] sm:$0xff]
      %v989 = vld [vmem:[%s973 + $0x78] sm:$0xff]
      %v990 = vld [vmem:[%s973 + $0x80] sm:$0xff]
      %v991 = vld [vmem:[%s973 + $0x88] sm:$0xff]
      %v992 = vld [vmem:[%s973 + $0x90] sm:$0xff]
      %v993 = vld [vmem:[%s973 + $0x98] sm:$0xff]
      %v994 = vld [vmem:[%s973 + $0xa0] sm:$0xff]
      %v995 = vld [vmem:[%s973 + $0xa8] sm:$0xff]
      %v996 = vld [vmem:[%s973 + $0xb0] sm:$0xff]
      %v997 = vld [vmem:[%s973 + $0xb8] sm:$0xff]
      %v998 = vld [vmem:[%s973 + $0xc0] sm:$0xff]
      %v999 = vld [vmem:[%s973 + $0xc8] sm:$0xff]
      %v1000 = vld [vmem:[%s973 + $0xd0] sm:$0xff]
      %v1001 = vld [vmem:[%s973 + $0xd8] sm:$0xff]
      %v1002 = vld [vmem:[%s973 + $0xe0] sm:$0xff]
      %v1003 = vld [vmem:[%s973 + $0xe8] sm:$0xff]
      %v1004 = vld [vmem:[%s973 + $0xf0] sm:$0xff]
      %v1005 = vld [vmem:[%s973 + $0xf8] sm:$0xff]
      %v1006 = vld [vmem:[%s973 + $0x100] sm:$0xff]
      %v1007 = vld [vmem:[%s973 + $0x108] sm:$0xff]
      %v1008 = vld [vmem:[%s973 + $0x110] sm:$0xff]
      %v1009 = vld [vmem:[%s973 + $0x118] sm:$0xff]
      %v1010 = vld [vmem:[%s973 + $0x120] sm:$0xff]
      %v1011 = vld [vmem:[%s973 + $0x128] sm:$0xff]
      %v1012 = vld [vmem:[%s973 + $0x130] sm:$0xff]
      %v1013 = vld [vmem:[%s973 + $0x138] sm:$0xff]
      %v1014 = vld [vmem:[%s973 + $0x140] sm:$0xff]
      %v1015 = vld [vmem:[%s973 + $0x148] sm:$0xff]
      %v1016 = vld [vmem:[%s973 + $0x150] sm:$0xff]
      %v1017 = vld [vmem:[%s973 + $0x158] sm:$0xff]
      %v1018 = vld [vmem:[%s973 + $0x160] sm:$0xff]
      %v1019 = vld [vmem:[%s973 + $0x168] sm:$0xff]
      %v1020 = vld [vmem:[%s973 + $0x170] sm:$0xff]
      %v1021 = vld [vmem:[%s973 + $0x178] sm:$0xff]
      %v1022 = vld [vmem:[%s973 + $0x180] sm:$0xff]
      %v1023 = vld [vmem:[%s973 + $0x188] sm:$0xff]
      %v1024 = vld [vmem:[%s973 + $0x190] sm:$0xff]
      %v1025 = vld [vmem:[%s973 + $0x198] sm:$0xff]
      %v1026 = vld [vmem:[%s973 + $0x1a0] sm:$0xff]
      %v1027 = vld [vmem:[%s973 + $0x1a8] sm:$0xff]
      %v1028 = vld [vmem:[%s973 + $0x1b0] sm:$0xff]
      %v1029 = vld [vmem:[%s973 + $0x1b8] sm:$0xff]
      %v1030 = vld [vmem:[%s973 + $0x1c0] sm:$0xff]
      %v1031 = vld [vmem:[%s973 + $0x1c8] sm:$0xff]
      %v1032 = vld [vmem:[%s973 + $0x1d0] sm:$0xff]
      %v1033 = vld [vmem:[%s973 + $0x1d8] sm:$0xff]
      %v1034 = vld [vmem:[%s973 + $0x1e0] sm:$0xff]
      %v1035 = vld [vmem:[%s973 + $0x1e8] sm:$0xff]
      %v1036 = vld [vmem:[%s973 + $0x1f0] sm:$0xff]
      %v1037 = vld [vmem:[%s973 + $0x1f8] sm:$0xff]
      %s1038 = scalar_lea.vmem %s327, 4
      %v1039 = vld [vmem:[%s1038] sm:$0xf]
      %v1041 = vlaneseq
      %v1042 = vshrl.u32 %v1041, 7
      %v1043 = vsub.s32 0, %v1042
      %v1044 = vrot.slane %v1039, %v1043
      %v1045 = vlaneseq
      %v1046 = vshrl.u32 %v1045, 7
      %v1047 = vsub.s32 1, %v1046
      %v1048 = vrot.slane %v1039, %v1047
      %v1049 = vlaneseq
      %v1050 = vshrl.u32 %v1049, 7
      %v1051 = vsub.s32 2, %v1050
      %v1052 = vrot.slane %v1039, %v1051
      %v1053 = vlaneseq
      %v1054 = vshrl.u32 %v1053, 7
      %v1055 = vsub.s32 3, %v1054
      %v1056 = vrot.slane %v1039, %v1055
      %v1125 = vunpack.c.l.b16 %v974
      %v1126 = vunpack.c.h.b16 %v974
      %v1127 = vunpack.c.l.b16 %v975
      %v1128 = vunpack.c.h.b16 %v975
      %v1129 = vunpack.c.l.b16 %v976
      %v1130 = vunpack.c.h.b16 %v976
      %v1131 = vunpack.c.l.b16 %v977
      %v1132 = vunpack.c.h.b16 %v977
      %v1133 = vunpack.c.l.b16 %v978
      %v1134 = vunpack.c.h.b16 %v978
      %v1135 = vunpack.c.l.b16 %v979
      %v1136 = vunpack.c.h.b16 %v979
      %v1137 = vunpack.c.l.b16 %v980
      %v1138 = vunpack.c.h.b16 %v980
      %v1139 = vunpack.c.l.b16 %v981
      %v1140 = vunpack.c.h.b16 %v981
      %v1141 = vunpack.c.l.b16 %v982
      %v1142 = vunpack.c.h.b16 %v982
      %v1143 = vunpack.c.l.b16 %v983
      %v1144 = vunpack.c.h.b16 %v983
      %v1145 = vunpack.c.l.b16 %v984
      %v1146 = vunpack.c.h.b16 %v984
      %v1147 = vunpack.c.l.b16 %v985
      %v1148 = vunpack.c.h.b16 %v985
      %v1149 = vunpack.c.l.b16 %v986
      %v1150 = vunpack.c.h.b16 %v986
      %v1151 = vunpack.c.l.b16 %v987
      %v1152 = vunpack.c.h.b16 %v987
      %v1153 = vunpack.c.l.b16 %v988
      %v1154 = vunpack.c.h.b16 %v988
      %v1155 = vunpack.c.l.b16 %v989
      %v1156 = vunpack.c.h.b16 %v989
      %v1157 = vunpack.c.l.b16 %v990
      %v1158 = vunpack.c.h.b16 %v990
      %v1159 = vunpack.c.l.b16 %v991
      %v1160 = vunpack.c.h.b16 %v991
      %v1161 = vunpack.c.l.b16 %v992
      %v1162 = vunpack.c.h.b16 %v992
      %v1163 = vunpack.c.l.b16 %v993
      %v1164 = vunpack.c.h.b16 %v993
      %v1165 = vunpack.c.l.b16 %v994
      %v1166 = vunpack.c.h.b16 %v994
      %v1167 = vunpack.c.l.b16 %v995
      %v1168 = vunpack.c.h.b16 %v995
      %v1169 = vunpack.c.l.b16 %v996
      %v1170 = vunpack.c.h.b16 %v996
      %v1171 = vunpack.c.l.b16 %v997
      %v1172 = vunpack.c.h.b16 %v997
      %v1173 = vunpack.c.l.b16 %v998
      %v1174 = vunpack.c.h.b16 %v998
      %v1175 = vunpack.c.l.b16 %v999
      %v1176 = vunpack.c.h.b16 %v999
      %v1177 = vunpack.c.l.b16 %v1000
      %v1178 = vunpack.c.h.b16 %v1000
      %v1179 = vunpack.c.l.b16 %v1001
      %v1180 = vunpack.c.h.b16 %v1001
      %v1181 = vunpack.c.l.b16 %v1002
      %v1182 = vunpack.c.h.b16 %v1002
      %v1183 = vunpack.c.l.b16 %v1003
      %v1184 = vunpack.c.h.b16 %v1003
      %v1185 = vunpack.c.l.b16 %v1004
      %v1186 = vunpack.c.h.b16 %v1004
      %v1187 = vunpack.c.l.b16 %v1005
      %v1188 = vunpack.c.h.b16 %v1005
      %v1189 = vunpack.c.l.b16 %v1006
      %v1190 = vunpack.c.h.b16 %v1006
      %v1191 = vunpack.c.l.b16 %v1007
      %v1192 = vunpack.c.h.b16 %v1007
      %v1193 = vunpack.c.l.b16 %v1008
      %v1194 = vunpack.c.h.b16 %v1008
      %v1195 = vunpack.c.l.b16 %v1009
      %v1196 = vunpack.c.h.b16 %v1009
      %v1197 = vunpack.c.l.b16 %v1010
      %v1198 = vunpack.c.h.b16 %v1010
      %v1199 = vunpack.c.l.b16 %v1011
      %v1200 = vunpack.c.h.b16 %v1011
      %v1201 = vunpack.c.l.b16 %v1012
      %v1202 = vunpack.c.h.b16 %v1012
      %v1203 = vunpack.c.l.b16 %v1013
      %v1204 = vunpack.c.h.b16 %v1013
      %v1205 = vunpack.c.l.b16 %v1014
      %v1206 = vunpack.c.h.b16 %v1014
      %v1207 = vunpack.c.l.b16 %v1015
      %v1208 = vunpack.c.h.b16 %v1015
      %v1209 = vunpack.c.l.b16 %v1016
      %v1210 = vunpack.c.h.b16 %v1016
      %v1211 = vunpack.c.l.b16 %v1017
      %v1212 = vunpack.c.h.b16 %v1017
      %v1213 = vunpack.c.l.b16 %v1018
      %v1214 = vunpack.c.h.b16 %v1018
      %v1215 = vunpack.c.l.b16 %v1019
      %v1216 = vunpack.c.h.b16 %v1019
      %v1217 = vunpack.c.l.b16 %v1020
      %v1218 = vunpack.c.h.b16 %v1020
      %v1219 = vunpack.c.l.b16 %v1021
      %v1220 = vunpack.c.h.b16 %v1021
      %v1221 = vunpack.c.l.b16 %v1022
      %v1222 = vunpack.c.h.b16 %v1022
      %v1223 = vunpack.c.l.b16 %v1023
      %v1224 = vunpack.c.h.b16 %v1023
      %v1225 = vunpack.c.l.b16 %v1024
      %v1226 = vunpack.c.h.b16 %v1024
      %v1227 = vunpack.c.l.b16 %v1025
      %v1228 = vunpack.c.h.b16 %v1025
      %v1229 = vunpack.c.l.b16 %v1026
      %v1230 = vunpack.c.h.b16 %v1026
      %v1231 = vunpack.c.l.b16 %v1027
      %v1232 = vunpack.c.h.b16 %v1027
      %v1233 = vunpack.c.l.b16 %v1028
      %v1234 = vunpack.c.h.b16 %v1028
      %v1235 = vunpack.c.l.b16 %v1029
      %v1236 = vunpack.c.h.b16 %v1029
      %v1237 = vunpack.c.l.b16 %v1030
      %v1238 = vunpack.c.h.b16 %v1030
      %v1239 = vunpack.c.l.b16 %v1031
      %v1240 = vunpack.c.h.b16 %v1031
      %v1241 = vunpack.c.l.b16 %v1032
      %v1242 = vunpack.c.h.b16 %v1032
      %v1243 = vunpack.c.l.b16 %v1033
      %v1244 = vunpack.c.h.b16 %v1033
      %v1245 = vunpack.c.l.b16 %v1034
      %v1246 = vunpack.c.h.b16 %v1034
      %v1247 = vunpack.c.l.b16 %v1035
      %v1248 = vunpack.c.h.b16 %v1035
      %v1249 = vunpack.c.l.b16 %v1036
      %v1250 = vunpack.c.h.b16 %v1036
      %v1251 = vunpack.c.l.b16 %v1037
      %v1252 = vunpack.c.h.b16 %v1037
      %v1253 = vpack.c.b16 %v1129, %v1125
      %v1254 = vpack.c.b16 %v1130, %v1126
      %v1255 = vpack.c.b16 %v1131, %v1127
      %v1256 = vpack.c.b16 %v1132, %v1128
      %v1257 = vpack.c.b16 %v1137, %v1133
      %v1258 = vpack.c.b16 %v1138, %v1134
      %v1259 = vpack.c.b16 %v1139, %v1135
      %v1260 = vpack.c.b16 %v1140, %v1136
      %v1261 = vpack.c.b16 %v1145, %v1141
      %v1262 = vpack.c.b16 %v1146, %v1142
      %v1263 = vpack.c.b16 %v1147, %v1143
      %v1264 = vpack.c.b16 %v1148, %v1144
      %v1265 = vpack.c.b16 %v1153, %v1149
      %v1266 = vpack.c.b16 %v1154, %v1150
      %v1267 = vpack.c.b16 %v1155, %v1151
      %v1268 = vpack.c.b16 %v1156, %v1152
      %v1269 = vpack.c.b16 %v1161, %v1157
      %v1270 = vpack.c.b16 %v1162, %v1158
      %v1271 = vpack.c.b16 %v1163, %v1159
      %v1272 = vpack.c.b16 %v1164, %v1160
      %v1273 = vpack.c.b16 %v1169, %v1165
      %v1274 = vpack.c.b16 %v1170, %v1166
      %v1275 = vpack.c.b16 %v1171, %v1167
      %v1276 = vpack.c.b16 %v1172, %v1168
      %v1277 = vpack.c.b16 %v1177, %v1173
      %v1278 = vpack.c.b16 %v1178, %v1174
      %v1279 = vpack.c.b16 %v1179, %v1175
      %v1280 = vpack.c.b16 %v1180, %v1176
      %v1281 = vpack.c.b16 %v1185, %v1181
      %v1282 = vpack.c.b16 %v1186, %v1182
      %v1283 = vpack.c.b16 %v1187, %v1183
      %v1284 = vpack.c.b16 %v1188, %v1184
      %v1285 = vpack.c.b16 %v1193, %v1189
      %v1286 = vpack.c.b16 %v1194, %v1190
      %v1287 = vpack.c.b16 %v1195, %v1191
      %v1288 = vpack.c.b16 %v1196, %v1192
      %v1289 = vpack.c.b16 %v1201, %v1197
      %v1290 = vpack.c.b16 %v1202, %v1198
      %v1291 = vpack.c.b16 %v1203, %v1199
      %v1292 = vpack.c.b16 %v1204, %v1200
      %v1293 = vpack.c.b16 %v1209, %v1205
      %v1294 = vpack.c.b16 %v1210, %v1206
      %v1295 = vpack.c.b16 %v1211, %v1207
      %v1296 = vpack.c.b16 %v1212, %v1208
      %v1297 = vpack.c.b16 %v1217, %v1213
      %v1298 = vpack.c.b16 %v1218, %v1214
      %v1299 = vpack.c.b16 %v1219, %v1215
      %v1300 = vpack.c.b16 %v1220, %v1216
      %v1301 = vpack.c.b16 %v1225, %v1221
      %v1302 = vpack.c.b16 %v1226, %v1222
      %v1303 = vpack.c.b16 %v1227, %v1223
      %v1304 = vpack.c.b16 %v1228, %v1224
      %v1305 = vpack.c.b16 %v1233, %v1229
      %v1306 = vpack.c.b16 %v1234, %v1230
      %v1307 = vpack.c.b16 %v1235, %v1231
      %v1308 = vpack.c.b16 %v1236, %v1232
      %v1309 = vpack.c.b16 %v1241, %v1237
      %v1310 = vpack.c.b16 %v1242, %v1238
      %v1311 = vpack.c.b16 %v1243, %v1239
      %v1312 = vpack.c.b16 %v1244, %v1240
      %v1313 = vpack.c.b16 %v1249, %v1245
      %v1314 = vpack.c.b16 %v1250, %v1246
      %v1315 = vpack.c.b16 %v1251, %v1247
      %v1316 = vpack.c.b16 %v1252, %v1248
      %1381 = vmatprep.subr.bf16.mxu0 %v1254
      %1382 = vmatpush1.bf16.msra.mxu0 %v1253
      %1383 = vmatprep.subr.bf16.mxu0 %v1258
      %1384 = vmatpush1.bf16.msra.mxu0 %v1257
      %1385 = vmatprep.subr.bf16.mxu0 %v1262
      %1386 = vmatpush1.bf16.msra.mxu0 %v1261
      %1387 = vmatprep.subr.bf16.mxu0 %v1266
      %1388 = vmatpush1.bf16.msra.mxu0 %v1265
      %1389 = vmatprep.subr.bf16.mxu0 %v1270
      %1390 = vmatpush1.bf16.msra.mxu0 %v1269
      %1391 = vmatprep.subr.bf16.mxu0 %v1274
      %1392 = vmatpush1.bf16.msra.mxu0 %v1273
      %1393 = vmatprep.subr.bf16.mxu0 %v1278
      %1394 = vmatpush1.bf16.msra.mxu0 %v1277
      %1395 = vmatprep.subr.bf16.mxu0 %v1282
      %1396 = vmatpush1.bf16.msra.mxu0 %v1281
      %1397 = vmatprep.subr.bf16.mxu0 %v1286
      %1398 = vmatpush1.bf16.msra.mxu0 %v1285
      %1399 = vmatprep.subr.bf16.mxu0 %v1290
      %1400 = vmatpush1.bf16.msra.mxu0 %v1289
      %1401 = vmatprep.subr.bf16.mxu0 %v1294
      %1402 = vmatpush1.bf16.msra.mxu0 %v1293
      %1403 = vmatprep.subr.bf16.mxu0 %v1298
      %1404 = vmatpush1.bf16.msra.mxu0 %v1297
      %1405 = vmatprep.subr.bf16.mxu0 %v1302
      %1406 = vmatpush1.bf16.msra.mxu0 %v1301
      %1407 = vmatprep.subr.bf16.mxu0 %v1306
      %1408 = vmatpush1.bf16.msra.mxu0 %v1305
      %1409 = vmatprep.subr.bf16.mxu0 %v1310
      %1410 = vmatpush1.bf16.msra.mxu0 %v1309
      %1411 = vmatprep.subr.bf16.mxu0 %v1314
      %1412 = vmatpush1.bf16.msra.mxu0 %v1313
      %1413 = vmatprep.mubr.bf16.mxu0 %v382
      %1414 = vmatmul.mubr.bf16.gmra.mrb[0].mxu0 %v381
      %v1415 = vpop.f32.mrb[0].mxu0
      %v1416 = vadd.f32 %v1044, %v1415
      %v1417 = vpop.f32.mrb[0].mxu0
      %v1418 = vadd.f32 %v1048, %v1417
      %v1419 = vpop.f32.mrb[0].mxu0
      %v1420 = vadd.f32 %v1044, %v1419
      %v1421 = vpop.f32.mrb[0].mxu0
      %v1422 = vadd.f32 %v1048, %v1421
      %1423 = vmatprep.mubr.bf16.mxu0 %v384
      %1424 = vmatmul.mubr.bf16.gmra.mrb[0].mxu0 %v383
      %v1425 = vpop.f32.mrb[0].mxu0
      %v1426 = vadd.f32 %v1044, %v1425
      %v1427 = vpop.f32.mrb[0].mxu0
      %v1428 = vadd.f32 %v1048, %v1427
      %v1429 = vpop.f32.mrb[0].mxu0
      %v1430 = vadd.f32 %v1044, %v1429
      %v1431 = vpop.f32.mrb[0].mxu0
      %v1432 = vadd.f32 %v1048, %v1431
      %1433 = vmatprep.mubr.bf16.mxu0 %v386
      %1434 = vmatmul.mubr.bf16.gmra.mrb[0].mxu0 %v385
      %v1435 = vpop.f32.mrb[0].mxu0
      %v1436 = vadd.f32 %v1044, %v1435
      %v1437 = vpop.f32.mrb[0].mxu0
      %v1438 = vadd.f32 %v1048, %v1437
      %v1439 = vpop.f32.mrb[0].mxu0
      %v1440 = vadd.f32 %v1044, %v1439
      %v1441 = vpop.f32.mrb[0].mxu0
      %v1442 = vadd.f32 %v1048, %v1441
      %1443 = vmatprep.mubr.bf16.mxu0 %v388
      %1444 = vmatmul.mubr.bf16.gmra.mrb[0].mxu0 %v387
      %v1445 = vpop.f32.mrb[0].mxu0
      %v1446 = vadd.f32 %v1044, %v1445
      %v1447 = vpop.f32.mrb[0].mxu0
      %v1448 = vadd.f32 %v1048, %v1447
      %v1449 = vpop.f32.mrb[0].mxu0
      %v1450 = vadd.f32 %v1044, %v1449
      %v1451 = vpop.f32.mrb[0].mxu0
      %v1452 = vadd.f32 %v1048, %v1451
      %1453 = vdwg.mxu0
      %1454 = vmatprep.subr.bf16.mxu0 %v1256
      %1455 = vmatpush1.bf16.msra.mxu0 %v1255
      %1456 = vmatprep.subr.bf16.mxu0 %v1260
      %1457 = vmatpush1.bf16.msra.mxu0 %v1259
      %1458 = vmatprep.subr.bf16.mxu0 %v1264
      %1459 = vmatpush1.bf16.msra.mxu0 %v1263
      %1460 = vmatprep.subr.bf16.mxu0 %v1268
      %1461 = vmatpush1.bf16.msra.mxu0 %v1267
      %1462 = vmatprep.subr.bf16.mxu0 %v1272
      %1463 = vmatpush1.bf16.msra.mxu0 %v1271
      %1464 = vmatprep.subr.bf16.mxu0 %v1276
      %1465 = vmatpush1.bf16.msra.mxu0 %v1275
      %1466 = vmatprep.subr.bf16.mxu0 %v1280
      %1467 = vmatpush1.bf16.msra.mxu0 %v1279
      %1468 = vmatprep.subr.bf16.mxu0 %v1284
      %1469 = vmatpush1.bf16.msra.mxu0 %v1283
      %1470 = vmatprep.subr.bf16.mxu0 %v1288
      %1471 = vmatpush1.bf16.msra.mxu0 %v1287
      %1472 = vmatprep.subr.bf16.mxu0 %v1292
      %1473 = vmatpush1.bf16.msra.mxu0 %v1291
      %1474 = vmatprep.subr.bf16.mxu0 %v1296
      %1475 = vmatpush1.bf16.msra.mxu0 %v1295
      %1476 = vmatprep.subr.bf16.mxu0 %v1300
      %1477 = vmatpush1.bf16.msra.mxu0 %v1299
      %1478 = vmatprep.subr.bf16.mxu0 %v1304
      %1479 = vmatpush1.bf16.msra.mxu0 %v1303
      %1480 = vmatprep.subr.bf16.mxu0 %v1308
      %1481 = vmatpush1.bf16.msra.mxu0 %v1307
      %1482 = vmatprep.subr.bf16.mxu0 %v1312
      %1483 = vmatpush1.bf16.msra.mxu0 %v1311
      %1484 = vmatprep.subr.bf16.mxu0 %v1316
      %1485 = vmatpush1.bf16.msra.mxu0 %v1315
      %1486 = vmatprep.mubr.bf16.mxu0 %v382
      %1487 = vmatmul.mubr.bf16.gmra.mrb[0].mxu0 %v381
      %v1488 = vpop.f32.mrb[0].mxu0
      %v1489 = vadd.f32 %v1052, %v1488
      %v1490 = vpop.f32.mrb[0].mxu0
      %v1491 = vadd.f32 %v1056, %v1490
      %v1492 = vpop.f32.mrb[0].mxu0
      %v1493 = vadd.f32 %v1052, %v1492
      %v1494 = vpop.f32.mrb[0].mxu0
      %v1495 = vadd.f32 %v1056, %v1494
      %1496 = vmatprep.mubr.bf16.mxu0 %v384
      %1497 = vmatmul.mubr.bf16.gmra.mrb[0].mxu0 %v383
      %v1498 = vpop.f32.mrb[0].mxu0
      %v1499 = vadd.f32 %v1052, %v1498
      %v1500 = vpop.f32.mrb[0].mxu0
      %v1501 = vadd.f32 %v1056, %v1500
      %v1502 = vpop.f32.mrb[0].mxu0
      %v1503 = vadd.f32 %v1052, %v1502
      %v1504 = vpop.f32.mrb[0].mxu0
      %v1505 = vadd.f32 %v1056, %v1504
      %1506 = vmatprep.mubr.bf16.mxu0 %v386
      %1507 = vmatmul.mubr.bf16.gmra.mrb[0].mxu0 %v385
      %v1508 = vpop.f32.mrb[0].mxu0
      %v1509 = vadd.f32 %v1052, %v1508
      %v1510 = vpop.f32.mrb[0].mxu0
      %v1511 = vadd.f32 %v1056, %v1510
      %v1512 = vpop.f32.mrb[0].mxu0
      %v1513 = vadd.f32 %v1052, %v1512
      %v1514 = vpop.f32.mrb[0].mxu0
      %v1515 = vadd.f32 %v1056, %v1514
      %1516 = vmatprep.mubr.bf16.mxu0 %v388
      %1517 = vmatmul.mubr.bf16.gmra.mrb[0].mxu0 %v387
      %v1518 = vpop.f32.mrb[0].mxu0
      %v1519 = vadd.f32 %v1052, %v1518
      %v1520 = vpop.f32.mrb[0].mxu0
      %v1521 = vadd.f32 %v1056, %v1520
      %v1522 = vpop.f32.mrb[0].mxu0
      %v1523 = vadd.f32 %v1052, %v1522
      %v1524 = vpop.f32.mrb[0].mxu0
      %v1525 = vadd.f32 %v1056, %v1524
      %1526 = vdwg.mxu0
      %1527 = vst [vmem:[#allocation4] sm:$0xff] %v1416
      %1528 = vst [vmem:[#allocation4 + $0x8] sm:$0xff] %v1418
      %1529 = vst [vmem:[#allocation4 + $0x10] sm:$0xff] %v1489
      %1530 = vst [vmem:[#allocation4 + $0x18] sm:$0xff] %v1491
      %1531 = vst [vmem:[#allocation4 + $0x20] sm:$0xff] %v1420
      %1532 = vst [vmem:[#allocation4 + $0x28] sm:$0xff] %v1422
      %1533 = vst [vmem:[#allocation4 + $0x30] sm:$0xff] %v1493
      %1534 = vst [vmem:[#allocation4 + $0x38] sm:$0xff] %v1495
      %1535 = vst [vmem:[#allocation4 + $0x40] sm:$0xff] %v1426
      %1536 = vst [vmem:[#allocation4 + $0x48] sm:$0xff] %v1428
      %1537 = vst [vmem:[#allocation4 + $0x50] sm:$0xff] %v1499
      %1538 = vst [vmem:[#allocation4 + $0x58] sm:$0xff] %v1501
      %1539 = vst [vmem:[#allocation4 + $0x60] sm:$0xff] %v1430
      %1540 = vst [vmem:[#allocation4 + $0x68] sm:$0xff] %v1432
      %1541 = vst [vmem:[#allocation4 + $0x70] sm:$0xff] %v1503
      %1542 = vst [vmem:[#allocation4 + $0x78] sm:$0xff] %v1505
      %1543 = vst [vmem:[#allocation4 + $0x80] sm:$0xff] %v1436
      %1544 = vst [vmem:[#allocation4 + $0x88] sm:$0xff] %v1438
      %1545 = vst [vmem:[#allocation4 + $0x90] sm:$0xff] %v1509
      %1546 = vst [vmem:[#allocation4 + $0x98] sm:$0xff] %v1511
      %1547 = vst [vmem:[#allocation4 + $0xa0] sm:$0xff] %v1440
      %1548 = vst [vmem:[#allocation4 + $0xa8] sm:$0xff] %v1442
      %1549 = vst [vmem:[#allocation4 + $0xb0] sm:$0xff] %v1513
      %1550 = vst [vmem:[#allocation4 + $0xb8] sm:$0xff] %v1515
      %1551 = vst [vmem:[#allocation4 + $0xc0] sm:$0xff] %v1446
      %1552 = vst [vmem:[#allocation4 + $0xc8] sm:$0xff] %v1448
      %1553 = vst [vmem:[#allocation4 + $0xd0] sm:$0xff] %v1519
      %1554 = vst [vmem:[#allocation4 + $0xd8] sm:$0xff] %v1521
      %1555 = vst [vmem:[#allocation4 + $0xe0] sm:$0xff] %v1450
      %1556 = vst [vmem:[#allocation4 + $0xe8] sm:$0xff] %v1452
      %1557 = vst [vmem:[#allocation4 + $0xf0] sm:$0xff] %v1523
      %1558 = vst [vmem:[#allocation4 + $0xf8] sm:$0xff] %v1525
      %1559 = vst [vmem:[#allocation5] sm:$0xff] 0.0
      %1560 = vst [vmem:[#allocation6] sm:$0xff] 0.0
      %1561 = vst [vmem:[#allocation7] sm:$0xff] 0.0
      %1562 = vst [vmem:[#allocation8] sm:$0xff] 0.0
      %v1563 = vld [vmem:[#allocation3] sm:$0xff]
      %v1564 = vld [vmem:[#allocation3 + $0x8] sm:$0xff]
      %v1565 = vld [vmem:[#allocation3 + $0x10] sm:$0xff]
      %v1566 = vld [vmem:[#allocation3 + $0x18] sm:$0xff]
      %v1567 = vld [vmem:[#allocation5] sm:$0xff]
      %v1568 = vpack.c.bf16 %v1567, %v1567
      %v1569 = vld [vmem:[%s323] sm:$0xff]
      %v1570 = vld [vmem:[%s323 + $0x8] sm:$0xff]
      %v1571 = vld [vmem:[%s323 + $0x10] sm:$0xff]
      %v1572 = vld [vmem:[%s323 + $0x18] sm:$0xff]
      %v1573 = vld [vmem:[%s323 + $0x20] sm:$0xff]
      %v1574 = vld [vmem:[%s323 + $0x28] sm:$0xff]
      %v1575 = vld [vmem:[%s323 + $0x30] sm:$0xff]
      %v1576 = vld [vmem:[%s323 + $0x38] sm:$0xff]
      %v1577 = vld [vmem:[%s323 + $0x40] sm:$0xff]
      %v1578 = vld [vmem:[%s323 + $0x48] sm:$0xff]
      %v1579 = vld [vmem:[%s323 + $0x50] sm:$0xff]
      %v1580 = vld [vmem:[%s323 + $0x58] sm:$0xff]
      %v1581 = vld [vmem:[%s323 + $0x60] sm:$0xff]
      %v1582 = vld [vmem:[%s323 + $0x68] sm:$0xff]
      %v1583 = vld [vmem:[%s323 + $0x70] sm:$0xff]
      %v1584 = vld [vmem:[%s323 + $0x78] sm:$0xff]
      %v1585 = vld [vmem:[%s323 + $0x80] sm:$0xff]
      %v1586 = vld [vmem:[%s323 + $0x88] sm:$0xff]
      %v1587 = vld [vmem:[%s323 + $0x90] sm:$0xff]
      %v1588 = vld [vmem:[%s323 + $0x98] sm:$0xff]
      %v1589 = vld [vmem:[%s323 + $0xa0] sm:$0xff]
      %v1590 = vld [vmem:[%s323 + $0xa8] sm:$0xff]
      %v1591 = vld [vmem:[%s323 + $0xb0] sm:$0xff]
      %v1592 = vld [vmem:[%s323 + $0xb8] sm:$0xff]
      %v1593 = vld [vmem:[%s323 + $0xc0] sm:$0xff]
      %v1594 = vld [vmem:[%s323 + $0xc8] sm:$0xff]
      %v1595 = vld [vmem:[%s323 + $0xd0] sm:$0xff]
      %v1596 = vld [vmem:[%s323 + $0xd8] sm:$0xff]
      %v1597 = vld [vmem:[%s323 + $0xe0] sm:$0xff]
      %v1598 = vld [vmem:[%s323 + $0xe8] sm:$0xff]
      %v1599 = vld [vmem:[%s323 + $0xf0] sm:$0xff]
      %v1600 = vld [vmem:[%s323 + $0xf8] sm:$0xff]
      %v1633 = vunpack.c.l.b16 %v1569
      %v1634 = vunpack.c.h.b16 %v1569
      %v1635 = vunpack.c.l.b16 %v1570
      %v1636 = vunpack.c.h.b16 %v1570
      %v1637 = vunpack.c.l.b16 %v1571
      %v1638 = vunpack.c.h.b16 %v1571
      %v1639 = vunpack.c.l.b16 %v1572
      %v1640 = vunpack.c.h.b16 %v1572
      %v1641 = vunpack.c.l.b16 %v1573
      %v1642 = vunpack.c.h.b16 %v1573
      %v1643 = vunpack.c.l.b16 %v1574
      %v1644 = vunpack.c.h.b16 %v1574
      %v1645 = vunpack.c.l.b16 %v1575
      %v1646 = vunpack.c.h.b16 %v1575
      %v1647 = vunpack.c.l.b16 %v1576
      %v1648 = vunpack.c.h.b16 %v1576
      %v1649 = vunpack.c.l.b16 %v1577
      %v1650 = vunpack.c.h.b16 %v1577
      %v1651 = vunpack.c.l.b16 %v1578
      %v1652 = vunpack.c.h.b16 %v1578
      %v1653 = vunpack.c.l.b16 %v1579
      %v1654 = vunpack.c.h.b16 %v1579
      %v1655 = vunpack.c.l.b16 %v1580
      %v1656 = vunpack.c.h.b16 %v1580
      %v1657 = vunpack.c.l.b16 %v1581
      %v1658 = vunpack.c.h.b16 %v1581
      %v1659 = vunpack.c.l.b16 %v1582
      %v1660 = vunpack.c.h.b16 %v1582
      %v1661 = vunpack.c.l.b16 %v1583
      %v1662 = vunpack.c.h.b16 %v1583
      %v1663 = vunpack.c.l.b16 %v1584
      %v1664 = vunpack.c.h.b16 %v1584
      %v1665 = vunpack.c.l.b16 %v1585
      %v1666 = vunpack.c.h.b16 %v1585
      %v1667 = vunpack.c.l.b16 %v1586
      %v1668 = vunpack.c.h.b16 %v1586
      %v1669 = vunpack.c.l.b16 %v1587
      %v1670 = vunpack.c.h.b16 %v1587
      %v1671 = vunpack.c.l.b16 %v1588
      %v1672 = vunpack.c.h.b16 %v1588
      %v1673 = vunpack.c.l.b16 %v1589
      %v1674 = vunpack.c.h.b16 %v1589
      %v1675 = vunpack.c.l.b16 %v1590
      %v1676 = vunpack.c.h.b16 %v1590
      %v1677 = vunpack.c.l.b16 %v1591
      %v1678 = vunpack.c.h.b16 %v1591
      %v1679 = vunpack.c.l.b16 %v1592
      %v1680 = vunpack.c.h.b16 %v1592
      %v1681 = vunpack.c.l.b16 %v1593
      %v1682 = vunpack.c.h.b16 %v1593
      %v1683 = vunpack.c.l.b16 %v1594
      %v1684 = vunpack.c.h.b16 %v1594
      %v1685 = vunpack.c.l.b16 %v1595
      %v1686 = vunpack.c.h.b16 %v1595
      %v1687 = vunpack.c.l.b16 %v1596
      %v1688 = vunpack.c.h.b16 %v1596
      %v1689 = vunpack.c.l.b16 %v1597
      %v1690 = vunpack.c.h.b16 %v1597
      %v1691 = vunpack.c.l.b16 %v1598
      %v1692 = vunpack.c.h.b16 %v1598
      %v1693 = vunpack.c.l.b16 %v1599
      %v1694 = vunpack.c.h.b16 %v1599
      %v1695 = vunpack.c.l.b16 %v1600
      %v1696 = vunpack.c.h.b16 %v1600
      %v1697 = vpack.c.b16 %v1637, %v1633
      %v1698 = vpack.c.b16 %v1638, %v1634
      %v1699 = vpack.c.b16 %v1639, %v1635
      %v1700 = vpack.c.b16 %v1640, %v1636
      %v1701 = vpack.c.b16 %v1645, %v1641
      %v1702 = vpack.c.b16 %v1646, %v1642
      %v1703 = vpack.c.b16 %v1647, %v1643
      %v1704 = vpack.c.b16 %v1648, %v1644
      %v1705 = vpack.c.b16 %v1653, %v1649
      %v1706 = vpack.c.b16 %v1654, %v1650
      %v1707 = vpack.c.b16 %v1655, %v1651
      %v1708 = vpack.c.b16 %v1656, %v1652
      %v1709 = vpack.c.b16 %v1661, %v1657
      %v1710 = vpack.c.b16 %v1662, %v1658
      %v1711 = vpack.c.b16 %v1663, %v1659
      %v1712 = vpack.c.b16 %v1664, %v1660
      %v1713 = vpack.c.b16 %v1669, %v1665
      %v1714 = vpack.c.b16 %v1670, %v1666
      %v1715 = vpack.c.b16 %v1671, %v1667
      %v1716 = vpack.c.b16 %v1672, %v1668
      %v1717 = vpack.c.b16 %v1677, %v1673
      %v1718 = vpack.c.b16 %v1678, %v1674
      %v1719 = vpack.c.b16 %v1679, %v1675
      %v1720 = vpack.c.b16 %v1680, %v1676
      %v1721 = vpack.c.b16 %v1685, %v1681
      %v1722 = vpack.c.b16 %v1686, %v1682
      %v1723 = vpack.c.b16 %v1687, %v1683
      %v1724 = vpack.c.b16 %v1688, %v1684
      %v1725 = vpack.c.b16 %v1693, %v1689
      %v1726 = vpack.c.b16 %v1694, %v1690
      %v1727 = vpack.c.b16 %v1695, %v1691
      %v1728 = vpack.c.b16 %v1696, %v1692
      %1761 = vmatprep.subr.bf16.mxu0 %v1698
      %1762 = vmatpush1.bf16.msra.mxu0 %v1697
      %1763 = vmatprep.subr.bf16.mxu0 %v1702
      %1764 = vmatpush1.bf16.msra.mxu0 %v1701
      %1765 = vmatprep.subr.bf16.mxu0 %v1706
      %1766 = vmatpush1.bf16.msra.mxu0 %v1705
      %1767 = vmatprep.subr.bf16.mxu0 %v1710
      %1768 = vmatpush1.bf16.msra.mxu0 %v1709
      %1769 = vmatprep.subr.bf16.mxu0 %v1714
      %1770 = vmatpush1.bf16.msra.mxu0 %v1713
      %1771 = vmatprep.subr.bf16.mxu0 %v1718
      %1772 = vmatpush1.bf16.msra.mxu0 %v1717
      %1773 = vmatprep.subr.bf16.mxu0 %v1722
      %1774 = vmatpush1.bf16.msra.mxu0 %v1721
      %1775 = vmatprep.subr.bf16.mxu0 %v1726
      %1776 = vmatpush1.bf16.msra.mxu0 %v1725
      %1777 = vmatprep.subr.bf16.mxu0 0
      %1778 = vmatpush1.bf16.msra.mxu0 0
      %1779 = vmatprep.subr.bf16.mxu0 0
      %1780 = vmatpush1.bf16.msra.mxu0 0
      %1781 = vmatprep.subr.bf16.mxu0 0
      %1782 = vmatpush1.bf16.msra.mxu0 0
      %1783 = vmatprep.subr.bf16.mxu0 0
      %1784 = vmatpush1.bf16.msra.mxu0 0
      %1785 = vmatprep.subr.bf16.mxu0 0
      %1786 = vmatpush1.bf16.msra.mxu0 0
      %1787 = vmatprep.subr.bf16.mxu0 0
      %1788 = vmatpush1.bf16.msra.mxu0 0
      %1789 = vmatprep.subr.bf16.mxu0 0
      %1790 = vmatpush1.bf16.msra.mxu0 0
      %1791 = vmatprep.subr.bf16.mxu0 0
      %1792 = vmatpush1.bf16.msra.mxu0 0
      %1793 = vmatprep.mubr.bf16.mxu0 0
      %1794 = vmatmul.mubr.bf16.gmra.mrb[0].mxu0 %v1568
      %v1795 = vpop.f32.mrb[0].mxu0
      %v1796 = vadd.f32 0.0, %v1795
      %v1797 = vpop.f32.mrb[0].mxu0
      %v1798 = vadd.f32 0.0, %v1797
      %v1799 = vpop.f32.mrb[0].mxu0
      %v1800 = vpop.f32.mrb[0].mxu0
      %1801 = vdwg.mxu0
      %1802 = vmatprep.subr.bf16.mxu0 %v1700
      %1803 = vmatpush1.bf16.msra.mxu0 %v1699
      %1804 = vmatprep.subr.bf16.mxu0 %v1704
      %1805 = vmatpush1.bf16.msra.mxu0 %v1703
      %1806 = vmatprep.subr.bf16.mxu0 %v1708
      %1807 = vmatpush1.bf16.msra.mxu0 %v1707
      %1808 = vmatprep.subr.bf16.mxu0 %v1712
      %1809 = vmatpush1.bf16.msra.mxu0 %v1711
      %1810 = vmatprep.subr.bf16.mxu0 %v1716
      %1811 = vmatpush1.bf16.msra.mxu0 %v1715
      %1812 = vmatprep.subr.bf16.mxu0 %v1720
      %1813 = vmatpush1.bf16.msra.mxu0 %v1719
      %1814 = vmatprep.subr.bf16.mxu0 %v1724
      %1815 = vmatpush1.bf16.msra.mxu0 %v1723
      %1816 = vmatprep.subr.bf16.mxu0 %v1728
      %1817 = vmatpush1.bf16.msra.mxu0 %v1727
      %1818 = vmatprep.subr.bf16.mxu0 0
      %1819 = vmatpush1.bf16.msra.mxu0 0
      %1820 = vmatprep.subr.bf16.mxu0 0
      %1821 = vmatpush1.bf16.msra.mxu0 0
      %1822 = vmatprep.subr.bf16.mxu0 0
      %1823 = vmatpush1.bf16.msra.mxu0 0
      %1824 = vmatprep.subr.bf16.mxu0 0
      %1825 = vmatpush1.bf16.msra.mxu0 0
      %1826 = vmatprep.subr.bf16.mxu0 0
      %1827 = vmatpush1.bf16.msra.mxu0 0
      %1828 = vmatprep.subr.bf16.mxu0 0
      %1829 = vmatpush1.bf16.msra.mxu0 0
      %1830 = vmatprep.subr.bf16.mxu0 0
      %1831 = vmatpush1.bf16.msra.mxu0 0
      %1832 = vmatprep.subr.bf16.mxu0 0
      %1833 = vmatpush1.bf16.msra.mxu0 0
      %1834 = vmatprep.mubr.bf16.mxu0 0
      %1835 = vmatmul.mubr.bf16.gmra.mrb[0].mxu0 %v1568
      %v1836 = vpop.f32.mrb[0].mxu0
      %v1837 = vadd.f32 0.0, %v1836
      %v1838 = vpop.f32.mrb[0].mxu0
      %v1839 = vadd.f32 0.0, %v1838
      %v1840 = vpop.f32.mrb[0].mxu0
      %v1841 = vpop.f32.mrb[0].mxu0
      %1842 = vdwg.mxu0
      %v1843 = vadd.f32 %v1563, %v1796
      %v1844 = vadd.f32 %v1564, %v1798
      %v1845 = vadd.f32 %v1565, %v1837
      %v1846 = vadd.f32 %v1566, %v1839
      %v1847 = vld [vmem:[#allocation6] sm:$0xff]
      %v1848 = vxor.u32 %v1843, 2147483648
      %v1849 = vmul.f32 %v1848, 1.442695
      %v1850 = vpow.pop %v1849
      %v1851 = vadd.f32 %v1850, 1.0
      %v1852 = vrcp.pop %v1851
      %v1853 = vmul.f32 1.0, %v1852
      %v1854 = vxor.u32 %v1844, 2147483648
      %v1855 = vmul.f32 %v1854, 1.442695
      %v1856 = vpow.pop %v1855
      %v1857 = vadd.f32 %v1856, 1.0
      %v1858 = vrcp.pop %v1857
      %v1859 = vmul.f32 1.0, %v1858
      %v1860 = vtanh.pop %v1845
      %v1861 = vxor.u32 %v1846, 2147483648
      %v1862 = vmul.f32 %v1861, 1.442695
      %v1863 = vpow.pop %v1862
      %v1864 = vadd.f32 %v1863, 1.0
      %v1865 = vrcp.pop %v1864
      %v1866 = vmul.f32 1.0, %v1865
      %v1867 = vmul.f32 %v1859, %v1847
      %v1868 = vmul.f32 %v1853, %v1860
      %v1869 = vadd.f32 %v1867, %v1868
      %v1870 = vtanh.pop %v1869
      %v1871 = vmul.f32 %v1866, %v1870
      %1872 = vst [vmem:[#allocation5] sm:$0xff] %v1871
      %1873 = vst [vmem:[#allocation6] sm:$0xff] %v1869
      %1874 = vst [vmem:[#allocation2] sm:$0xff] %v1871
      %v1875 = vld [vmem:[#allocation4 + $0xe0] sm:$0xff]
      %v1876 = vld [vmem:[#allocation4 + $0xe8] sm:$0xff]
      %v1877 = vld [vmem:[#allocation4 + $0xf0] sm:$0xff]
      %v1878 = vld [vmem:[#allocation4 + $0xf8] sm:$0xff]
      %v1879 = vld [vmem:[#allocation7] sm:$0xff]
      %v1880 = vpack.c.bf16 %v1879, %v1879
      %s1881 = scalar_lea.vmem %s323, 256
      %v1882 = vld [vmem:[%s1881] sm:$0xff]
      %v1883 = vld [vmem:[%s1881 + $0x8] sm:$0xff]
      %v1884 = vld [vmem:[%s1881 + $0x10] sm:$0xff]
      %v1885 = vld [vmem:[%s1881 + $0x18] sm:$0xff]
      %v1886 = vld [vmem:[%s1881 + $0x20] sm:$0xff]
      %v1887 = vld [vmem:[%s1881 + $0x28] sm:$0xff]
      %v1888 = vld [vmem:[%s1881 + $0x30] sm:$0xff]
      %v1889 = vld [vmem:[%s1881 + $0x38] sm:$0xff]
      %v1890 = vld [vmem:[%s1881 + $0x40] sm:$0xff]
      %v1891 = vld [vmem:[%s1881 + $0x48] sm:$0xff]
      %v1892 = vld [vmem:[%s1881 + $0x50] sm:$0xff]
      %v1893 = vld [vmem:[%s1881 + $0x58] sm:$0xff]
      %v1894 = vld [vmem:[%s1881 + $0x60] sm:$0xff]
      %v1895 = vld [vmem:[%s1881 + $0x68] sm:$0xff]
      %v1896 = vld [vmem:[%s1881 + $0x70] sm:$0xff]
      %v1897 = vld [vmem:[%s1881 + $0x78] sm:$0xff]
      %v1898 = vld [vmem:[%s1881 + $0x80] sm:$0xff]
      %v1899 = vld [vmem:[%s1881 + $0x88] sm:$0xff]
      %v1900 = vld [vmem:[%s1881 + $0x90] sm:$0xff]
      %v1901 = vld [vmem:[%s1881 + $0x98] sm:$0xff]
      %v1902 = vld [vmem:[%s1881 + $0xa0] sm:$0xff]
      %v1903 = vld [vmem:[%s1881 + $0xa8] sm:$0xff]
      %v1904 = vld [vmem:[%s1881 + $0xb0] sm:$0xff]
      %v1905 = vld [vmem:[%s1881 + $0xb8] sm:$0xff]
      %v1906 = vld [vmem:[%s1881 + $0xc0] sm:$0xff]
      %v1907 = vld [vmem:[%s1881 + $0xc8] sm:$0xff]
      %v1908 = vld [vmem:[%s1881 + $0xd0] sm:$0xff]
      %v1909 = vld [vmem:[%s1881 + $0xd8] sm:$0xff]
      %v1910 = vld [vmem:[%s1881 + $0xe0] sm:$0xff]
      %v1911 = vld [vmem:[%s1881 + $0xe8] sm:$0xff]
      %v1912 = vld [vmem:[%s1881 + $0xf0] sm:$0xff]
      %v1913 = vld [vmem:[%s1881 + $0xf8] sm:$0xff]
      %v1946 = vunpack.c.l.b16 %v1882
      %v1947 = vunpack.c.h.b16 %v1882
      %v1948 = vunpack.c.l.b16 %v1883
      %v1949 = vunpack.c.h.b16 %v1883
      %v1950 = vunpack.c.l.b16 %v1884
      %v1951 = vunpack.c.h.b16 %v1884
      %v1952 = vunpack.c.l.b16 %v1885
      %v1953 = vunpack.c.h.b16 %v1885
      %v1954 = vunpack.c.l.b16 %v1886
      %v1955 = vunpack.c.h.b16 %v1886
      %v1956 = vunpack.c.l.b16 %v1887
      %v1957 = vunpack.c.h.b16 %v1887
      %v1958 = vunpack.c.l.b16 %v1888
      %v1959 = vunpack.c.h.b16 %v1888
      %v1960 = vunpack.c.l.b16 %v1889
      %v1961 = vunpack.c.h.b16 %v1889
      %v1962 = vunpack.c.l.b16 %v1890
      %v1963 = vunpack.c.h.b16 %v1890
      %v1964 = vunpack.c.l.b16 %v1891
      %v1965 = vunpack.c.h.b16 %v1891
      %v1966 = vunpack.c.l.b16 %v1892
      %v1967 = vunpack.c.h.b16 %v1892
      %v1968 = vunpack.c.l.b16 %v1893
      %v1969 = vunpack.c.h.b16 %v1893
      %v1970 = vunpack.c.l.b16 %v1894
      %v1971 = vunpack.c.h.b16 %v1894
      %v1972 = vunpack.c.l.b16 %v1895
      %v1973 = vunpack.c.h.b16 %v1895
      %v1974 = vunpack.c.l.b16 %v1896
      %v1975 = vunpack.c.h.b16 %v1896
      %v1976 = vunpack.c.l.b16 %v1897
      %v1977 = vunpack.c.h.b16 %v1897
      %v1978 = vunpack.c.l.b16 %v1898
      %v1979 = vunpack.c.h.b16 %v1898
      %v1980 = vunpack.c.l.b16 %v1899
      %v1981 = vunpack.c.h.b16 %v1899
      %v1982 = vunpack.c.l.b16 %v1900
      %v1983 = vunpack.c.h.b16 %v1900
      %v1984 = vunpack.c.l.b16 %v1901
      %v1985 = vunpack.c.h.b16 %v1901
      %v1986 = vunpack.c.l.b16 %v1902
      %v1987 = vunpack.c.h.b16 %v1902
      %v1988 = vunpack.c.l.b16 %v1903
      %v1989 = vunpack.c.h.b16 %v1903
      %v1990 = vunpack.c.l.b16 %v1904
      %v1991 = vunpack.c.h.b16 %v1904
      %v1992 = vunpack.c.l.b16 %v1905
      %v1993 = vunpack.c.h.b16 %v1905
      %v1994 = vunpack.c.l.b16 %v1906
      %v1995 = vunpack.c.h.b16 %v1906
      %v1996 = vunpack.c.l.b16 %v1907
      %v1997 = vunpack.c.h.b16 %v1907
      %v1998 = vunpack.c.l.b16 %v1908
      %v1999 = vunpack.c.h.b16 %v1908
      %v2000 = vunpack.c.l.b16 %v1909
      %v2001 = vunpack.c.h.b16 %v1909
      %v2002 = vunpack.c.l.b16 %v1910
      %v2003 = vunpack.c.h.b16 %v1910
      %v2004 = vunpack.c.l.b16 %v1911
      %v2005 = vunpack.c.h.b16 %v1911
      %v2006 = vunpack.c.l.b16 %v1912
      %v2007 = vunpack.c.h.b16 %v1912
      %v2008 = vunpack.c.l.b16 %v1913
      %v2009 = vunpack.c.h.b16 %v1913
      %v2010 = vpack.c.b16 %v1950, %v1946
      %v2011 = vpack.c.b16 %v1951, %v1947
      %v2012 = vpack.c.b16 %v1952, %v1948
      %v2013 = vpack.c.b16 %v1953, %v1949
      %v2014 = vpack.c.b16 %v1958, %v1954
      %v2015 = vpack.c.b16 %v1959, %v1955
      %v2016 = vpack.c.b16 %v1960, %v1956
      %v2017 = vpack.c.b16 %v1961, %v1957
      %v2018 = vpack.c.b16 %v1966, %v1962
      %v2019 = vpack.c.b16 %v1967, %v1963
      %v2020 = vpack.c.b16 %v1968, %v1964
      %v2021 = vpack.c.b16 %v1969, %v1965
      %v2022 = vpack.c.b16 %v1974, %v1970
      %v2023 = vpack.c.b16 %v1975, %v1971
      %v2024 = vpack.c.b16 %v1976, %v1972
      %v2025 = vpack.c.b16 %v1977, %v1973
      %v2026 = vpack.c.b16 %v1982, %v1978
      %v2027 = vpack.c.b16 %v1983, %v1979
      %v2028 = vpack.c.b16 %v1984, %v1980
      %v2029 = vpack.c.b16 %v1985, %v1981
      %v2030 = vpack.c.b16 %v1990, %v1986
      %v2031 = vpack.c.b16 %v1991, %v1987
      %v2032 = vpack.c.b16 %v1992, %v1988
      %v2033 = vpack.c.b16 %v1993, %v1989
      %v2034 = vpack.c.b16 %v1998, %v1994
      %v2035 = vpack.c.b16 %v1999, %v1995
      %v2036 = vpack.c.b16 %v2000, %v1996
      %v2037 = vpack.c.b16 %v2001, %v1997
      %v2038 = vpack.c.b16 %v2006, %v2002
      %v2039 = vpack.c.b16 %v2007, %v2003
      %v2040 = vpack.c.b16 %v2008, %v2004
      %v2041 = vpack.c.b16 %v2009, %v2005
      %2074 = vmatprep.subr.bf16.mxu0 %v2011
      %2075 = vmatpush1.bf16.msra.mxu0 %v2010
      %2076 = vmatprep.subr.bf16.mxu0 %v2015
      %2077 = vmatpush1.bf16.msra.mxu0 %v2014
      %2078 = vmatprep.subr.bf16.mxu0 %v2019
      %2079 = vmatpush1.bf16.msra.mxu0 %v2018
      %2080 = vmatprep.subr.bf16.mxu0 %v2023
      %2081 = vmatpush1.bf16.msra.mxu0 %v2022
      %2082 = vmatprep.subr.bf16.mxu0 %v2027
      %2083 = vmatpush1.bf16.msra.mxu0 %v2026
      %2084 = vmatprep.subr.bf16.mxu0 %v2031
      %2085 = vmatpush1.bf16.msra.mxu0 %v2030
      %2086 = vmatprep.subr.bf16.mxu0 %v2035
      %2087 = vmatpush1.bf16.msra.mxu0 %v2034
      %2088 = vmatprep.subr.bf16.mxu0 %v2039
      %2089 = vmatpush1.bf16.msra.mxu0 %v2038
      %2090 = vmatprep.subr.bf16.mxu0 0
      %2091 = vmatpush1.bf16.msra.mxu0 0
      %2092 = vmatprep.subr.bf16.mxu0 0
      %2093 = vmatpush1.bf16.msra.mxu0 0
      %2094 = vmatprep.subr.bf16.mxu0 0
      %2095 = vmatpush1.bf16.msra.mxu0 0
      %2096 = vmatprep.subr.bf16.mxu0 0
      %2097 = vmatpush1.bf16.msra.mxu0 0
      %2098 = vmatprep.subr.bf16.mxu0 0
      %2099 = vmatpush1.bf16.msra.mxu0 0
      %2100 = vmatprep.subr.bf16.mxu0 0
      %2101 = vmatpush1.bf16.msra.mxu0 0
      %2102 = vmatprep.subr.bf16.mxu0 0
      %2103 = vmatpush1.bf16.msra.mxu0 0
      %2104 = vmatprep.subr.bf16.mxu0 0
      %2105 = vmatpush1.bf16.msra.mxu0 0
      %2106 = vmatprep.mubr.bf16.mxu0 0
      %2107 = vmatmul.mubr.bf16.gmra.mrb[0].mxu0 %v1880
      %v2108 = vpop.f32.mrb[0].mxu0
      %v2109 = vadd.f32 0.0, %v2108
      %v2110 = vpop.f32.mrb[0].mxu0
      %v2111 = vadd.f32 0.0, %v2110
      %v2112 = vpop.f32.mrb[0].mxu0
      %v2113 = vpop.f32.mrb[0].mxu0
      %2114 = vdwg.mxu0
      %2115 = vmatprep.subr.bf16.mxu0 %v2013
      %2116 = vmatpush1.bf16.msra.mxu0 %v2012
      %2117 = vmatprep.subr.bf16.mxu0 %v2017
      %2118 = vmatpush1.bf16.msra.mxu0 %v2016
      %2119 = vmatprep.subr.bf16.mxu0 %v2021
      %2120 = vmatpush1.bf16.msra.mxu0 %v2020
      %2121 = vmatprep.subr.bf16.mxu0 %v2025
      %2122 = vmatpush1.bf16.msra.mxu0 %v2024
      %2123 = vmatprep.subr.bf16.mxu0 %v2029
      %2124 = vmatpush1.bf16.msra.mxu0 %v2028
      %2125 = vmatprep.subr.bf16.mxu0 %v2033
      %2126 = vmatpush1.bf16.msra.mxu0 %v2032
      %2127 = vmatprep.subr.bf16.mxu0 %v2037
      %2128 = vmatpush1.bf16.msra.mxu0 %v2036
      %2129 = vmatprep.subr.bf16.mxu0 %v2041
      %2130 = vmatpush1.bf16.msra.mxu0 %v2040
      %2131 = vmatprep.subr.bf16.mxu0 0
      %2132 = vmatpush1.bf16.msra.mxu0 0
      %2133 = vmatprep.subr.bf16.mxu0 0
      %2134 = vmatpush1.bf16.msra.mxu0 0
      %2135 = vmatprep.subr.bf16.mxu0 0
      %2136 = vmatpush1.bf16.msra.mxu0 0
      %2137 = vmatprep.subr.bf16.mxu0 0
      %2138 = vmatpush1.bf16.msra.mxu0 0
      %2139 = vmatprep.subr.bf16.mxu0 0
      %2140 = vmatpush1.bf16.msra.mxu0 0
      %2141 = vmatprep.subr.bf16.mxu0 0
      %2142 = vmatpush1.bf16.msra.mxu0 0
      %2143 = vmatprep.subr.bf16.mxu0 0
      %2144 = vmatpush1.bf16.msra.mxu0 0
      %2145 = vmatprep.subr.bf16.mxu0 0
      %2146 = vmatpush1.bf16.msra.mxu0 0
      %2147 = vmatprep.mubr.bf16.mxu0 0
      %2148 = vmatmul.mubr.bf16.gmra.mrb[0].mxu0 %v1880
      %v2149 = vpop.f32.mrb[0].mxu0
      %v2150 = vadd.f32 0.0, %v2149
      %v2151 = vpop.f32.mrb[0].mxu0
      %v2152 = vadd.f32 0.0, %v2151
      %v2153 = vpop.f32.mrb[0].mxu0
      %v2154 = vpop.f32.mrb[0].mxu0
      %2155 = vdwg.mxu0
      %v2156 = vadd.f32 %v1875, %v2109
      %v2157 = vadd.f32 %v1876, %v2111
      %v2158 = vadd.f32 %v1877, %v2150
      %v2159 = vadd.f32 %v1878, %v2152
      %v2160 = vld [vmem:[#allocation8] sm:$0xff]
      %v2161 = vxor.u32 %v2156, 2147483648
      %v2162 = vmul.f32 %v2161, 1.442695
      %v2163 = vpow.pop %v2162
      %v2164 = vadd.f32 %v2163, 1.0
      %v2165 = vrcp.pop %v2164
      %v2166 = vmul.f32 1.0, %v2165
      %v2167 = vxor.u32 %v2157, 2147483648
      %v2168 = vmul.f32 %v2167, 1.442695
      %v2169 = vpow.pop %v2168
      %v2170 = vadd.f32 %v2169, 1.0
      %v2171 = vrcp.pop %v2170
      %v2172 = vmul.f32 1.0, %v2171
      %v2173 = vtanh.pop %v2158
      %v2174 = vxor.u32 %v2159, 2147483648
      %v2175 = vmul.f32 %v2174, 1.442695
      %v2176 = vpow.pop %v2175
      %v2177 = vadd.f32 %v2176, 1.0
      %v2178 = vrcp.pop %v2177
      %v2179 = vmul.f32 1.0, %v2178
      %v2180 = vmul.f32 %v2172, %v2160
      %v2181 = vmul.f32 %v2166, %v2173
      %v2182 = vadd.f32 %v2180, %v2181
      %v2183 = vtanh.pop %v2182
      %v2184 = vmul.f32 %v2179, %v2183
      %2185 = vst [vmem:[#allocation7] sm:$0xff] %v2184
      %2186 = vst [vmem:[#allocation8] sm:$0xff] %v2182
      %2187 = vst [vmem:[#allocation2 + $0x78] sm:$0xff] %v2184
      %v2188 = vld [vmem:[#allocation3 + $0x20] sm:$0xff]
      %v2189 = vld [vmem:[#allocation3 + $0x28] sm:$0xff]
      %v2190 = vld [vmem:[#allocation3 + $0x30] sm:$0xff]
      %v2191 = vld [vmem:[#allocation3 + $0x38] sm:$0xff]
      %v2192 = vld [vmem:[#allocation5] sm:$0xff]
      %v2193 = vpack.c.bf16 %v2192, %v2192
      %v2194 = vld [vmem:[%s323] sm:$0xff]
      %v2195 = vld [vmem:[%s323 + $0x8] sm:$0xff]
      %v2196 = vld [vmem:[%s323 + $0x10] sm:$0xff]
      %v2197 = vld [vmem:[%s323 + $0x18] sm:$0xff]
      %v2198 = vld [vmem:[%s323 + $0x20] sm:$0xff]
      %v2199 = vld [vmem:[%s323 + $0x28] sm:$0xff]
      %v2200 = vld [vmem:[%s323 + $0x30] sm:$0xff]
      %v2201 = vld [vmem:[%s323 + $0x38] sm:$0xff]
      %v2202 = vld [vmem:[%s323 + $0x40] sm:$0xff]
      %v2203 = vld [vmem:[%s323 + $0x48] sm:$0xff]
      %v2204 = vld [vmem:[%s323 + $0x50] sm:$0xff]
      %v2205 = vld [vmem:[%s323 + $0x58] sm:$0xff]
      %v2206 = vld [vmem:[%s323 + $0x60] sm:$0xff]
      %v2207 = vld [vmem:[%s323 + $0x68] sm:$0xff]
      %v2208 = vld [vmem:[%s323 + $0x70] sm:$0xff]
      %v2209 = vld [vmem:[%s323 + $0x78] sm:$0xff]
      %v2210 = vld [vmem:[%s323 + $0x80] sm:$0xff]
      %v2211 = vld [vmem:[%s323 + $0x88] sm:$0xff]
      %v2212 = vld [vmem:[%s323 + $0x90] sm:$0xff]
      %v2213 = vld [vmem:[%s323 + $0x98] sm:$0xff]
      %v2214 = vld [vmem:[%s323 + $0xa0] sm:$0xff]
      %v2215 = vld [vmem:[%s323 + $0xa8] sm:$0xff]
      %v2216 = vld [vmem:[%s323 + $0xb0] sm:$0xff]
      %v2217 = vld [vmem:[%s323 + $0xb8] sm:$0xff]
      %v2218 = vld [vmem:[%s323 + $0xc0] sm:$0xff]
      %v2219 = vld [vmem:[%s323 + $0xc8] sm:$0xff]
      %v2220 = vld [vmem:[%s323 + $0xd0] sm:$0xff]
      %v2221 = vld [vmem:[%s323 + $0xd8] sm:$0xff]
      %v2222 = vld [vmem:[%s323 + $0xe0] sm:$0xff]
      %v2223 = vld [vmem:[%s323 + $0xe8] sm:$0xff]
      %v2224 = vld [vmem:[%s323 + $0xf0] sm:$0xff]
      %v2225 = vld [vmem:[%s323 + $0xf8] sm:$0xff]
      %v2258 = vunpack.c.l.b16 %v2194
      %v2259 = vunpack.c.h.b16 %v2194
      %v2260 = vunpack.c.l.b16 %v2195
      %v2261 = vunpack.c.h.b16 %v2195
      %v2262 = vunpack.c.l.b16 %v2196
      %v2263 = vunpack.c.h.b16 %v2196
      %v2264 = vunpack.c.l.b16 %v2197
      %v2265 = vunpack.c.h.b16 %v2197
      %v2266 = vunpack.c.l.b16 %v2198
      %v2267 = vunpack.c.h.b16 %v2198
      %v2268 = vunpack.c.l.b16 %v2199
      %v2269 = vunpack.c.h.b16 %v2199
      %v2270 = vunpack.c.l.b16 %v2200
      %v2271 = vunpack.c.h.b16 %v2200
      %v2272 = vunpack.c.l.b16 %v2201
      %v2273 = vunpack.c.h.b16 %v2201
      %v2274 = vunpack.c.l.b16 %v2202
      %v2275 = vunpack.c.h.b16 %v2202
      %v2276 = vunpack.c.l.b16 %v2203
      %v2277 = vunpack.c.h.b16 %v2203
      %v2278 = vunpack.c.l.b16 %v2204
      %v2279 = vunpack.c.h.b16 %v2204
      %v2280 = vunpack.c.l.b16 %v2205
      %v2281 = vunpack.c.h.b16 %v2205
      %v2282 = vunpack.c.l.b16 %v2206
      %v2283 = vunpack.c.h.b16 %v2206
      %v2284 = vunpack.c.l.b16 %v2207
      %v2285 = vunpack.c.h.b16 %v2207
      %v2286 = vunpack.c.l.b16 %v2208
      %v2287 = vunpack.c.h.b16 %v2208
      %v2288 = vunpack.c.l.b16 %v2209
      %v2289 = vunpack.c.h.b16 %v2209
      %v2290 = vunpack.c.l.b16 %v2210
      %v2291 = vunpack.c.h.b16 %v2210
      %v2292 = vunpack.c.l.b16 %v2211
      %v2293 = vunpack.c.h.b16 %v2211
      %v2294 = vunpack.c.l.b16 %v2212
      %v2295 = vunpack.c.h.b16 %v2212
      %v2296 = vunpack.c.l.b16 %v2213
      %v2297 = vunpack.c.h.b16 %v2213
      %v2298 = vunpack.c.l.b16 %v2214
      %v2299 = vunpack.c.h.b16 %v2214
      %v2300 = vunpack.c.l.b16 %v2215
      %v2301 = vunpack.c.h.b16 %v2215
      %v2302 = vunpack.c.l.b16 %v2216
      %v2303 = vunpack.c.h.b16 %v2216
      %v2304 = vunpack.c.l.b16 %v2217
      %v2305 = vunpack.c.h.b16 %v2217
      %v2306 = vunpack.c.l.b16 %v2218
      %v2307 = vunpack.c.h.b16 %v2218
      %v2308 = vunpack.c.l.b16 %v2219
      %v2309 = vunpack.c.h.b16 %v2219
      %v2310 = vunpack.c.l.b16 %v2220
      %v2311 = vunpack.c.h.b16 %v2220
      %v2312 = vunpack.c.l.b16 %v2221
      %v2313 = vunpack.c.h.b16 %v2221
      %v2314 = vunpack.c.l.b16 %v2222
      %v2315 = vunpack.c.h.b16 %v2222
      %v2316 = vunpack.c.l.b16 %v2223
      %v2317 = vunpack.c.h.b16 %v2223
      %v2318 = vunpack.c.l.b16 %v2224
      %v2319 = vunpack.c.h.b16 %v2224
      %v2320 = vunpack.c.l.b16 %v2225
      %v2321 = vunpack.c.h.b16 %v2225
      %v2322 = vpack.c.b16 %v2262, %v2258
      %v2323 = vpack.c.b16 %v2263, %v2259
      %v2324 = vpack.c.b16 %v2264, %v2260
      %v2325 = vpack.c.b16 %v2265, %v2261
      %v2326 = vpack.c.b16 %v2270, %v2266
      %v2327 = vpack.c.b16 %v2271, %v2267
      %v2328 = vpack.c.b16 %v2272, %v2268
      %v2329 = vpack.c.b16 %v2273, %v2269
      %v2330 = vpack.c.b16 %v2278, %v2274
      %v2331 = vpack.c.b16 %v2279, %v2275
      %v2332 = vpack.c.b16 %v2280, %v2276
      %v2333 = vpack.c.b16 %v2281, %v2277
      %v2334 = vpack.c.b16 %v2286, %v2282
      %v2335 = vpack.c.b16 %v2287, %v2283
      %v2336 = vpack.c.b16 %v2288, %v2284
      %v2337 = vpack.c.b16 %v2289, %v2285
      %v2338 = vpack.c.b16 %v2294, %v2290
      %v2339 = vpack.c.b16 %v2295, %v2291
      %v2340 = vpack.c.b16 %v2296, %v2292
      %v2341 = vpack.c.b16 %v2297, %v2293
      %v2342 = vpack.c.b16 %v2302, %v2298
      %v2343 = vpack.c.b16 %v2303, %v2299
      %v2344 = vpack.c.b16 %v2304, %v2300
      %v2345 = vpack.c.b16 %v2305, %v2301
      %v2346 = vpack.c.b16 %v2310, %v2306
      %v2347 = vpack.c.b16 %v2311, %v2307
      %v2348 = vpack.c.b16 %v2312, %v2308
      %v2349 = vpack.c.b16 %v2313, %v2309
      %v2350 = vpack.c.b16 %v2318, %v2314
      %v2351 = vpack.c.b16 %v2319, %v2315
      %v2352 = vpack.c.b16 %v2320, %v2316
      %v2353 = vpack.c.b16 %v2321, %v2317
      %2386 = vmatprep.subr.bf16.mxu0 %v2323
      %2387 = vmatpush1.bf16.msra.mxu0 %v2322
      %2388 = vmatprep.subr.bf16.mxu0 %v2327
      %2389 = vmatpush1.bf16.msra.mxu0 %v2326
      %2390 = vmatprep.subr.bf16.mxu0 %v2331
      %2391 = vmatpush1.bf16.msra.mxu0 %v2330
      %2392 = vmatprep.subr.bf16.mxu0 %v2335
      %2393 = vmatpush1.bf16.msra.mxu0 %v2334
      %2394 = vmatprep.subr.bf16.mxu0 %v2339
      %2395 = vmatpush1.bf16.msra.mxu0 %v2338
      %2396 = vmatprep.subr.bf16.mxu0 %v2343
      %2397 = vmatpush1.bf16.msra.mxu0 %v2342
      %2398 = vmatprep.subr.bf16.mxu0 %v2347
      %2399 = vmatpush1.bf16.msra.mxu0 %v2346
      %2400 = vmatprep.subr.bf16.mxu0 %v2351
      %2401 = vmatpush1.bf16.msra.mxu0 %v2350
      %2402 = vmatprep.subr.bf16.mxu0 0
      %2403 = vmatpush1.bf16.msra.mxu0 0
      %2404 = vmatprep.subr.bf16.mxu0 0
      %2405 = vmatpush1.bf16.msra.mxu0 0
      %2406 = vmatprep.subr.bf16.mxu0 0
      %2407 = vmatpush1.bf16.msra.mxu0 0
      %2408 = vmatprep.subr.bf16.mxu0 0
      %2409 = vmatpush1.bf16.msra.mxu0 0
      %2410 = vmatprep.subr.bf16.mxu0 0
      %2411 = vmatpush1.bf16.msra.mxu0 0
      %2412 = vmatprep.subr.bf16.mxu0 0
      %2413 = vmatpush1.bf16.msra.mxu0 0
      %2414 = vmatprep.subr.bf16.mxu0 0
      %2415 = vmatpush1.bf16.msra.mxu0 0
      %2416 = vmatprep.subr.bf16.mxu0 0
      %2417 = vmatpush1.bf16.msra.mxu0 0
      %2418 = vmatprep.mubr.bf16.mxu0 0
      %2419 = vmatmul.mubr.bf16.gmra.mrb[0].mxu0 %v2193
      %v2420 = vpop.f32.mrb[0].mxu0
      %v2421 = vadd.f32 0.0, %v2420
      %v2422 = vpop.f32.mrb[0].mxu0
      %v2423 = vadd.f32 0.0, %v2422
      %v2424 = vpop.f32.mrb[0].mxu0
      %v2425 = vpop.f32.mrb[0].mxu0
      %2426 = vdwg.mxu0
      %2427 = vmatprep.subr.bf16.mxu0 %v2325
      %2428 = vmatpush1.bf16.msra.mxu0 %v2324
      %2429 = vmatprep.subr.bf16.mxu0 %v2329
      %2430 = vmatpush1.bf16.msra.mxu0 %v2328
      %2431 = vmatprep.subr.bf16.mxu0 %v2333
      %2432 = vmatpush1.bf16.msra.mxu0 %v2332
      %2433 = vmatprep.subr.bf16.mxu0 %v2337
      %2434 = vmatpush1.bf16.msra.mxu0 %v2336
      %2435 = vmatprep.subr.bf16.mxu0 %v2341
      %2436 = vmatpush1.bf16.msra.mxu0 %v2340
      %2437 = vmatprep.subr.bf16.mxu0 %v2345
      %2438 = vmatpush1.bf16.msra.mxu0 %v2344
      %2439 = vmatprep.subr.bf16.mxu0 %v2349
      %2440 = vmatpush1.bf16.msra.mxu0 %v2348
      %2441 = vmatprep.subr.bf16.mxu0 %v2353
      %2442 = vmatpush1.bf16.msra.mxu0 %v2352
      %2443 = vmatprep.subr.bf16.mxu0 0
      %2444 = vmatpush1.bf16.msra.mxu0 0
      %2445 = vmatprep.subr.bf16.mxu0 0
      %2446 = vmatpush1.bf16.msra.mxu0 0
      %2447 = vmatprep.subr.bf16.mxu0 0
      %2448 = vmatpush1.bf16.msra.mxu0 0
      %2449 = vmatprep.subr.bf16.mxu0 0
      %2450 = vmatpush1.bf16.msra.mxu0 0
      %2451 = vmatprep.subr.bf16.mxu0 0
      %2452 = vmatpush1.bf16.msra.mxu0 0
      %2453 = vmatprep.subr.bf16.mxu0 0
      %2454 = vmatpush1.bf16.msra.mxu0 0
      %2455 = vmatprep.subr.bf16.mxu0 0
      %2456 = vmatpush1.bf16.msra.mxu0 0
      %2457 = vmatprep.subr.bf16.mxu0 0
      %2458 = vmatpush1.bf16.msra.mxu0 0
      %2459 = vmatprep.mubr.bf16.mxu0 0
      %2460 = vmatmul.mubr.bf16.gmra.mrb[0].mxu0 %v2193
      %v2461 = vpop.f32.mrb[0].mxu0
      %v2462 = vadd.f32 0.0, %v2461
      %v2463 = vpop.f32.mrb[0].mxu0
      %v2464 = vadd.f32 0.0, %v2463
      %v2465 = vpop.f32.mrb[0].mxu0
      %v2466 = vpop.f32.mrb[0].mxu0
      %2467 = vdwg.mxu0
      %v2468 = vadd.f32 %v2188, %v2421
      %v2469 = vadd.f32 %v2189, %v2423
      %v2470 = vadd.f32 %v2190, %v2462
      %v2471 = vadd.f32 %v2191, %v2464
      %v2472 = vld [vmem:[#allocation6] sm:$0xff]
      %v2473 = vxor.u32 %v2468, 2147483648
      %v2474 = vmul.f32 %v2473, 1.442695
      %v2475 = vpow.pop %v2474
      %v2476 = vadd.f32 %v2475, 1.0
      %v2477 = vrcp.pop %v2476
      %v2478 = vmul.f32 1.0, %v2477
      %v2479 = vxor.u32 %v2469, 2147483648
      %v2480 = vmul.f32 %v2479, 1.442695
      %v2481 = vpow.pop %v2480
      %v2482 = vadd.f32 %v2481, 1.0
      %v2483 = vrcp.pop %v2482
      %v2484 = vmul.f32 1.0, %v2483
      %v2485 = vtanh.pop %v2470
      %v2486 = vxor.u32 %v2471, 2147483648
      %v2487 = vmul.f32 %v2486, 1.442695
      %v2488 = vpow.pop %v2487
      %v2489 = vadd.f32 %v2488, 1.0
      %v2490 = vrcp.pop %v2489
      %v2491 = vmul.f32 1.0, %v2490
      %v2492 = vmul.f32 %v2484, %v2472
      %v2493 = vmul.f32 %v2478, %v2485
      %v2494 = vadd.f32 %v2492, %v2493
      %v2495 = vtanh.pop %v2494
      %v2496 = vmul.f32 %v2491, %v2495
      %2497 = vst [vmem:[#allocation5] sm:$0xff] %v2496
      %2498 = vst [vmem:[#allocation6] sm:$0xff] %v2494
      %2499 = vst [vmem:[#allocation2 + $0x10] sm:$0xff] %v2496
      %v2500 = vld [vmem:[#allocation4 + $0xc0] sm:$0xff]
      %v2501 = vld [vmem:[#allocation4 + $0xc8] sm:$0xff]
      %v2502 = vld [vmem:[#allocation4 + $0xd0] sm:$0xff]
      %v2503 = vld [vmem:[#allocation4 + $0xd8] sm:$0xff]
      %v2504 = vld [vmem:[#allocation7] sm:$0xff]
      %v2505 = vpack.c.bf16 %v2504, %v2504
      %v2506 = vld [vmem:[%s1881] sm:$0xff]
      %v2507 = vld [vmem:[%s1881 + $0x8] sm:$0xff]
      %v2508 = vld [vmem:[%s1881 + $0x10] sm:$0xff]
      %v2509 = vld [vmem:[%s1881 + $0x18] sm:$0xff]
      %v2510 = vld [vmem:[%s1881 + $0x20] sm:$0xff]
      %v2511 = vld [vmem:[%s1881 + $0x28] sm:$0xff]
      %v2512 = vld [vmem:[%s1881 + $0x30] sm:$0xff]
      %v2513 = vld [vmem:[%s1881 + $0x38] sm:$0xff]
      %v2514 = vld [vmem:[%s1881 + $0x40] sm:$0xff]
      %v2515 = vld [vmem:[%s1881 + $0x48] sm:$0xff]
      %v2516 = vld [vmem:[%s1881 + $0x50] sm:$0xff]
      %v2517 = vld [vmem:[%s1881 + $0x58] sm:$0xff]
      %v2518 = vld [vmem:[%s1881 + $0x60] sm:$0xff]
      %v2519 = vld [vmem:[%s1881 + $0x68] sm:$0xff]
      %v2520 = vld [vmem:[%s1881 + $0x70] sm:$0xff]
      %v2521 = vld [vmem:[%s1881 + $0x78] sm:$0xff]
      %v2522 = vld [vmem:[%s1881 + $0x80] sm:$0xff]
      %v2523 = vld [vmem:[%s1881 + $0x88] sm:$0xff]
      %v2524 = vld [vmem:[%s1881 + $0x90] sm:$0xff]
      %v2525 = vld [vmem:[%s1881 + $0x98] sm:$0xff]
      %v2526 = vld [vmem:[%s1881 + $0xa0] sm:$0xff]
      %v2527 = vld [vmem:[%s1881 + $0xa8] sm:$0xff]
      %v2528 = vld [vmem:[%s1881 + $0xb0] sm:$0xff]
      %v2529 = vld [vmem:[%s1881 + $0xb8] sm:$0xff]
      %v2530 = vld [vmem:[%s1881 + $0xc0] sm:$0xff]
      %v2531 = vld [vmem:[%s1881 + $0xc8] sm:$0xff]
      %v2532 = vld [vmem:[%s1881 + $0xd0] sm:$0xff]
      %v2533 = vld [vmem:[%s1881 + $0xd8] sm:$0xff]
      %v2534 = vld [vmem:[%s1881 + $0xe0] sm:$0xff]
      %v2535 = vld [vmem:[%s1881 + $0xe8] sm:$0xff]
      %v2536 = vld [vmem:[%s1881 + $0xf0] sm:$0xff]
      %v2537 = vld [vmem:[%s1881 + $0xf8] sm:$0xff]
      %v2570 = vunpack.c.l.b16 %v2506
      %v2571 = vunpack.c.h.b16 %v2506
      %v2572 = vunpack.c.l.b16 %v2507
      %v2573 = vunpack.c.h.b16 %v2507
      %v2574 = vunpack.c.l.b16 %v2508
      %v2575 = vunpack.c.h.b16 %v2508
      %v2576 = vunpack.c.l.b16 %v2509
      %v2577 = vunpack.c.h.b16 %v2509
      %v2578 = vunpack.c.l.b16 %v2510
      %v2579 = vunpack.c.h.b16 %v2510
      %v2580 = vunpack.c.l.b16 %v2511
      %v2581 = vunpack.c.h.b16 %v2511
      %v2582 = vunpack.c.l.b16 %v2512
      %v2583 = vunpack.c.h.b16 %v2512
      %v2584 = vunpack.c.l.b16 %v2513
      %v2585 = vunpack.c.h.b16 %v2513
      %v2586 = vunpack.c.l.b16 %v2514
      %v2587 = vunpack.c.h.b16 %v2514
      %v2588 = vunpack.c.l.b16 %v2515
      %v2589 = vunpack.c.h.b16 %v2515
      %v2590 = vunpack.c.l.b16 %v2516
      %v2591 = vunpack.c.h.b16 %v2516
      %v2592 = vunpack.c.l.b16 %v2517
      %v2593 = vunpack.c.h.b16 %v2517
      %v2594 = vunpack.c.l.b16 %v2518
      %v2595 = vunpack.c.h.b16 %v2518
      %v2596 = vunpack.c.l.b16 %v2519
      %v2597 = vunpack.c.h.b16 %v2519
      %v2598 = vunpack.c.l.b16 %v2520
      %v2599 = vunpack.c.h.b16 %v2520
      %v2600 = vunpack.c.l.b16 %v2521
      %v2601 = vunpack.c.h.b16 %v2521
      %v2602 = vunpack.c.l.b16 %v2522
      %v2603 = vunpack.c.h.b16 %v2522
      %v2604 = vunpack.c.l.b16 %v2523
      %v2605 = vunpack.c.h.b16 %v2523
      %v2606 = vunpack.c.l.b16 %v2524
      %v2607 = vunpack.c.h.b16 %v2524
      %v2608 = vunpack.c.l.b16 %v2525
      %v2609 = vunpack.c.h.b16 %v2525
      %v2610 = vunpack.c.l.b16 %v2526
      %v2611 = vunpack.c.h.b16 %v2526
      %v2612 = vunpack.c.l.b16 %v2527
      %v2613 = vunpack.c.h.b16 %v2527
      %v2614 = vunpack.c.l.b16 %v2528
      %v2615 = vunpack.c.h.b16 %v2528
      %v2616 = vunpack.c.l.b16 %v2529
      %v2617 = vunpack.c.h.b16 %v2529
      %v2618 = vunpack.c.l.b16 %v2530
      %v2619 = vunpack.c.h.b16 %v2530
      %v2620 = vunpack.c.l.b16 %v2531
      %v2621 = vunpack.c.h.b16 %v2531
      %v2622 = vunpack.c.l.b16 %v2532
      %v2623 = vunpack.c.h.b16 %v2532
      %v2624 = vunpack.c.l.b16 %v2533
      %v2625 = vunpack.c.h.b16 %v2533
      %v2626 = vunpack.c.l.b16 %v2534
      %v2627 = vunpack.c.h.b16 %v2534
      %v2628 = vunpack.c.l.b16 %v2535
      %v2629 = vunpack.c.h.b16 %v2535
      %v2630 = vunpack.c.l.b16 %v2536
      %v2631 = vunpack.c.h.b16 %v2536
      %v2632 = vunpack.c.l.b16 %v2537
      %v2633 = vunpack.c.h.b16 %v2537
      %v2634 = vpack.c.b16 %v2574, %v2570
      %v2635 = vpack.c.b16 %v2575, %v2571
      %v2636 = vpack.c.b16 %v2576, %v2572
      %v2637 = vpack.c.b16 %v2577, %v2573
      %v2638 = vpack.c.b16 %v2582, %v2578
      %v2639 = vpack.c.b16 %v2583, %v2579
      %v2640 = vpack.c.b16 %v2584, %v2580
      %v2641 = vpack.c.b16 %v2585, %v2581
      %v2642 = vpack.c.b16 %v2590, %v2586
      %v2643 = vpack.c.b16 %v2591, %v2587
      %v2644 = vpack.c.b16 %v2592, %v2588
      %v2645 = vpack.c.b16 %v2593, %v2589
      %v2646 = vpack.c.b16 %v2598, %v2594
      %v2647 = vpack.c.b16 %v2599, %v2595
      %v2648 = vpack.c.b16 %v2600, %v2596
      %v2649 = vpack.c.b16 %v2601, %v2597
      %v2650 = vpack.c.b16 %v2606, %v2602
      %v2651 = vpack.c.b16 %v2607, %v2603
      %v2652 = vpack.c.b16 %v2608, %v2604
      %v2653 = vpack.c.b16 %v2609, %v2605
      %v2654 = vpack.c.b16 %v2614, %v2610
      %v2655 = vpack.c.b16 %v2615, %v2611
      %v2656 = vpack.c.b16 %v2616, %v2612
      %v2657 = vpack.c.b16 %v2617, %v2613
      %v2658 = vpack.c.b16 %v2622, %v2618
      %v2659 = vpack.c.b16 %v2623, %v2619
      %v2660 = vpack.c.b16 %v2624, %v2620
      %v2661 = vpack.c.b16 %v2625, %v2621
      %v2662 = vpack.c.b16 %v2630, %v2626
      %v2663 = vpack.c.b16 %v2631, %v2627
      %v2664 = vpack.c.b16 %v2632, %v2628
      %v2665 = vpack.c.b16 %v2633, %v2629
      %2698 = vmatprep.subr.bf16.mxu0 %v2635
      %2699 = vmatpush1.bf16.msra.mxu0 %v2634
      %2700 = vmatprep.subr.bf16.mxu0 %v2639
      %2701 = vmatpush1.bf16.msra.mxu0 %v2638
      %2702 = vmatprep.subr.bf16.mxu0 %v2643
      %2703 = vmatpush1.bf16.msra.mxu0 %v2642
      %2704 = vmatprep.subr.bf16.mxu0 %v2647
      %2705 = vmatpush1.bf16.msra.mxu0 %v2646
      %2706 = vmatprep.subr.bf16.mxu0 %v2651
      %2707 = vmatpush1.bf16.msra.mxu0 %v2650
      %2708 = vmatprep.subr.bf16.mxu0 %v2655
      %2709 = vmatpush1.bf16.msra.mxu0 %v2654
      %2710 = vmatprep.subr.bf16.mxu0 %v2659
      %2711 = vmatpush1.bf16.msra.mxu0 %v2658
      %2712 = vmatprep.subr.bf16.mxu0 %v2663
      %2713 = vmatpush1.bf16.msra.mxu0 %v2662
      %2714 = vmatprep.subr.bf16.mxu0 0
      %2715 = vmatpush1.bf16.msra.mxu0 0
      %2716 = vmatprep.subr.bf16.mxu0 0
      %2717 = vmatpush1.bf16.msra.mxu0 0
      %2718 = vmatprep.subr.bf16.mxu0 0
      %2719 = vmatpush1.bf16.msra.mxu0 0
      %2720 = vmatprep.subr.bf16.mxu0 0
      %2721 = vmatpush1.bf16.msra.mxu0 0
      %2722 = vmatprep.subr.bf16.mxu0 0
      %2723 = vmatpush1.bf16.msra.mxu0 0
      %2724 = vmatprep.subr.bf16.mxu0 0
      %2725 = vmatpush1.bf16.msra.mxu0 0
      %2726 = vmatprep.subr.bf16.mxu0 0
      %2727 = vmatpush1.bf16.msra.mxu0 0
      %2728 = vmatprep.subr.bf16.mxu0 0
      %2729 = vmatpush1.bf16.msra.mxu0 0
      %2730 = vmatprep.mubr.bf16.mxu0 0
      %2731 = vmatmul.mubr.bf16.gmra.mrb[0].mxu0 %v2505
      %v2732 = vpop.f32.mrb[0].mxu0
      %v2733 = vadd.f32 0.0, %v2732
      %v2734 = vpop.f32.mrb[0].mxu0
      %v2735 = vadd.f32 0.0, %v2734
      %v2736 = vpop.f32.mrb[0].mxu0
      %v2737 = vpop.f32.mrb[0].mxu0
      %2738 = vdwg.mxu0
      %2739 = vmatprep.subr.bf16.mxu0 %v2637
      %2740 = vmatpush1.bf16.msra.mxu0 %v2636
      %2741 = vmatprep.subr.bf16.mxu0 %v2641
      %2742 = vmatpush1.bf16.msra.mxu0 %v2640
      %2743 = vmatprep.subr.bf16.mxu0 %v2645
      %2744 = vmatpush1.bf16.msra.mxu0 %v2644
      %2745 = vmatprep.subr.bf16.mxu0 %v2649
      %2746 = vmatpush1.bf16.msra.mxu0 %v2648
      %2747 = vmatprep.subr.bf16.mxu0 %v2653
      %2748 = vmatpush1.bf16.msra.mxu0 %v2652
      %2749 = vmatprep.subr.bf16.mxu0 %v2657
      %2750 = vmatpush1.bf16.msra.mxu0 %v2656
      %2751 = vmatprep.subr.bf16.mxu0 %v2661
      %2752 = vmatpush1.bf16.msra.mxu0 %v2660
      %2753 = vmatprep.subr.bf16.mxu0 %v2665
      %2754 = vmatpush1.bf16.msra.mxu0 %v2664
      %2755 = vmatprep.subr.bf16.mxu0 0
      %2756 = vmatpush1.bf16.msra.mxu0 0
      %2757 = vmatprep.subr.bf16.mxu0 0
      %2758 = vmatpush1.bf16.msra.mxu0 0
      %2759 = vmatprep.subr.bf16.mxu0 0
      %2760 = vmatpush1.bf16.msra.mxu0 0
      %2761 = vmatprep.subr.bf16.mxu0 0
      %2762 = vmatpush1.bf16.msra.mxu0 0
      %2763 = vmatprep.subr.bf16.mxu0 0
      %2764 = vmatpush1.bf16.msra.mxu0 0
      %2765 = vmatprep.subr.bf16.mxu0 0
      %2766 = vmatpush1.bf16.msra.mxu0 0
      %2767 = vmatprep.subr.bf16.mxu0 0
      %2768 = vmatpush1.bf16.msra.mxu0 0
      %2769 = vmatprep.subr.bf16.mxu0 0
      %2770 = vmatpush1.bf16.msra.mxu0 0
      %2771 = vmatprep.mubr.bf16.mxu0 0
      %2772 = vmatmul.mubr.bf16.gmra.mrb[0].mxu0 %v2505
      %v2773 = vpop.f32.mrb[0].mxu0
      %v2774 = vadd.f32 0.0, %v2773
      %v2775 = vpop.f32.mrb[0].mxu0
      %v2776 = vadd.f32 0.0, %v2775
      %v2777 = vpop.f32.mrb[0].mxu0
      %v2778 = vpop.f32.mrb[0].mxu0
      %2779 = vdwg.mxu0
      %v2780 = vadd.f32 %v2500, %v2733
      %v2781 = vadd.f32 %v2501, %v2735
      %v2782 = vadd.f32 %v2502, %v2774
      %v2783 = vadd.f32 %v2503, %v2776
      %v2784 = vld [vmem:[#allocation8] sm:$0xff]
      %v2785 = vxor.u32 %v2780, 2147483648
      %v2786 = vmul.f32 %v2785, 1.442695
      %v2787 = vpow.pop %v2786
      %v2788 = vadd.f32 %v2787, 1.0
      %v2789 = vrcp.pop %v2788
      %v2790 = vmul.f32 1.0, %v2789
      %v2791 = vxor.u32 %v2781, 2147483648
      %v2792 = vmul.f32 %v2791, 1.442695
      %v2793 = vpow.pop %v2792
      %v2794 = vadd.f32 %v2793, 1.0
      %v2795 = vrcp.pop %v2794
      %v2796 = vmul.f32 1.0, %v2795
      %v2797 = vtanh.pop %v2782
      %v2798 = vxor.u32 %v2783, 2147483648
      %v2799 = vmul.f32 %v2798, 1.442695
      %v2800 = vpow.pop %v2799
      %v2801 = vadd.f32 %v2800, 1.0
      %v2802 = vrcp.pop %v2801
      %v2803 = vmul.f32 1.0, %v2802
      %v2804 = vmul.f32 %v2796, %v2784
      %v2805 = vmul.f32 %v2790, %v2797
      %v2806 = vadd.f32 %v2804, %v2805
      %v2807 = vtanh.pop %v2806
      %v2808 = vmul.f32 %v2803, %v2807
      %2809 = vst [vmem:[#allocation7] sm:$0xff] %v2808
      %2810 = vst [vmem:[#allocation8] sm:$0xff] %v2806
      %2811 = vst [vmem:[#allocation2 + $0x68] sm:$0xff] %v2808
      %v2812 = vld [vmem:[#allocation3 + $0x40] sm:$0xff]
      %v2813 = vld [vmem:[#allocation3 + $0x48] sm:$0xff]
      %v2814 = vld [vmem:[#allocation3 + $0x50] sm:$0xff]
      %v2815 = vld [vmem:[#allocation3 + $0x58] sm:$0xff]
      %v2816 = vld [vmem:[#allocation5] sm:$0xff]
      %v2817 = vpack.c.bf16 %v2816, %v2816
      %v2818 = vld [vmem:[%s323] sm:$0xff]
      %v2819 = vld [vmem:[%s323 + $0x8] sm:$0xff]
      %v2820 = vld [vmem:[%s323 + $0x10] sm:$0xff]
      %v2821 = vld [vmem:[%s323 + $0x18] sm:$0xff]
      %v2822 = vld [vmem:[%s323 + $0x20] sm:$0xff]
      %v2823 = vld [vmem:[%s323 + $0x28] sm:$0xff]
      %v2824 = vld [vmem:[%s323 + $0x30] sm:$0xff]
      %v2825 = vld [vmem:[%s323 + $0x38] sm:$0xff]
      %v2826 = vld [vmem:[%s323 + $0x40] sm:$0xff]
      %v2827 = vld [vmem:[%s323 + $0x48] sm:$0xff]
      %v2828 = vld [vmem:[%s323 + $0x50] sm:$0xff]
      %v2829 = vld [vmem:[%s323 + $0x58] sm:$0xff]
      %v2830 = vld [vmem:[%s323 + $0x60] sm:$0xff]
      %v2831 = vld [vmem:[%s323 + $0x68] sm:$0xff]
      %v2832 = vld [vmem:[%s323 + $0x70] sm:$0xff]
      %v2833 = vld [vmem:[%s323 + $0x78] sm:$0xff]
      %v2834 = vld [vmem:[%s323 + $0x80] sm:$0xff]
      %v2835 = vld [vmem:[%s323 + $0x88] sm:$0xff]
      %v2836 = vld [vmem:[%s323 + $0x90] sm:$0xff]
      %v2837 = vld [vmem:[%s323 + $0x98] sm:$0xff]
      %v2838 = vld [vmem:[%s323 + $0xa0] sm:$0xff]
      %v2839 = vld [vmem:[%s323 + $0xa8] sm:$0xff]
      %v2840 = vld [vmem:[%s323 + $0xb0] sm:$0xff]
      %v2841 = vld [vmem:[%s323 + $0xb8] sm:$0xff]
      %v2842 = vld [vmem:[%s323 + $0xc0] sm:$0xff]
      %v2843 = vld [vmem:[%s323 + $0xc8] sm:$0xff]
      %v2844 = vld [vmem:[%s323 + $0xd0] sm:$0xff]
      %v2845 = vld [vmem:[%s323 + $0xd8] sm:$0xff]
      %v2846 = vld [vmem:[%s323 + $0xe0] sm:$0xff]
      %v2847 = vld [vmem:[%s323 + $0xe8] sm:$0xff]
      %v2848 = vld [vmem:[%s323 + $0xf0] sm:$0xff]
      %v2849 = vld [vmem:[%s323 + $0xf8] sm:$0xff]
      %v2882 = vunpack.c.l.b16 %v2818
      %v2883 = vunpack.c.h.b16 %v2818
      %v2884 = vunpack.c.l.b16 %v2819
      %v2885 = vunpack.c.h.b16 %v2819
      %v2886 = vunpack.c.l.b16 %v2820
      %v2887 = vunpack.c.h.b16 %v2820
      %v2888 = vunpack.c.l.b16 %v2821
      %v2889 = vunpack.c.h.b16 %v2821
      %v2890 = vunpack.c.l.b16 %v2822
      %v2891 = vunpack.c.h.b16 %v2822
      %v2892 = vunpack.c.l.b16 %v2823
      %v2893 = vunpack.c.h.b16 %v2823
      %v2894 = vunpack.c.l.b16 %v2824
      %v2895 = vunpack.c.h.b16 %v2824
      %v2896 = vunpack.c.l.b16 %v2825
      %v2897 = vunpack.c.h.b16 %v2825
      %v2898 = vunpack.c.l.b16 %v2826
      %v2899 = vunpack.c.h.b16 %v2826
      %v2900 = vunpack.c.l.b16 %v2827
      %v2901 = vunpack.c.h.b16 %v2827
      %v2902 = vunpack.c.l.b16 %v2828
      %v2903 = vunpack.c.h.b16 %v2828
      %v2904 = vunpack.c.l.b16 %v2829
      %v2905 = vunpack.c.h.b16 %v2829
      %v2906 = vunpack.c.l.b16 %v2830
      %v2907 = vunpack.c.h.b16 %v2830
      %v2908 = vunpack.c.l.b16 %v2831
      %v2909 = vunpack.c.h.b16 %v2831
      %v2910 = vunpack.c.l.b16 %v2832
      %v2911 = vunpack.c.h.b16 %v2832
      %v2912 = vunpack.c.l.b16 %v2833
      %v2913 = vunpack.c.h.b16 %v2833
      %v2914 = vunpack.c.l.b16 %v2834
      %v2915 = vunpack.c.h.b16 %v2834
      %v2916 = vunpack.c.l.b16 %v2835
      %v2917 = vunpack.c.h.b16 %v2835
      %v2918 = vunpack.c.l.b16 %v2836
      %v2919 = vunpack.c.h.b16 %v2836
      %v2920 = vunpack.c.l.b16 %v2837
      %v2921 = vunpack.c.h.b16 %v2837
      %v2922 = vunpack.c.l.b16 %v2838
      %v2923 = vunpack.c.h.b16 %v2838
      %v2924 = vunpack.c.l.b16 %v2839
      %v2925 = vunpack.c.h.b16 %v2839
      %v2926 = vunpack.c.l.b16 %v2840
      %v2927 = vunpack.c.h.b16 %v2840
      %v2928 = vunpack.c.l.b16 %v2841
      %v2929 = vunpack.c.h.b16 %v2841
      %v2930 = vunpack.c.l.b16 %v2842
      %v2931 = vunpack.c.h.b16 %v2842
      %v2932 = vunpack.c.l.b16 %v2843
      %v2933 = vunpack.c.h.b16 %v2843
      %v2934 = vunpack.c.l.b16 %v2844
      %v2935 = vunpack.c.h.b16 %v2844
      %v2936 = vunpack.c.l.b16 %v2845
      %v2937 = vunpack.c.h.b16 %v2845
      %v2938 = vunpack.c.l.b16 %v2846
      %v2939 = vunpack.c.h.b16 %v2846
      %v2940 = vunpack.c.l.b16 %v2847
      %v2941 = vunpack.c.h.b16 %v2847
      %v2942 = vunpack.c.l.b16 %v2848
      %v2943 = vunpack.c.h.b16 %v2848
      %v2944 = vunpack.c.l.b16 %v2849
      %v2945 = vunpack.c.h.b16 %v2849
      %v2946 = vpack.c.b16 %v2886, %v2882
      %v2947 = vpack.c.b16 %v2887, %v2883
      %v2948 = vpack.c.b16 %v2888, %v2884
      %v2949 = vpack.c.b16 %v2889, %v2885
      %v2950 = vpack.c.b16 %v2894, %v2890
      %v2951 = vpack.c.b16 %v2895, %v2891
      %v2952 = vpack.c.b16 %v2896, %v2892
      %v2953 = vpack.c.b16 %v2897, %v2893
      %v2954 = vpack.c.b16 %v2902, %v2898
      %v2955 = vpack.c.b16 %v2903, %v2899
      %v2956 = vpack.c.b16 %v2904, %v2900
      %v2957 = vpack.c.b16 %v2905, %v2901
      %v2958 = vpack.c.b16 %v2910, %v2906
      %v2959 = vpack.c.b16 %v2911, %v2907
      %v2960 = vpack.c.b16 %v2912, %v2908
      %v2961 = vpack.c.b16 %v2913, %v2909
      %v2962 = vpack.c.b16 %v2918, %v2914
      %v2963 = vpack.c.b16 %v2919, %v2915
      %v2964 = vpack.c.b16 %v2920, %v2916
      %v2965 = vpack.c.b16 %v2921, %v2917
      %v2966 = vpack.c.b16 %v2926, %v2922
      %v2967 = vpack.c.b16 %v2927, %v2923
      %v2968 = vpack.c.b16 %v2928, %v2924
      %v2969 = vpack.c.b16 %v2929, %v2925
      %v2970 = vpack.c.b16 %v2934, %v2930
      %v2971 = vpack.c.b16 %v2935, %v2931
      %v2972 = vpack.c.b16 %v2936, %v2932
      %v2973 = vpack.c.b16 %v2937, %v2933
      %v2974 = vpack.c.b16 %v2942, %v2938
      %v2975 = vpack.c.b16 %v2943, %v2939
      %v2976 = vpack.c.b16 %v2944, %v2940
      %v2977 = vpack.c.b16 %v2945, %v2941
      %3010 = vmatprep.subr.bf16.mxu0 %v2947
      %3011 = vmatpush1.bf16.msra.mxu0 %v2946
      %3012 = vmatprep.subr.bf16.mxu0 %v2951
      %3013 = vmatpush1.bf16.msra.mxu0 %v2950
      %3014 = vmatprep.subr.bf16.mxu0 %v2955
      %3015 = vmatpush1.bf16.msra.mxu0 %v2954
      %3016 = vmatprep.subr.bf16.mxu0 %v2959
      %3017 = vmatpush1.bf16.msra.mxu0 %v2958
      %3018 = vmatprep.subr.bf16.mxu0 %v2963
      %3019 = vmatpush1.bf16.msra.mxu0 %v2962
      %3020 = vmatprep.subr.bf16.mxu0 %v2967
      %3021 = vmatpush1.bf16.msra.mxu0 %v2966
      %3022 = vmatprep.subr.bf16.mxu0 %v2971
      %3023 = vmatpush1.bf16.msra.mxu0 %v2970
      %3024 = vmatprep.subr.bf16.mxu0 %v2975
      %3025 = vmatpush1.bf16.msra.mxu0 %v2974
      %3026 = vmatprep.subr.bf16.mxu0 0
      %3027 = vmatpush1.bf16.msra.mxu0 0
      %3028 = vmatprep.subr.bf16.mxu0 0
      %3029 = vmatpush1.bf16.msra.mxu0 0
      %3030 = vmatprep.subr.bf16.mxu0 0
      %3031 = vmatpush1.bf16.msra.mxu0 0
      %3032 = vmatprep.subr.bf16.mxu0 0
      %3033 = vmatpush1.bf16.msra.mxu0 0
      %3034 = vmatprep.subr.bf16.mxu0 0
      %3035 = vmatpush1.bf16.msra.mxu0 0
      %3036 = vmatprep.subr.bf16.mxu0 0
      %3037 = vmatpush1.bf16.msra.mxu0 0
      %3038 = vmatprep.subr.bf16.mxu0 0
      %3039 = vmatpush1.bf16.msra.mxu0 0
      %3040 = vmatprep.subr.bf16.mxu0 0
      %3041 = vmatpush1.bf16.msra.mxu0 0
      %3042 = vmatprep.mubr.bf16.mxu0 0
      %3043 = vmatmul.mubr.bf16.gmra.mrb[0].mxu0 %v2817
      %v3044 = vpop.f32.mrb[0].mxu0
      %v3045 = vadd.f32 0.0, %v3044
      %v3046 = vpop.f32.mrb[0].mxu0
      %v3047 = vadd.f32 0.0, %v3046
      %v3048 = vpop.f32.mrb[0].mxu0
      %v3049 = vpop.f32.mrb[0].mxu0
      %3050 = vdwg.mxu0
      %3051 = vmatprep.subr.bf16.mxu0 %v2949
      %3052 = vmatpush1.bf16.msra.mxu0 %v2948
      %3053 = vmatprep.subr.bf16.mxu0 %v2953
      %3054 = vmatpush1.bf16.msra.mxu0 %v2952
      %3055 = vmatprep.subr.bf16.mxu0 %v2957
      %3056 = vmatpush1.bf16.msra.mxu0 %v2956
      %3057 = vmatprep.subr.bf16.mxu0 %v2961
      %3058 = vmatpush1.bf16.msra.mxu0 %v2960
      %3059 = vmatprep.subr.bf16.mxu0 %v2965
      %3060 = vmatpush1.bf16.msra.mxu0 %v2964
      %3061 = vmatprep.subr.bf16.mxu0 %v2969
      %3062 = vmatpush1.bf16.msra.mxu0 %v2968
      %3063 = vmatprep.subr.bf16.mxu0 %v2973
      %3064 = vmatpush1.bf16.msra.mxu0 %v2972
      %3065 = vmatprep.subr.bf16.mxu0 %v2977
      %3066 = vmatpush1.bf16.msra.mxu0 %v2976
      %3067 = vmatprep.subr.bf16.mxu0 0
      %3068 = vmatpush1.bf16.msra.mxu0 0
      %3069 = vmatprep.subr.bf16.mxu0 0
      %3070 = vmatpush1.bf16.msra.mxu0 0
      %3071 = vmatprep.subr.bf16.mxu0 0
      %3072 = vmatpush1.bf16.msra.mxu0 0
      %3073 = vmatprep.subr.bf16.mxu0 0
      %3074 = vmatpush1.bf16.msra.mxu0 0
      %3075 = vmatprep.subr.bf16.mxu0 0
      %3076 = vmatpush1.bf16.msra.mxu0 0
      %3077 = vmatprep.subr.bf16.mxu0 0
      %3078 = vmatpush1.bf16.msra.mxu0 0
      %3079 = vmatprep.subr.bf16.mxu0 0
      %3080 = vmatpush1.bf16.msra.mxu0 0
      %3081 = vmatprep.subr.bf16.mxu0 0
      %3082 = vmatpush1.bf16.msra.mxu0 0
      %3083 = vmatprep.mubr.bf16.mxu0 0
      %3084 = vmatmul.mubr.bf16.gmra.mrb[0].mxu0 %v2817
      %v3085 = vpop.f32.mrb[0].mxu0
      %v3086 = vadd.f32 0.0, %v3085
      %v3087 = vpop.f32.mrb[0].mxu0
      %v3088 = vadd.f32 0.0, %v3087
      %v3089 = vpop.f32.mrb[0].mxu0
      %v3090 = vpop.f32.mrb[0].mxu0
      %3091 = vdwg.mxu0
      %v3092 = vadd.f32 %v2812, %v3045
      %v3093 = vadd.f32 %v2813, %v3047
      %v3094 = vadd.f32 %v2814, %v3086
      %v3095 = vadd.f32 %v2815, %v3088
      %v3096 = vld [vmem:[#allocation6] sm:$0xff]
      %v3097 = vxor.u32 %v3092, 2147483648
      %v3098 = vmul.f32 %v3097, 1.442695
      %v3099 = vpow.pop %v3098
      %v3100 = vadd.f32 %v3099, 1.0
      %v3101 = vrcp.pop %v3100
      %v3102 = vmul.f32 1.0, %v3101
      %v3103 = vxor.u32 %v3093, 2147483648
      %v3104 = vmul.f32 %v3103, 1.442695
      %v3105 = vpow.pop %v3104
      %v3106 = vadd.f32 %v3105, 1.0
      %v3107 = vrcp.pop %v3106
      %v3108 = vmul.f32 1.0, %v3107
      %v3109 = vtanh.pop %v3094
      %v3110 = vxor.u32 %v3095, 2147483648
      %v3111 = vmul.f32 %v3110, 1.442695
      %v3112 = vpow.pop %v3111
      %v3113 = vadd.f32 %v3112, 1.0
      %v3114 = vrcp.pop %v3113
      %v3115 = vmul.f32 1.0, %v3114
      %v3116 = vmul.f32 %v3108, %v3096
      %v3117 = vmul.f32 %v3102, %v3109
      %v3118 = vadd.f32 %v3116, %v3117
      %v3119 = vtanh.pop %v3118
      %v3120 = vmul.f32 %v3115, %v3119
      %3121 = vst [vmem:[#allocation5] sm:$0xff] %v3120
      %3122 = vst [vmem:[#allocation6] sm:$0xff] %v3118
      %3123 = vst [vmem:[#allocation2 + $0x20] sm:$0xff] %v3120
      %v3124 = vld [vmem:[#allocation4 + $0xa0] sm:$0xff]
      %v3125 = vld [vmem:[#allocation4 + $0xa8] sm:$0xff]
      %v3126 = vld [vmem:[#allocation4 + $0xb0] sm:$0xff]
      %v3127 = vld [vmem:[#allocation4 + $0xb8] sm:$0xff]
      %v3128 = vld [vmem:[#allocation7] sm:$0xff]
      %v3129 = vpack.c.bf16 %v3128, %v3128
      %v3130 = vld [vmem:[%s1881] sm:$0xff]
      %v3131 = vld [vmem:[%s1881 + $0x8] sm:$0xff]
      %v3132 = vld [vmem:[%s1881 + $0x10] sm:$0xff]
      %v3133 = vld [vmem:[%s1881 + $0x18] sm:$0xff]
      %v3134 = vld [vmem:[%s1881 + $0x20] sm:$0xff]
      %v3135 = vld [vmem:[%s1881 + $0x28] sm:$0xff]
      %v3136 = vld [vmem:[%s1881 + $0x30] sm:$0xff]
      %v3137 = vld [vmem:[%s1881 + $0x38] sm:$0xff]
      %v3138 = vld [vmem:[%s1881 + $0x40] sm:$0xff]
      %v3139 = vld [vmem:[%s1881 + $0x48] sm:$0xff]
      %v3140 = vld [vmem:[%s1881 + $0x50] sm:$0xff]
      %v3141 = vld [vmem:[%s1881 + $0x58] sm:$0xff]
      %v3142 = vld [vmem:[%s1881 + $0x60] sm:$0xff]
      %v3143 = vld [vmem:[%s1881 + $0x68] sm:$0xff]
      %v3144 = vld [vmem:[%s1881 + $0x70] sm:$0xff]
      %v3145 = vld [vmem:[%s1881 + $0x78] sm:$0xff]
      %v3146 = vld [vmem:[%s1881 + $0x80] sm:$0xff]
      %v3147 = vld [vmem:[%s1881 + $0x88] sm:$0xff]
      %v3148 = vld [vmem:[%s1881 + $0x90] sm:$0xff]
      %v3149 = vld [vmem:[%s1881 + $0x98] sm:$0xff]
      %v3150 = vld [vmem:[%s1881 + $0xa0] sm:$0xff]
      %v3151 = vld [vmem:[%s1881 + $0xa8] sm:$0xff]
      %v3152 = vld [vmem:[%s1881 + $0xb0] sm:$0xff]
      %v3153 = vld [vmem:[%s1881 + $0xb8] sm:$0xff]
      %v3154 = vld [vmem:[%s1881 + $0xc0] sm:$0xff]
      %v3155 = vld [vmem:[%s1881 + $0xc8] sm:$0xff]
      %v3156 = vld [vmem:[%s1881 + $0xd0] sm:$0xff]
      %v3157 = vld [vmem:[%s1881 + $0xd8] sm:$0xff]
      %v3158 = vld [vmem:[%s1881 + $0xe0] sm:$0xff]
      %v3159 = vld [vmem:[%s1881 + $0xe8] sm:$0xff]
      %v3160 = vld [vmem:[%s1881 + $0xf0] sm:$0xff]
      %v3161 = vld [vmem:[%s1881 + $0xf8] sm:$0xff]
      %v3194 = vunpack.c.l.b16 %v3130
      %v3195 = vunpack.c.h.b16 %v3130
      %v3196 = vunpack.c.l.b16 %v3131
      %v3197 = vunpack.c.h.b16 %v3131
      %v3198 = vunpack.c.l.b16 %v3132
      %v3199 = vunpack.c.h.b16 %v3132
      %v3200 = vunpack.c.l.b16 %v3133
      %v3201 = vunpack.c.h.b16 %v3133
      %v3202 = vunpack.c.l.b16 %v3134
      %v3203 = vunpack.c.h.b16 %v3134
      %v3204 = vunpack.c.l.b16 %v3135
      %v3205 = vunpack.c.h.b16 %v3135
      %v3206 = vunpack.c.l.b16 %v3136
      %v3207 = vunpack.c.h.b16 %v3136
      %v3208 = vunpack.c.l.b16 %v3137
      %v3209 = vunpack.c.h.b16 %v3137
      %v3210 = vunpack.c.l.b16 %v3138
      %v3211 = vunpack.c.h.b16 %v3138
      %v3212 = vunpack.c.l.b16 %v3139
      %v3213 = vunpack.c.h.b16 %v3139
      %v3214 = vunpack.c.l.b16 %v3140
      %v3215 = vunpack.c.h.b16 %v3140
      %v3216 = vunpack.c.l.b16 %v3141
      %v3217 = vunpack.c.h.b16 %v3141
      %v3218 = vunpack.c.l.b16 %v3142
      %v3219 = vunpack.c.h.b16 %v3142
      %v3220 = vunpack.c.l.b16 %v3143
      %v3221 = vunpack.c.h.b16 %v3143
      %v3222 = vunpack.c.l.b16 %v3144
      %v3223 = vunpack.c.h.b16 %v3144
      %v3224 = vunpack.c.l.b16 %v3145
      %v3225 = vunpack.c.h.b16 %v3145
      %v3226 = vunpack.c.l.b16 %v3146
      %v3227 = vunpack.c.h.b16 %v3146
      %v3228 = vunpack.c.l.b16 %v3147
      %v3229 = vunpack.c.h.b16 %v3147
      %v3230 = vunpack.c.l.b16 %v3148
      %v3231 = vunpack.c.h.b16 %v3148
      %v3232 = vunpack.c.l.b16 %v3149
      %v3233 = vunpack.c.h.b16 %v3149
      %v3234 = vunpack.c.l.b16 %v3150
      %v3235 = vunpack.c.h.b16 %v3150
      %v3236 = vunpack.c.l.b16 %v3151
      %v3237 = vunpack.c.h.b16 %v3151
      %v3238 = vunpack.c.l.b16 %v3152
      %v3239 = vunpack.c.h.b16 %v3152
      %v3240 = vunpack.c.l.b16 %v3153
      %v3241 = vunpack.c.h.b16 %v3153
      %v3242 = vunpack.c.l.b16 %v3154
      %v3243 = vunpack.c.h.b16 %v3154
      %v3244 = vunpack.c.l.b16 %v3155
      %v3245 = vunpack.c.h.b16 %v3155
      %v3246 = vunpack.c.l.b16 %v3156
      %v3247 = vunpack.c.h.b16 %v3156
      %v3248 = vunpack.c.l.b16 %v3157
      %v3249 = vunpack.c.h.b16 %v3157
      %v3250 = vunpack.c.l.b16 %v3158
      %v3251 = vunpack.c.h.b16 %v3158
      %v3252 = vunpack.c.l.b16 %v3159
      %v3253 = vunpack.c.h.b16 %v3159
      %v3254 = vunpack.c.l.b16 %v3160
      %v3255 = vunpack.c.h.b16 %v3160
      %v3256 = vunpack.c.l.b16 %v3161
      %v3257 = vunpack.c.h.b16 %v3161
      %v3258 = vpack.c.b16 %v3198, %v3194
      %v3259 = vpack.c.b16 %v3199, %v3195
      %v3260 = vpack.c.b16 %v3200, %v3196
      %v3261 = vpack.c.b16 %v3201, %v3197
      %v3262 = vpack.c.b16 %v3206, %v3202
      %v3263 = vpack.c.b16 %v3207, %v3203
      %v3264 = vpack.c.b16 %v3208, %v3204
      %v3265 = vpack.c.b16 %v3209, %v3205
      %v3266 = vpack.c.b16 %v3214, %v3210
      %v3267 = vpack.c.b16 %v3215, %v3211
      %v3268 = vpack.c.b16 %v3216, %v3212
      %v3269 = vpack.c.b16 %v3217, %v3213
      %v3270 = vpack.c.b16 %v3222, %v3218
      %v3271 = vpack.c.b16 %v3223, %v3219
      %v3272 = vpack.c.b16 %v3224, %v3220
      %v3273 = vpack.c.b16 %v3225, %v3221
      %v3274 = vpack.c.b16 %v3230, %v3226
      %v3275 = vpack.c.b16 %v3231, %v3227
      %v3276 = vpack.c.b16 %v3232, %v3228
      %v3277 = vpack.c.b16 %v3233, %v3229
      %v3278 = vpack.c.b16 %v3238, %v3234
      %v3279 = vpack.c.b16 %v3239, %v3235
      %v3280 = vpack.c.b16 %v3240, %v3236
      %v3281 = vpack.c.b16 %v3241, %v3237
      %v3282 = vpack.c.b16 %v3246, %v3242
      %v3283 = vpack.c.b16 %v3247, %v3243
      %v3284 = vpack.c.b16 %v3248, %v3244
      %v3285 = vpack.c.b16 %v3249, %v3245
      %v3286 = vpack.c.b16 %v3254, %v3250
      %v3287 = vpack.c.b16 %v3255, %v3251
      %v3288 = vpack.c.b16 %v3256, %v3252
      %v3289 = vpack.c.b16 %v3257, %v3253
      %3322 = vmatprep.subr.bf16.mxu0 %v3259
      %3323 = vmatpush1.bf16.msra.mxu0 %v3258
      %3324 = vmatprep.subr.bf16.mxu0 %v3263
      %3325 = vmatpush1.bf16.msra.mxu0 %v3262
      %3326 = vmatprep.subr.bf16.mxu0 %v3267
      %3327 = vmatpush1.bf16.msra.mxu0 %v3266
      %3328 = vmatprep.subr.bf16.mxu0 %v3271
      %3329 = vmatpush1.bf16.msra.mxu0 %v3270
      %3330 = vmatprep.subr.bf16.mxu0 %v3275
      %3331 = vmatpush1.bf16.msra.mxu0 %v3274
      %3332 = vmatprep.subr.bf16.mxu0 %v3279
      %3333 = vmatpush1.bf16.msra.mxu0 %v3278
      %3334 = vmatprep.subr.bf16.mxu0 %v3283
      %3335 = vmatpush1.bf16.msra.mxu0 %v3282
      %3336 = vmatprep.subr.bf16.mxu0 %v3287
      %3337 = vmatpush1.bf16.msra.mxu0 %v3286
      %3338 = vmatprep.subr.bf16.mxu0 0
      %3339 = vmatpush1.bf16.msra.mxu0 0
      %3340 = vmatprep.subr.bf16.mxu0 0
      %3341 = vmatpush1.bf16.msra.mxu0 0
      %3342 = vmatprep.subr.bf16.mxu0 0
      %3343 = vmatpush1.bf16.msra.mxu0 0
      %3344 = vmatprep.subr.bf16.mxu0 0
      %3345 = vmatpush1.bf16.msra.mxu0 0
      %3346 = vmatprep.subr.bf16.mxu0 0
      %3347 = vmatpush1.bf16.msra.mxu0 0
      %3348 = vmatprep.subr.bf16.mxu0 0
      %3349 = vmatpush1.bf16.msra.mxu0 0
      %3350 = vmatprep.subr.bf16.mxu0 0
      %3351 = vmatpush1.bf16.msra.mxu0 0
      %3352 = vmatprep.subr.bf16.mxu0 0
      %3353 = vmatpush1.bf16.msra.mxu0 0
      %3354 = vmatprep.mubr.bf16.mxu0 0
      %3355 = vmatmul.mubr.bf16.gmra.mrb[0].mxu0 %v3129
      %v3356 = vpop.f32.mrb[0].mxu0
      %v3357 = vadd.f32 0.0, %v3356
      %v3358 = vpop.f32.mrb[0].mxu0
      %v3359 = vadd.f32 0.0, %v3358
      %v3360 = vpop.f32.mrb[0].mxu0
      %v3361 = vpop.f32.mrb[0].mxu0
      %3362 = vdwg.mxu0
      %3363 = vmatprep.subr.bf16.mxu0 %v3261
      %3364 = vmatpush1.bf16.msra.mxu0 %v3260
      %3365 = vmatprep.subr.bf16.mxu0 %v3265
      %3366 = vmatpush1.bf16.msra.mxu0 %v3264
      %3367 = vmatprep.subr.bf16.mxu0 %v3269
      %3368 = vmatpush1.bf16.msra.mxu0 %v3268
      %3369 = vmatprep.subr.bf16.mxu0 %v3273
      %3370 = vmatpush1.bf16.msra.mxu0 %v3272
      %3371 = vmatprep.subr.bf16.mxu0 %v3277
      %3372 = vmatpush1.bf16.msra.mxu0 %v3276
      %3373 = vmatprep.subr.bf16.mxu0 %v3281
      %3374 = vmatpush1.bf16.msra.mxu0 %v3280
      %3375 = vmatprep.subr.bf16.mxu0 %v3285
      %3376 = vmatpush1.bf16.msra.mxu0 %v3284
      %3377 = vmatprep.subr.bf16.mxu0 %v3289
      %3378 = vmatpush1.bf16.msra.mxu0 %v3288
      %3379 = vmatprep.subr.bf16.mxu0 0
      %3380 = vmatpush1.bf16.msra.mxu0 0
      %3381 = vmatprep.subr.bf16.mxu0 0
      %3382 = vmatpush1.bf16.msra.mxu0 0
      %3383 = vmatprep.subr.bf16.mxu0 0
      %3384 = vmatpush1.bf16.msra.mxu0 0
      %3385 = vmatprep.subr.bf16.mxu0 0
      %3386 = vmatpush1.bf16.msra.mxu0 0
      %3387 = vmatprep.subr.bf16.mxu0 0
      %3388 = vmatpush1.bf16.msra.mxu0 0
      %3389 = vmatprep.subr.bf16.mxu0 0
      %3390 = vmatpush1.bf16.msra.mxu0 0
      %3391 = vmatprep.subr.bf16.mxu0 0
      %3392 = vmatpush1.bf16.msra.mxu0 0
      %3393 = vmatprep.subr.bf16.mxu0 0
      %3394 = vmatpush1.bf16.msra.mxu0 0
      %3395 = vmatprep.mubr.bf16.mxu0 0
      %3396 = vmatmul.mubr.bf16.gmra.mrb[0].mxu0 %v3129
      %v3397 = vpop.f32.mrb[0].mxu0
      %v3398 = vadd.f32 0.0, %v3397
      %v3399 = vpop.f32.mrb[0].mxu0
      %v3400 = vadd.f32 0.0, %v3399
      %v3401 = vpop.f32.mrb[0].mxu0
      %v3402 = vpop.f32.mrb[0].mxu0
      %3403 = vdwg.mxu0
      %v3404 = vadd.f32 %v3124, %v3357
      %v3405 = vadd.f32 %v3125, %v3359
      %v3406 = vadd.f32 %v3126, %v3398
      %v3407 = vadd.f32 %v3127, %v3400
      %v3408 = vld [vmem:[#allocation8] sm:$0xff]
      %v3409 = vxor.u32 %v3404, 2147483648
      %v3410 = vmul.f32 %v3409, 1.442695
      %v3411 = vpow.pop %v3410
      %v3412 = vadd.f32 %v3411, 1.0
      %v3413 = vrcp.pop %v3412
      %v3414 = vmul.f32 1.0, %v3413
      %v3415 = vxor.u32 %v3405, 2147483648
      %v3416 = vmul.f32 %v3415, 1.442695
      %v3417 = vpow.pop %v3416
      %v3418 = vadd.f32 %v3417, 1.0
      %v3419 = vrcp.pop %v3418
      %v3420 = vmul.f32 1.0, %v3419
      %v3421 = vtanh.pop %v3406
      %v3422 = vxor.u32 %v3407, 2147483648
      %v3423 = vmul.f32 %v3422, 1.442695
      %v3424 = vpow.pop %v3423
      %v3425 = vadd.f32 %v3424, 1.0
      %v3426 = vrcp.pop %v3425
      %v3427 = vmul.f32 1.0, %v3426
      %v3428 = vmul.f32 %v3420, %v3408
      %v3429 = vmul.f32 %v3414, %v3421
      %v3430 = vadd.f32 %v3428, %v3429
      %v3431 = vtanh.pop %v3430
      %v3432 = vmul.f32 %v3427, %v3431
      %3433 = vst [vmem:[#allocation7] sm:$0xff] %v3432
      %3434 = vst [vmem:[#allocation8] sm:$0xff] %v3430
      %3435 = vst [vmem:[#allocation2 + $0x58] sm:$0xff] %v3432
      %v3436 = vld [vmem:[#allocation3 + $0x60] sm:$0xff]
      %v3437 = vld [vmem:[#allocation3 + $0x68] sm:$0xff]
      %v3438 = vld [vmem:[#allocation3 + $0x70] sm:$0xff]
      %v3439 = vld [vmem:[#allocation3 + $0x78] sm:$0xff]
      %v3440 = vld [vmem:[#allocation5] sm:$0xff]
      %v3441 = vpack.c.bf16 %v3440, %v3440
      %v3442 = vld [vmem:[%s323] sm:$0xff]
      %v3443 = vld [vmem:[%s323 + $0x8] sm:$0xff]
      %v3444 = vld [vmem:[%s323 + $0x10] sm:$0xff]
      %v3445 = vld [vmem:[%s323 + $0x18] sm:$0xff]
      %v3446 = vld [vmem:[%s323 + $0x20] sm:$0xff]
      %v3447 = vld [vmem:[%s323 + $0x28] sm:$0xff]
      %v3448 = vld [vmem:[%s323 + $0x30] sm:$0xff]
      %v3449 = vld [vmem:[%s323 + $0x38] sm:$0xff]
      %v3450 = vld [vmem:[%s323 + $0x40] sm:$0xff]
      %v3451 = vld [vmem:[%s323 + $0x48] sm:$0xff]
      %v3452 = vld [vmem:[%s323 + $0x50] sm:$0xff]
      %v3453 = vld [vmem:[%s323 + $0x58] sm:$0xff]
      %v3454 = vld [vmem:[%s323 + $0x60] sm:$0xff]
      %v3455 = vld [vmem:[%s323 + $0x68] sm:$0xff]
      %v3456 = vld [vmem:[%s323 + $0x70] sm:$0xff]
      %v3457 = vld [vmem:[%s323 + $0x78] sm:$0xff]
      %v3458 = vld [vmem:[%s323 + $0x80] sm:$0xff]
      %v3459 = vld [vmem:[%s323 + $0x88] sm:$0xff]
      %v3460 = vld [vmem:[%s323 + $0x90] sm:$0xff]
      %v3461 = vld [vmem:[%s323 + $0x98] sm:$0xff]
      %v3462 = vld [vmem:[%s323 + $0xa0] sm:$0xff]
      %v3463 = vld [vmem:[%s323 + $0xa8] sm:$0xff]
      %v3464 = vld [vmem:[%s323 + $0xb0] sm:$0xff]
      %v3465 = vld [vmem:[%s323 + $0xb8] sm:$0xff]
      %v3466 = vld [vmem:[%s323 + $0xc0] sm:$0xff]
      %v3467 = vld [vmem:[%s323 + $0xc8] sm:$0xff]
      %v3468 = vld [vmem:[%s323 + $0xd0] sm:$0xff]
      %v3469 = vld [vmem:[%s323 + $0xd8] sm:$0xff]
      %v3470 = vld [vmem:[%s323 + $0xe0] sm:$0xff]
      %v3471 = vld [vmem:[%s323 + $0xe8] sm:$0xff]
      %v3472 = vld [vmem:[%s323 + $0xf0] sm:$0xff]
      %v3473 = vld [vmem:[%s323 + $0xf8] sm:$0xff]
      %v3506 = vunpack.c.l.b16 %v3442
      %v3507 = vunpack.c.h.b16 %v3442
      %v3508 = vunpack.c.l.b16 %v3443
      %v3509 = vunpack.c.h.b16 %v3443
      %v3510 = vunpack.c.l.b16 %v3444
      %v3511 = vunpack.c.h.b16 %v3444
      %v3512 = vunpack.c.l.b16 %v3445
      %v3513 = vunpack.c.h.b16 %v3445
      %v3514 = vunpack.c.l.b16 %v3446
      %v3515 = vunpack.c.h.b16 %v3446
      %v3516 = vunpack.c.l.b16 %v3447
      %v3517 = vunpack.c.h.b16 %v3447
      %v3518 = vunpack.c.l.b16 %v3448
      %v3519 = vunpack.c.h.b16 %v3448
      %v3520 = vunpack.c.l.b16 %v3449
      %v3521 = vunpack.c.h.b16 %v3449
      %v3522 = vunpack.c.l.b16 %v3450
      %v3523 = vunpack.c.h.b16 %v3450
      %v3524 = vunpack.c.l.b16 %v3451
      %v3525 = vunpack.c.h.b16 %v3451
      %v3526 = vunpack.c.l.b16 %v3452
      %v3527 = vunpack.c.h.b16 %v3452
      %v3528 = vunpack.c.l.b16 %v3453
      %v3529 = vunpack.c.h.b16 %v3453
      %v3530 = vunpack.c.l.b16 %v3454
      %v3531 = vunpack.c.h.b16 %v3454
      %v3532 = vunpack.c.l.b16 %v3455
      %v3533 = vunpack.c.h.b16 %v3455
      %v3534 = vunpack.c.l.b16 %v3456
      %v3535 = vunpack.c.h.b16 %v3456
      %v3536 = vunpack.c.l.b16 %v3457
      %v3537 = vunpack.c.h.b16 %v3457
      %v3538 = vunpack.c.l.b16 %v3458
      %v3539 = vunpack.c.h.b16 %v3458
      %v3540 = vunpack.c.l.b16 %v3459
      %v3541 = vunpack.c.h.b16 %v3459
      %v3542 = vunpack.c.l.b16 %v3460
      %v3543 = vunpack.c.h.b16 %v3460
      %v3544 = vunpack.c.l.b16 %v3461
      %v3545 = vunpack.c.h.b16 %v3461
      %v3546 = vunpack.c.l.b16 %v3462
      %v3547 = vunpack.c.h.b16 %v3462
      %v3548 = vunpack.c.l.b16 %v3463
      %v3549 = vunpack.c.h.b16 %v3463
      %v3550 = vunpack.c.l.b16 %v3464
      %v3551 = vunpack.c.h.b16 %v3464
      %v3552 = vunpack.c.l.b16 %v3465
      %v3553 = vunpack.c.h.b16 %v3465
      %v3554 = vunpack.c.l.b16 %v3466
      %v3555 = vunpack.c.h.b16 %v3466
      %v3556 = vunpack.c.l.b16 %v3467
      %v3557 = vunpack.c.h.b16 %v3467
      %v3558 = vunpack.c.l.b16 %v3468
      %v3559 = vunpack.c.h.b16 %v3468
      %v3560 = vunpack.c.l.b16 %v3469
      %v3561 = vunpack.c.h.b16 %v3469
      %v3562 = vunpack.c.l.b16 %v3470
      %v3563 = vunpack.c.h.b16 %v3470
      %v3564 = vunpack.c.l.b16 %v3471
      %v3565 = vunpack.c.h.b16 %v3471
      %v3566 = vunpack.c.l.b16 %v3472
      %v3567 = vunpack.c.h.b16 %v3472
      %v3568 = vunpack.c.l.b16 %v3473
      %v3569 = vunpack.c.h.b16 %v3473
      %v3570 = vpack.c.b16 %v3510, %v3506
      %v3571 = vpack.c.b16 %v3511, %v3507
      %v3572 = vpack.c.b16 %v3512, %v3508
      %v3573 = vpack.c.b16 %v3513, %v3509
      %v3574 = vpack.c.b16 %v3518, %v3514
      %v3575 = vpack.c.b16 %v3519, %v3515
      %v3576 = vpack.c.b16 %v3520, %v3516
      %v3577 = vpack.c.b16 %v3521, %v3517
      %v3578 = vpack.c.b16 %v3526, %v3522
      %v3579 = vpack.c.b16 %v3527, %v3523
      %v3580 = vpack.c.b16 %v3528, %v3524
      %v3581 = vpack.c.b16 %v3529, %v3525
      %v3582 = vpack.c.b16 %v3534, %v3530
      %v3583 = vpack.c.b16 %v3535, %v3531
      %v3584 = vpack.c.b16 %v3536, %v3532
      %v3585 = vpack.c.b16 %v3537, %v3533
      %v3586 = vpack.c.b16 %v3542, %v3538
      %v3587 = vpack.c.b16 %v3543, %v3539
      %v3588 = vpack.c.b16 %v3544, %v3540
      %v3589 = vpack.c.b16 %v3545, %v3541
      %v3590 = vpack.c.b16 %v3550, %v3546
      %v3591 = vpack.c.b16 %v3551, %v3547
      %v3592 = vpack.c.b16 %v3552, %v3548
      %v3593 = vpack.c.b16 %v3553, %v3549
      %v3594 = vpack.c.b16 %v3558, %v3554
      %v3595 = vpack.c.b16 %v3559, %v3555
      %v3596 = vpack.c.b16 %v3560, %v3556
      %v3597 = vpack.c.b16 %v3561, %v3557
      %v3598 = vpack.c.b16 %v3566, %v3562
      %v3599 = vpack.c.b16 %v3567, %v3563
      %v3600 = vpack.c.b16 %v3568, %v3564
      %v3601 = vpack.c.b16 %v3569, %v3565
      %3634 = vmatprep.subr.bf16.mxu0 %v3571
      %3635 = vmatpush1.bf16.msra.mxu0 %v3570
      %3636 = vmatprep.subr.bf16.mxu0 %v3575
      %3637 = vmatpush1.bf16.msra.mxu0 %v3574
      %3638 = vmatprep.subr.bf16.mxu0 %v3579
      %3639 = vmatpush1.bf16.msra.mxu0 %v3578
      %3640 = vmatprep.subr.bf16.mxu0 %v3583
      %3641 = vmatpush1.bf16.msra.mxu0 %v3582
      %3642 = vmatprep.subr.bf16.mxu0 %v3587
      %3643 = vmatpush1.bf16.msra.mxu0 %v3586
      %3644 = vmatprep.subr.bf16.mxu0 %v3591
      %3645 = vmatpush1.bf16.msra.mxu0 %v3590
      %3646 = vmatprep.subr.bf16.mxu0 %v3595
      %3647 = vmatpush1.bf16.msra.mxu0 %v3594
      %3648 = vmatprep.subr.bf16.mxu0 %v3599
      %3649 = vmatpush1.bf16.msra.mxu0 %v3598
      %3650 = vmatprep.subr.bf16.mxu0 0
      %3651 = vmatpush1.bf16.msra.mxu0 0
      %3652 = vmatprep.subr.bf16.mxu0 0
      %3653 = vmatpush1.bf16.msra.mxu0 0
      %3654 = vmatprep.subr.bf16.mxu0 0
      %3655 = vmatpush1.bf16.msra.mxu0 0
      %3656 = vmatprep.subr.bf16.mxu0 0
      %3657 = vmatpush1.bf16.msra.mxu0 0
      %3658 = vmatprep.subr.bf16.mxu0 0
      %3659 = vmatpush1.bf16.msra.mxu0 0
      %3660 = vmatprep.subr.bf16.mxu0 0
      %3661 = vmatpush1.bf16.msra.mxu0 0
      %3662 = vmatprep.subr.bf16.mxu0 0
      %3663 = vmatpush1.bf16.msra.mxu0 0
      %3664 = vmatprep.subr.bf16.mxu0 0
      %3665 = vmatpush1.bf16.msra.mxu0 0
      %3666 = vmatprep.mubr.bf16.mxu0 0
      %3667 = vmatmul.mubr.bf16.gmra.mrb[0].mxu0 %v3441
      %v3668 = vpop.f32.mrb[0].mxu0
      %v3669 = vadd.f32 0.0, %v3668
      %v3670 = vpop.f32.mrb[0].mxu0
      %v3671 = vadd.f32 0.0, %v3670
      %v3672 = vpop.f32.mrb[0].mxu0
      %v3673 = vpop.f32.mrb[0].mxu0
      %3674 = vdwg.mxu0
      %3675 = vmatprep.subr.bf16.mxu0 %v3573
      %3676 = vmatpush1.bf16.msra.mxu0 %v3572
      %3677 = vmatprep.subr.bf16.mxu0 %v3577
      %3678 = vmatpush1.bf16.msra.mxu0 %v3576
      %3679 = vmatprep.subr.bf16.mxu0 %v3581
      %3680 = vmatpush1.bf16.msra.mxu0 %v3580
      %3681 = vmatprep.subr.bf16.mxu0 %v3585
      %3682 = vmatpush1.bf16.msra.mxu0 %v3584
      %3683 = vmatprep.subr.bf16.mxu0 %v3589
      %3684 = vmatpush1.bf16.msra.mxu0 %v3588
      %3685 = vmatprep.subr.bf16.mxu0 %v3593
      %3686 = vmatpush1.bf16.msra.mxu0 %v3592
      %3687 = vmatprep.subr.bf16.mxu0 %v3597
      %3688 = vmatpush1.bf16.msra.mxu0 %v3596
      %3689 = vmatprep.subr.bf16.mxu0 %v3601
      %3690 = vmatpush1.bf16.msra.mxu0 %v3600
      %3691 = vmatprep.subr.bf16.mxu0 0
      %3692 = vmatpush1.bf16.msra.mxu0 0
      %3693 = vmatprep.subr.bf16.mxu0 0
      %3694 = vmatpush1.bf16.msra.mxu0 0
      %3695 = vmatprep.subr.bf16.mxu0 0
      %3696 = vmatpush1.bf16.msra.mxu0 0
      %3697 = vmatprep.subr.bf16.mxu0 0
      %3698 = vmatpush1.bf16.msra.mxu0 0
      %3699 = vmatprep.subr.bf16.mxu0 0
      %3700 = vmatpush1.bf16.msra.mxu0 0
      %3701 = vmatprep.subr.bf16.mxu0 0
      %3702 = vmatpush1.bf16.msra.mxu0 0
      %3703 = vmatprep.subr.bf16.mxu0 0
      %3704 = vmatpush1.bf16.msra.mxu0 0
      %3705 = vmatprep.subr.bf16.mxu0 0
      %3706 = vmatpush1.bf16.msra.mxu0 0
      %3707 = vmatprep.mubr.bf16.mxu0 0
      %3708 = vmatmul.mubr.bf16.gmra.mrb[0].mxu0 %v3441
      %v3709 = vpop.f32.mrb[0].mxu0
      %v3710 = vadd.f32 0.0, %v3709
      %v3711 = vpop.f32.mrb[0].mxu0
      %v3712 = vadd.f32 0.0, %v3711
      %v3713 = vpop.f32.mrb[0].mxu0
      %v3714 = vpop.f32.mrb[0].mxu0
      %3715 = vdwg.mxu0
      %v3716 = vadd.f32 %v3436, %v3669
      %v3717 = vadd.f32 %v3437, %v3671
      %v3718 = vadd.f32 %v3438, %v3710
      %v3719 = vadd.f32 %v3439, %v3712
      %v3720 = vld [vmem:[#allocation6] sm:$0xff]
      %v3721 = vxor.u32 %v3716, 2147483648
      %v3722 = vmul.f32 %v3721, 1.442695
      %v3723 = vpow.pop %v3722
      %v3724 = vadd.f32 %v3723, 1.0
      %v3725 = vrcp.pop %v3724
      %v3726 = vmul.f32 1.0, %v3725
      %v3727 = vxor.u32 %v3717, 2147483648
      %v3728 = vmul.f32 %v3727, 1.442695
      %v3729 = vpow.pop %v3728
      %v3730 = vadd.f32 %v3729, 1.0
      %v3731 = vrcp.pop %v3730
      %v3732 = vmul.f32 1.0, %v3731
      %v3733 = vtanh.pop %v3718
      %v3734 = vxor.u32 %v3719, 2147483648
      %v3735 = vmul.f32 %v3734, 1.442695
      %v3736 = vpow.pop %v3735
      %v3737 = vadd.f32 %v3736, 1.0
      %v3738 = vrcp.pop %v3737
      %v3739 = vmul.f32 1.0, %v3738
      %v3740 = vmul.f32 %v3732, %v3720
      %v3741 = vmul.f32 %v3726, %v3733
      %v3742 = vadd.f32 %v3740, %v3741
      %v3743 = vtanh.pop %v3742
      %v3744 = vmul.f32 %v3739, %v3743
      %3745 = vst [vmem:[#allocation5] sm:$0xff] %v3744
      %3746 = vst [vmem:[#allocation6] sm:$0xff] %v3742
      %3747 = vst [vmem:[#allocation2 + $0x30] sm:$0xff] %v3744
      %v3748 = vld [vmem:[#allocation4 + $0x80] sm:$0xff]
      %v3749 = vld [vmem:[#allocation4 + $0x88] sm:$0xff]
      %v3750 = vld [vmem:[#allocation4 + $0x90] sm:$0xff]
      %v3751 = vld [vmem:[#allocation4 + $0x98] sm:$0xff]
      %v3752 = vld [vmem:[#allocation7] sm:$0xff]
      %v3753 = vpack.c.bf16 %v3752, %v3752
      %v3754 = vld [vmem:[%s1881] sm:$0xff]
      %v3755 = vld [vmem:[%s1881 + $0x8] sm:$0xff]
      %v3756 = vld [vmem:[%s1881 + $0x10] sm:$0xff]
      %v3757 = vld [vmem:[%s1881 + $0x18] sm:$0xff]
      %v3758 = vld [vmem:[%s1881 + $0x20] sm:$0xff]
      %v3759 = vld [vmem:[%s1881 + $0x28] sm:$0xff]
      %v3760 = vld [vmem:[%s1881 + $0x30] sm:$0xff]
      %v3761 = vld [vmem:[%s1881 + $0x38] sm:$0xff]
      %v3762 = vld [vmem:[%s1881 + $0x40] sm:$0xff]
      %v3763 = vld [vmem:[%s1881 + $0x48] sm:$0xff]
      %v3764 = vld [vmem:[%s1881 + $0x50] sm:$0xff]
      %v3765 = vld [vmem:[%s1881 + $0x58] sm:$0xff]
      %v3766 = vld [vmem:[%s1881 + $0x60] sm:$0xff]
      %v3767 = vld [vmem:[%s1881 + $0x68] sm:$0xff]
      %v3768 = vld [vmem:[%s1881 + $0x70] sm:$0xff]
      %v3769 = vld [vmem:[%s1881 + $0x78] sm:$0xff]
      %v3770 = vld [vmem:[%s1881 + $0x80] sm:$0xff]
      %v3771 = vld [vmem:[%s1881 + $0x88] sm:$0xff]
      %v3772 = vld [vmem:[%s1881 + $0x90] sm:$0xff]
      %v3773 = vld [vmem:[%s1881 + $0x98] sm:$0xff]
      %v3774 = vld [vmem:[%s1881 + $0xa0] sm:$0xff]
      %v3775 = vld [vmem:[%s1881 + $0xa8] sm:$0xff]
      %v3776 = vld [vmem:[%s1881 + $0xb0] sm:$0xff]
      %v3777 = vld [vmem:[%s1881 + $0xb8] sm:$0xff]
      %v3778 = vld [vmem:[%s1881 + $0xc0] sm:$0xff]
      %v3779 = vld [vmem:[%s1881 + $0xc8] sm:$0xff]
      %v3780 = vld [vmem:[%s1881 + $0xd0] sm:$0xff]
      %v3781 = vld [vmem:[%s1881 + $0xd8] sm:$0xff]
      %v3782 = vld [vmem:[%s1881 + $0xe0] sm:$0xff]
      %v3783 = vld [vmem:[%s1881 + $0xe8] sm:$0xff]
      %v3784 = vld [vmem:[%s1881 + $0xf0] sm:$0xff]
      %v3785 = vld [vmem:[%s1881 + $0xf8] sm:$0xff]
      %v3818 = vunpack.c.l.b16 %v3754
      %v3819 = vunpack.c.h.b16 %v3754
      %v3820 = vunpack.c.l.b16 %v3755
      %v3821 = vunpack.c.h.b16 %v3755
      %v3822 = vunpack.c.l.b16 %v3756
      %v3823 = vunpack.c.h.b16 %v3756
      %v3824 = vunpack.c.l.b16 %v3757
      %v3825 = vunpack.c.h.b16 %v3757
      %v3826 = vunpack.c.l.b16 %v3758
      %v3827 = vunpack.c.h.b16 %v3758
      %v3828 = vunpack.c.l.b16 %v3759
      %v3829 = vunpack.c.h.b16 %v3759
      %v3830 = vunpack.c.l.b16 %v3760
      %v3831 = vunpack.c.h.b16 %v3760
      %v3832 = vunpack.c.l.b16 %v3761
      %v3833 = vunpack.c.h.b16 %v3761
      %v3834 = vunpack.c.l.b16 %v3762
      %v3835 = vunpack.c.h.b16 %v3762
      %v3836 = vunpack.c.l.b16 %v3763
      %v3837 = vunpack.c.h.b16 %v3763
      %v3838 = vunpack.c.l.b16 %v3764
      %v3839 = vunpack.c.h.b16 %v3764
      %v3840 = vunpack.c.l.b16 %v3765
      %v3841 = vunpack.c.h.b16 %v3765
      %v3842 = vunpack.c.l.b16 %v3766
      %v3843 = vunpack.c.h.b16 %v3766
      %v3844 = vunpack.c.l.b16 %v3767
      %v3845 = vunpack.c.h.b16 %v3767
      %v3846 = vunpack.c.l.b16 %v3768
      %v3847 = vunpack.c.h.b16 %v3768
      %v3848 = vunpack.c.l.b16 %v3769
      %v3849 = vunpack.c.h.b16 %v3769
      %v3850 = vunpack.c.l.b16 %v3770
      %v3851 = vunpack.c.h.b16 %v3770
      %v3852 = vunpack.c.l.b16 %v3771
      %v3853 = vunpack.c.h.b16 %v3771
      %v3854 = vunpack.c.l.b16 %v3772
      %v3855 = vunpack.c.h.b16 %v3772
      %v3856 = vunpack.c.l.b16 %v3773
      %v3857 = vunpack.c.h.b16 %v3773
      %v3858 = vunpack.c.l.b16 %v3774
      %v3859 = vunpack.c.h.b16 %v3774
      %v3860 = vunpack.c.l.b16 %v3775
      %v3861 = vunpack.c.h.b16 %v3775
      %v3862 = vunpack.c.l.b16 %v3776
      %v3863 = vunpack.c.h.b16 %v3776
      %v3864 = vunpack.c.l.b16 %v3777
      %v3865 = vunpack.c.h.b16 %v3777
      %v3866 = vunpack.c.l.b16 %v3778
      %v3867 = vunpack.c.h.b16 %v3778
      %v3868 = vunpack.c.l.b16 %v3779
      %v3869 = vunpack.c.h.b16 %v3779
      %v3870 = vunpack.c.l.b16 %v3780
      %v3871 = vunpack.c.h.b16 %v3780
      %v3872 = vunpack.c.l.b16 %v3781
      %v3873 = vunpack.c.h.b16 %v3781
      %v3874 = vunpack.c.l.b16 %v3782
      %v3875 = vunpack.c.h.b16 %v3782
      %v3876 = vunpack.c.l.b16 %v3783
      %v3877 = vunpack.c.h.b16 %v3783
      %v3878 = vunpack.c.l.b16 %v3784
      %v3879 = vunpack.c.h.b16 %v3784
      %v3880 = vunpack.c.l.b16 %v3785
      %v3881 = vunpack.c.h.b16 %v3785
      %v3882 = vpack.c.b16 %v3822, %v3818
      %v3883 = vpack.c.b16 %v3823, %v3819
      %v3884 = vpack.c.b16 %v3824, %v3820
      %v3885 = vpack.c.b16 %v3825, %v3821
      %v3886 = vpack.c.b16 %v3830, %v3826
      %v3887 = vpack.c.b16 %v3831, %v3827
      %v3888 = vpack.c.b16 %v3832, %v3828
      %v3889 = vpack.c.b16 %v3833, %v3829
      %v3890 = vpack.c.b16 %v3838, %v3834
      %v3891 = vpack.c.b16 %v3839, %v3835
      %v3892 = vpack.c.b16 %v3840, %v3836
      %v3893 = vpack.c.b16 %v3841, %v3837
      %v3894 = vpack.c.b16 %v3846, %v3842
      %v3895 = vpack.c.b16 %v3847, %v3843
      %v3896 = vpack.c.b16 %v3848, %v3844
      %v3897 = vpack.c.b16 %v3849, %v3845
      %v3898 = vpack.c.b16 %v3854, %v3850
      %v3899 = vpack.c.b16 %v3855, %v3851
      %v3900 = vpack.c.b16 %v3856, %v3852
      %v3901 = vpack.c.b16 %v3857, %v3853
      %v3902 = vpack.c.b16 %v3862, %v3858
      %v3903 = vpack.c.b16 %v3863, %v3859
      %v3904 = vpack.c.b16 %v3864, %v3860
      %v3905 = vpack.c.b16 %v3865, %v3861
      %v3906 = vpack.c.b16 %v3870, %v3866
      %v3907 = vpack.c.b16 %v3871, %v3867
      %v3908 = vpack.c.b16 %v3872, %v3868
      %v3909 = vpack.c.b16 %v3873, %v3869
      %v3910 = vpack.c.b16 %v3878, %v3874
      %v3911 = vpack.c.b16 %v3879, %v3875
      %v3912 = vpack.c.b16 %v3880, %v3876
      %v3913 = vpack.c.b16 %v3881, %v3877
      %3946 = vmatprep.subr.bf16.mxu0 %v3883
      %3947 = vmatpush1.bf16.msra.mxu0 %v3882
      %3948 = vmatprep.subr.bf16.mxu0 %v3887
      %3949 = vmatpush1.bf16.msra.mxu0 %v3886
      %3950 = vmatprep.subr.bf16.mxu0 %v3891
      %3951 = vmatpush1.bf16.msra.mxu0 %v3890
      %3952 = vmatprep.subr.bf16.mxu0 %v3895
      %3953 = vmatpush1.bf16.msra.mxu0 %v3894
      %3954 = vmatprep.subr.bf16.mxu0 %v3899
      %3955 = vmatpush1.bf16.msra.mxu0 %v3898
      %3956 = vmatprep.subr.bf16.mxu0 %v3903
      %3957 = vmatpush1.bf16.msra.mxu0 %v3902
      %3958 = vmatprep.subr.bf16.mxu0 %v3907
      %3959 = vmatpush1.bf16.msra.mxu0 %v3906
      %3960 = vmatprep.subr.bf16.mxu0 %v3911
      %3961 = vmatpush1.bf16.msra.mxu0 %v3910
      %3962 = vmatprep.subr.bf16.mxu0 0
      %3963 = vmatpush1.bf16.msra.mxu0 0
      %3964 = vmatprep.subr.bf16.mxu0 0
      %3965 = vmatpush1.bf16.msra.mxu0 0
      %3966 = vmatprep.subr.bf16.mxu0 0
      %3967 = vmatpush1.bf16.msra.mxu0 0
      %3968 = vmatprep.subr.bf16.mxu0 0
      %3969 = vmatpush1.bf16.msra.mxu0 0
      %3970 = vmatprep.subr.bf16.mxu0 0
      %3971 = vmatpush1.bf16.msra.mxu0 0
      %3972 = vmatprep.subr.bf16.mxu0 0
      %3973 = vmatpush1.bf16.msra.mxu0 0
      %3974 = vmatprep.subr.bf16.mxu0 0
      %3975 = vmatpush1.bf16.msra.mxu0 0
      %3976 = vmatprep.subr.bf16.mxu0 0
      %3977 = vmatpush1.bf16.msra.mxu0 0
      %3978 = vmatprep.mubr.bf16.mxu0 0
      %3979 = vmatmul.mubr.bf16.gmra.mrb[0].mxu0 %v3753
      %v3980 = vpop.f32.mrb[0].mxu0
      %v3981 = vadd.f32 0.0, %v3980
      %v3982 = vpop.f32.mrb[0].mxu0
      %v3983 = vadd.f32 0.0, %v3982
      %v3984 = vpop.f32.mrb[0].mxu0
      %v3985 = vpop.f32.mrb[0].mxu0
      %3986 = vdwg.mxu0
      %3987 = vmatprep.subr.bf16.mxu0 %v3885
      %3988 = vmatpush1.bf16.msra.mxu0 %v3884
      %3989 = vmatprep.subr.bf16.mxu0 %v3889
      %3990 = vmatpush1.bf16.msra.mxu0 %v3888
      %3991 = vmatprep.subr.bf16.mxu0 %v3893
      %3992 = vmatpush1.bf16.msra.mxu0 %v3892
      %3993 = vmatprep.subr.bf16.mxu0 %v3897
      %3994 = vmatpush1.bf16.msra.mxu0 %v3896
      %3995 = vmatprep.subr.bf16.mxu0 %v3901
      %3996 = vmatpush1.bf16.msra.mxu0 %v3900
      %3997 = vmatprep.subr.bf16.mxu0 %v3905
      %3998 = vmatpush1.bf16.msra.mxu0 %v3904
      %3999 = vmatprep.subr.bf16.mxu0 %v3909
      %4000 = vmatpush1.bf16.msra.mxu0 %v3908
      %4001 = vmatprep.subr.bf16.mxu0 %v3913
      %4002 = vmatpush1.bf16.msra.mxu0 %v3912
      %4003 = vmatprep.subr.bf16.mxu0 0
      %4004 = vmatpush1.bf16.msra.mxu0 0
      %4005 = vmatprep.subr.bf16.mxu0 0
      %4006 = vmatpush1.bf16.msra.mxu0 0
      %4007 = vmatprep.subr.bf16.mxu0 0
      %4008 = vmatpush1.bf16.msra.mxu0 0
      %4009 = vmatprep.subr.bf16.mxu0 0
      %4010 = vmatpush1.bf16.msra.mxu0 0
      %4011 = vmatprep.subr.bf16.mxu0 0
      %4012 = vmatpush1.bf16.msra.mxu0 0
      %4013 = vmatprep.subr.bf16.mxu0 0
      %4014 = vmatpush1.bf16.msra.mxu0 0
      %4015 = vmatprep.subr.bf16.mxu0 0
      %4016 = vmatpush1.bf16.msra.mxu0 0
      %4017 = vmatprep.subr.bf16.mxu0 0
      %4018 = vmatpush1.bf16.msra.mxu0 0
      %4019 = vmatprep.mubr.bf16.mxu0 0
      %4020 = vmatmul.mubr.bf16.gmra.mrb[0].mxu0 %v3753
      %v4021 = vpop.f32.mrb[0].mxu0
      %v4022 = vadd.f32 0.0, %v4021
      %v4023 = vpop.f32.mrb[0].mxu0
      %v4024 = vadd.f32 0.0, %v4023
      %v4025 = vpop.f32.mrb[0].mxu0
      %v4026 = vpop.f32.mrb[0].mxu0
      %4027 = vdwg.mxu0
      %v4028 = vadd.f32 %v3748, %v3981
      %v4029 = vadd.f32 %v3749, %v3983
      %v4030 = vadd.f32 %v3750, %v4022
      %v4031 = vadd.f32 %v3751, %v4024
      %v4032 = vld [vmem:[#allocation8] sm:$0xff]
      %v4033 = vxor.u32 %v4028, 2147483648
      %v4034 = vmul.f32 %v4033, 1.442695
      %v4035 = vpow.pop %v4034
      %v4036 = vadd.f32 %v4035, 1.0
      %v4037 = vrcp.pop %v4036
      %v4038 = vmul.f32 1.0, %v4037
      %v4039 = vxor.u32 %v4029, 2147483648
      %v4040 = vmul.f32 %v4039, 1.442695
      %v4041 = vpow.pop %v4040
      %v4042 = vadd.f32 %v4041, 1.0
      %v4043 = vrcp.pop %v4042
      %v4044 = vmul.f32 1.0, %v4043
      %v4045 = vtanh.pop %v4030
      %v4046 = vxor.u32 %v4031, 2147483648
      %v4047 = vmul.f32 %v4046, 1.442695
      %v4048 = vpow.pop %v4047
      %v4049 = vadd.f32 %v4048, 1.0
      %v4050 = vrcp.pop %v4049
      %v4051 = vmul.f32 1.0, %v4050
      %v4052 = vmul.f32 %v4044, %v4032
      %v4053 = vmul.f32 %v4038, %v4045
      %v4054 = vadd.f32 %v4052, %v4053
      %v4055 = vtanh.pop %v4054
      %v4056 = vmul.f32 %v4051, %v4055
      %4057 = vst [vmem:[#allocation7] sm:$0xff] %v4056
      %4058 = vst [vmem:[#allocation8] sm:$0xff] %v4054
      %4059 = vst [vmem:[#allocation2 + $0x48] sm:$0xff] %v4056
      %v4060 = vld [vmem:[#allocation3 + $0x80] sm:$0xff]
      %v4061 = vld [vmem:[#allocation3 + $0x88] sm:$0xff]
      %v4062 = vld [vmem:[#allocation3 + $0x90] sm:$0xff]
      %v4063 = vld [vmem:[#allocation3 + $0x98] sm:$0xff]
      %v4064 = vld [vmem:[#allocation5] sm:$0xff]
      %v4065 = vpack.c.bf16 %v4064, %v4064
      %v4066 = vld [vmem:[%s323] sm:$0xff]
      %v4067 = vld [vmem:[%s323 + $0x8] sm:$0xff]
      %v4068 = vld [vmem:[%s323 + $0x10] sm:$0xff]
      %v4069 = vld [vmem:[%s323 + $0x18] sm:$0xff]
      %v4070 = vld [vmem:[%s323 + $0x20] sm:$0xff]
      %v4071 = vld [vmem:[%s323 + $0x28] sm:$0xff]
      %v4072 = vld [vmem:[%s323 + $0x30] sm:$0xff]
      %v4073 = vld [vmem:[%s323 + $0x38] sm:$0xff]
      %v4074 = vld [vmem:[%s323 + $0x40] sm:$0xff]
      %v4075 = vld [vmem:[%s323 + $0x48] sm:$0xff]
      %v4076 = vld [vmem:[%s323 + $0x50] sm:$0xff]
      %v4077 = vld [vmem:[%s323 + $0x58] sm:$0xff]
      %v4078 = vld [vmem:[%s323 + $0x60] sm:$0xff]
      %v4079 = vld [vmem:[%s323 + $0x68] sm:$0xff]
      %v4080 = vld [vmem:[%s323 + $0x70] sm:$0xff]
      %v4081 = vld [vmem:[%s323 + $0x78] sm:$0xff]
      %v4082 = vld [vmem:[%s323 + $0x80] sm:$0xff]
      %v4083 = vld [vmem:[%s323 + $0x88] sm:$0xff]
      %v4084 = vld [vmem:[%s323 + $0x90] sm:$0xff]
      %v4085 = vld [vmem:[%s323 + $0x98] sm:$0xff]
      %v4086 = vld [vmem:[%s323 + $0xa0] sm:$0xff]
      %v4087 = vld [vmem:[%s323 + $0xa8] sm:$0xff]
      %v4088 = vld [vmem:[%s323 + $0xb0] sm:$0xff]
      %v4089 = vld [vmem:[%s323 + $0xb8] sm:$0xff]
      %v4090 = vld [vmem:[%s323 + $0xc0] sm:$0xff]
      %v4091 = vld [vmem:[%s323 + $0xc8] sm:$0xff]
      %v4092 = vld [vmem:[%s323 + $0xd0] sm:$0xff]
      %v4093 = vld [vmem:[%s323 + $0xd8] sm:$0xff]
      %v4094 = vld [vmem:[%s323 + $0xe0] sm:$0xff]
      %v4095 = vld [vmem:[%s323 + $0xe8] sm:$0xff]
      %v4096 = vld [vmem:[%s323 + $0xf0] sm:$0xff]
      %v4097 = vld [vmem:[%s323 + $0xf8] sm:$0xff]
      %v4130 = vunpack.c.l.b16 %v4066
      %v4131 = vunpack.c.h.b16 %v4066
      %v4132 = vunpack.c.l.b16 %v4067
      %v4133 = vunpack.c.h.b16 %v4067
      %v4134 = vunpack.c.l.b16 %v4068
      %v4135 = vunpack.c.h.b16 %v4068
      %v4136 = vunpack.c.l.b16 %v4069
      %v4137 = vunpack.c.h.b16 %v4069
      %v4138 = vunpack.c.l.b16 %v4070
      %v4139 = vunpack.c.h.b16 %v4070
      %v4140 = vunpack.c.l.b16 %v4071
      %v4141 = vunpack.c.h.b16 %v4071
      %v4142 = vunpack.c.l.b16 %v4072
      %v4143 = vunpack.c.h.b16 %v4072
      %v4144 = vunpack.c.l.b16 %v4073
      %v4145 = vunpack.c.h.b16 %v4073
      %v4146 = vunpack.c.l.b16 %v4074
      %v4147 = vunpack.c.h.b16 %v4074
      %v4148 = vunpack.c.l.b16 %v4075
      %v4149 = vunpack.c.h.b16 %v4075
      %v4150 = vunpack.c.l.b16 %v4076
      %v4151 = vunpack.c.h.b16 %v4076
      %v4152 = vunpack.c.l.b16 %v4077
      %v4153 = vunpack.c.h.b16 %v4077
      %v4154 = vunpack.c.l.b16 %v4078
      %v4155 = vunpack.c.h.b16 %v4078
      %v4156 = vunpack.c.l.b16 %v4079
      %v4157 = vunpack.c.h.b16 %v4079
      %v4158 = vunpack.c.l.b16 %v4080
      %v4159 = vunpack.c.h.b16 %v4080
      %v4160 = vunpack.c.l.b16 %v4081
      %v4161 = vunpack.c.h.b16 %v4081
      %v4162 = vunpack.c.l.b16 %v4082
      %v4163 = vunpack.c.h.b16 %v4082
      %v4164 = vunpack.c.l.b16 %v4083
      %v4165 = vunpack.c.h.b16 %v4083
      %v4166 = vunpack.c.l.b16 %v4084
      %v4167 = vunpack.c.h.b16 %v4084
      %v4168 = vunpack.c.l.b16 %v4085
      %v4169 = vunpack.c.h.b16 %v4085
      %v4170 = vunpack.c.l.b16 %v4086
      %v4171 = vunpack.c.h.b16 %v4086
      %v4172 = vunpack.c.l.b16 %v4087
      %v4173 = vunpack.c.h.b16 %v4087
      %v4174 = vunpack.c.l.b16 %v4088
      %v4175 = vunpack.c.h.b16 %v4088
      %v4176 = vunpack.c.l.b16 %v4089
      %v4177 = vunpack.c.h.b16 %v4089
      %v4178 = vunpack.c.l.b16 %v4090
      %v4179 = vunpack.c.h.b16 %v4090
      %v4180 = vunpack.c.l.b16 %v4091
      %v4181 = vunpack.c.h.b16 %v4091
      %v4182 = vunpack.c.l.b16 %v4092
      %v4183 = vunpack.c.h.b16 %v4092
      %v4184 = vunpack.c.l.b16 %v4093
      %v4185 = vunpack.c.h.b16 %v4093
      %v4186 = vunpack.c.l.b16 %v4094
      %v4187 = vunpack.c.h.b16 %v4094
      %v4188 = vunpack.c.l.b16 %v4095
      %v4189 = vunpack.c.h.b16 %v4095
      %v4190 = vunpack.c.l.b16 %v4096
      %v4191 = vunpack.c.h.b16 %v4096
      %v4192 = vunpack.c.l.b16 %v4097
      %v4193 = vunpack.c.h.b16 %v4097
      %v4194 = vpack.c.b16 %v4134, %v4130
      %v4195 = vpack.c.b16 %v4135, %v4131
      %v4196 = vpack.c.b16 %v4136, %v4132
      %v4197 = vpack.c.b16 %v4137, %v4133
      %v4198 = vpack.c.b16 %v4142, %v4138
      %v4199 = vpack.c.b16 %v4143, %v4139
      %v4200 = vpack.c.b16 %v4144, %v4140
      %v4201 = vpack.c.b16 %v4145, %v4141
      %v4202 = vpack.c.b16 %v4150, %v4146
      %v4203 = vpack.c.b16 %v4151, %v4147
      %v4204 = vpack.c.b16 %v4152, %v4148
      %v4205 = vpack.c.b16 %v4153, %v4149
      %v4206 = vpack.c.b16 %v4158, %v4154
      %v4207 = vpack.c.b16 %v4159, %v4155
      %v4208 = vpack.c.b16 %v4160, %v4156
      %v4209 = vpack.c.b16 %v4161, %v4157
      %v4210 = vpack.c.b16 %v4166, %v4162
      %v4211 = vpack.c.b16 %v4167, %v4163
      %v4212 = vpack.c.b16 %v4168, %v4164
      %v4213 = vpack.c.b16 %v4169, %v4165
      %v4214 = vpack.c.b16 %v4174, %v4170
      %v4215 = vpack.c.b16 %v4175, %v4171
      %v4216 = vpack.c.b16 %v4176, %v4172
      %v4217 = vpack.c.b16 %v4177, %v4173
      %v4218 = vpack.c.b16 %v4182, %v4178
      %v4219 = vpack.c.b16 %v4183, %v4179
      %v4220 = vpack.c.b16 %v4184, %v4180
      %v4221 = vpack.c.b16 %v4185, %v4181
      %v4222 = vpack.c.b16 %v4190, %v4186
      %v4223 = vpack.c.b16 %v4191, %v4187
      %v4224 = vpack.c.b16 %v4192, %v4188
      %v4225 = vpack.c.b16 %v4193, %v4189
      %4258 = vmatprep.subr.bf16.mxu0 %v4195
      %4259 = vmatpush1.bf16.msra.mxu0 %v4194
      %4260 = vmatprep.subr.bf16.mxu0 %v4199
      %4261 = vmatpush1.bf16.msra.mxu0 %v4198
      %4262 = vmatprep.subr.bf16.mxu0 %v4203
      %4263 = vmatpush1.bf16.msra.mxu0 %v4202
      %4264 = vmatprep.subr.bf16.mxu0 %v4207
      %4265 = vmatpush1.bf16.msra.mxu0 %v4206
      %4266 = vmatprep.subr.bf16.mxu0 %v4211
      %4267 = vmatpush1.bf16.msra.mxu0 %v4210
      %4268 = vmatprep.subr.bf16.mxu0 %v4215
      %4269 = vmatpush1.bf16.msra.mxu0 %v4214
      %4270 = vmatprep.subr.bf16.mxu0 %v4219
      %4271 = vmatpush1.bf16.msra.mxu0 %v4218
      %4272 = vmatprep.subr.bf16.mxu0 %v4223
      %4273 = vmatpush1.bf16.msra.mxu0 %v4222
      %4274 = vmatprep.subr.bf16.mxu0 0
      %4275 = vmatpush1.bf16.msra.mxu0 0
      %4276 = vmatprep.subr.bf16.mxu0 0
      %4277 = vmatpush1.bf16.msra.mxu0 0
      %4278 = vmatprep.subr.bf16.mxu0 0
      %4279 = vmatpush1.bf16.msra.mxu0 0
      %4280 = vmatprep.subr.bf16.mxu0 0
      %4281 = vmatpush1.bf16.msra.mxu0 0
      %4282 = vmatprep.subr.bf16.mxu0 0
      %4283 = vmatpush1.bf16.msra.mxu0 0
      %4284 = vmatprep.subr.bf16.mxu0 0
      %4285 = vmatpush1.bf16.msra.mxu0 0
      %4286 = vmatprep.subr.bf16.mxu0 0
      %4287 = vmatpush1.bf16.msra.mxu0 0
      %4288 = vmatprep.subr.bf16.mxu0 0
      %4289 = vmatpush1.bf16.msra.mxu0 0
      %4290 = vmatprep.mubr.bf16.mxu0 0
      %4291 = vmatmul.mubr.bf16.gmra.mrb[0].mxu0 %v4065
      %v4292 = vpop.f32.mrb[0].mxu0
      %v4293 = vadd.f32 0.0, %v4292
      %v4294 = vpop.f32.mrb[0].mxu0
      %v4295 = vadd.f32 0.0, %v4294
      %v4296 = vpop.f32.mrb[0].mxu0
      %v4297 = vpop.f32.mrb[0].mxu0
      %4298 = vdwg.mxu0
      %4299 = vmatprep.subr.bf16.mxu0 %v4197
      %4300 = vmatpush1.bf16.msra.mxu0 %v4196
      %4301 = vmatprep.subr.bf16.mxu0 %v4201
      %4302 = vmatpush1.bf16.msra.mxu0 %v4200
      %4303 = vmatprep.subr.bf16.mxu0 %v4205
      %4304 = vmatpush1.bf16.msra.mxu0 %v4204
      %4305 = vmatprep.subr.bf16.mxu0 %v4209
      %4306 = vmatpush1.bf16.msra.mxu0 %v4208
      %4307 = vmatprep.subr.bf16.mxu0 %v4213
      %4308 = vmatpush1.bf16.msra.mxu0 %v4212
      %4309 = vmatprep.subr.bf16.mxu0 %v4217
      %4310 = vmatpush1.bf16.msra.mxu0 %v4216
      %4311 = vmatprep.subr.bf16.mxu0 %v4221
      %4312 = vmatpush1.bf16.msra.mxu0 %v4220
      %4313 = vmatprep.subr.bf16.mxu0 %v4225
      %4314 = vmatpush1.bf16.msra.mxu0 %v4224
      %4315 = vmatprep.subr.bf16.mxu0 0
      %4316 = vmatpush1.bf16.msra.mxu0 0
      %4317 = vmatprep.subr.bf16.mxu0 0
      %4318 = vmatpush1.bf16.msra.mxu0 0
      %4319 = vmatprep.subr.bf16.mxu0 0
      %4320 = vmatpush1.bf16.msra.mxu0 0
      %4321 = vmatprep.subr.bf16.mxu0 0
      %4322 = vmatpush1.bf16.msra.mxu0 0
      %4323 = vmatprep.subr.bf16.mxu0 0
      %4324 = vmatpush1.bf16.msra.mxu0 0
      %4325 = vmatprep.subr.bf16.mxu0 0
      %4326 = vmatpush1.bf16.msra.mxu0 0
      %4327 = vmatprep.subr.bf16.mxu0 0
      %4328 = vmatpush1.bf16.msra.mxu0 0
      %4329 = vmatprep.subr.bf16.mxu0 0
      %4330 = vmatpush1.bf16.msra.mxu0 0
      %4331 = vmatprep.mubr.bf16.mxu0 0
      %4332 = vmatmul.mubr.bf16.gmra.mrb[0].mxu0 %v4065
      %v4333 = vpop.f32.mrb[0].mxu0
      %v4334 = vadd.f32 0.0, %v4333
      %v4335 = vpop.f32.mrb[0].mxu0
      %v4336 = vadd.f32 0.0, %v4335
      %v4337 = vpop.f32.mrb[0].mxu0
      %v4338 = vpop.f32.mrb[0].mxu0
      %4339 = vdwg.mxu0
      %v4340 = vadd.f32 %v4060, %v4293
      %v4341 = vadd.f32 %v4061, %v4295
      %v4342 = vadd.f32 %v4062, %v4334
      %v4343 = vadd.f32 %v4063, %v4336
      %v4344 = vld [vmem:[#allocation6] sm:$0xff]
      %v4345 = vxor.u32 %v4340, 2147483648
      %v4346 = vmul.f32 %v4345, 1.442695
      %v4347 = vpow.pop %v4346
      %v4348 = vadd.f32 %v4347, 1.0
      %v4349 = vrcp.pop %v4348
      %v4350 = vmul.f32 1.0, %v4349
      %v4351 = vxor.u32 %v4341, 2147483648
      %v4352 = vmul.f32 %v4351, 1.442695
      %v4353 = vpow.pop %v4352
      %v4354 = vadd.f32 %v4353, 1.0
      %v4355 = vrcp.pop %v4354
      %v4356 = vmul.f32 1.0, %v4355
      %v4357 = vtanh.pop %v4342
      %v4358 = vxor.u32 %v4343, 2147483648
      %v4359 = vmul.f32 %v4358, 1.442695
      %v4360 = vpow.pop %v4359
      %v4361 = vadd.f32 %v4360, 1.0
      %v4362 = vrcp.pop %v4361
      %v4363 = vmul.f32 1.0, %v4362
      %v4364 = vmul.f32 %v4356, %v4344
      %v4365 = vmul.f32 %v4350, %v4357
      %v4366 = vadd.f32 %v4364, %v4365
      %v4367 = vtanh.pop %v4366
      %v4368 = vmul.f32 %v4363, %v4367
      %4369 = vst [vmem:[#allocation5] sm:$0xff] %v4368
      %4370 = vst [vmem:[#allocation6] sm:$0xff] %v4366
      %4371 = vst [vmem:[#allocation2 + $0x40] sm:$0xff] %v4368
      %v4372 = vld [vmem:[#allocation4 + $0x60] sm:$0xff]
      %v4373 = vld [vmem:[#allocation4 + $0x68] sm:$0xff]
      %v4374 = vld [vmem:[#allocation4 + $0x70] sm:$0xff]
      %v4375 = vld [vmem:[#allocation4 + $0x78] sm:$0xff]
      %v4376 = vld [vmem:[#allocation7] sm:$0xff]
      %v4377 = vpack.c.bf16 %v4376, %v4376
      %v4378 = vld [vmem:[%s1881] sm:$0xff]
      %v4379 = vld [vmem:[%s1881 + $0x8] sm:$0xff]
      %v4380 = vld [vmem:[%s1881 + $0x10] sm:$0xff]
      %v4381 = vld [vmem:[%s1881 + $0x18] sm:$0xff]
      %v4382 = vld [vmem:[%s1881 + $0x20] sm:$0xff]
      %v4383 = vld [vmem:[%s1881 + $0x28] sm:$0xff]
      %v4384 = vld [vmem:[%s1881 + $0x30] sm:$0xff]
      %v4385 = vld [vmem:[%s1881 + $0x38] sm:$0xff]
      %v4386 = vld [vmem:[%s1881 + $0x40] sm:$0xff]
      %v4387 = vld [vmem:[%s1881 + $0x48] sm:$0xff]
      %v4388 = vld [vmem:[%s1881 + $0x50] sm:$0xff]
      %v4389 = vld [vmem:[%s1881 + $0x58] sm:$0xff]
      %v4390 = vld [vmem:[%s1881 + $0x60] sm:$0xff]
      %v4391 = vld [vmem:[%s1881 + $0x68] sm:$0xff]
      %v4392 = vld [vmem:[%s1881 + $0x70] sm:$0xff]
      %v4393 = vld [vmem:[%s1881 + $0x78] sm:$0xff]
      %v4394 = vld [vmem:[%s1881 + $0x80] sm:$0xff]
      %v4395 = vld [vmem:[%s1881 + $0x88] sm:$0xff]
      %v4396 = vld [vmem:[%s1881 + $0x90] sm:$0xff]
      %v4397 = vld [vmem:[%s1881 + $0x98] sm:$0xff]
      %v4398 = vld [vmem:[%s1881 + $0xa0] sm:$0xff]
      %v4399 = vld [vmem:[%s1881 + $0xa8] sm:$0xff]
      %v4400 = vld [vmem:[%s1881 + $0xb0] sm:$0xff]
      %v4401 = vld [vmem:[%s1881 + $0xb8] sm:$0xff]
      %v4402 = vld [vmem:[%s1881 + $0xc0] sm:$0xff]
      %v4403 = vld [vmem:[%s1881 + $0xc8] sm:$0xff]
      %v4404 = vld [vmem:[%s1881 + $0xd0] sm:$0xff]
      %v4405 = vld [vmem:[%s1881 + $0xd8] sm:$0xff]
      %v4406 = vld [vmem:[%s1881 + $0xe0] sm:$0xff]
      %v4407 = vld [vmem:[%s1881 + $0xe8] sm:$0xff]
      %v4408 = vld [vmem:[%s1881 + $0xf0] sm:$0xff]
      %v4409 = vld [vmem:[%s1881 + $0xf8] sm:$0xff]
      %v4442 = vunpack.c.l.b16 %v4378
      %v4443 = vunpack.c.h.b16 %v4378
      %v4444 = vunpack.c.l.b16 %v4379
      %v4445 = vunpack.c.h.b16 %v4379
      %v4446 = vunpack.c.l.b16 %v4380
      %v4447 = vunpack.c.h.b16 %v4380
      %v4448 = vunpack.c.l.b16 %v4381
      %v4449 = vunpack.c.h.b16 %v4381
      %v4450 = vunpack.c.l.b16 %v4382
      %v4451 = vunpack.c.h.b16 %v4382
      %v4452 = vunpack.c.l.b16 %v4383
      %v4453 = vunpack.c.h.b16 %v4383
      %v4454 = vunpack.c.l.b16 %v4384
      %v4455 = vunpack.c.h.b16 %v4384
      %v4456 = vunpack.c.l.b16 %v4385
      %v4457 = vunpack.c.h.b16 %v4385
      %v4458 = vunpack.c.l.b16 %v4386
      %v4459 = vunpack.c.h.b16 %v4386
      %v4460 = vunpack.c.l.b16 %v4387
      %v4461 = vunpack.c.h.b16 %v4387
      %v4462 = vunpack.c.l.b16 %v4388
      %v4463 = vunpack.c.h.b16 %v4388
      %v4464 = vunpack.c.l.b16 %v4389
      %v4465 = vunpack.c.h.b16 %v4389
      %v4466 = vunpack.c.l.b16 %v4390
      %v4467 = vunpack.c.h.b16 %v4390
      %v4468 = vunpack.c.l.b16 %v4391
      %v4469 = vunpack.c.h.b16 %v4391
      %v4470 = vunpack.c.l.b16 %v4392
      %v4471 = vunpack.c.h.b16 %v4392
      %v4472 = vunpack.c.l.b16 %v4393
      %v4473 = vunpack.c.h.b16 %v4393
      %v4474 = vunpack.c.l.b16 %v4394
      %v4475 = vunpack.c.h.b16 %v4394
      %v4476 = vunpack.c.l.b16 %v4395
      %v4477 = vunpack.c.h.b16 %v4395
      %v4478 = vunpack.c.l.b16 %v4396
      %v4479 = vunpack.c.h.b16 %v4396
      %v4480 = vunpack.c.l.b16 %v4397
      %v4481 = vunpack.c.h.b16 %v4397
      %v4482 = vunpack.c.l.b16 %v4398
      %v4483 = vunpack.c.h.b16 %v4398
      %v4484 = vunpack.c.l.b16 %v4399
      %v4485 = vunpack.c.h.b16 %v4399
      %v4486 = vunpack.c.l.b16 %v4400
      %v4487 = vunpack.c.h.b16 %v4400
      %v4488 = vunpack.c.l.b16 %v4401
      %v4489 = vunpack.c.h.b16 %v4401
      %v4490 = vunpack.c.l.b16 %v4402
      %v4491 = vunpack.c.h.b16 %v4402
      %v4492 = vunpack.c.l.b16 %v4403
      %v4493 = vunpack.c.h.b16 %v4403
      %v4494 = vunpack.c.l.b16 %v4404
      %v4495 = vunpack.c.h.b16 %v4404
      %v4496 = vunpack.c.l.b16 %v4405
      %v4497 = vunpack.c.h.b16 %v4405
      %v4498 = vunpack.c.l.b16 %v4406
      %v4499 = vunpack.c.h.b16 %v4406
      %v4500 = vunpack.c.l.b16 %v4407
      %v4501 = vunpack.c.h.b16 %v4407
      %v4502 = vunpack.c.l.b16 %v4408
      %v4503 = vunpack.c.h.b16 %v4408
      %v4504 = vunpack.c.l.b16 %v4409
      %v4505 = vunpack.c.h.b16 %v4409
      %v4506 = vpack.c.b16 %v4446, %v4442
      %v4507 = vpack.c.b16 %v4447, %v4443
      %v4508 = vpack.c.b16 %v4448, %v4444
      %v4509 = vpack.c.b16 %v4449, %v4445
      %v4510 = vpack.c.b16 %v4454, %v4450
      %v4511 = vpack.c.b16 %v4455, %v4451
      %v4512 = vpack.c.b16 %v4456, %v4452
      %v4513 = vpack.c.b16 %v4457, %v4453
      %v4514 = vpack.c.b16 %v4462, %v4458
      %v4515 = vpack.c.b16 %v4463, %v4459
      %v4516 = vpack.c.b16 %v4464, %v4460
      %v4517 = vpack.c.b16 %v4465, %v4461
      %v4518 = vpack.c.b16 %v4470, %v4466
      %v4519 = vpack.c.b16 %v4471, %v4467
      %v4520 = vpack.c.b16 %v4472, %v4468
      %v4521 = vpack.c.b16 %v4473, %v4469
      %v4522 = vpack.c.b16 %v4478, %v4474
      %v4523 = vpack.c.b16 %v4479, %v4475
      %v4524 = vpack.c.b16 %v4480, %v4476
      %v4525 = vpack.c.b16 %v4481, %v4477
      %v4526 = vpack.c.b16 %v4486, %v4482
      %v4527 = vpack.c.b16 %v4487, %v4483
      %v4528 = vpack.c.b16 %v4488, %v4484
      %v4529 = vpack.c.b16 %v4489, %v4485
      %v4530 = vpack.c.b16 %v4494, %v4490
      %v4531 = vpack.c.b16 %v4495, %v4491
      %v4532 = vpack.c.b16 %v4496, %v4492
      %v4533 = vpack.c.b16 %v4497, %v4493
      %v4534 = vpack.c.b16 %v4502, %v4498
      %v4535 = vpack.c.b16 %v4503, %v4499
      %v4536 = vpack.c.b16 %v4504, %v4500
      %v4537 = vpack.c.b16 %v4505, %v4501
      %4570 = vmatprep.subr.bf16.mxu0 %v4507
      %4571 = vmatpush1.bf16.msra.mxu0 %v4506
      %4572 = vmatprep.subr.bf16.mxu0 %v4511
      %4573 = vmatpush1.bf16.msra.mxu0 %v4510
      %4574 = vmatprep.subr.bf16.mxu0 %v4515
      %4575 = vmatpush1.bf16.msra.mxu0 %v4514
      %4576 = vmatprep.subr.bf16.mxu0 %v4519
      %4577 = vmatpush1.bf16.msra.mxu0 %v4518
      %4578 = vmatprep.subr.bf16.mxu0 %v4523
      %4579 = vmatpush1.bf16.msra.mxu0 %v4522
      %4580 = vmatprep.subr.bf16.mxu0 %v4527
      %4581 = vmatpush1.bf16.msra.mxu0 %v4526
      %4582 = vmatprep.subr.bf16.mxu0 %v4531
      %4583 = vmatpush1.bf16.msra.mxu0 %v4530
      %4584 = vmatprep.subr.bf16.mxu0 %v4535
      %4585 = vmatpush1.bf16.msra.mxu0 %v4534
      %4586 = vmatprep.subr.bf16.mxu0 0
      %4587 = vmatpush1.bf16.msra.mxu0 0
      %4588 = vmatprep.subr.bf16.mxu0 0
      %4589 = vmatpush1.bf16.msra.mxu0 0
      %4590 = vmatprep.subr.bf16.mxu0 0
      %4591 = vmatpush1.bf16.msra.mxu0 0
      %4592 = vmatprep.subr.bf16.mxu0 0
      %4593 = vmatpush1.bf16.msra.mxu0 0
      %4594 = vmatprep.subr.bf16.mxu0 0
      %4595 = vmatpush1.bf16.msra.mxu0 0
      %4596 = vmatprep.subr.bf16.mxu0 0
      %4597 = vmatpush1.bf16.msra.mxu0 0
      %4598 = vmatprep.subr.bf16.mxu0 0
      %4599 = vmatpush1.bf16.msra.mxu0 0
      %4600 = vmatprep.subr.bf16.mxu0 0
      %4601 = vmatpush1.bf16.msra.mxu0 0
      %4602 = vmatprep.mubr.bf16.mxu0 0
      %4603 = vmatmul.mubr.bf16.gmra.mrb[0].mxu0 %v4377
      %v4604 = vpop.f32.mrb[0].mxu0
      %v4605 = vadd.f32 0.0, %v4604
      %v4606 = vpop.f32.mrb[0].mxu0
      %v4607 = vadd.f32 0.0, %v4606
      %v4608 = vpop.f32.mrb[0].mxu0
      %v4609 = vpop.f32.mrb[0].mxu0
      %4610 = vdwg.mxu0
      %4611 = vmatprep.subr.bf16.mxu0 %v4509
      %4612 = vmatpush1.bf16.msra.mxu0 %v4508
      %4613 = vmatprep.subr.bf16.mxu0 %v4513
      %4614 = vmatpush1.bf16.msra.mxu0 %v4512
      %4615 = vmatprep.subr.bf16.mxu0 %v4517
      %4616 = vmatpush1.bf16.msra.mxu0 %v4516
      %4617 = vmatprep.subr.bf16.mxu0 %v4521
      %4618 = vmatpush1.bf16.msra.mxu0 %v4520
      %4619 = vmatprep.subr.bf16.mxu0 %v4525
      %4620 = vmatpush1.bf16.msra.mxu0 %v4524
      %4621 = vmatprep.subr.bf16.mxu0 %v4529
      %4622 = vmatpush1.bf16.msra.mxu0 %v4528
      %4623 = vmatprep.subr.bf16.mxu0 %v4533
      %4624 = vmatpush1.bf16.msra.mxu0 %v4532
      %4625 = vmatprep.subr.bf16.mxu0 %v4537
      %4626 = vmatpush1.bf16.msra.mxu0 %v4536
      %4627 = vmatprep.subr.bf16.mxu0 0
      %4628 = vmatpush1.bf16.msra.mxu0 0
      %4629 = vmatprep.subr.bf16.mxu0 0
      %4630 = vmatpush1.bf16.msra.mxu0 0
      %4631 = vmatprep.subr.bf16.mxu0 0
      %4632 = vmatpush1.bf16.msra.mxu0 0
      %4633 = vmatprep.subr.bf16.mxu0 0
      %4634 = vmatpush1.bf16.msra.mxu0 0
      %4635 = vmatprep.subr.bf16.mxu0 0
      %4636 = vmatpush1.bf16.msra.mxu0 0
      %4637 = vmatprep.subr.bf16.mxu0 0
      %4638 = vmatpush1.bf16.msra.mxu0 0
      %4639 = vmatprep.subr.bf16.mxu0 0
      %4640 = vmatpush1.bf16.msra.mxu0 0
      %4641 = vmatprep.subr.bf16.mxu0 0
      %4642 = vmatpush1.bf16.msra.mxu0 0
      %4643 = vmatprep.mubr.bf16.mxu0 0
      %4644 = vmatmul.mubr.bf16.gmra.mrb[0].mxu0 %v4377
      %v4645 = vpop.f32.mrb[0].mxu0
      %v4646 = vadd.f32 0.0, %v4645
      %v4647 = vpop.f32.mrb[0].mxu0
      %v4648 = vadd.f32 0.0, %v4647
      %v4649 = vpop.f32.mrb[0].mxu0
      %v4650 = vpop.f32.mrb[0].mxu0
      %4651 = vdwg.mxu0
      %v4652 = vadd.f32 %v4372, %v4605
      %v4653 = vadd.f32 %v4373, %v4607
      %v4654 = vadd.f32 %v4374, %v4646
      %v4655 = vadd.f32 %v4375, %v4648
      %v4656 = vld [vmem:[#allocation8] sm:$0xff]
      %v4657 = vxor.u32 %v4652, 2147483648
      %v4658 = vmul.f32 %v4657, 1.442695
      %v4659 = vpow.pop %v4658
      %v4660 = vadd.f32 %v4659, 1.0
      %v4661 = vrcp.pop %v4660
      %v4662 = vmul.f32 1.0, %v4661
      %v4663 = vxor.u32 %v4653, 2147483648
      %v4664 = vmul.f32 %v4663, 1.442695
      %v4665 = vpow.pop %v4664
      %v4666 = vadd.f32 %v4665, 1.0
      %v4667 = vrcp.pop %v4666
      %v4668 = vmul.f32 1.0, %v4667
      %v4669 = vtanh.pop %v4654
      %v4670 = vxor.u32 %v4655, 2147483648
      %v4671 = vmul.f32 %v4670, 1.442695
      %v4672 = vpow.pop %v4671
      %v4673 = vadd.f32 %v4672, 1.0
      %v4674 = vrcp.pop %v4673
      %v4675 = vmul.f32 1.0, %v4674
      %v4676 = vmul.f32 %v4668, %v4656
      %v4677 = vmul.f32 %v4662, %v4669
      %v4678 = vadd.f32 %v4676, %v4677
      %v4679 = vtanh.pop %v4678
      %v4680 = vmul.f32 %v4675, %v4679
      %4681 = vst [vmem:[#allocation7] sm:$0xff] %v4680
      %4682 = vst [vmem:[#allocation8] sm:$0xff] %v4678
      %4683 = vst [vmem:[#allocation2 + $0x38] sm:$0xff] %v4680
      %v4684 = vld [vmem:[#allocation3 + $0xa0] sm:$0xff]
      %v4685 = vld [vmem:[#allocation3 + $0xa8] sm:$0xff]
      %v4686 = vld [vmem:[#allocation3 + $0xb0] sm:$0xff]
      %v4687 = vld [vmem:[#allocation3 + $0xb8] sm:$0xff]
      %v4688 = vld [vmem:[#allocation5] sm:$0xff]
      %v4689 = vpack.c.bf16 %v4688, %v4688
      %v4690 = vld [vmem:[%s323] sm:$0xff]
      %v4691 = vld [vmem:[%s323 + $0x8] sm:$0xff]
      %v4692 = vld [vmem:[%s323 + $0x10] sm:$0xff]
      %v4693 = vld [vmem:[%s323 + $0x18] sm:$0xff]
      %v4694 = vld [vmem:[%s323 + $0x20] sm:$0xff]
      %v4695 = vld [vmem:[%s323 + $0x28] sm:$0xff]
      %v4696 = vld [vmem:[%s323 + $0x30] sm:$0xff]
      %v4697 = vld [vmem:[%s323 + $0x38] sm:$0xff]
      %v4698 = vld [vmem:[%s323 + $0x40] sm:$0xff]
      %v4699 = vld [vmem:[%s323 + $0x48] sm:$0xff]
      %v4700 = vld [vmem:[%s323 + $0x50] sm:$0xff]
      %v4701 = vld [vmem:[%s323 + $0x58] sm:$0xff]
      %v4702 = vld [vmem:[%s323 + $0x60] sm:$0xff]
      %v4703 = vld [vmem:[%s323 + $0x68] sm:$0xff]
      %v4704 = vld [vmem:[%s323 + $0x70] sm:$0xff]
      %v4705 = vld [vmem:[%s323 + $0x78] sm:$0xff]
      %v4706 = vld [vmem:[%s323 + $0x80] sm:$0xff]
      %v4707 = vld [vmem:[%s323 + $0x88] sm:$0xff]
      %v4708 = vld [vmem:[%s323 + $0x90] sm:$0xff]
      %v4709 = vld [vmem:[%s323 + $0x98] sm:$0xff]
      %v4710 = vld [vmem:[%s323 + $0xa0] sm:$0xff]
      %v4711 = vld [vmem:[%s323 + $0xa8] sm:$0xff]
      %v4712 = vld [vmem:[%s323 + $0xb0] sm:$0xff]
      %v4713 = vld [vmem:[%s323 + $0xb8] sm:$0xff]
      %v4714 = vld [vmem:[%s323 + $0xc0] sm:$0xff]
      %v4715 = vld [vmem:[%s323 + $0xc8] sm:$0xff]
      %v4716 = vld [vmem:[%s323 + $0xd0] sm:$0xff]
      %v4717 = vld [vmem:[%s323 + $0xd8] sm:$0xff]
      %v4718 = vld [vmem:[%s323 + $0xe0] sm:$0xff]
      %v4719 = vld [vmem:[%s323 + $0xe8] sm:$0xff]
      %v4720 = vld [vmem:[%s323 + $0xf0] sm:$0xff]
      %v4721 = vld [vmem:[%s323 + $0xf8] sm:$0xff]
      %v4754 = vunpack.c.l.b16 %v4690
      %v4755 = vunpack.c.h.b16 %v4690
      %v4756 = vunpack.c.l.b16 %v4691
      %v4757 = vunpack.c.h.b16 %v4691
      %v4758 = vunpack.c.l.b16 %v4692
      %v4759 = vunpack.c.h.b16 %v4692
      %v4760 = vunpack.c.l.b16 %v4693
      %v4761 = vunpack.c.h.b16 %v4693
      %v4762 = vunpack.c.l.b16 %v4694
      %v4763 = vunpack.c.h.b16 %v4694
      %v4764 = vunpack.c.l.b16 %v4695
      %v4765 = vunpack.c.h.b16 %v4695
      %v4766 = vunpack.c.l.b16 %v4696
      %v4767 = vunpack.c.h.b16 %v4696
      %v4768 = vunpack.c.l.b16 %v4697
      %v4769 = vunpack.c.h.b16 %v4697
      %v4770 = vunpack.c.l.b16 %v4698
      %v4771 = vunpack.c.h.b16 %v4698
      %v4772 = vunpack.c.l.b16 %v4699
      %v4773 = vunpack.c.h.b16 %v4699
      %v4774 = vunpack.c.l.b16 %v4700
      %v4775 = vunpack.c.h.b16 %v4700
      %v4776 = vunpack.c.l.b16 %v4701
      %v4777 = vunpack.c.h.b16 %v4701
      %v4778 = vunpack.c.l.b16 %v4702
      %v4779 = vunpack.c.h.b16 %v4702
      %v4780 = vunpack.c.l.b16 %v4703
      %v4781 = vunpack.c.h.b16 %v4703
      %v4782 = vunpack.c.l.b16 %v4704
      %v4783 = vunpack.c.h.b16 %v4704
      %v4784 = vunpack.c.l.b16 %v4705
      %v4785 = vunpack.c.h.b16 %v4705
      %v4786 = vunpack.c.l.b16 %v4706
      %v4787 = vunpack.c.h.b16 %v4706
      %v4788 = vunpack.c.l.b16 %v4707
      %v4789 = vunpack.c.h.b16 %v4707
      %v4790 = vunpack.c.l.b16 %v4708
      %v4791 = vunpack.c.h.b16 %v4708
      %v4792 = vunpack.c.l.b16 %v4709
      %v4793 = vunpack.c.h.b16 %v4709
      %v4794 = vunpack.c.l.b16 %v4710
      %v4795 = vunpack.c.h.b16 %v4710
      %v4796 = vunpack.c.l.b16 %v4711
      %v4797 = vunpack.c.h.b16 %v4711
      %v4798 = vunpack.c.l.b16 %v4712
      %v4799 = vunpack.c.h.b16 %v4712
      %v4800 = vunpack.c.l.b16 %v4713
      %v4801 = vunpack.c.h.b16 %v4713
      %v4802 = vunpack.c.l.b16 %v4714
      %v4803 = vunpack.c.h.b16 %v4714
      %v4804 = vunpack.c.l.b16 %v4715
      %v4805 = vunpack.c.h.b16 %v4715
      %v4806 = vunpack.c.l.b16 %v4716
      %v4807 = vunpack.c.h.b16 %v4716
      %v4808 = vunpack.c.l.b16 %v4717
      %v4809 = vunpack.c.h.b16 %v4717
      %v4810 = vunpack.c.l.b16 %v4718
      %v4811 = vunpack.c.h.b16 %v4718
      %v4812 = vunpack.c.l.b16 %v4719
      %v4813 = vunpack.c.h.b16 %v4719
      %v4814 = vunpack.c.l.b16 %v4720
      %v4815 = vunpack.c.h.b16 %v4720
      %v4816 = vunpack.c.l.b16 %v4721
      %v4817 = vunpack.c.h.b16 %v4721
      %v4818 = vpack.c.b16 %v4758, %v4754
      %v4819 = vpack.c.b16 %v4759, %v4755
      %v4820 = vpack.c.b16 %v4760, %v4756
      %v4821 = vpack.c.b16 %v4761, %v4757
      %v4822 = vpack.c.b16 %v4766, %v4762
      %v4823 = vpack.c.b16 %v4767, %v4763
      %v4824 = vpack.c.b16 %v4768, %v4764
      %v4825 = vpack.c.b16 %v4769, %v4765
      %v4826 = vpack.c.b16 %v4774, %v4770
      %v4827 = vpack.c.b16 %v4775, %v4771
      %v4828 = vpack.c.b16 %v4776, %v4772
      %v4829 = vpack.c.b16 %v4777, %v4773
      %v4830 = vpack.c.b16 %v4782, %v4778
      %v4831 = vpack.c.b16 %v4783, %v4779
      %v4832 = vpack.c.b16 %v4784, %v4780
      %v4833 = vpack.c.b16 %v4785, %v4781
      %v4834 = vpack.c.b16 %v4790, %v4786
      %v4835 = vpack.c.b16 %v4791, %v4787
      %v4836 = vpack.c.b16 %v4792, %v4788
      %v4837 = vpack.c.b16 %v4793, %v4789
      %v4838 = vpack.c.b16 %v4798, %v4794
      %v4839 = vpack.c.b16 %v4799, %v4795
      %v4840 = vpack.c.b16 %v4800, %v4796
      %v4841 = vpack.c.b16 %v4801, %v4797
      %v4842 = vpack.c.b16 %v4806, %v4802
      %v4843 = vpack.c.b16 %v4807, %v4803
      %v4844 = vpack.c.b16 %v4808, %v4804
      %v4845 = vpack.c.b16 %v4809, %v4805
      %v4846 = vpack.c.b16 %v4814, %v4810
      %v4847 = vpack.c.b16 %v4815, %v4811
      %v4848 = vpack.c.b16 %v4816, %v4812
      %v4849 = vpack.c.b16 %v4817, %v4813
      %4882 = vmatprep.subr.bf16.mxu0 %v4819
      %4883 = vmatpush1.bf16.msra.mxu0 %v4818
      %4884 = vmatprep.subr.bf16.mxu0 %v4823
      %4885 = vmatpush1.bf16.msra.mxu0 %v4822
      %4886 = vmatprep.subr.bf16.mxu0 %v4827
      %4887 = vmatpush1.bf16.msra.mxu0 %v4826
      %4888 = vmatprep.subr.bf16.mxu0 %v4831
      %4889 = vmatpush1.bf16.msra.mxu0 %v4830
      %4890 = vmatprep.subr.bf16.mxu0 %v4835
      %4891 = vmatpush1.bf16.msra.mxu0 %v4834
      %4892 = vmatprep.subr.bf16.mxu0 %v4839
      %4893 = vmatpush1.bf16.msra.mxu0 %v4838
      %4894 = vmatprep.subr.bf16.mxu0 %v4843
      %4895 = vmatpush1.bf16.msra.mxu0 %v4842
      %4896 = vmatprep.subr.bf16.mxu0 %v4847
      %4897 = vmatpush1.bf16.msra.mxu0 %v4846
      %4898 = vmatprep.subr.bf16.mxu0 0
      %4899 = vmatpush1.bf16.msra.mxu0 0
      %4900 = vmatprep.subr.bf16.mxu0 0
      %4901 = vmatpush1.bf16.msra.mxu0 0
      %4902 = vmatprep.subr.bf16.mxu0 0
      %4903 = vmatpush1.bf16.msra.mxu0 0
      %4904 = vmatprep.subr.bf16.mxu0 0
      %4905 = vmatpush1.bf16.msra.mxu0 0
      %4906 = vmatprep.subr.bf16.mxu0 0
      %4907 = vmatpush1.bf16.msra.mxu0 0
      %4908 = vmatprep.subr.bf16.mxu0 0
      %4909 = vmatpush1.bf16.msra.mxu0 0
      %4910 = vmatprep.subr.bf16.mxu0 0
      %4911 = vmatpush1.bf16.msra.mxu0 0
      %4912 = vmatprep.subr.bf16.mxu0 0
      %4913 = vmatpush1.bf16.msra.mxu0 0
      %4914 = vmatprep.mubr.bf16.mxu0 0
      %4915 = vmatmul.mubr.bf16.gmra.mrb[0].mxu0 %v4689
      %v4916 = vpop.f32.mrb[0].mxu0
      %v4917 = vadd.f32 0.0, %v4916
      %v4918 = vpop.f32.mrb[0].mxu0
      %v4919 = vadd.f32 0.0, %v4918
      %v4920 = vpop.f32.mrb[0].mxu0
      %v4921 = vpop.f32.mrb[0].mxu0
      %4922 = vdwg.mxu0
      %4923 = vmatprep.subr.bf16.mxu0 %v4821
      %4924 = vmatpush1.bf16.msra.mxu0 %v4820
      %4925 = vmatprep.subr.bf16.mxu0 %v4825
      %4926 = vmatpush1.bf16.msra.mxu0 %v4824
      %4927 = vmatprep.subr.bf16.mxu0 %v4829
      %4928 = vmatpush1.bf16.msra.mxu0 %v4828
      %4929 = vmatprep.subr.bf16.mxu0 %v4833
      %4930 = vmatpush1.bf16.msra.mxu0 %v4832
      %4931 = vmatprep.subr.bf16.mxu0 %v4837
      %4932 = vmatpush1.bf16.msra.mxu0 %v4836
      %4933 = vmatprep.subr.bf16.mxu0 %v4841
      %4934 = vmatpush1.bf16.msra.mxu0 %v4840
      %4935 = vmatprep.subr.bf16.mxu0 %v4845
      %4936 = vmatpush1.bf16.msra.mxu0 %v4844
      %4937 = vmatprep.subr.bf16.mxu0 %v4849
      %4938 = vmatpush1.bf16.msra.mxu0 %v4848
      %4939 = vmatprep.subr.bf16.mxu0 0
      %4940 = vmatpush1.bf16.msra.mxu0 0
      %4941 = vmatprep.subr.bf16.mxu0 0
      %4942 = vmatpush1.bf16.msra.mxu0 0
      %4943 = vmatprep.subr.bf16.mxu0 0
      %4944 = vmatpush1.bf16.msra.mxu0 0
      %4945 = vmatprep.subr.bf16.mxu0 0
      %4946 = vmatpush1.bf16.msra.mxu0 0
      %4947 = vmatprep.subr.bf16.mxu0 0
      %4948 = vmatpush1.bf16.msra.mxu0 0
      %4949 = vmatprep.subr.bf16.mxu0 0
      %4950 = vmatpush1.bf16.msra.mxu0 0
      %4951 = vmatprep.subr.bf16.mxu0 0
      %4952 = vmatpush1.bf16.msra.mxu0 0
      %4953 = vmatprep.subr.bf16.mxu0 0
      %4954 = vmatpush1.bf16.msra.mxu0 0
      %4955 = vmatprep.mubr.bf16.mxu0 0
      %4956 = vmatmul.mubr.bf16.gmra.mrb[0].mxu0 %v4689
      %v4957 = vpop.f32.mrb[0].mxu0
      %v4958 = vadd.f32 0.0, %v4957
      %v4959 = vpop.f32.mrb[0].mxu0
      %v4960 = vadd.f32 0.0, %v4959
      %v4961 = vpop.f32.mrb[0].mxu0
      %v4962 = vpop.f32.mrb[0].mxu0
      %4963 = vdwg.mxu0
      %v4964 = vadd.f32 %v4684, %v4917
      %v4965 = vadd.f32 %v4685, %v4919
      %v4966 = vadd.f32 %v4686, %v4958
      %v4967 = vadd.f32 %v4687, %v4960
      %v4968 = vld [vmem:[#allocation6] sm:$0xff]
      %v4969 = vxor.u32 %v4964, 2147483648
      %v4970 = vmul.f32 %v4969, 1.442695
      %v4971 = vpow.pop %v4970
      %v4972 = vadd.f32 %v4971, 1.0
      %v4973 = vrcp.pop %v4972
      %v4974 = vmul.f32 1.0, %v4973
      %v4975 = vxor.u32 %v4965, 2147483648
      %v4976 = vmul.f32 %v4975, 1.442695
      %v4977 = vpow.pop %v4976
      %v4978 = vadd.f32 %v4977, 1.0
      %v4979 = vrcp.pop %v4978
      %v4980 = vmul.f32 1.0, %v4979
      %v4981 = vtanh.pop %v4966
      %v4982 = vxor.u32 %v4967, 2147483648
      %v4983 = vmul.f32 %v4982, 1.442695
      %v4984 = vpow.pop %v4983
      %v4985 = vadd.f32 %v4984, 1.0
      %v4986 = vrcp.pop %v4985
      %v4987 = vmul.f32 1.0, %v4986
      %v4988 = vmul.f32 %v4980, %v4968
      %v4989 = vmul.f32 %v4974, %v4981
      %v4990 = vadd.f32 %v4988, %v4989
      %v4991 = vtanh.pop %v4990
      %v4992 = vmul.f32 %v4987, %v4991
      %4993 = vst [vmem:[#allocation5] sm:$0xff] %v4992
      %4994 = vst [vmem:[#allocation6] sm:$0xff] %v4990
      %4995 = vst [vmem:[#allocation2 + $0x50] sm:$0xff] %v4992
      %v4996 = vld [vmem:[#allocation4 + $0x40] sm:$0xff]
      %v4997 = vld [vmem:[#allocation4 + $0x48] sm:$0xff]
      %v4998 = vld [vmem:[#allocation4 + $0x50] sm:$0xff]
      %v4999 = vld [vmem:[#allocation4 + $0x58] sm:$0xff]
      %v5000 = vld [vmem:[#allocation7] sm:$0xff]
      %v5001 = vpack.c.bf16 %v5000, %v5000
      %v5002 = vld [vmem:[%s1881] sm:$0xff]
      %v5003 = vld [vmem:[%s1881 + $0x8] sm:$0xff]
      %v5004 = vld [vmem:[%s1881 + $0x10] sm:$0xff]
      %v5005 = vld [vmem:[%s1881 + $0x18] sm:$0xff]
      %v5006 = vld [vmem:[%s1881 + $0x20] sm:$0xff]
      %v5007 = vld [vmem:[%s1881 + $0x28] sm:$0xff]
      %v5008 = vld [vmem:[%s1881 + $0x30] sm:$0xff]
      %v5009 = vld [vmem:[%s1881 + $0x38] sm:$0xff]
      %v5010 = vld [vmem:[%s1881 + $0x40] sm:$0xff]
      %v5011 = vld [vmem:[%s1881 + $0x48] sm:$0xff]
      %v5012 = vld [vmem:[%s1881 + $0x50] sm:$0xff]
      %v5013 = vld [vmem:[%s1881 + $0x58] sm:$0xff]
      %v5014 = vld [vmem:[%s1881 + $0x60] sm:$0xff]
      %v5015 = vld [vmem:[%s1881 + $0x68] sm:$0xff]
      %v5016 = vld [vmem:[%s1881 + $0x70] sm:$0xff]
      %v5017 = vld [vmem:[%s1881 + $0x78] sm:$0xff]
      %v5018 = vld [vmem:[%s1881 + $0x80] sm:$0xff]
      %v5019 = vld [vmem:[%s1881 + $0x88] sm:$0xff]
      %v5020 = vld [vmem:[%s1881 + $0x90] sm:$0xff]
      %v5021 = vld [vmem:[%s1881 + $0x98] sm:$0xff]
      %v5022 = vld [vmem:[%s1881 + $0xa0] sm:$0xff]
      %v5023 = vld [vmem:[%s1881 + $0xa8] sm:$0xff]
      %v5024 = vld [vmem:[%s1881 + $0xb0] sm:$0xff]
      %v5025 = vld [vmem:[%s1881 + $0xb8] sm:$0xff]
      %v5026 = vld [vmem:[%s1881 + $0xc0] sm:$0xff]
      %v5027 = vld [vmem:[%s1881 + $0xc8] sm:$0xff]
      %v5028 = vld [vmem:[%s1881 + $0xd0] sm:$0xff]
      %v5029 = vld [vmem:[%s1881 + $0xd8] sm:$0xff]
      %v5030 = vld [vmem:[%s1881 + $0xe0] sm:$0xff]
      %v5031 = vld [vmem:[%s1881 + $0xe8] sm:$0xff]
      %v5032 = vld [vmem:[%s1881 + $0xf0] sm:$0xff]
      %v5033 = vld [vmem:[%s1881 + $0xf8] sm:$0xff]
      %v5066 = vunpack.c.l.b16 %v5002
      %v5067 = vunpack.c.h.b16 %v5002
      %v5068 = vunpack.c.l.b16 %v5003
      %v5069 = vunpack.c.h.b16 %v5003
      %v5070 = vunpack.c.l.b16 %v5004
      %v5071 = vunpack.c.h.b16 %v5004
      %v5072 = vunpack.c.l.b16 %v5005
      %v5073 = vunpack.c.h.b16 %v5005
      %v5074 = vunpack.c.l.b16 %v5006
      %v5075 = vunpack.c.h.b16 %v5006
      %v5076 = vunpack.c.l.b16 %v5007
      %v5077 = vunpack.c.h.b16 %v5007
      %v5078 = vunpack.c.l.b16 %v5008
      %v5079 = vunpack.c.h.b16 %v5008
      %v5080 = vunpack.c.l.b16 %v5009
      %v5081 = vunpack.c.h.b16 %v5009
      %v5082 = vunpack.c.l.b16 %v5010
      %v5083 = vunpack.c.h.b16 %v5010
      %v5084 = vunpack.c.l.b16 %v5011
      %v5085 = vunpack.c.h.b16 %v5011
      %v5086 = vunpack.c.l.b16 %v5012
      %v5087 = vunpack.c.h.b16 %v5012
      %v5088 = vunpack.c.l.b16 %v5013
      %v5089 = vunpack.c.h.b16 %v5013
      %v5090 = vunpack.c.l.b16 %v5014
      %v5091 = vunpack.c.h.b16 %v5014
      %v5092 = vunpack.c.l.b16 %v5015
      %v5093 = vunpack.c.h.b16 %v5015
      %v5094 = vunpack.c.l.b16 %v5016
      %v5095 = vunpack.c.h.b16 %v5016
      %v5096 = vunpack.c.l.b16 %v5017
      %v5097 = vunpack.c.h.b16 %v5017
      %v5098 = vunpack.c.l.b16 %v5018
      %v5099 = vunpack.c.h.b16 %v5018
      %v5100 = vunpack.c.l.b16 %v5019
      %v5101 = vunpack.c.h.b16 %v5019
      %v5102 = vunpack.c.l.b16 %v5020
      %v5103 = vunpack.c.h.b16 %v5020
      %v5104 = vunpack.c.l.b16 %v5021
      %v5105 = vunpack.c.h.b16 %v5021
      %v5106 = vunpack.c.l.b16 %v5022
      %v5107 = vunpack.c.h.b16 %v5022
      %v5108 = vunpack.c.l.b16 %v5023
      %v5109 = vunpack.c.h.b16 %v5023
      %v5110 = vunpack.c.l.b16 %v5024
      %v5111 = vunpack.c.h.b16 %v5024
      %v5112 = vunpack.c.l.b16 %v5025
      %v5113 = vunpack.c.h.b16 %v5025
      %v5114 = vunpack.c.l.b16 %v5026
      %v5115 = vunpack.c.h.b16 %v5026
      %v5116 = vunpack.c.l.b16 %v5027
      %v5117 = vunpack.c.h.b16 %v5027
      %v5118 = vunpack.c.l.b16 %v5028
      %v5119 = vunpack.c.h.b16 %v5028
      %v5120 = vunpack.c.l.b16 %v5029
      %v5121 = vunpack.c.h.b16 %v5029
      %v5122 = vunpack.c.l.b16 %v5030
      %v5123 = vunpack.c.h.b16 %v5030
      %v5124 = vunpack.c.l.b16 %v5031
      %v5125 = vunpack.c.h.b16 %v5031
      %v5126 = vunpack.c.l.b16 %v5032
      %v5127 = vunpack.c.h.b16 %v5032
      %v5128 = vunpack.c.l.b16 %v5033
      %v5129 = vunpack.c.h.b16 %v5033
      %v5130 = vpack.c.b16 %v5070, %v5066
      %v5131 = vpack.c.b16 %v5071, %v5067
      %v5132 = vpack.c.b16 %v5072, %v5068
      %v5133 = vpack.c.b16 %v5073, %v5069
      %v5134 = vpack.c.b16 %v5078, %v5074
      %v5135 = vpack.c.b16 %v5079, %v5075
      %v5136 = vpack.c.b16 %v5080, %v5076
      %v5137 = vpack.c.b16 %v5081, %v5077
      %v5138 = vpack.c.b16 %v5086, %v5082
      %v5139 = vpack.c.b16 %v5087, %v5083
      %v5140 = vpack.c.b16 %v5088, %v5084
      %v5141 = vpack.c.b16 %v5089, %v5085
      %v5142 = vpack.c.b16 %v5094, %v5090
      %v5143 = vpack.c.b16 %v5095, %v5091
      %v5144 = vpack.c.b16 %v5096, %v5092
      %v5145 = vpack.c.b16 %v5097, %v5093
      %v5146 = vpack.c.b16 %v5102, %v5098
      %v5147 = vpack.c.b16 %v5103, %v5099
      %v5148 = vpack.c.b16 %v5104, %v5100
      %v5149 = vpack.c.b16 %v5105, %v5101
      %v5150 = vpack.c.b16 %v5110, %v5106
      %v5151 = vpack.c.b16 %v5111, %v5107
      %v5152 = vpack.c.b16 %v5112, %v5108
      %v5153 = vpack.c.b16 %v5113, %v5109
      %v5154 = vpack.c.b16 %v5118, %v5114
      %v5155 = vpack.c.b16 %v5119, %v5115
      %v5156 = vpack.c.b16 %v5120, %v5116
      %v5157 = vpack.c.b16 %v5121, %v5117
      %v5158 = vpack.c.b16 %v5126, %v5122
      %v5159 = vpack.c.b16 %v5127, %v5123
      %v5160 = vpack.c.b16 %v5128, %v5124
      %v5161 = vpack.c.b16 %v5129, %v5125
      %5194 = vmatprep.subr.bf16.mxu0 %v5131
      %5195 = vmatpush1.bf16.msra.mxu0 %v5130
      %5196 = vmatprep.subr.bf16.mxu0 %v5135
      %5197 = vmatpush1.bf16.msra.mxu0 %v5134
      %5198 = vmatprep.subr.bf16.mxu0 %v5139
      %5199 = vmatpush1.bf16.msra.mxu0 %v5138
      %5200 = vmatprep.subr.bf16.mxu0 %v5143
      %5201 = vmatpush1.bf16.msra.mxu0 %v5142
      %5202 = vmatprep.subr.bf16.mxu0 %v5147
      %5203 = vmatpush1.bf16.msra.mxu0 %v5146
      %5204 = vmatprep.subr.bf16.mxu0 %v5151
      %5205 = vmatpush1.bf16.msra.mxu0 %v5150
      %5206 = vmatprep.subr.bf16.mxu0 %v5155
      %5207 = vmatpush1.bf16.msra.mxu0 %v5154
      %5208 = vmatprep.subr.bf16.mxu0 %v5159
      %5209 = vmatpush1.bf16.msra.mxu0 %v5158
      %5210 = vmatprep.subr.bf16.mxu0 0
      %5211 = vmatpush1.bf16.msra.mxu0 0
      %5212 = vmatprep.subr.bf16.mxu0 0
      %5213 = vmatpush1.bf16.msra.mxu0 0
      %5214 = vmatprep.subr.bf16.mxu0 0
      %5215 = vmatpush1.bf16.msra.mxu0 0
      %5216 = vmatprep.subr.bf16.mxu0 0
      %5217 = vmatpush1.bf16.msra.mxu0 0
      %5218 = vmatprep.subr.bf16.mxu0 0
      %5219 = vmatpush1.bf16.msra.mxu0 0
      %5220 = vmatprep.subr.bf16.mxu0 0
      %5221 = vmatpush1.bf16.msra.mxu0 0
      %5222 = vmatprep.subr.bf16.mxu0 0
      %5223 = vmatpush1.bf16.msra.mxu0 0
      %5224 = vmatprep.subr.bf16.mxu0 0
      %5225 = vmatpush1.bf16.msra.mxu0 0
      %5226 = vmatprep.mubr.bf16.mxu0 0
      %5227 = vmatmul.mubr.bf16.gmra.mrb[0].mxu0 %v5001
      %v5228 = vpop.f32.mrb[0].mxu0
      %v5229 = vadd.f32 0.0, %v5228
      %v5230 = vpop.f32.mrb[0].mxu0
      %v5231 = vadd.f32 0.0, %v5230
      %v5232 = vpop.f32.mrb[0].mxu0
      %v5233 = vpop.f32.mrb[0].mxu0
      %5234 = vdwg.mxu0
      %5235 = vmatprep.subr.bf16.mxu0 %v5133
      %5236 = vmatpush1.bf16.msra.mxu0 %v5132
      %5237 = vmatprep.subr.bf16.mxu0 %v5137
      %5238 = vmatpush1.bf16.msra.mxu0 %v5136
      %5239 = vmatprep.subr.bf16.mxu0 %v5141
      %5240 = vmatpush1.bf16.msra.mxu0 %v5140
      %5241 = vmatprep.subr.bf16.mxu0 %v5145
      %5242 = vmatpush1.bf16.msra.mxu0 %v5144
      %5243 = vmatprep.subr.bf16.mxu0 %v5149
      %5244 = vmatpush1.bf16.msra.mxu0 %v5148
      %5245 = vmatprep.subr.bf16.mxu0 %v5153
      %5246 = vmatpush1.bf16.msra.mxu0 %v5152
      %5247 = vmatprep.subr.bf16.mxu0 %v5157
      %5248 = vmatpush1.bf16.msra.mxu0 %v5156
      %5249 = vmatprep.subr.bf16.mxu0 %v5161
      %5250 = vmatpush1.bf16.msra.mxu0 %v5160
      %5251 = vmatprep.subr.bf16.mxu0 0
      %5252 = vmatpush1.bf16.msra.mxu0 0
      %5253 = vmatprep.subr.bf16.mxu0 0
      %5254 = vmatpush1.bf16.msra.mxu0 0
      %5255 = vmatprep.subr.bf16.mxu0 0
      %5256 = vmatpush1.bf16.msra.mxu0 0
      %5257 = vmatprep.subr.bf16.mxu0 0
      %5258 = vmatpush1.bf16.msra.mxu0 0
      %5259 = vmatprep.subr.bf16.mxu0 0
      %5260 = vmatpush1.bf16.msra.mxu0 0
      %5261 = vmatprep.subr.bf16.mxu0 0
      %5262 = vmatpush1.bf16.msra.mxu0 0
      %5263 = vmatprep.subr.bf16.mxu0 0
      %5264 = vmatpush1.bf16.msra.mxu0 0
      %5265 = vmatprep.subr.bf16.mxu0 0
      %5266 = vmatpush1.bf16.msra.mxu0 0
      %5267 = vmatprep.mubr.bf16.mxu0 0
      %5268 = vmatmul.mubr.bf16.gmra.mrb[0].mxu0 %v5001
      %v5269 = vpop.f32.mrb[0].mxu0
      %v5270 = vadd.f32 0.0, %v5269
      %v5271 = vpop.f32.mrb[0].mxu0
      %v5272 = vadd.f32 0.0, %v5271
      %v5273 = vpop.f32.mrb[0].mxu0
      %v5274 = vpop.f32.mrb[0].mxu0
      %5275 = vdwg.mxu0
      %v5276 = vadd.f32 %v4996, %v5229
      %v5277 = vadd.f32 %v4997, %v5231
      %v5278 = vadd.f32 %v4998, %v5270
      %v5279 = vadd.f32 %v4999, %v5272
      %v5280 = vld [vmem:[#allocation8] sm:$0xff]
      %v5281 = vxor.u32 %v5276, 2147483648
      %v5282 = vmul.f32 %v5281, 1.442695
      %v5283 = vpow.pop %v5282
      %v5284 = vadd.f32 %v5283, 1.0
      %v5285 = vrcp.pop %v5284
      %v5286 = vmul.f32 1.0, %v5285
      %v5287 = vxor.u32 %v5277, 2147483648
      %v5288 = vmul.f32 %v5287, 1.442695
      %v5289 = vpow.pop %v5288
      %v5290 = vadd.f32 %v5289, 1.0
      %v5291 = vrcp.pop %v5290
      %v5292 = vmul.f32 1.0, %v5291
      %v5293 = vtanh.pop %v5278
      %v5294 = vxor.u32 %v5279, 2147483648
      %v5295 = vmul.f32 %v5294, 1.442695
      %v5296 = vpow.pop %v5295
      %v5297 = vadd.f32 %v5296, 1.0
      %v5298 = vrcp.pop %v5297
      %v5299 = vmul.f32 1.0, %v5298
      %v5300 = vmul.f32 %v5292, %v5280
      %v5301 = vmul.f32 %v5286, %v5293
      %v5302 = vadd.f32 %v5300, %v5301
      %v5303 = vtanh.pop %v5302
      %v5304 = vmul.f32 %v5299, %v5303
      %5305 = vst [vmem:[#allocation7] sm:$0xff] %v5304
      %5306 = vst [vmem:[#allocation8] sm:$0xff] %v5302
      %5307 = vst [vmem:[#allocation2 + $0x28] sm:$0xff] %v5304
      %v5308 = vld [vmem:[#allocation3 + $0xc0] sm:$0xff]
      %v5309 = vld [vmem:[#allocation3 + $0xc8] sm:$0xff]
      %v5310 = vld [vmem:[#allocation3 + $0xd0] sm:$0xff]
      %v5311 = vld [vmem:[#allocation3 + $0xd8] sm:$0xff]
      %v5312 = vld [vmem:[#allocation5] sm:$0xff]
      %v5313 = vpack.c.bf16 %v5312, %v5312
      %v5314 = vld [vmem:[%s323] sm:$0xff]
      %v5315 = vld [vmem:[%s323 + $0x8] sm:$0xff]
      %v5316 = vld [vmem:[%s323 + $0x10] sm:$0xff]
      %v5317 = vld [vmem:[%s323 + $0x18] sm:$0xff]
      %v5318 = vld [vmem:[%s323 + $0x20] sm:$0xff]
      %v5319 = vld [vmem:[%s323 + $0x28] sm:$0xff]
      %v5320 = vld [vmem:[%s323 + $0x30] sm:$0xff]
      %v5321 = vld [vmem:[%s323 + $0x38] sm:$0xff]
      %v5322 = vld [vmem:[%s323 + $0x40] sm:$0xff]
      %v5323 = vld [vmem:[%s323 + $0x48] sm:$0xff]
      %v5324 = vld [vmem:[%s323 + $0x50] sm:$0xff]
      %v5325 = vld [vmem:[%s323 + $0x58] sm:$0xff]
      %v5326 = vld [vmem:[%s323 + $0x60] sm:$0xff]
      %v5327 = vld [vmem:[%s323 + $0x68] sm:$0xff]
      %v5328 = vld [vmem:[%s323 + $0x70] sm:$0xff]
      %v5329 = vld [vmem:[%s323 + $0x78] sm:$0xff]
      %v5330 = vld [vmem:[%s323 + $0x80] sm:$0xff]
      %v5331 = vld [vmem:[%s323 + $0x88] sm:$0xff]
      %v5332 = vld [vmem:[%s323 + $0x90] sm:$0xff]
      %v5333 = vld [vmem:[%s323 + $0x98] sm:$0xff]
      %v5334 = vld [vmem:[%s323 + $0xa0] sm:$0xff]
      %v5335 = vld [vmem:[%s323 + $0xa8] sm:$0xff]
      %v5336 = vld [vmem:[%s323 + $0xb0] sm:$0xff]
      %v5337 = vld [vmem:[%s323 + $0xb8] sm:$0xff]
      %v5338 = vld [vmem:[%s323 + $0xc0] sm:$0xff]
      %v5339 = vld [vmem:[%s323 + $0xc8] sm:$0xff]
      %v5340 = vld [vmem:[%s323 + $0xd0] sm:$0xff]
      %v5341 = vld [vmem:[%s323 + $0xd8] sm:$0xff]
      %v5342 = vld [vmem:[%s323 + $0xe0] sm:$0xff]
      %v5343 = vld [vmem:[%s323 + $0xe8] sm:$0xff]
      %v5344 = vld [vmem:[%s323 + $0xf0] sm:$0xff]
      %v5345 = vld [vmem:[%s323 + $0xf8] sm:$0xff]
      %v5378 = vunpack.c.l.b16 %v5314
      %v5379 = vunpack.c.h.b16 %v5314
      %v5380 = vunpack.c.l.b16 %v5315
      %v5381 = vunpack.c.h.b16 %v5315
      %v5382 = vunpack.c.l.b16 %v5316
      %v5383 = vunpack.c.h.b16 %v5316
      %v5384 = vunpack.c.l.b16 %v5317
      %v5385 = vunpack.c.h.b16 %v5317
      %v5386 = vunpack.c.l.b16 %v5318
      %v5387 = vunpack.c.h.b16 %v5318
      %v5388 = vunpack.c.l.b16 %v5319
      %v5389 = vunpack.c.h.b16 %v5319
      %v5390 = vunpack.c.l.b16 %v5320
      %v5391 = vunpack.c.h.b16 %v5320
      %v5392 = vunpack.c.l.b16 %v5321
      %v5393 = vunpack.c.h.b16 %v5321
      %v5394 = vunpack.c.l.b16 %v5322
      %v5395 = vunpack.c.h.b16 %v5322
      %v5396 = vunpack.c.l.b16 %v5323
      %v5397 = vunpack.c.h.b16 %v5323
      %v5398 = vunpack.c.l.b16 %v5324
      %v5399 = vunpack.c.h.b16 %v5324
      %v5400 = vunpack.c.l.b16 %v5325
      %v5401 = vunpack.c.h.b16 %v5325
      %v5402 = vunpack.c.l.b16 %v5326
      %v5403 = vunpack.c.h.b16 %v5326
      %v5404 = vunpack.c.l.b16 %v5327
      %v5405 = vunpack.c.h.b16 %v5327
      %v5406 = vunpack.c.l.b16 %v5328
      %v5407 = vunpack.c.h.b16 %v5328
      %v5408 = vunpack.c.l.b16 %v5329
      %v5409 = vunpack.c.h.b16 %v5329
      %v5410 = vunpack.c.l.b16 %v5330
      %v5411 = vunpack.c.h.b16 %v5330
      %v5412 = vunpack.c.l.b16 %v5331
      %v5413 = vunpack.c.h.b16 %v5331
      %v5414 = vunpack.c.l.b16 %v5332
      %v5415 = vunpack.c.h.b16 %v5332
      %v5416 = vunpack.c.l.b16 %v5333
      %v5417 = vunpack.c.h.b16 %v5333
      %v5418 = vunpack.c.l.b16 %v5334
      %v5419 = vunpack.c.h.b16 %v5334
      %v5420 = vunpack.c.l.b16 %v5335
      %v5421 = vunpack.c.h.b16 %v5335
      %v5422 = vunpack.c.l.b16 %v5336
      %v5423 = vunpack.c.h.b16 %v5336
      %v5424 = vunpack.c.l.b16 %v5337
      %v5425 = vunpack.c.h.b16 %v5337
      %v5426 = vunpack.c.l.b16 %v5338
      %v5427 = vunpack.c.h.b16 %v5338
      %v5428 = vunpack.c.l.b16 %v5339
      %v5429 = vunpack.c.h.b16 %v5339
      %v5430 = vunpack.c.l.b16 %v5340
      %v5431 = vunpack.c.h.b16 %v5340
      %v5432 = vunpack.c.l.b16 %v5341
      %v5433 = vunpack.c.h.b16 %v5341
      %v5434 = vunpack.c.l.b16 %v5342
      %v5435 = vunpack.c.h.b16 %v5342
      %v5436 = vunpack.c.l.b16 %v5343
      %v5437 = vunpack.c.h.b16 %v5343
      %v5438 = vunpack.c.l.b16 %v5344
      %v5439 = vunpack.c.h.b16 %v5344
      %v5440 = vunpack.c.l.b16 %v5345
      %v5441 = vunpack.c.h.b16 %v5345
      %v5442 = vpack.c.b16 %v5382, %v5378
      %v5443 = vpack.c.b16 %v5383, %v5379
      %v5444 = vpack.c.b16 %v5384, %v5380
      %v5445 = vpack.c.b16 %v5385, %v5381
      %v5446 = vpack.c.b16 %v5390, %v5386
      %v5447 = vpack.c.b16 %v5391, %v5387
      %v5448 = vpack.c.b16 %v5392, %v5388
      %v5449 = vpack.c.b16 %v5393, %v5389
      %v5450 = vpack.c.b16 %v5398, %v5394
      %v5451 = vpack.c.b16 %v5399, %v5395
      %v5452 = vpack.c.b16 %v5400, %v5396
      %v5453 = vpack.c.b16 %v5401, %v5397
      %v5454 = vpack.c.b16 %v5406, %v5402
      %v5455 = vpack.c.b16 %v5407, %v5403
      %v5456 = vpack.c.b16 %v5408, %v5404
      %v5457 = vpack.c.b16 %v5409, %v5405
      %v5458 = vpack.c.b16 %v5414, %v5410
      %v5459 = vpack.c.b16 %v5415, %v5411
      %v5460 = vpack.c.b16 %v5416, %v5412
      %v5461 = vpack.c.b16 %v5417, %v5413
      %v5462 = vpack.c.b16 %v5422, %v5418
      %v5463 = vpack.c.b16 %v5423, %v5419
      %v5464 = vpack.c.b16 %v5424, %v5420
      %v5465 = vpack.c.b16 %v5425, %v5421
      %v5466 = vpack.c.b16 %v5430, %v5426
      %v5467 = vpack.c.b16 %v5431, %v5427
      %v5468 = vpack.c.b16 %v5432, %v5428
      %v5469 = vpack.c.b16 %v5433, %v5429
      %v5470 = vpack.c.b16 %v5438, %v5434
      %v5471 = vpack.c.b16 %v5439, %v5435
      %v5472 = vpack.c.b16 %v5440, %v5436
      %v5473 = vpack.c.b16 %v5441, %v5437
      %5506 = vmatprep.subr.bf16.mxu0 %v5443
      %5507 = vmatpush1.bf16.msra.mxu0 %v5442
      %5508 = vmatprep.subr.bf16.mxu0 %v5447
      %5509 = vmatpush1.bf16.msra.mxu0 %v5446
      %5510 = vmatprep.subr.bf16.mxu0 %v5451
      %5511 = vmatpush1.bf16.msra.mxu0 %v5450
      %5512 = vmatprep.subr.bf16.mxu0 %v5455
      %5513 = vmatpush1.bf16.msra.mxu0 %v5454
      %5514 = vmatprep.subr.bf16.mxu0 %v5459
      %5515 = vmatpush1.bf16.msra.mxu0 %v5458
      %5516 = vmatprep.subr.bf16.mxu0 %v5463
      %5517 = vmatpush1.bf16.msra.mxu0 %v5462
      %5518 = vmatprep.subr.bf16.mxu0 %v5467
      %5519 = vmatpush1.bf16.msra.mxu0 %v5466
      %5520 = vmatprep.subr.bf16.mxu0 %v5471
      %5521 = vmatpush1.bf16.msra.mxu0 %v5470
      %5522 = vmatprep.subr.bf16.mxu0 0
      %5523 = vmatpush1.bf16.msra.mxu0 0
      %5524 = vmatprep.subr.bf16.mxu0 0
      %5525 = vmatpush1.bf16.msra.mxu0 0
      %5526 = vmatprep.subr.bf16.mxu0 0
      %5527 = vmatpush1.bf16.msra.mxu0 0
      %5528 = vmatprep.subr.bf16.mxu0 0
      %5529 = vmatpush1.bf16.msra.mxu0 0
      %5530 = vmatprep.subr.bf16.mxu0 0
      %5531 = vmatpush1.bf16.msra.mxu0 0
      %5532 = vmatprep.subr.bf16.mxu0 0
      %5533 = vmatpush1.bf16.msra.mxu0 0
      %5534 = vmatprep.subr.bf16.mxu0 0
      %5535 = vmatpush1.bf16.msra.mxu0 0
      %5536 = vmatprep.subr.bf16.mxu0 0
      %5537 = vmatpush1.bf16.msra.mxu0 0
      %5538 = vmatprep.mubr.bf16.mxu0 0
      %5539 = vmatmul.mubr.bf16.gmra.mrb[0].mxu0 %v5313
      %v5540 = vpop.f32.mrb[0].mxu0
      %v5541 = vadd.f32 0.0, %v5540
      %v5542 = vpop.f32.mrb[0].mxu0
      %v5543 = vadd.f32 0.0, %v5542
      %v5544 = vpop.f32.mrb[0].mxu0
      %v5545 = vpop.f32.mrb[0].mxu0
      %5546 = vdwg.mxu0
      %5547 = vmatprep.subr.bf16.mxu0 %v5445
      %5548 = vmatpush1.bf16.msra.mxu0 %v5444
      %5549 = vmatprep.subr.bf16.mxu0 %v5449
      %5550 = vmatpush1.bf16.msra.mxu0 %v5448
      %5551 = vmatprep.subr.bf16.mxu0 %v5453
      %5552 = vmatpush1.bf16.msra.mxu0 %v5452
      %5553 = vmatprep.subr.bf16.mxu0 %v5457
      %5554 = vmatpush1.bf16.msra.mxu0 %v5456
      %5555 = vmatprep.subr.bf16.mxu0 %v5461
      %5556 = vmatpush1.bf16.msra.mxu0 %v5460
      %5557 = vmatprep.subr.bf16.mxu0 %v5465
      %5558 = vmatpush1.bf16.msra.mxu0 %v5464
      %5559 = vmatprep.subr.bf16.mxu0 %v5469
      %5560 = vmatpush1.bf16.msra.mxu0 %v5468
      %5561 = vmatprep.subr.bf16.mxu0 %v5473
      %5562 = vmatpush1.bf16.msra.mxu0 %v5472
      %5563 = vmatprep.subr.bf16.mxu0 0
      %5564 = vmatpush1.bf16.msra.mxu0 0
      %5565 = vmatprep.subr.bf16.mxu0 0
      %5566 = vmatpush1.bf16.msra.mxu0 0
      %5567 = vmatprep.subr.bf16.mxu0 0
      %5568 = vmatpush1.bf16.msra.mxu0 0
      %5569 = vmatprep.subr.bf16.mxu0 0
      %5570 = vmatpush1.bf16.msra.mxu0 0
      %5571 = vmatprep.subr.bf16.mxu0 0
      %5572 = vmatpush1.bf16.msra.mxu0 0
      %5573 = vmatprep.subr.bf16.mxu0 0
      %5574 = vmatpush1.bf16.msra.mxu0 0
      %5575 = vmatprep.subr.bf16.mxu0 0
      %5576 = vmatpush1.bf16.msra.mxu0 0
      %5577 = vmatprep.subr.bf16.mxu0 0
      %5578 = vmatpush1.bf16.msra.mxu0 0
      %5579 = vmatprep.mubr.bf16.mxu0 0
      %5580 = vmatmul.mubr.bf16.gmra.mrb[0].mxu0 %v5313
      %v5581 = vpop.f32.mrb[0].mxu0
      %v5582 = vadd.f32 0.0, %v5581
      %v5583 = vpop.f32.mrb[0].mxu0
      %v5584 = vadd.f32 0.0, %v5583
      %v5585 = vpop.f32.mrb[0].mxu0
      %v5586 = vpop.f32.mrb[0].mxu0
      %5587 = vdwg.mxu0
      %v5588 = vadd.f32 %v5308, %v5541
      %v5589 = vadd.f32 %v5309, %v5543
      %v5590 = vadd.f32 %v5310, %v5582
      %v5591 = vadd.f32 %v5311, %v5584
      %v5592 = vld [vmem:[#allocation6] sm:$0xff]
      %v5593 = vxor.u32 %v5588, 2147483648
      %v5594 = vmul.f32 %v5593, 1.442695
      %v5595 = vpow.pop %v5594
      %v5596 = vadd.f32 %v5595, 1.0
      %v5597 = vrcp.pop %v5596
      %v5598 = vmul.f32 1.0, %v5597
      %v5599 = vxor.u32 %v5589, 2147483648
      %v5600 = vmul.f32 %v5599, 1.442695
      %v5601 = vpow.pop %v5600
      %v5602 = vadd.f32 %v5601, 1.0
      %v5603 = vrcp.pop %v5602
      %v5604 = vmul.f32 1.0, %v5603
      %v5605 = vtanh.pop %v5590
      %v5606 = vxor.u32 %v5591, 2147483648
      %v5607 = vmul.f32 %v5606, 1.442695
      %v5608 = vpow.pop %v5607
      %v5609 = vadd.f32 %v5608, 1.0
      %v5610 = vrcp.pop %v5609
      %v5611 = vmul.f32 1.0, %v5610
      %v5612 = vmul.f32 %v5604, %v5592
      %v5613 = vmul.f32 %v5598, %v5605
      %v5614 = vadd.f32 %v5612, %v5613
      %v5615 = vtanh.pop %v5614
      %v5616 = vmul.f32 %v5611, %v5615
      %5617 = vst [vmem:[#allocation5] sm:$0xff] %v5616
      %5618 = vst [vmem:[#allocation6] sm:$0xff] %v5614
      %5619 = vst [vmem:[#allocation2 + $0x60] sm:$0xff] %v5616
      %v5620 = vld [vmem:[#allocation4 + $0x20] sm:$0xff]
      %v5621 = vld [vmem:[#allocation4 + $0x28] sm:$0xff]
      %v5622 = vld [vmem:[#allocation4 + $0x30] sm:$0xff]
      %v5623 = vld [vmem:[#allocation4 + $0x38] sm:$0xff]
      %v5624 = vld [vmem:[#allocation7] sm:$0xff]
      %v5625 = vpack.c.bf16 %v5624, %v5624
      %v5626 = vld [vmem:[%s1881] sm:$0xff]
      %v5627 = vld [vmem:[%s1881 + $0x8] sm:$0xff]
      %v5628 = vld [vmem:[%s1881 + $0x10] sm:$0xff]
      %v5629 = vld [vmem:[%s1881 + $0x18] sm:$0xff]
      %v5630 = vld [vmem:[%s1881 + $0x20] sm:$0xff]
      %v5631 = vld [vmem:[%s1881 + $0x28] sm:$0xff]
      %v5632 = vld [vmem:[%s1881 + $0x30] sm:$0xff]
      %v5633 = vld [vmem:[%s1881 + $0x38] sm:$0xff]
      %v5634 = vld [vmem:[%s1881 + $0x40] sm:$0xff]
      %v5635 = vld [vmem:[%s1881 + $0x48] sm:$0xff]
      %v5636 = vld [vmem:[%s1881 + $0x50] sm:$0xff]
      %v5637 = vld [vmem:[%s1881 + $0x58] sm:$0xff]
      %v5638 = vld [vmem:[%s1881 + $0x60] sm:$0xff]
      %v5639 = vld [vmem:[%s1881 + $0x68] sm:$0xff]
      %v5640 = vld [vmem:[%s1881 + $0x70] sm:$0xff]
      %v5641 = vld [vmem:[%s1881 + $0x78] sm:$0xff]
      %v5642 = vld [vmem:[%s1881 + $0x80] sm:$0xff]
      %v5643 = vld [vmem:[%s1881 + $0x88] sm:$0xff]
      %v5644 = vld [vmem:[%s1881 + $0x90] sm:$0xff]
      %v5645 = vld [vmem:[%s1881 + $0x98] sm:$0xff]
      %v5646 = vld [vmem:[%s1881 + $0xa0] sm:$0xff]
      %v5647 = vld [vmem:[%s1881 + $0xa8] sm:$0xff]
      %v5648 = vld [vmem:[%s1881 + $0xb0] sm:$0xff]
      %v5649 = vld [vmem:[%s1881 + $0xb8] sm:$0xff]
      %v5650 = vld [vmem:[%s1881 + $0xc0] sm:$0xff]
      %v5651 = vld [vmem:[%s1881 + $0xc8] sm:$0xff]
      %v5652 = vld [vmem:[%s1881 + $0xd0] sm:$0xff]
      %v5653 = vld [vmem:[%s1881 + $0xd8] sm:$0xff]
      %v5654 = vld [vmem:[%s1881 + $0xe0] sm:$0xff]
      %v5655 = vld [vmem:[%s1881 + $0xe8] sm:$0xff]
      %v5656 = vld [vmem:[%s1881 + $0xf0] sm:$0xff]
      %v5657 = vld [vmem:[%s1881 + $0xf8] sm:$0xff]
      %v5690 = vunpack.c.l.b16 %v5626
      %v5691 = vunpack.c.h.b16 %v5626
      %v5692 = vunpack.c.l.b16 %v5627
      %v5693 = vunpack.c.h.b16 %v5627
      %v5694 = vunpack.c.l.b16 %v5628
      %v5695 = vunpack.c.h.b16 %v5628
      %v5696 = vunpack.c.l.b16 %v5629
      %v5697 = vunpack.c.h.b16 %v5629
      %v5698 = vunpack.c.l.b16 %v5630
      %v5699 = vunpack.c.h.b16 %v5630
      %v5700 = vunpack.c.l.b16 %v5631
      %v5701 = vunpack.c.h.b16 %v5631
      %v5702 = vunpack.c.l.b16 %v5632
      %v5703 = vunpack.c.h.b16 %v5632
      %v5704 = vunpack.c.l.b16 %v5633
      %v5705 = vunpack.c.h.b16 %v5633
      %v5706 = vunpack.c.l.b16 %v5634
      %v5707 = vunpack.c.h.b16 %v5634
      %v5708 = vunpack.c.l.b16 %v5635
      %v5709 = vunpack.c.h.b16 %v5635
      %v5710 = vunpack.c.l.b16 %v5636
      %v5711 = vunpack.c.h.b16 %v5636
      %v5712 = vunpack.c.l.b16 %v5637
      %v5713 = vunpack.c.h.b16 %v5637
      %v5714 = vunpack.c.l.b16 %v5638
      %v5715 = vunpack.c.h.b16 %v5638
      %v5716 = vunpack.c.l.b16 %v5639
      %v5717 = vunpack.c.h.b16 %v5639
      %v5718 = vunpack.c.l.b16 %v5640
      %v5719 = vunpack.c.h.b16 %v5640
      %v5720 = vunpack.c.l.b16 %v5641
      %v5721 = vunpack.c.h.b16 %v5641
      %v5722 = vunpack.c.l.b16 %v5642
      %v5723 = vunpack.c.h.b16 %v5642
      %v5724 = vunpack.c.l.b16 %v5643
      %v5725 = vunpack.c.h.b16 %v5643
      %v5726 = vunpack.c.l.b16 %v5644
      %v5727 = vunpack.c.h.b16 %v5644
      %v5728 = vunpack.c.l.b16 %v5645
      %v5729 = vunpack.c.h.b16 %v5645
      %v5730 = vunpack.c.l.b16 %v5646
      %v5731 = vunpack.c.h.b16 %v5646
      %v5732 = vunpack.c.l.b16 %v5647
      %v5733 = vunpack.c.h.b16 %v5647
      %v5734 = vunpack.c.l.b16 %v5648
      %v5735 = vunpack.c.h.b16 %v5648
      %v5736 = vunpack.c.l.b16 %v5649
      %v5737 = vunpack.c.h.b16 %v5649
      %v5738 = vunpack.c.l.b16 %v5650
      %v5739 = vunpack.c.h.b16 %v5650
      %v5740 = vunpack.c.l.b16 %v5651
      %v5741 = vunpack.c.h.b16 %v5651
      %v5742 = vunpack.c.l.b16 %v5652
      %v5743 = vunpack.c.h.b16 %v5652
      %v5744 = vunpack.c.l.b16 %v5653
      %v5745 = vunpack.c.h.b16 %v5653
      %v5746 = vunpack.c.l.b16 %v5654
      %v5747 = vunpack.c.h.b16 %v5654
      %v5748 = vunpack.c.l.b16 %v5655
      %v5749 = vunpack.c.h.b16 %v5655
      %v5750 = vunpack.c.l.b16 %v5656
      %v5751 = vunpack.c.h.b16 %v5656
      %v5752 = vunpack.c.l.b16 %v5657
      %v5753 = vunpack.c.h.b16 %v5657
      %v5754 = vpack.c.b16 %v5694, %v5690
      %v5755 = vpack.c.b16 %v5695, %v5691
      %v5756 = vpack.c.b16 %v5696, %v5692
      %v5757 = vpack.c.b16 %v5697, %v5693
      %v5758 = vpack.c.b16 %v5702, %v5698
      %v5759 = vpack.c.b16 %v5703, %v5699
      %v5760 = vpack.c.b16 %v5704, %v5700
      %v5761 = vpack.c.b16 %v5705, %v5701
      %v5762 = vpack.c.b16 %v5710, %v5706
      %v5763 = vpack.c.b16 %v5711, %v5707
      %v5764 = vpack.c.b16 %v5712, %v5708
      %v5765 = vpack.c.b16 %v5713, %v5709
      %v5766 = vpack.c.b16 %v5718, %v5714
      %v5767 = vpack.c.b16 %v5719, %v5715
      %v5768 = vpack.c.b16 %v5720, %v5716
      %v5769 = vpack.c.b16 %v5721, %v5717
      %v5770 = vpack.c.b16 %v5726, %v5722
      %v5771 = vpack.c.b16 %v5727, %v5723
      %v5772 = vpack.c.b16 %v5728, %v5724
      %v5773 = vpack.c.b16 %v5729, %v5725
      %v5774 = vpack.c.b16 %v5734, %v5730
      %v5775 = vpack.c.b16 %v5735, %v5731
      %v5776 = vpack.c.b16 %v5736, %v5732
      %v5777 = vpack.c.b16 %v5737, %v5733
      %v5778 = vpack.c.b16 %v5742, %v5738
      %v5779 = vpack.c.b16 %v5743, %v5739
      %v5780 = vpack.c.b16 %v5744, %v5740
      %v5781 = vpack.c.b16 %v5745, %v5741
      %v5782 = vpack.c.b16 %v5750, %v5746
      %v5783 = vpack.c.b16 %v5751, %v5747
      %v5784 = vpack.c.b16 %v5752, %v5748
      %v5785 = vpack.c.b16 %v5753, %v5749
      %5818 = vmatprep.subr.bf16.mxu0 %v5755
      %5819 = vmatpush1.bf16.msra.mxu0 %v5754
      %5820 = vmatprep.subr.bf16.mxu0 %v5759
      %5821 = vmatpush1.bf16.msra.mxu0 %v5758
      %5822 = vmatprep.subr.bf16.mxu0 %v5763
      %5823 = vmatpush1.bf16.msra.mxu0 %v5762
      %5824 = vmatprep.subr.bf16.mxu0 %v5767
      %5825 = vmatpush1.bf16.msra.mxu0 %v5766
      %5826 = vmatprep.subr.bf16.mxu0 %v5771
      %5827 = vmatpush1.bf16.msra.mxu0 %v5770
      %5828 = vmatprep.subr.bf16.mxu0 %v5775
      %5829 = vmatpush1.bf16.msra.mxu0 %v5774
      %5830 = vmatprep.subr.bf16.mxu0 %v5779
      %5831 = vmatpush1.bf16.msra.mxu0 %v5778
      %5832 = vmatprep.subr.bf16.mxu0 %v5783
      %5833 = vmatpush1.bf16.msra.mxu0 %v5782
      %5834 = vmatprep.subr.bf16.mxu0 0
      %5835 = vmatpush1.bf16.msra.mxu0 0
      %5836 = vmatprep.subr.bf16.mxu0 0
      %5837 = vmatpush1.bf16.msra.mxu0 0
      %5838 = vmatprep.subr.bf16.mxu0 0
      %5839 = vmatpush1.bf16.msra.mxu0 0
      %5840 = vmatprep.subr.bf16.mxu0 0
      %5841 = vmatpush1.bf16.msra.mxu0 0
      %5842 = vmatprep.subr.bf16.mxu0 0
      %5843 = vmatpush1.bf16.msra.mxu0 0
      %5844 = vmatprep.subr.bf16.mxu0 0
      %5845 = vmatpush1.bf16.msra.mxu0 0
      %5846 = vmatprep.subr.bf16.mxu0 0
      %5847 = vmatpush1.bf16.msra.mxu0 0
      %5848 = vmatprep.subr.bf16.mxu0 0
      %5849 = vmatpush1.bf16.msra.mxu0 0
      %5850 = vmatprep.mubr.bf16.mxu0 0
      %5851 = vmatmul.mubr.bf16.gmra.mrb[0].mxu0 %v5625
      %v5852 = vpop.f32.mrb[0].mxu0
      %v5853 = vadd.f32 0.0, %v5852
      %v5854 = vpop.f32.mrb[0].mxu0
      %v5855 = vadd.f32 0.0, %v5854
      %v5856 = vpop.f32.mrb[0].mxu0
      %v5857 = vpop.f32.mrb[0].mxu0
      %5858 = vdwg.mxu0
      %5859 = vmatprep.subr.bf16.mxu0 %v5757
      %5860 = vmatpush1.bf16.msra.mxu0 %v5756
      %5861 = vmatprep.subr.bf16.mxu0 %v5761
      %5862 = vmatpush1.bf16.msra.mxu0 %v5760
      %5863 = vmatprep.subr.bf16.mxu0 %v5765
      %5864 = vmatpush1.bf16.msra.mxu0 %v5764
      %5865 = vmatprep.subr.bf16.mxu0 %v5769
      %5866 = vmatpush1.bf16.msra.mxu0 %v5768
      %5867 = vmatprep.subr.bf16.mxu0 %v5773
      %5868 = vmatpush1.bf16.msra.mxu0 %v5772
      %5869 = vmatprep.subr.bf16.mxu0 %v5777
      %5870 = vmatpush1.bf16.msra.mxu0 %v5776
      %5871 = vmatprep.subr.bf16.mxu0 %v5781
      %5872 = vmatpush1.bf16.msra.mxu0 %v5780
      %5873 = vmatprep.subr.bf16.mxu0 %v5785
      %5874 = vmatpush1.bf16.msra.mxu0 %v5784
      %5875 = vmatprep.subr.bf16.mxu0 0
      %5876 = vmatpush1.bf16.msra.mxu0 0
      %5877 = vmatprep.subr.bf16.mxu0 0
      %5878 = vmatpush1.bf16.msra.mxu0 0
      %5879 = vmatprep.subr.bf16.mxu0 0
      %5880 = vmatpush1.bf16.msra.mxu0 0
      %5881 = vmatprep.subr.bf16.mxu0 0
      %5882 = vmatpush1.bf16.msra.mxu0 0
      %5883 = vmatprep.subr.bf16.mxu0 0
      %5884 = vmatpush1.bf16.msra.mxu0 0
      %5885 = vmatprep.subr.bf16.mxu0 0
      %5886 = vmatpush1.bf16.msra.mxu0 0
      %5887 = vmatprep.subr.bf16.mxu0 0
      %5888 = vmatpush1.bf16.msra.mxu0 0
      %5889 = vmatprep.subr.bf16.mxu0 0
      %5890 = vmatpush1.bf16.msra.mxu0 0
      %5891 = vmatprep.mubr.bf16.mxu0 0
      %5892 = vmatmul.mubr.bf16.gmra.mrb[0].mxu0 %v5625
      %v5893 = vpop.f32.mrb[0].mxu0
      %v5894 = vadd.f32 0.0, %v5893
      %v5895 = vpop.f32.mrb[0].mxu0
      %v5896 = vadd.f32 0.0, %v5895
      %v5897 = vpop.f32.mrb[0].mxu0
      %v5898 = vpop.f32.mrb[0].mxu0
      %5899 = vdwg.mxu0
      %v5900 = vadd.f32 %v5620, %v5853
      %v5901 = vadd.f32 %v5621, %v5855
      %v5902 = vadd.f32 %v5622, %v5894
      %v5903 = vadd.f32 %v5623, %v5896
      %v5904 = vld [vmem:[#allocation8] sm:$0xff]
      %v5905 = vxor.u32 %v5900, 2147483648
      %v5906 = vmul.f32 %v5905, 1.442695
      %v5907 = vpow.pop %v5906
      %v5908 = vadd.f32 %v5907, 1.0
      %v5909 = vrcp.pop %v5908
      %v5910 = vmul.f32 1.0, %v5909
      %v5911 = vxor.u32 %v5901, 2147483648
      %v5912 = vmul.f32 %v5911, 1.442695
      %v5913 = vpow.pop %v5912
      %v5914 = vadd.f32 %v5913, 1.0
      %v5915 = vrcp.pop %v5914
      %v5916 = vmul.f32 1.0, %v5915
      %v5917 = vtanh.pop %v5902
      %v5918 = vxor.u32 %v5903, 2147483648
      %v5919 = vmul.f32 %v5918, 1.442695
      %v5920 = vpow.pop %v5919
      %v5921 = vadd.f32 %v5920, 1.0
      %v5922 = vrcp.pop %v5921
      %v5923 = vmul.f32 1.0, %v5922
      %v5924 = vmul.f32 %v5916, %v5904
      %v5925 = vmul.f32 %v5910, %v5917
      %v5926 = vadd.f32 %v5924, %v5925
      %v5927 = vtanh.pop %v5926
      %v5928 = vmul.f32 %v5923, %v5927
      %5929 = vst [vmem:[#allocation7] sm:$0xff] %v5928
      %5930 = vst [vmem:[#allocation8] sm:$0xff] %v5926
      %5931 = vst [vmem:[#allocation2 + $0x18] sm:$0xff] %v5928
      %v5932 = vld [vmem:[#allocation3 + $0xe0] sm:$0xff]
      %v5933 = vld [vmem:[#allocation3 + $0xe8] sm:$0xff]
      %v5934 = vld [vmem:[#allocation3 + $0xf0] sm:$0xff]
      %v5935 = vld [vmem:[#allocation3 + $0xf8] sm:$0xff]
      %v5936 = vld [vmem:[#allocation5] sm:$0xff]
      %v5937 = vpack.c.bf16 %v5936, %v5936
      %v5938 = vld [vmem:[%s323] sm:$0xff]
      %v5939 = vld [vmem:[%s323 + $0x8] sm:$0xff]
      %v5940 = vld [vmem:[%s323 + $0x10] sm:$0xff]
      %v5941 = vld [vmem:[%s323 + $0x18] sm:$0xff]
      %v5942 = vld [vmem:[%s323 + $0x20] sm:$0xff]
      %v5943 = vld [vmem:[%s323 + $0x28] sm:$0xff]
      %v5944 = vld [vmem:[%s323 + $0x30] sm:$0xff]
      %v5945 = vld [vmem:[%s323 + $0x38] sm:$0xff]
      %v5946 = vld [vmem:[%s323 + $0x40] sm:$0xff]
      %v5947 = vld [vmem:[%s323 + $0x48] sm:$0xff]
      %v5948 = vld [vmem:[%s323 + $0x50] sm:$0xff]
      %v5949 = vld [vmem:[%s323 + $0x58] sm:$0xff]
      %v5950 = vld [vmem:[%s323 + $0x60] sm:$0xff]
      %v5951 = vld [vmem:[%s323 + $0x68] sm:$0xff]
      %v5952 = vld [vmem:[%s323 + $0x70] sm:$0xff]
      %v5953 = vld [vmem:[%s323 + $0x78] sm:$0xff]
      %v5954 = vld [vmem:[%s323 + $0x80] sm:$0xff]
      %v5955 = vld [vmem:[%s323 + $0x88] sm:$0xff]
      %v5956 = vld [vmem:[%s323 + $0x90] sm:$0xff]
      %v5957 = vld [vmem:[%s323 + $0x98] sm:$0xff]
      %v5958 = vld [vmem:[%s323 + $0xa0] sm:$0xff]
      %v5959 = vld [vmem:[%s323 + $0xa8] sm:$0xff]
      %v5960 = vld [vmem:[%s323 + $0xb0] sm:$0xff]
      %v5961 = vld [vmem:[%s323 + $0xb8] sm:$0xff]
      %v5962 = vld [vmem:[%s323 + $0xc0] sm:$0xff]
      %v5963 = vld [vmem:[%s323 + $0xc8] sm:$0xff]
      %v5964 = vld [vmem:[%s323 + $0xd0] sm:$0xff]
      %v5965 = vld [vmem:[%s323 + $0xd8] sm:$0xff]
      %v5966 = vld [vmem:[%s323 + $0xe0] sm:$0xff]
      %v5967 = vld [vmem:[%s323 + $0xe8] sm:$0xff]
      %v5968 = vld [vmem:[%s323 + $0xf0] sm:$0xff]
      %v5969 = vld [vmem:[%s323 + $0xf8] sm:$0xff]
      %v6002 = vunpack.c.l.b16 %v5938
      %v6003 = vunpack.c.h.b16 %v5938
      %v6004 = vunpack.c.l.b16 %v5939
      %v6005 = vunpack.c.h.b16 %v5939
      %v6006 = vunpack.c.l.b16 %v5940
      %v6007 = vunpack.c.h.b16 %v5940
      %v6008 = vunpack.c.l.b16 %v5941
      %v6009 = vunpack.c.h.b16 %v5941
      %v6010 = vunpack.c.l.b16 %v5942
      %v6011 = vunpack.c.h.b16 %v5942
      %v6012 = vunpack.c.l.b16 %v5943
      %v6013 = vunpack.c.h.b16 %v5943
      %v6014 = vunpack.c.l.b16 %v5944
      %v6015 = vunpack.c.h.b16 %v5944
      %v6016 = vunpack.c.l.b16 %v5945
      %v6017 = vunpack.c.h.b16 %v5945
      %v6018 = vunpack.c.l.b16 %v5946
      %v6019 = vunpack.c.h.b16 %v5946
      %v6020 = vunpack.c.l.b16 %v5947
      %v6021 = vunpack.c.h.b16 %v5947
      %v6022 = vunpack.c.l.b16 %v5948
      %v6023 = vunpack.c.h.b16 %v5948
      %v6024 = vunpack.c.l.b16 %v5949
      %v6025 = vunpack.c.h.b16 %v5949
      %v6026 = vunpack.c.l.b16 %v5950
      %v6027 = vunpack.c.h.b16 %v5950
      %v6028 = vunpack.c.l.b16 %v5951
      %v6029 = vunpack.c.h.b16 %v5951
      %v6030 = vunpack.c.l.b16 %v5952
      %v6031 = vunpack.c.h.b16 %v5952
      %v6032 = vunpack.c.l.b16 %v5953
      %v6033 = vunpack.c.h.b16 %v5953
      %v6034 = vunpack.c.l.b16 %v5954
      %v6035 = vunpack.c.h.b16 %v5954
      %v6036 = vunpack.c.l.b16 %v5955
      %v6037 = vunpack.c.h.b16 %v5955
      %v6038 = vunpack.c.l.b16 %v5956
      %v6039 = vunpack.c.h.b16 %v5956
      %v6040 = vunpack.c.l.b16 %v5957
      %v6041 = vunpack.c.h.b16 %v5957
      %v6042 = vunpack.c.l.b16 %v5958
      %v6043 = vunpack.c.h.b16 %v5958
      %v6044 = vunpack.c.l.b16 %v5959
      %v6045 = vunpack.c.h.b16 %v5959
      %v6046 = vunpack.c.l.b16 %v5960
      %v6047 = vunpack.c.h.b16 %v5960
      %v6048 = vunpack.c.l.b16 %v5961
      %v6049 = vunpack.c.h.b16 %v5961
      %v6050 = vunpack.c.l.b16 %v5962
      %v6051 = vunpack.c.h.b16 %v5962
      %v6052 = vunpack.c.l.b16 %v5963
      %v6053 = vunpack.c.h.b16 %v5963
      %v6054 = vunpack.c.l.b16 %v5964
      %v6055 = vunpack.c.h.b16 %v5964
      %v6056 = vunpack.c.l.b16 %v5965
      %v6057 = vunpack.c.h.b16 %v5965
      %v6058 = vunpack.c.l.b16 %v5966
      %v6059 = vunpack.c.h.b16 %v5966
      %v6060 = vunpack.c.l.b16 %v5967
      %v6061 = vunpack.c.h.b16 %v5967
      %v6062 = vunpack.c.l.b16 %v5968
      %v6063 = vunpack.c.h.b16 %v5968
      %v6064 = vunpack.c.l.b16 %v5969
      %v6065 = vunpack.c.h.b16 %v5969
      %v6066 = vpack.c.b16 %v6006, %v6002
      %v6067 = vpack.c.b16 %v6007, %v6003
      %v6068 = vpack.c.b16 %v6008, %v6004
      %v6069 = vpack.c.b16 %v6009, %v6005
      %v6070 = vpack.c.b16 %v6014, %v6010
      %v6071 = vpack.c.b16 %v6015, %v6011
      %v6072 = vpack.c.b16 %v6016, %v6012
      %v6073 = vpack.c.b16 %v6017, %v6013
      %v6074 = vpack.c.b16 %v6022, %v6018
      %v6075 = vpack.c.b16 %v6023, %v6019
      %v6076 = vpack.c.b16 %v6024, %v6020
      %v6077 = vpack.c.b16 %v6025, %v6021
      %v6078 = vpack.c.b16 %v6030, %v6026
      %v6079 = vpack.c.b16 %v6031, %v6027
      %v6080 = vpack.c.b16 %v6032, %v6028
      %v6081 = vpack.c.b16 %v6033, %v6029
      %v6082 = vpack.c.b16 %v6038, %v6034
      %v6083 = vpack.c.b16 %v6039, %v6035
      %v6084 = vpack.c.b16 %v6040, %v6036
      %v6085 = vpack.c.b16 %v6041, %v6037
      %v6086 = vpack.c.b16 %v6046, %v6042
      %v6087 = vpack.c.b16 %v6047, %v6043
      %v6088 = vpack.c.b16 %v6048, %v6044
      %v6089 = vpack.c.b16 %v6049, %v6045
      %v6090 = vpack.c.b16 %v6054, %v6050
      %v6091 = vpack.c.b16 %v6055, %v6051
      %v6092 = vpack.c.b16 %v6056, %v6052
      %v6093 = vpack.c.b16 %v6057, %v6053
      %v6094 = vpack.c.b16 %v6062, %v6058
      %v6095 = vpack.c.b16 %v6063, %v6059
      %v6096 = vpack.c.b16 %v6064, %v6060
      %v6097 = vpack.c.b16 %v6065, %v6061
      %6130 = vmatprep.subr.bf16.mxu0 %v6067
      %6131 = vmatpush1.bf16.msra.mxu0 %v6066
      %6132 = vmatprep.subr.bf16.mxu0 %v6071
      %6133 = vmatpush1.bf16.msra.mxu0 %v6070
      %6134 = vmatprep.subr.bf16.mxu0 %v6075
      %6135 = vmatpush1.bf16.msra.mxu0 %v6074
      %6136 = vmatprep.subr.bf16.mxu0 %v6079
      %6137 = vmatpush1.bf16.msra.mxu0 %v6078
      %6138 = vmatprep.subr.bf16.mxu0 %v6083
      %6139 = vmatpush1.bf16.msra.mxu0 %v6082
      %6140 = vmatprep.subr.bf16.mxu0 %v6087
      %6141 = vmatpush1.bf16.msra.mxu0 %v6086
      %6142 = vmatprep.subr.bf16.mxu0 %v6091
      %6143 = vmatpush1.bf16.msra.mxu0 %v6090
      %6144 = vmatprep.subr.bf16.mxu0 %v6095
      %6145 = vmatpush1.bf16.msra.mxu0 %v6094
      %6146 = vmatprep.subr.bf16.mxu0 0
      %6147 = vmatpush1.bf16.msra.mxu0 0
      %6148 = vmatprep.subr.bf16.mxu0 0
      %6149 = vmatpush1.bf16.msra.mxu0 0
      %6150 = vmatprep.subr.bf16.mxu0 0
      %6151 = vmatpush1.bf16.msra.mxu0 0
      %6152 = vmatprep.subr.bf16.mxu0 0
      %6153 = vmatpush1.bf16.msra.mxu0 0
      %6154 = vmatprep.subr.bf16.mxu0 0
      %6155 = vmatpush1.bf16.msra.mxu0 0
      %6156 = vmatprep.subr.bf16.mxu0 0
      %6157 = vmatpush1.bf16.msra.mxu0 0
      %6158 = vmatprep.subr.bf16.mxu0 0
      %6159 = vmatpush1.bf16.msra.mxu0 0
      %6160 = vmatprep.subr.bf16.mxu0 0
      %6161 = vmatpush1.bf16.msra.mxu0 0
      %6162 = vmatprep.mubr.bf16.mxu0 0
      %6163 = vmatmul.mubr.bf16.gmra.mrb[0].mxu0 %v5937
      %v6164 = vpop.f32.mrb[0].mxu0
      %v6165 = vadd.f32 0.0, %v6164
      %v6166 = vpop.f32.mrb[0].mxu0
      %v6167 = vadd.f32 0.0, %v6166
      %v6168 = vpop.f32.mrb[0].mxu0
      %v6169 = vpop.f32.mrb[0].mxu0
      %6170 = vdwg.mxu0
      %6171 = vmatprep.subr.bf16.mxu0 %v6069
      %6172 = vmatpush1.bf16.msra.mxu0 %v6068
      %6173 = vmatprep.subr.bf16.mxu0 %v6073
      %6174 = vmatpush1.bf16.msra.mxu0 %v6072
      %6175 = vmatprep.subr.bf16.mxu0 %v6077
      %6176 = vmatpush1.bf16.msra.mxu0 %v6076
      %6177 = vmatprep.subr.bf16.mxu0 %v6081
      %6178 = vmatpush1.bf16.msra.mxu0 %v6080
      %6179 = vmatprep.subr.bf16.mxu0 %v6085
      %6180 = vmatpush1.bf16.msra.mxu0 %v6084
      %6181 = vmatprep.subr.bf16.mxu0 %v6089
      %6182 = vmatpush1.bf16.msra.mxu0 %v6088
      %6183 = vmatprep.subr.bf16.mxu0 %v6093
      %6184 = vmatpush1.bf16.msra.mxu0 %v6092
      %6185 = vmatprep.subr.bf16.mxu0 %v6097
      %6186 = vmatpush1.bf16.msra.mxu0 %v6096
      %6187 = vmatprep.subr.bf16.mxu0 0
      %6188 = vmatpush1.bf16.msra.mxu0 0
      %6189 = vmatprep.subr.bf16.mxu0 0
      %6190 = vmatpush1.bf16.msra.mxu0 0
      %6191 = vmatprep.subr.bf16.mxu0 0
      %6192 = vmatpush1.bf16.msra.mxu0 0
      %6193 = vmatprep.subr.bf16.mxu0 0
      %6194 = vmatpush1.bf16.msra.mxu0 0
      %6195 = vmatprep.subr.bf16.mxu0 0
      %6196 = vmatpush1.bf16.msra.mxu0 0
      %6197 = vmatprep.subr.bf16.mxu0 0
      %6198 = vmatpush1.bf16.msra.mxu0 0
      %6199 = vmatprep.subr.bf16.mxu0 0
      %6200 = vmatpush1.bf16.msra.mxu0 0
      %6201 = vmatprep.subr.bf16.mxu0 0
      %6202 = vmatpush1.bf16.msra.mxu0 0
      %6203 = vmatprep.mubr.bf16.mxu0 0
      %6204 = vmatmul.mubr.bf16.gmra.mrb[0].mxu0 %v5937
      %v6205 = vpop.f32.mrb[0].mxu0
      %v6206 = vadd.f32 0.0, %v6205
      %v6207 = vpop.f32.mrb[0].mxu0
      %v6208 = vadd.f32 0.0, %v6207
      %v6209 = vpop.f32.mrb[0].mxu0
      %v6210 = vpop.f32.mrb[0].mxu0
      %6211 = vdwg.mxu0
      %v6212 = vadd.f32 %v5932, %v6165
      %v6213 = vadd.f32 %v5933, %v6167
      %v6214 = vadd.f32 %v5934, %v6206
      %v6215 = vadd.f32 %v5935, %v6208
      %v6216 = vld [vmem:[#allocation6] sm:$0xff]
      %v6217 = vxor.u32 %v6212, 2147483648
      %v6218 = vmul.f32 %v6217, 1.442695
      %v6219 = vpow.pop %v6218
      %v6220 = vadd.f32 %v6219, 1.0
      %v6221 = vrcp.pop %v6220
      %v6222 = vmul.f32 1.0, %v6221
      %v6223 = vxor.u32 %v6213, 2147483648
      %v6224 = vmul.f32 %v6223, 1.442695
      %v6225 = vpow.pop %v6224
      %v6226 = vadd.f32 %v6225, 1.0
      %v6227 = vrcp.pop %v6226
      %v6228 = vmul.f32 1.0, %v6227
      %v6229 = vtanh.pop %v6214
      %v6230 = vxor.u32 %v6215, 2147483648
      %v6231 = vmul.f32 %v6230, 1.442695
      %v6232 = vpow.pop %v6231
      %v6233 = vadd.f32 %v6232, 1.0
      %v6234 = vrcp.pop %v6233
      %v6235 = vmul.f32 1.0, %v6234
      %v6236 = vmul.f32 %v6228, %v6216
      %v6237 = vmul.f32 %v6222, %v6229
      %v6238 = vadd.f32 %v6236, %v6237
      %v6239 = vtanh.pop %v6238
      %v6240 = vmul.f32 %v6235, %v6239
      %6241 = vst [vmem:[#allocation5] sm:$0xff] %v6240
      %6242 = vst [vmem:[#allocation6] sm:$0xff] %v6238
      %6243 = vst [vmem:[#allocation2 + $0x70] sm:$0xff] %v6240
      %v6244 = vld [vmem:[#allocation4] sm:$0xff]
      %v6245 = vld [vmem:[#allocation4 + $0x8] sm:$0xff]
      %v6246 = vld [vmem:[#allocation4 + $0x10] sm:$0xff]
      %v6247 = vld [vmem:[#allocation4 + $0x18] sm:$0xff]
      %v6248 = vld [vmem:[#allocation7] sm:$0xff]
      %v6249 = vpack.c.bf16 %v6248, %v6248
      %v6250 = vld [vmem:[%s1881] sm:$0xff]
      %v6251 = vld [vmem:[%s1881 + $0x8] sm:$0xff]
      %v6252 = vld [vmem:[%s1881 + $0x10] sm:$0xff]
      %v6253 = vld [vmem:[%s1881 + $0x18] sm:$0xff]
      %v6254 = vld [vmem:[%s1881 + $0x20] sm:$0xff]
      %v6255 = vld [vmem:[%s1881 + $0x28] sm:$0xff]
      %v6256 = vld [vmem:[%s1881 + $0x30] sm:$0xff]
      %v6257 = vld [vmem:[%s1881 + $0x38] sm:$0xff]
      %v6258 = vld [vmem:[%s1881 + $0x40] sm:$0xff]
      %v6259 = vld [vmem:[%s1881 + $0x48] sm:$0xff]
      %v6260 = vld [vmem:[%s1881 + $0x50] sm:$0xff]
      %v6261 = vld [vmem:[%s1881 + $0x58] sm:$0xff]
      %v6262 = vld [vmem:[%s1881 + $0x60] sm:$0xff]
      %v6263 = vld [vmem:[%s1881 + $0x68] sm:$0xff]
      %v6264 = vld [vmem:[%s1881 + $0x70] sm:$0xff]
      %v6265 = vld [vmem:[%s1881 + $0x78] sm:$0xff]
      %v6266 = vld [vmem:[%s1881 + $0x80] sm:$0xff]
      %v6267 = vld [vmem:[%s1881 + $0x88] sm:$0xff]
      %v6268 = vld [vmem:[%s1881 + $0x90] sm:$0xff]
      %v6269 = vld [vmem:[%s1881 + $0x98] sm:$0xff]
      %v6270 = vld [vmem:[%s1881 + $0xa0] sm:$0xff]
      %v6271 = vld [vmem:[%s1881 + $0xa8] sm:$0xff]
      %v6272 = vld [vmem:[%s1881 + $0xb0] sm:$0xff]
      %v6273 = vld [vmem:[%s1881 + $0xb8] sm:$0xff]
      %v6274 = vld [vmem:[%s1881 + $0xc0] sm:$0xff]
      %v6275 = vld [vmem:[%s1881 + $0xc8] sm:$0xff]
      %v6276 = vld [vmem:[%s1881 + $0xd0] sm:$0xff]
      %v6277 = vld [vmem:[%s1881 + $0xd8] sm:$0xff]
      %v6278 = vld [vmem:[%s1881 + $0xe0] sm:$0xff]
      %v6279 = vld [vmem:[%s1881 + $0xe8] sm:$0xff]
      %v6280 = vld [vmem:[%s1881 + $0xf0] sm:$0xff]
      %v6281 = vld [vmem:[%s1881 + $0xf8] sm:$0xff]
      %v6314 = vunpack.c.l.b16 %v6250
      %v6315 = vunpack.c.h.b16 %v6250
      %v6316 = vunpack.c.l.b16 %v6251
      %v6317 = vunpack.c.h.b16 %v6251
      %v6318 = vunpack.c.l.b16 %v6252
      %v6319 = vunpack.c.h.b16 %v6252
      %v6320 = vunpack.c.l.b16 %v6253
      %v6321 = vunpack.c.h.b16 %v6253
      %v6322 = vunpack.c.l.b16 %v6254
      %v6323 = vunpack.c.h.b16 %v6254
      %v6324 = vunpack.c.l.b16 %v6255
      %v6325 = vunpack.c.h.b16 %v6255
      %v6326 = vunpack.c.l.b16 %v6256
      %v6327 = vunpack.c.h.b16 %v6256
      %v6328 = vunpack.c.l.b16 %v6257
      %v6329 = vunpack.c.h.b16 %v6257
      %v6330 = vunpack.c.l.b16 %v6258
      %v6331 = vunpack.c.h.b16 %v6258
      %v6332 = vunpack.c.l.b16 %v6259
      %v6333 = vunpack.c.h.b16 %v6259
      %v6334 = vunpack.c.l.b16 %v6260
      %v6335 = vunpack.c.h.b16 %v6260
      %v6336 = vunpack.c.l.b16 %v6261
      %v6337 = vunpack.c.h.b16 %v6261
      %v6338 = vunpack.c.l.b16 %v6262
      %v6339 = vunpack.c.h.b16 %v6262
      %v6340 = vunpack.c.l.b16 %v6263
      %v6341 = vunpack.c.h.b16 %v6263
      %v6342 = vunpack.c.l.b16 %v6264
      %v6343 = vunpack.c.h.b16 %v6264
      %v6344 = vunpack.c.l.b16 %v6265
      %v6345 = vunpack.c.h.b16 %v6265
      %v6346 = vunpack.c.l.b16 %v6266
      %v6347 = vunpack.c.h.b16 %v6266
      %v6348 = vunpack.c.l.b16 %v6267
      %v6349 = vunpack.c.h.b16 %v6267
      %v6350 = vunpack.c.l.b16 %v6268
      %v6351 = vunpack.c.h.b16 %v6268
      %v6352 = vunpack.c.l.b16 %v6269
      %v6353 = vunpack.c.h.b16 %v6269
      %v6354 = vunpack.c.l.b16 %v6270
      %v6355 = vunpack.c.h.b16 %v6270
      %v6356 = vunpack.c.l.b16 %v6271
      %v6357 = vunpack.c.h.b16 %v6271
      %v6358 = vunpack.c.l.b16 %v6272
      %v6359 = vunpack.c.h.b16 %v6272
      %v6360 = vunpack.c.l.b16 %v6273
      %v6361 = vunpack.c.h.b16 %v6273
      %v6362 = vunpack.c.l.b16 %v6274
      %v6363 = vunpack.c.h.b16 %v6274
      %v6364 = vunpack.c.l.b16 %v6275
      %v6365 = vunpack.c.h.b16 %v6275
      %v6366 = vunpack.c.l.b16 %v6276
      %v6367 = vunpack.c.h.b16 %v6276
      %v6368 = vunpack.c.l.b16 %v6277
      %v6369 = vunpack.c.h.b16 %v6277
      %v6370 = vunpack.c.l.b16 %v6278
      %v6371 = vunpack.c.h.b16 %v6278
      %v6372 = vunpack.c.l.b16 %v6279
      %v6373 = vunpack.c.h.b16 %v6279
      %v6374 = vunpack.c.l.b16 %v6280
      %v6375 = vunpack.c.h.b16 %v6280
      %v6376 = vunpack.c.l.b16 %v6281
      %v6377 = vunpack.c.h.b16 %v6281
      %v6378 = vpack.c.b16 %v6318, %v6314
      %v6379 = vpack.c.b16 %v6319, %v6315
      %v6380 = vpack.c.b16 %v6320, %v6316
      %v6381 = vpack.c.b16 %v6321, %v6317
      %v6382 = vpack.c.b16 %v6326, %v6322
      %v6383 = vpack.c.b16 %v6327, %v6323
      %v6384 = vpack.c.b16 %v6328, %v6324
      %v6385 = vpack.c.b16 %v6329, %v6325
      %v6386 = vpack.c.b16 %v6334, %v6330
      %v6387 = vpack.c.b16 %v6335, %v6331
      %v6388 = vpack.c.b16 %v6336, %v6332
      %v6389 = vpack.c.b16 %v6337, %v6333
      %v6390 = vpack.c.b16 %v6342, %v6338
      %v6391 = vpack.c.b16 %v6343, %v6339
      %v6392 = vpack.c.b16 %v6344, %v6340
      %v6393 = vpack.c.b16 %v6345, %v6341
      %v6394 = vpack.c.b16 %v6350, %v6346
      %v6395 = vpack.c.b16 %v6351, %v6347
      %v6396 = vpack.c.b16 %v6352, %v6348
      %v6397 = vpack.c.b16 %v6353, %v6349
      %v6398 = vpack.c.b16 %v6358, %v6354
      %v6399 = vpack.c.b16 %v6359, %v6355
      %v6400 = vpack.c.b16 %v6360, %v6356
      %v6401 = vpack.c.b16 %v6361, %v6357
      %v6402 = vpack.c.b16 %v6366, %v6362
      %v6403 = vpack.c.b16 %v6367, %v6363
      %v6404 = vpack.c.b16 %v6368, %v6364
      %v6405 = vpack.c.b16 %v6369, %v6365
      %v6406 = vpack.c.b16 %v6374, %v6370
      %v6407 = vpack.c.b16 %v6375, %v6371
      %v6408 = vpack.c.b16 %v6376, %v6372
      %v6409 = vpack.c.b16 %v6377, %v6373
      %6442 = vmatprep.subr.bf16.mxu0 %v6379
      %6443 = vmatpush1.bf16.msra.mxu0 %v6378
      %6444 = vmatprep.subr.bf16.mxu0 %v6383
      %6445 = vmatpush1.bf16.msra.mxu0 %v6382
      %6446 = vmatprep.subr.bf16.mxu0 %v6387
      %6447 = vmatpush1.bf16.msra.mxu0 %v6386
      %6448 = vmatprep.subr.bf16.mxu0 %v6391
      %6449 = vmatpush1.bf16.msra.mxu0 %v6390
      %6450 = vmatprep.subr.bf16.mxu0 %v6395
      %6451 = vmatpush1.bf16.msra.mxu0 %v6394
      %6452 = vmatprep.subr.bf16.mxu0 %v6399
      %6453 = vmatpush1.bf16.msra.mxu0 %v6398
      %6454 = vmatprep.subr.bf16.mxu0 %v6403
      %6455 = vmatpush1.bf16.msra.mxu0 %v6402
      %6456 = vmatprep.subr.bf16.mxu0 %v6407
      %6457 = vmatpush1.bf16.msra.mxu0 %v6406
      %6458 = vmatprep.subr.bf16.mxu0 0
      %6459 = vmatpush1.bf16.msra.mxu0 0
      %6460 = vmatprep.subr.bf16.mxu0 0
      %6461 = vmatpush1.bf16.msra.mxu0 0
      %6462 = vmatprep.subr.bf16.mxu0 0
      %6463 = vmatpush1.bf16.msra.mxu0 0
      %6464 = vmatprep.subr.bf16.mxu0 0
      %6465 = vmatpush1.bf16.msra.mxu0 0
      %6466 = vmatprep.subr.bf16.mxu0 0
      %6467 = vmatpush1.bf16.msra.mxu0 0
      %6468 = vmatprep.subr.bf16.mxu0 0
      %6469 = vmatpush1.bf16.msra.mxu0 0
      %6470 = vmatprep.subr.bf16.mxu0 0
      %6471 = vmatpush1.bf16.msra.mxu0 0
      %6472 = vmatprep.subr.bf16.mxu0 0
      %6473 = vmatpush1.bf16.msra.mxu0 0
      %6474 = vmatprep.mubr.bf16.mxu0 0
      %6475 = vmatmul.mubr.bf16.gmra.mrb[0].mxu0 %v6249
      %v6476 = vpop.f32.mrb[0].mxu0
      %v6477 = vadd.f32 0.0, %v6476
      %v6478 = vpop.f32.mrb[0].mxu0
      %v6479 = vadd.f32 0.0, %v6478
      %v6480 = vpop.f32.mrb[0].mxu0
      %v6481 = vpop.f32.mrb[0].mxu0
      %6482 = vdwg.mxu0
      %6483 = vmatprep.subr.bf16.mxu0 %v6381
      %6484 = vmatpush1.bf16.msra.mxu0 %v6380
      %6485 = vmatprep.subr.bf16.mxu0 %v6385
      %6486 = vmatpush1.bf16.msra.mxu0 %v6384
      %6487 = vmatprep.subr.bf16.mxu0 %v6389
      %6488 = vmatpush1.bf16.msra.mxu0 %v6388
      %6489 = vmatprep.subr.bf16.mxu0 %v6393
      %6490 = vmatpush1.bf16.msra.mxu0 %v6392
      %6491 = vmatprep.subr.bf16.mxu0 %v6397
      %6492 = vmatpush1.bf16.msra.mxu0 %v6396
      %6493 = vmatprep.subr.bf16.mxu0 %v6401
      %6494 = vmatpush1.bf16.msra.mxu0 %v6400
      %6495 = vmatprep.subr.bf16.mxu0 %v6405
      %6496 = vmatpush1.bf16.msra.mxu0 %v6404
      %6497 = vmatprep.subr.bf16.mxu0 %v6409
      %6498 = vmatpush1.bf16.msra.mxu0 %v6408
      %6499 = vmatprep.subr.bf16.mxu0 0
      %6500 = vmatpush1.bf16.msra.mxu0 0
      %6501 = vmatprep.subr.bf16.mxu0 0
      %6502 = vmatpush1.bf16.msra.mxu0 0
      %6503 = vmatprep.subr.bf16.mxu0 0
      %6504 = vmatpush1.bf16.msra.mxu0 0
      %6505 = vmatprep.subr.bf16.mxu0 0
      %6506 = vmatpush1.bf16.msra.mxu0 0
      %6507 = vmatprep.subr.bf16.mxu0 0
      %6508 = vmatpush1.bf16.msra.mxu0 0
      %6509 = vmatprep.subr.bf16.mxu0 0
      %6510 = vmatpush1.bf16.msra.mxu0 0
      %6511 = vmatprep.subr.bf16.mxu0 0
      %6512 = vmatpush1.bf16.msra.mxu0 0
      %6513 = vmatprep.subr.bf16.mxu0 0
      %6514 = vmatpush1.bf16.msra.mxu0 0
      %6515 = vmatprep.mubr.bf16.mxu0 0
      %6516 = vmatmul.mubr.bf16.gmra.mrb[0].mxu0 %v6249
      %v6517 = vpop.f32.mrb[0].mxu0
      %v6518 = vadd.f32 0.0, %v6517
      %v6519 = vpop.f32.mrb[0].mxu0
      %v6520 = vadd.f32 0.0, %v6519
      %v6521 = vpop.f32.mrb[0].mxu0
      %v6522 = vpop.f32.mrb[0].mxu0
      %6523 = vdwg.mxu0
      %v6524 = vadd.f32 %v6244, %v6477
      %v6525 = vadd.f32 %v6245, %v6479
      %v6526 = vadd.f32 %v6246, %v6518
      %v6527 = vadd.f32 %v6247, %v6520
      %v6528 = vld [vmem:[#allocation8] sm:$0xff]
      %v6529 = vxor.u32 %v6524, 2147483648
      %v6530 = vmul.f32 %v6529, 1.442695
      %v6531 = vpow.pop %v6530
      %v6532 = vadd.f32 %v6531, 1.0
      %v6533 = vrcp.pop %v6532
      %v6534 = vmul.f32 1.0, %v6533
      %v6535 = vxor.u32 %v6525, 2147483648
      %v6536 = vmul.f32 %v6535, 1.442695
      %v6537 = vpow.pop %v6536
      %v6538 = vadd.f32 %v6537, 1.0
      %v6539 = vrcp.pop %v6538
      %v6540 = vmul.f32 1.0, %v6539
      %v6541 = vtanh.pop %v6526
      %v6542 = vxor.u32 %v6527, 2147483648
      %v6543 = vmul.f32 %v6542, 1.442695
      %v6544 = vpow.pop %v6543
      %v6545 = vadd.f32 %v6544, 1.0
      %v6546 = vrcp.pop %v6545
      %v6547 = vmul.f32 1.0, %v6546
      %v6548 = vmul.f32 %v6540, %v6528
      %v6549 = vmul.f32 %v6534, %v6541
      %v6550 = vadd.f32 %v6548, %v6549
      %v6551 = vtanh.pop %v6550
      %v6552 = vmul.f32 %v6547, %v6551
      %6553 = vst [vmem:[#allocation7] sm:$0xff] %v6552
      %6554 = vst [vmem:[#allocation8] sm:$0xff] %v6550
      %6555 = vst [vmem:[#allocation2 + $0x8] sm:$0xff] %v6552
      %p6556 = scmp.eq.s32.totalorder %s19, 3
      // Predicated region
      $region57: #{no_encoder_model_forward.1} parent=51 // pred_check
        %p6557 = pneg %p6556
      $region58: #{no_encoder_model_forward.1} parent=51 // pred_check_branch
        %6559 = sbr.rel (%p6557) target = $region60
      $region59: #{no_encoder_model_forward.1} parent=51 // pred_region
        %v6560 = vld [vmem:[#allocation2] sm:$0xff]
        %v6561 = vld [vmem:[#allocation2 + $0x8] sm:$0xff]
        %v6562 = vld [vmem:[#allocation2 + $0x10] sm:$0xff]
        %v6563 = vld [vmem:[#allocation2 + $0x18] sm:$0xff]
        %v6564 = vld [vmem:[#allocation2 + $0x20] sm:$0xff]
        %v6565 = vld [vmem:[#allocation2 + $0x28] sm:$0xff]
        %v6566 = vld [vmem:[#allocation2 + $0x30] sm:$0xff]
        %v6567 = vld [vmem:[#allocation2 + $0x38] sm:$0xff]
        %v6568 = vld [vmem:[#allocation2 + $0x40] sm:$0xff]
        %v6569 = vld [vmem:[#allocation2 + $0x48] sm:$0xff]
        %v6570 = vld [vmem:[#allocation2 + $0x50] sm:$0xff]
        %v6571 = vld [vmem:[#allocation2 + $0x58] sm:$0xff]
        %v6572 = vld [vmem:[#allocation2 + $0x60] sm:$0xff]
        %v6573 = vld [vmem:[#allocation2 + $0x68] sm:$0xff]
        %v6574 = vld [vmem:[#allocation2 + $0x70] sm:$0xff]
        %v6575 = vld [vmem:[#allocation2 + $0x78] sm:$0xff]
        %v6576 = vld [vmem:[%s4] sm:$0x3]
        %v6577 = vld [vmem:[%s5] sm:$0x3]
        %v6578 = vld [vmem:[%s6] sm:$0xf]
        %v6579 = vld [vmem:[%s6 + $0x4] sm:$0xf]
        %v6580 = vld [vmem:[%s6 + $0x8] sm:$0xf]
        %v6581 = vld [vmem:[%s6 + $0xc] sm:$0xf]
        %v6582 = vld [vmem:[%s6 + $0x10] sm:$0xf]
        %v6583 = vld [vmem:[%s6 + $0x14] sm:$0xf]
        %v6584 = vld [vmem:[%s6 + $0x18] sm:$0xf]
        %v6585 = vld [vmem:[%s6 + $0x1c] sm:$0xf]
        %v6586 = vld [vmem:[%s6 + $0x20] sm:$0xf]
        %v6587 = vld [vmem:[%s6 + $0x24] sm:$0xf]
        %v6588 = vld [vmem:[%s6 + $0x28] sm:$0xf]
        %v6589 = vld [vmem:[%s6 + $0x2c] sm:$0xf]
        %v6590 = vld [vmem:[%s6 + $0x30] sm:$0xf]
        %v6591 = vld [vmem:[%s6 + $0x34] sm:$0xf]
        %v6592 = vld [vmem:[%s6 + $0x38] sm:$0xf]
        %v6593 = vld [vmem:[%s6 + $0x3c] sm:$0xf]
        %v6594 = vld [vmem:[%s6 + $0x40] sm:$0xf]
        %v6595 = vld [vmem:[%s6 + $0x44] sm:$0xf]
        %v6596 = vld [vmem:[%s6 + $0x48] sm:$0xf]
        %v6597 = vld [vmem:[%s6 + $0x4c] sm:$0xf]
        %v6598 = vld [vmem:[%s6 + $0x50] sm:$0xf]
        %v6599 = vld [vmem:[%s6 + $0x54] sm:$0xf]
        %v6600 = vld [vmem:[%s6 + $0x58] sm:$0xf]
        %v6601 = vld [vmem:[%s6 + $0x5c] sm:$0xf]
        %v6602 = vld [vmem:[%s6 + $0x60] sm:$0xf]
        %v6603 = vld [vmem:[%s6 + $0x64] sm:$0xf]
        %v6604 = vld [vmem:[%s6 + $0x68] sm:$0xf]
        %v6605 = vld [vmem:[%s6 + $0x6c] sm:$0xf]
        %v6606 = vld [vmem:[%s6 + $0x70] sm:$0xf]
        %v6607 = vld [vmem:[%s6 + $0x74] sm:$0xf]
        %v6608 = vld [vmem:[%s6 + $0x78] sm:$0xf]
        %v6609 = vld [vmem:[%s6 + $0x7c] sm:$0xf]
        %v6610 = vld [vmem:[%s7] sm:$0x1]
        %v6611 = vadd.f32 %v6560, %v6561
        %6612 = vadd.xlane.f32.xlu0 %v6611
        %v6613 = vpop.xlane.xlu0 %6612
        %v6614 = vadd.f32 %v6562, %v6563
        %6615 = vadd.xlane.f32.xlu0 %v6614
        %v6616 = vpop.xlane.xlu0 %6615
        %v6617 = vadd.f32 %v6564, %v6565
        %6618 = vadd.xlane.f32.xlu0 %v6617
        %v6619 = vpop.xlane.xlu0 %6618
        %v6620 = vadd.f32 %v6566, %v6567
        %6621 = vadd.xlane.f32.xlu0 %v6620
        %v6622 = vpop.xlane.xlu0 %6621
        %v6623 = vadd.f32 %v6568, %v6569
        %6624 = vadd.xlane.f32.xlu0 %v6623
        %v6625 = vpop.xlane.xlu0 %6624
        %v6626 = vadd.f32 %v6570, %v6571
        %6627 = vadd.xlane.f32.xlu0 %v6626
        %v6628 = vpop.xlane.xlu0 %6627
        %v6629 = vadd.f32 %v6572, %v6573
        %6630 = vadd.xlane.f32.xlu0 %v6629
        %v6631 = vpop.xlane.xlu0 %6630
        %v6632 = vadd.f32 %v6574, %v6575
        %6633 = vadd.xlane.f32.xlu0 %v6632
        %v6634 = vpop.xlane.xlu0 %6633
        %v6635 = vrcp.pop 256.0
        %v6636 = vmul.f32 %v6613, %v6635
        %v6637 = vmul.f32 %v6616, %v6635
        %v6638 = vmul.f32 %v6619, %v6635
        %v6639 = vmul.f32 %v6622, %v6635
        %v6640 = vmul.f32 %v6625, %v6635
        %v6641 = vmul.f32 %v6628, %v6635
        %v6642 = vmul.f32 %v6631, %v6635
        %v6643 = vmul.f32 %v6634, %v6635
        %v6644 = vsub.f32 %v6560, %v6636
        %v6645 = vsub.f32 %v6561, %v6636
        %v6646 = vsub.f32 %v6562, %v6637
        %v6647 = vsub.f32 %v6563, %v6637
        %v6648 = vsub.f32 %v6564, %v6638
        %v6649 = vsub.f32 %v6565, %v6638
        %v6650 = vsub.f32 %v6566, %v6639
        %v6651 = vsub.f32 %v6567, %v6639
        %v6652 = vsub.f32 %v6568, %v6640
        %v6653 = vsub.f32 %v6569, %v6640
        %v6654 = vsub.f32 %v6570, %v6641
        %v6655 = vsub.f32 %v6571, %v6641
        %v6656 = vsub.f32 %v6572, %v6642
        %v6657 = vsub.f32 %v6573, %v6642
        %v6658 = vsub.f32 %v6574, %v6643
        %v6659 = vsub.f32 %v6575, %v6643
        %v6660 = vmul.f32 %v6644, %v6644
        %v6661 = vmul.f32 %v6645, %v6645
        %v6662 = vmul.f32 %v6646, %v6646
        %v6663 = vmul.f32 %v6647, %v6647
        %v6664 = vmul.f32 %v6648, %v6648
        %v6665 = vmul.f32 %v6649, %v6649
        %v6666 = vmul.f32 %v6650, %v6650
        %v6667 = vmul.f32 %v6651, %v6651
        %v6668 = vmul.f32 %v6652, %v6652
        %v6669 = vmul.f32 %v6653, %v6653
        %v6670 = vmul.f32 %v6654, %v6654
        %v6671 = vmul.f32 %v6655, %v6655
        %v6672 = vmul.f32 %v6656, %v6656
        %v6673 = vmul.f32 %v6657, %v6657
        %v6674 = vmul.f32 %v6658, %v6658
        %v6675 = vmul.f32 %v6659, %v6659
        %v6676 = vadd.f32 %v6660, %v6661
        %6677 = vadd.xlane.f32.xlu0 %v6676
        %v6678 = vpop.xlane.xlu0 %6677
        %v6679 = vadd.f32 %v6662, %v6663
        %6680 = vadd.xlane.f32.xlu0 %v6679
        %v6681 = vpop.xlane.xlu0 %6680
        %v6682 = vadd.f32 %v6664, %v6665
        %6683 = vadd.xlane.f32.xlu0 %v6682
        %v6684 = vpop.xlane.xlu0 %6683
        %v6685 = vadd.f32 %v6666, %v6667
        %6686 = vadd.xlane.f32.xlu0 %v6685
        %v6687 = vpop.xlane.xlu0 %6686
        %v6688 = vadd.f32 %v6668, %v6669
        %6689 = vadd.xlane.f32.xlu0 %v6688
        %v6690 = vpop.xlane.xlu0 %6689
        %v6691 = vadd.f32 %v6670, %v6671
        %6692 = vadd.xlane.f32.xlu0 %v6691
        %v6693 = vpop.xlane.xlu0 %6692
        %v6694 = vadd.f32 %v6672, %v6673
        %6695 = vadd.xlane.f32.xlu0 %v6694
        %v6696 = vpop.xlane.xlu0 %6695
        %v6697 = vadd.f32 %v6674, %v6675
        %6698 = vadd.xlane.f32.xlu0 %v6697
        %v6699 = vpop.xlane.xlu0 %6698
        %v6700 = vmul.f32 %v6678, %v6635
        %v6701 = vmul.f32 %v6681, %v6635
        %v6702 = vmul.f32 %v6684, %v6635
        %v6703 = vmul.f32 %v6687, %v6635
        %v6704 = vmul.f32 %v6690, %v6635
        %v6705 = vmul.f32 %v6693, %v6635
        %v6706 = vmul.f32 %v6696, %v6635
        %v6707 = vmul.f32 %v6699, %v6635
        %v6708 = vadd.f32 %v6700, 1e-05
        %v6709 = vadd.f32 %v6701, 1e-05
        %v6710 = vadd.f32 %v6702, 1e-05
        %v6711 = vadd.f32 %v6703, 1e-05
        %v6712 = vadd.f32 %v6704, 1e-05
        %v6713 = vadd.f32 %v6705, 1e-05
        %v6714 = vadd.f32 %v6706, 1e-05
        %v6715 = vadd.f32 %v6707, 1e-05
        %v6716 = vrsqrt.pop %v6708
        %v6717 = vrsqrt.pop %v6709
        %v6718 = vrsqrt.pop %v6710
        %v6719 = vrsqrt.pop %v6711
        %v6720 = vrsqrt.pop %v6712
        %v6721 = vrsqrt.pop %v6713
        %v6722 = vrsqrt.pop %v6714
        %v6723 = vrsqrt.pop %v6715
        %v6724 = vmul.f32 %v6644, %v6716
        %v6725 = vmul.f32 %v6645, %v6716
        %v6726 = vmul.f32 %v6646, %v6717
        %v6727 = vmul.f32 %v6647, %v6717
        %v6728 = vmul.f32 %v6648, %v6718
        %v6729 = vmul.f32 %v6649, %v6718
        %v6730 = vmul.f32 %v6650, %v6719
        %v6731 = vmul.f32 %v6651, %v6719
        %v6732 = vmul.f32 %v6652, %v6720
        %v6733 = vmul.f32 %v6653, %v6720
        %v6734 = vmul.f32 %v6654, %v6721
        %v6735 = vmul.f32 %v6655, %v6721
        %v6736 = vmul.f32 %v6656, %v6722
        %v6737 = vmul.f32 %v6657, %v6722
        %v6738 = vmul.f32 %v6658, %v6723
        %v6739 = vmul.f32 %v6659, %v6723
        %v6741 = vlaneseq
        %v6742 = vshrl.u32 %v6741, 7
        %v6743 = vsub.s32 0, %v6742
        %v6744 = vrot.slane %v6576, %v6743
        %v6745 = vlaneseq
        %v6746 = vshrl.u32 %v6745, 7
        %v6747 = vsub.s32 1, %v6746
        %v6748 = vrot.slane %v6576, %v6747
        %v6751 = vmul.f32 %v6724, %v6744
        %v6752 = vmul.f32 %v6725, %v6748
        %v6753 = vmul.f32 %v6726, %v6744
        %v6754 = vmul.f32 %v6727, %v6748
        %v6755 = vmul.f32 %v6728, %v6744
        %v6756 = vmul.f32 %v6729, %v6748
        %v6757 = vmul.f32 %v6730, %v6744
        %v6758 = vmul.f32 %v6731, %v6748
        %v6759 = vmul.f32 %v6732, %v6744
        %v6760 = vmul.f32 %v6733, %v6748
        %v6761 = vmul.f32 %v6734, %v6744
        %v6762 = vmul.f32 %v6735, %v6748
        %v6763 = vmul.f32 %v6736, %v6744
        %v6764 = vmul.f32 %v6737, %v6748
        %v6765 = vmul.f32 %v6738, %v6744
        %v6766 = vmul.f32 %v6739, %v6748
        %v6768 = vlaneseq
        %v6769 = vshrl.u32 %v6768, 7
        %v6770 = vsub.s32 0, %v6769
        %v6771 = vrot.slane %v6577, %v6770
        %v6772 = vlaneseq
        %v6773 = vshrl.u32 %v6772, 7
        %v6774 = vsub.s32 1, %v6773
        %v6775 = vrot.slane %v6577, %v6774
        %v6778 = vadd.f32 %v6751, %v6771
        %v6779 = vadd.f32 %v6752, %v6775
        %v6780 = vadd.f32 %v6753, %v6771
        %v6781 = vadd.f32 %v6754, %v6775
        %v6782 = vadd.f32 %v6755, %v6771
        %v6783 = vadd.f32 %v6756, %v6775
        %v6784 = vadd.f32 %v6757, %v6771
        %v6785 = vadd.f32 %v6758, %v6775
        %v6786 = vadd.f32 %v6759, %v6771
        %v6787 = vadd.f32 %v6760, %v6775
        %v6788 = vadd.f32 %v6761, %v6771
        %v6789 = vadd.f32 %v6762, %v6775
        %v6790 = vadd.f32 %v6763, %v6771
        %v6791 = vadd.f32 %v6764, %v6775
        %v6792 = vadd.f32 %v6765, %v6771
        %v6793 = vadd.f32 %v6766, %v6775
        %v6794 = vpack.c.bf16 %v6780, %v6778
        %v6795 = vpack.c.bf16 %v6781, %v6779
        %v6796 = vpack.c.bf16 %v6784, %v6782
        %v6797 = vpack.c.bf16 %v6785, %v6783
        %v6798 = vpack.c.bf16 %v6788, %v6786
        %v6799 = vpack.c.bf16 %v6789, %v6787
        %v6800 = vpack.c.bf16 %v6792, %v6790
        %v6801 = vpack.c.bf16 %v6793, %v6791
        %v6803 = vlaneseq
        %v6804 = vshrl.u32 %v6803, 7
        %v6805 = vsub.s32 0, %v6804
        %v6806 = vrot.slane %v6610, %v6805
        %v6840 = vunpack.c.l.b16 %v6578
        %v6841 = vunpack.c.l.b16 %v6579
        %v6842 = vunpack.c.l.b16 %v6580
        %v6843 = vunpack.c.l.b16 %v6581
        %v6844 = vunpack.c.l.b16 %v6582
        %v6845 = vunpack.c.l.b16 %v6583
        %v6846 = vunpack.c.l.b16 %v6584
        %v6847 = vunpack.c.l.b16 %v6585
        %v6848 = vunpack.c.l.b16 %v6586
        %v6849 = vunpack.c.l.b16 %v6587
        %v6850 = vunpack.c.l.b16 %v6588
        %v6851 = vunpack.c.l.b16 %v6589
        %v6852 = vunpack.c.l.b16 %v6590
        %v6853 = vunpack.c.l.b16 %v6591
        %v6854 = vunpack.c.l.b16 %v6592
        %v6855 = vunpack.c.l.b16 %v6593
        %v6856 = vunpack.c.l.b16 %v6594
        %v6857 = vunpack.c.l.b16 %v6595
        %v6858 = vunpack.c.l.b16 %v6596
        %v6859 = vunpack.c.l.b16 %v6597
        %v6860 = vunpack.c.l.b16 %v6598
        %v6861 = vunpack.c.l.b16 %v6599
        %v6862 = vunpack.c.l.b16 %v6600
        %v6863 = vunpack.c.l.b16 %v6601
        %v6864 = vunpack.c.l.b16 %v6602
        %v6865 = vunpack.c.l.b16 %v6603
        %v6866 = vunpack.c.l.b16 %v6604
        %v6867 = vunpack.c.l.b16 %v6605
        %v6868 = vunpack.c.l.b16 %v6606
        %v6869 = vunpack.c.l.b16 %v6607
        %v6870 = vunpack.c.l.b16 %v6608
        %v6871 = vunpack.c.l.b16 %v6609
        %v6872 = vpack.c.b16 %v6841, %v6840
        %v6873 = vpack.c.b16 %v6843, %v6842
        %v6874 = vpack.c.b16 %v6845, %v6844
        %v6875 = vpack.c.b16 %v6847, %v6846
        %v6876 = vpack.c.b16 %v6849, %v6848
        %v6877 = vpack.c.b16 %v6851, %v6850
        %v6878 = vpack.c.b16 %v6853, %v6852
        %v6879 = vpack.c.b16 %v6855, %v6854
        %v6880 = vpack.c.b16 %v6857, %v6856
        %v6881 = vpack.c.b16 %v6859, %v6858
        %v6882 = vpack.c.b16 %v6861, %v6860
        %v6883 = vpack.c.b16 %v6863, %v6862
        %v6884 = vpack.c.b16 %v6865, %v6864
        %v6885 = vpack.c.b16 %v6867, %v6866
        %v6886 = vpack.c.b16 %v6869, %v6868
        %v6887 = vpack.c.b16 %v6871, %v6870
        %6904 = vmatprep.subr.bf16.mxu0 0
        %6905 = vmatpush1.bf16.msra.mxu0 %v6872
        %6906 = vmatprep.subr.bf16.mxu0 0
        %6907 = vmatpush1.bf16.msra.mxu0 %v6873
        %6908 = vmatprep.subr.bf16.mxu0 0
        %6909 = vmatpush1.bf16.msra.mxu0 %v6874
        %6910 = vmatprep.subr.bf16.mxu0 0
        %6911 = vmatpush1.bf16.msra.mxu0 %v6875
        %6912 = vmatprep.subr.bf16.mxu0 0
        %6913 = vmatpush1.bf16.msra.mxu0 %v6876
        %6914 = vmatprep.subr.bf16.mxu0 0
        %6915 = vmatpush1.bf16.msra.mxu0 %v6877
        %6916 = vmatprep.subr.bf16.mxu0 0
        %6917 = vmatpush1.bf16.msra.mxu0 %v6878
        %6918 = vmatprep.subr.bf16.mxu0 0
        %6919 = vmatpush1.bf16.msra.mxu0 %v6879
        %6920 = vmatprep.subr.bf16.mxu0 0
        %6921 = vmatpush1.bf16.msra.mxu0 %v6880
        %6922 = vmatprep.subr.bf16.mxu0 0
        %6923 = vmatpush1.bf16.msra.mxu0 %v6881
        %6924 = vmatprep.subr.bf16.mxu0 0
        %6925 = vmatpush1.bf16.msra.mxu0 %v6882
        %6926 = vmatprep.subr.bf16.mxu0 0
        %6927 = vmatpush1.bf16.msra.mxu0 %v6883
        %6928 = vmatprep.subr.bf16.mxu0 0
        %6929 = vmatpush1.bf16.msra.mxu0 %v6884
        %6930 = vmatprep.subr.bf16.mxu0 0
        %6931 = vmatpush1.bf16.msra.mxu0 %v6885
        %6932 = vmatprep.subr.bf16.mxu0 0
        %6933 = vmatpush1.bf16.msra.mxu0 %v6886
        %6934 = vmatprep.subr.bf16.mxu0 0
        %6935 = vmatpush1.bf16.msra.mxu0 %v6887
        %6936 = vmatprep.mubr.bf16.mxu0 %v6795
        %6937 = vmatmul.mubr.bf16.gmra.mrb[0].mxu0 %v6794
        %v6938 = vpop.f32.mrb[0].mxu0
        %v6939 = vadd.f32 %v6806, %v6938
        %v6940 = vpop.f32.mrb[0].mxu0
        %v6941 = vpop.f32.mrb[0].mxu0
        %v6942 = vadd.f32 %v6806, %v6941
        %v6943 = vpop.f32.mrb[0].mxu0
        %6944 = vmatprep.mubr.bf16.mxu0 %v6797
        %6945 = vmatmul.mubr.bf16.gmra.mrb[0].mxu0 %v6796
        %v6946 = vpop.f32.mrb[0].mxu0
        %v6947 = vadd.f32 %v6806, %v6946
        %v6948 = vpop.f32.mrb[0].mxu0
        %v6949 = vpop.f32.mrb[0].mxu0
        %v6950 = vadd.f32 %v6806, %v6949
        %v6951 = vpop.f32.mrb[0].mxu0
        %6952 = vmatprep.mubr.bf16.mxu0 %v6799
        %6953 = vmatmul.mubr.bf16.gmra.mrb[0].mxu0 %v6798
        %v6954 = vpop.f32.mrb[0].mxu0
        %v6955 = vadd.f32 %v6806, %v6954
        %v6956 = vpop.f32.mrb[0].mxu0
        %v6957 = vpop.f32.mrb[0].mxu0
        %v6958 = vadd.f32 %v6806, %v6957
        %v6959 = vpop.f32.mrb[0].mxu0
        %6960 = vmatprep.mubr.bf16.mxu0 %v6801
        %6961 = vmatmul.mubr.bf16.gmra.mrb[0].mxu0 %v6800
        %v6962 = vpop.f32.mrb[0].mxu0
        %v6963 = vadd.f32 %v6806, %v6962
        %v6964 = vpop.f32.mrb[0].mxu0
        %v6965 = vpop.f32.mrb[0].mxu0
        %v6966 = vadd.f32 %v6806, %v6965
        %v6967 = vpop.f32.mrb[0].mxu0
        %6968 = vdwg.mxu0
        %6969 = vst [vmem:[%s8] sm:$0xff] %v6939
        %6970 = vst [vmem:[%s8 + $0x8] sm:$0xff] %v6942
        %6971 = vst [vmem:[%s8 + $0x10] sm:$0xff] %v6947
        %6972 = vst [vmem:[%s8 + $0x18] sm:$0xff] %v6950
        %6973 = vst [vmem:[%s8 + $0x20] sm:$0xff] %v6955
        %6974 = vst [vmem:[%s8 + $0x28] sm:$0xff] %v6958
        %6975 = vst [vmem:[%s8 + $0x30] sm:$0xff] %v6963
        %6976 = vst [vmem:[%s8 + $0x38] sm:$0xff] %v6966
      $region60: #{no_encoder_model_forward.1} parent=51 // pred_fallthru
        _
      // Predicated region
      $region61: #{no_encoder_model_forward.1} parent=51 // pred_check
        %p6977 = pneg %p215
      $region62: #{no_encoder_model_forward.1} parent=51 // pred_check_branch
        %6979 = sbr.rel (%p6977) target = $region64
      $region63: #{no_encoder_model_forward.1} parent=51 // pred_region
        _
      $region64: #{no_encoder_model_forward.1} parent=51 // pred_fallthru
        _
      // Predicated region
      $region65: #{no_encoder_model_forward.1} parent=51 // pred_check
        %p6980 = pneg %p215
      $region66: #{no_encoder_model_forward.1} parent=51 // pred_check_branch
        %6982 = sbr.rel (%p6980) target = $region68
      $region67: #{no_encoder_model_forward.1} parent=51 // pred_region
        _
      $region68: #{no_encoder_model_forward.1} parent=51 // pred_fallthru
        _
    $region52: #{no_encoder_model_forward.1} parent=5 // pred_fallthru
      _
    %p6983 = scmp.le.s32.totalorder 2, %s14
    // Predicated region
    $region69: #{no_encoder_model_forward.1} parent=5 // pred_check
      %p6984 = pneg %p6983
    $region70: #{no_encoder_model_forward.1} parent=5 // pred_check_branch
      %6986 = sbr.rel (%p6984) target = $region72
    $region71: #{no_encoder_model_forward.1} parent=5 // pred_region
      %s6987 = ssub.s32 %s14, 2
    $region72: #{no_encoder_model_forward.1} parent=5 // pred_fallthru
      _
  $region6: #{no_encoder_model_forward.1} parent=0 // loop_footer
    %s18 = sadd.s32 1, %s14
  $region7: #{no_encoder_model_forward.1} parent=0 // loop_footer_branch
    %13 = sbr.rel target = $region3
  $region8: #{no_encoder_model_forward.1} parent=0 // loop_exit
    _

</llo_original>
